<compile_context>
chip_gen: v6e
topology: v6e:2x2x1
jax: 0.10.0
libtpu: 0.0.40
codegen_flags: <defaults>
</compile_context>

<pallas_src>
import functools

import jax
import jax.numpy as jnp
from jax.experimental import pallas as pl
from jax.experimental.pallas import tpu as pltpu


# ----------------------------- fused Pallas kernel --------------------------


def _pixelcnn_fused_kernel(x_ref, s_ref, w_band_ref, w_s_ref, w_out_ref,
                           b_mid_ref, b_out_ref, o_ref, act_ref, *,
                           n_blocks, do_skip):
    """All PixelCNN blocks fused; activation stays resident in VMEM.

    x_ref      : (TP, W*C)       input rows, width folded into lanes
    s_ref      : (TP, W*Cs)      conditioning rows
    w_band_ref : (L, W*C, W*C)   banded ShiftedConv weights (causal shift baked in)
    w_s_ref    : (L, W*Cs, W*C)  block-diagonal 1x1 s_conv weights
    w_out_ref  : (L, W*C, W*C)   block-diagonal 1x1 grouped out_conv weights
    b_mid_ref  : (L, 1, W*C)     folded b_in + b_s
    b_out_ref  : (L, 1, W*C)
    o_ref      : (TP, W*C)       output rows (lane-dense store)
    act_ref    : (TP, W*C) f32   VMEM scratch holding the running activation
    """
    act_ref[...] = x_ref[...].astype(jnp.float32)
    for l in range(n_blocks):
        x_l = act_ref[...]
        s_l = s_ref[...].astype(jnp.float32)
        # ShiftedConv (causal, dilated, grouped) == banded matmul.
        feat = jnp.dot(x_l, w_band_ref[l], preferred_element_type=jnp.float32)
        # 1x1 s_conv == block-diagonal matmul; biases pre-folded.
        feat = feat + jnp.dot(s_l, w_s_ref[l],
                              preferred_element_type=jnp.float32)
        feat = feat + b_mid_ref[l]
        feat = jnp.maximum(feat, 0.0)  # ReLU (gated=False path)
        # TODO(synk): gated activation (tanh(x[:,0::2]) * sigmoid(x[:,1::2])) not implemented.
        out = jnp.dot(feat, w_out_ref[l], preferred_element_type=jnp.float32)
        out = out + b_out_ref[l]
        if do_skip[l]:
            out = out + x_l
        act_ref[...] = out
    o_ref[...] = act_ref[...].astype(o_ref.dtype)


def _pick_tile_p(n_rows, max_tile=256):
    """Largest multiple of 8 that divides n_rows, capped (VMEM-safe on v7x)."""
    assert n_rows % 8 == 0, n_rows
    best, t, cap = 8, 8, min(n_rows, max_tile)
    while t <= cap:
        if n_rows % t == 0:
            best = t
        t += 8
    return best


def pixelcnn_layers_forward(x_nchw, s_nchw, packed, *, tile_p=None):
    """Fused forward. direction='x'/'none'; checkpointing is a fwd no-op."""
    # TODO(synk): direction='y'/'z' Rotate90 glue not implemented (only 'x'/'none').
    N, c0, H, W = x_nchw.shape
    cs = s_nchw.shape[1]
    C = packed["n_filters"]
    L = packed["w_band"].shape[0]
    assert packed["width"] == W, (packed["width"], W)
    P = N * H
    WC, WCs = W * C, W * cs

    # Channels-last, fold H into batch, fold W into the lane axis.
    x = jnp.transpose(x_nchw, (0, 2, 3, 1)).reshape(P, W, c0)
    if c0 < C:  # pad colour channels up to n_filters once (layer-0 weights are zero there)
        x = jnp.pad(x, ((0, 0), (0, 0), (0, C - c0)))
    x = x.reshape(P, WC)
    s = jnp.transpose(s_nchw, (0, 2, 3, 1)).reshape(P, WCs)

    if tile_p is None:
        tile_p = _pick_tile_p(P)
    assert P % tile_p == 0 and tile_p % 8 == 0

    kernel = functools.partial(_pixelcnn_fused_kernel, n_blocks=L,
                               do_skip=packed["do_skip"])

    def whole(shape):
        return pl.BlockSpec(shape, lambda i, _n=len(shape): (0,) * _n)

    out = pl.pallas_call(
        kernel,
        out_shape=jax.ShapeDtypeStruct((P, WC), x_nchw.dtype),
        grid_spec=pltpu.PrefetchScalarGridSpec(
            num_scalar_prefetch=0,
            grid=(P // tile_p,),
            in_specs=[
                pl.BlockSpec((tile_p, WC), lambda i: (i, 0)),
                pl.BlockSpec((tile_p, WCs), lambda i: (i, 0)),
                whole(packed["w_band"].shape),
                whole(packed["w_s"].shape),
                whole(packed["w_out"].shape),
                whole(packed["b_mid"].shape),
                whole(packed["b_out"].shape),
            ],
            out_specs=pl.BlockSpec((tile_p, WC), lambda i: (i, 0)),
            scratch_shapes=[pltpu.VMEM((tile_p, WC), jnp.float32)],
        ),
        compiler_params=pltpu.CompilerParams(
            dimension_semantics=("parallel",),  # v7x: both TCs take row tiles
            vmem_limit_bytes=32 * 1024 * 1024),
    )(x, s, packed["w_band"], packed["w_s"], packed["w_out"],
      packed["b_mid"], packed["b_out"])

    return jnp.transpose(out.reshape(N, H, W, C), (0, 3, 1, 2))


# --------------------------- parameter set-up / packing ---------------------


def _grouped_mask(cin, cout, groups):
    """Block-diagonal mask reproducing grouped-conv connectivity."""
    cin_g, cout_g = cin // groups, cout // groups
    ci = jnp.arange(cin)[:, None] // cin_g
    co = jnp.arange(cout)[None, :] // cout_g
    return (ci == co).astype(jnp.float32)


def init_block_params(key, cin, cout, cs, kernel_size, dilation, groups,
                      first):
    cmid = cout  # gated=False -> mid_channels == out_channels
    k1, k2, k3, k4, k5, k6 = jax.random.split(key, 6)
    scale = 0.2
    # ShiftedConv weights: (K, Cin, Cmid), grouped -> block-diagonal.
    w_in = jax.random.normal(k1, (kernel_size, cin, cmid), jnp.float32) * scale
    w_in = w_in * _grouped_mask(cin, cmid, groups)[None]
    if first:
        w_in = w_in.at[-1].set(0.0)  # ShiftedConv kernel_mask: zero centre tap
    b_in = jax.random.normal(k2, (1, cmid), jnp.float32) * scale
    w_s = jax.random.normal(k3, (cs, cmid), jnp.float32) * scale
    b_s = jax.random.normal(k4, (1, cmid), jnp.float32) * scale
    w_out = jax.random.normal(k5, (cmid, cout), jnp.float32) * scale
    w_out = w_out * _grouped_mask(cmid, cout, groups)
    b_out = jax.random.normal(k6, (1, cout), jnp.float32) * scale
    do_skip = (cout == cin) and (not first)
    return dict(w_in=w_in, b_in=b_in, w_s=w_s, b_s=b_s, w_out=w_out,
                b_out=b_out, kernel_size=kernel_size, dilation=dilation,
                do_skip=do_skip)


def init_pixelcnn_layers(key, colour_channels, s_code_channels, kernel_size,
                         n_filters, n_layers):
    middle_layer = n_layers // 2 + n_layers % 2
    groups = colour_channels
    blocks = []
    keys = jax.random.split(key, 2 * n_layers)
    for i in range(n_layers):
        c_in = colour_channels if i == 0 else n_filters
        first = i == 0
        dilation = 2 ** i if i < middle_layer else 2 ** (n_layers - i - 1)
        blocks.append(init_block_params(keys[2 * i], c_in, n_filters,
                                        s_code_channels, kernel_size,
                                        dilation, groups, first))
        blocks.append(init_block_params(keys[2 * i + 1], n_filters, n_filters,
                                        s_code_channels, kernel_size, 1,
                                        groups, False))
    return blocks


def pack_pixelcnn_params(blocks, *, n_filters, width):
    """One-time weight packing for the fused lane-dense kernel.

    Folds the causal/dilated/grouped ShiftedConv into a block-banded
    (W*C, W*C) matrix and the 1x1 convs into block-diagonal matrices, so the
    kernel is pure dense matmuls.  Done once and amortised over every forward.
    """
    C, W = n_filters, width
    w_band, w_s, w_out, b_mid, b_out, skips = [], [], [], [], [], []
    for p in blocks:
        K, d = p["kernel_size"], p["dilation"]
        w_in = p["w_in"]  # (K, cin, C)
        cin = w_in.shape[1]
        if cin < C:  # layer 0: pad input channels up to n_filters with zeros
            w_in = jnp.concatenate(
                [w_in, jnp.zeros((K, C - cin, C), w_in.dtype)], axis=1)
        band = jnp.zeros((W * C, W * C), jnp.float32)
        for k in range(K):  # causal shift (incl. zero left-pad) baked into band
            off = (K - 1 - k) * d
            band = band + jnp.kron(jnp.eye(W, W, k=off, dtype=jnp.float32),
                                   w_in[k])
        w_band.append(band)
        w_s.append(jnp.kron(jnp.eye(W, dtype=jnp.float32), p["w_s"]))
        w_out.append(jnp.kron(jnp.eye(W, dtype=jnp.float32), p["w_out"]))
        b_mid.append(jnp.tile(p["b_in"] + p["b_s"], (1, W)))  # fold b_in+b_s
        b_out.append(jnp.tile(p["b_out"], (1, W)))
        skips.append(bool(p["do_skip"]))
    # TODO(synk): for large W*C, switch back to a tap-based kernel (the banded
    # form trades ~(W/K)x redundant MACs for full MXU lane utilisation; a net
    # win only while W*C stays O(hundreds)).
    return dict(w_band=jnp.stack(w_band), w_s=jnp.stack(w_s),
                w_out=jnp.stack(w_out), b_mid=jnp.stack(b_mid),
                b_out=jnp.stack(b_out), do_skip=tuple(skips),
                n_filters=C, width=W)


# --------------------------- pure-JAX reference -----------------------------


def _block_ref(x, s, p):
    K = p["kernel_size"]
    d = p["dilation"]
    W = x.shape[1]
    shift = d * (K - 1)
    xp = jnp.pad(x, ((0, 0), (shift, 0), (0, 0)))
    feat = jnp.einsum("pwc,cd->pwd", s, p["w_s"]) + p["b_s"]
    for k in range(K):
        feat = feat + jnp.einsum("pwc,cd->pwd", xp[:, k * d:k * d + W],
                                 p["w_in"][k])
    feat = feat + p["b_in"]
    feat = jnp.maximum(feat, 0.0)
    out = jnp.einsum("pwc,cd->pwd", feat, p["w_out"]) + p["b_out"]
    if p["do_skip"]:
        out = out + x
    return out


def pixelcnn_layers_ref(x_nchw, s_nchw, blocks):
    N, C, H, W = x_nchw.shape
    Cs = s_nchw.shape[1]
    x = jnp.transpose(x_nchw, (0, 2, 3, 1)).reshape(N * H, W, C)
    s = jnp.transpose(s_nchw, (0, 2, 3, 1)).reshape(N * H, W, Cs)
    for p in blocks:
        x = _block_ref(x, s, p)
    cout = x.shape[-1]
    return jnp.transpose(x.reshape(N, H, W, cout), (0, 3, 1, 2))


# --------------------------------- main --------------------------------------


if __name__ == "__main__":
    key = jax.random.PRNGKey(0)
    kp, kx, ks = jax.random.split(key, 3)

    colour_channels, s_code_channels = 2, 6
    kernel_size, n_filters, n_layers = 3, 8, 3
    N, H, W = 2, 256, 16  # P = N*H = 512 rows -> 2 grid steps of tile_p = 256

    blocks = init_pixelcnn_layers(kp, colour_channels, s_code_channels,
                                  kernel_size, n_filters, n_layers)
    packed = pack_pixelcnn_params(blocks, n_filters=n_filters, width=W)

    x = jax.random.normal(kx, (N, colour_channels, H, W), jnp.float32)
    s_code = jax.random.normal(ks, (N, s_code_channels, H, W), jnp.float32)

    out = jax.block_until_ready(pixelcnn_layers_forward(x, s_code, packed))
    ref = jax.block_until_ready(pixelcnn_layers_ref(x, s_code, blocks))

    assert out.shape == (N, n_filters, H, W), out.shape
    max_err = float(jnp.max(jnp.abs(out - ref)))
    assert jnp.allclose(out, ref, atol=1e-3, rtol=1e-3), max_err
    print("KERNEL_OK")
</pallas_src>

<mosaic_0001>
module attributes {stable_mosaic.version = 11 : i64} {
  func.func @_pixelcnn_fused_kernel(%arg0: i32, %arg1: memref<256x128xf32, #tpu.memory_space<vmem>>, %arg2: memref<256x96xf32, #tpu.memory_space<vmem>>, %arg3: memref<6x128x128xf32, #tpu.memory_space<vmem>>, %arg4: memref<6x96x128xf32, #tpu.memory_space<vmem>>, %arg5: memref<6x128x128xf32, #tpu.memory_space<vmem>>, %arg6: memref<6x1x128xf32, #tpu.memory_space<vmem>>, %arg7: memref<6x1x128xf32, #tpu.memory_space<vmem>>, %arg8: memref<256x128xf32, #tpu.memory_space<vmem>>, %arg9: memref<256x128xf32, #tpu.memory_space<vmem>>) attributes {dimension_semantics = [#tpu.dimension_semantics<parallel>], iteration_bounds = array<i64: 2>, scalar_prefetch = 0 : i64, scratch_operands = 1 : i64, tpu.core_type = #tpu.core_type<tc>, window_params = [{transform_indices = @transform_0, window_bounds = array<i64: 256, 128>}, {transform_indices = @transform_1, window_bounds = array<i64: 256, 96>}, {pipeline_mode = #tpu.pipeline_mode<synchronous>, transform_indices = @transform_2, window_bounds = array<i64: 6, 128, 128>}, {pipeline_mode = #tpu.pipeline_mode<synchronous>, transform_indices = @transform_3, window_bounds = array<i64: 6, 96, 128>}, {pipeline_mode = #tpu.pipeline_mode<synchronous>, transform_indices = @transform_4, window_bounds = array<i64: 6, 128, 128>}, {pipeline_mode = #tpu.pipeline_mode<synchronous>, transform_indices = @transform_5, window_bounds = array<i64: 6, 1, 128>}, {pipeline_mode = #tpu.pipeline_mode<synchronous>, transform_indices = @transform_6, window_bounds = array<i64: 6, 1, 128>}, {transform_indices = @transform_7, window_bounds = array<i64: 256, 128>}]} {
    %c0 = arith.constant 0 : index
    %c0_0 = arith.constant 0 : index
    %0 = vector.load %arg1[%c0, %c0_0] : memref<256x128xf32, #tpu.memory_space<vmem>>, vector<256x128xf32>
    %c0_1 = arith.constant 0 : index
    %c0_2 = arith.constant 0 : index
    %1 = vector.load %arg9[%c0_1, %c0_2] : memref<256x128xf32, #tpu.memory_space<vmem>>, vector<256x128xf32>
    tpu.vector_store %arg9[%c0_1, %c0_2], %0 {strides = array<i32>} : memref<256x128xf32, #tpu.memory_space<vmem>>, vector<256x128xf32>,
    %c0_3 = arith.constant 0 : index
    %c0_4 = arith.constant 0 : index
    %2 = vector.load %arg9[%c0_3, %c0_4] : memref<256x128xf32, #tpu.memory_space<vmem>>, vector<256x128xf32>
    %c0_5 = arith.constant 0 : index
    %c0_6 = arith.constant 0 : index
    %3 = vector.load %arg2[%c0_5, %c0_6] : memref<256x96xf32, #tpu.memory_space<vmem>>, vector<256x96xf32>
    %c0_7 = arith.constant 0 : index
    %c0_8 = arith.constant 0 : index
    %c0_9 = arith.constant 0 : index
    %4 = vector.load %arg3[%c0_7, %c0_8, %c0_9] : memref<6x128x128xf32, #tpu.memory_space<vmem>>, vector<1x128x128xf32>
    %5 = vector.shape_cast %4 : vector<1x128x128xf32> to vector<128x128xf32>
    %cst = arith.constant dense<0.000000e+00> : vector<256x128xf32>
    %6 = tpu.matmul %2, %5, %cst {dimension_numbers = #tpu.dot_dimension_numbers<[1], [0], [0], [1], [0, 0, 1, 1], [], []>} : vector<256x128xf32>, vector<128x128xf32>, vector<256x128xf32> -> vector<256x128xf32>
    %c0_10 = arith.constant 0 : index
    %c0_11 = arith.constant 0 : index
    %c0_12 = arith.constant 0 : index
    %7 = vector.load %arg4[%c0_10, %c0_11, %c0_12] : memref<6x96x128xf32, #tpu.memory_space<vmem>>, vector<1x96x128xf32>
    %8 = vector.shape_cast %7 : vector<1x96x128xf32> to vector<96x128xf32>
    %cst_13 = arith.constant dense<0.000000e+00> : vector<256x128xf32>
    %9 = tpu.matmul %3, %8, %cst_13 {dimension_numbers = #tpu.dot_dimension_numbers<[1], [0], [0], [1], [0, 0, 1, 1], [], []>} : vector<256x96xf32>, vector<96x128xf32>, vector<256x128xf32> -> vector<256x128xf32>
    %10 = arith.addf %6, %9 : vector<256x128xf32>
    %c0_14 = arith.constant 0 : index
    %c0_15 = arith.constant 0 : index
    %c0_16 = arith.constant 0 : index
    %11 = vector.load %arg6[%c0_14, %c0_15, %c0_16] : memref<6x1x128xf32, #tpu.memory_space<vmem>>, vector<1x1x128xf32>
    %12 = vector.shape_cast %11 : vector<1x1x128xf32> to vector<1x128xf32>
    %13 = vector.broadcast %12 : vector<1x128xf32> to vector<256x128xf32>
    %14 = arith.addf %10, %13 : vector<256x128xf32>
    %cst_17 = arith.constant 0.000000e+00 : f32
    %15 = vector.broadcast %cst_17 : f32 to vector<256x128xf32>
    %16 = arith.maximumf %14, %15 : vector<256x128xf32>
    %c0_18 = arith.constant 0 : index
    %c0_19 = arith.constant 0 : index
    %c0_20 = arith.constant 0 : index
    %17 = vector.load %arg5[%c0_18, %c0_19, %c0_20] : memref<6x128x128xf32, #tpu.memory_space<vmem>>, vector<1x128x128xf32>
    %18 = vector.shape_cast %17 : vector<1x128x128xf32> to vector<128x128xf32>
    %cst_21 = arith.constant dense<0.000000e+00> : vector<256x128xf32>
    %19 = tpu.matmul %16, %18, %cst_21 {dimension_numbers = #tpu.dot_dimension_numbers<[1], [0], [0], [1], [0, 0, 1, 1], [], []>} : vector<256x128xf32>, vector<128x128xf32>, vector<256x128xf32> -> vector<256x128xf32>
    %c0_22 = arith.constant 0 : index
    %c0_23 = arith.constant 0 : index
    %c0_24 = arith.constant 0 : index
    %20 = vector.load %arg7[%c0_22, %c0_23, %c0_24] : memref<6x1x128xf32, #tpu.memory_space<vmem>>, vector<1x1x128xf32>
    %21 = vector.shape_cast %20 : vector<1x1x128xf32> to vector<1x128xf32>
    %22 = vector.broadcast %21 : vector<1x128xf32> to vector<256x128xf32>
    %23 = arith.addf %19, %22 : vector<256x128xf32>
    %c0_25 = arith.constant 0 : index
    %c0_26 = arith.constant 0 : index
    %24 = vector.load %arg9[%c0_25, %c0_26] : memref<256x128xf32, #tpu.memory_space<vmem>>, vector<256x128xf32>
    tpu.vector_store %arg9[%c0_25, %c0_26], %23 {strides = array<i32>} : memref<256x128xf32, #tpu.memory_space<vmem>>, vector<256x128xf32>,
    %c0_27 = arith.constant 0 : index
    %c0_28 = arith.constant 0 : index
    %25 = vector.load %arg9[%c0_27, %c0_28] : memref<256x128xf32, #tpu.memory_space<vmem>>, vector<256x128xf32>
    %c0_29 = arith.constant 0 : index
    %c0_30 = arith.constant 0 : index
    %26 = vector.load %arg2[%c0_29, %c0_30] : memref<256x96xf32, #tpu.memory_space<vmem>>, vector<256x96xf32>
    %c1 = arith.constant 1 : index
    %c0_31 = arith.constant 0 : index
    %c0_32 = arith.constant 0 : index
    %27 = vector.load %arg3[%c1, %c0_31, %c0_32] : memref<6x128x128xf32, #tpu.memory_space<vmem>>, vector<1x128x128xf32>
    %28 = vector.shape_cast %27 : vector<1x128x128xf32> to vector<128x128xf32>
    %cst_33 = arith.constant dense<0.000000e+00> : vector<256x128xf32>
    %29 = tpu.matmul %25, %28, %cst_33 {dimension_numbers = #tpu.dot_dimension_numbers<[1], [0], [0], [1], [0, 0, 1, 1], [], []>} : vector<256x128xf32>, vector<128x128xf32>, vector<256x128xf32> -> vector<256x128xf32>
    %c1_34 = arith.constant 1 : index
    %c0_35 = arith.constant 0 : index
    %c0_36 = arith.constant 0 : index
    %30 = vector.load %arg4[%c1_34, %c0_35, %c0_36] : memref<6x96x128xf32, #tpu.memory_space<vmem>>, vector<1x96x128xf32>
    %31 = vector.shape_cast %30 : vector<1x96x128xf32> to vector<96x128xf32>
    %cst_37 = arith.constant dense<0.000000e+00> : vector<256x128xf32>
    %32 = tpu.matmul %26, %31, %cst_37 {dimension_numbers = #tpu.dot_dimension_numbers<[1], [0], [0], [1], [0, 0, 1, 1], [], []>} : vector<256x96xf32>, vector<96x128xf32>, vector<256x128xf32> -> vector<256x128xf32>
    %33 = arith.addf %29, %32 : vector<256x128xf32>
    %c1_38 = arith.constant 1 : index
    %c0_39 = arith.constant 0 : index
    %c0_40 = arith.constant 0 : index
    %34 = vector.load %arg6[%c1_38, %c0_39, %c0_40] : memref<6x1x128xf32, #tpu.memory_space<vmem>>, vector<1x1x128xf32>
    %35 = vector.shape_cast %34 : vector<1x1x128xf32> to vector<1x128xf32>
    %36 = vector.broadcast %35 : vector<1x128xf32> to vector<256x128xf32>
    %37 = arith.addf %33, %36 : vector<256x128xf32>
    %cst_41 = arith.constant 0.000000e+00 : f32
    %38 = vector.broadcast %cst_41 : f32 to vector<256x128xf32>
    %39 = arith.maximumf %37, %38 : vector<256x128xf32>
    %c1_42 = arith.constant 1 : index
    %c0_43 = arith.constant 0 : index
    %c0_44 = arith.constant 0 : index
    %40 = vector.load %arg5[%c1_42, %c0_43, %c0_44] : memref<6x128x128xf32, #tpu.memory_space<vmem>>, vector<1x128x128xf32>
    %41 = vector.shape_cast %40 : vector<1x128x128xf32> to vector<128x128xf32>
    %cst_45 = arith.constant dense<0.000000e+00> : vector<256x128xf32>
    %42 = tpu.matmul %39, %41, %cst_45 {dimension_numbers = #tpu.dot_dimension_numbers<[1], [0], [0], [1], [0, 0, 1, 1], [], []>} : vector<256x128xf32>, vector<128x128xf32>, vector<256x128xf32> -> vector<256x128xf32>
    %c1_46 = arith.constant 1 : index
    %c0_47 = arith.constant 0 : index
    %c0_48 = arith.constant 0 : index
    %43 = vector.load %arg7[%c1_46, %c0_47, %c0_48] : memref<6x1x128xf32, #tpu.memory_space<vmem>>, vector<1x1x128xf32>
    %44 = vector.shape_cast %43 : vector<1x1x128xf32> to vector<1x128xf32>
    %45 = vector.broadcast %44 : vector<1x128xf32> to vector<256x128xf32>
    %46 = arith.addf %42, %45 : vector<256x128xf32>
    %47 = arith.addf %46, %25 : vector<256x128xf32>
    %c0_49 = arith.constant 0 : index
    %c0_50 = arith.constant 0 : index
    %48 = vector.load %arg9[%c0_49, %c0_50] : memref<256x128xf32, #tpu.memory_space<vmem>>, vector<256x128xf32>
    tpu.vector_store %arg9[%c0_49, %c0_50], %47 {strides = array<i32>} : memref<256x128xf32, #tpu.memory_space<vmem>>, vector<256x128xf32>,
    %c0_51 = arith.constant 0 : index
    %c0_52 = arith.constant 0 : index
    %49 = vector.load %arg9[%c0_51, %c0_52] : memref<256x128xf32, #tpu.memory_space<vmem>>, vector<256x128xf32>
    %c0_53 = arith.constant 0 : index
    %c0_54 = arith.constant 0 : index
    %50 = vector.load %arg2[%c0_53, %c0_54] : memref<256x96xf32, #tpu.memory_space<vmem>>, vector<256x96xf32>
    %c2 = arith.constant 2 : index
    %c0_55 = arith.constant 0 : index
    %c0_56 = arith.constant 0 : index
    %51 = vector.load %arg3[%c2, %c0_55, %c0_56] : memref<6x128x128xf32, #tpu.memory_space<vmem>>, vector<1x128x128xf32>
    %52 = vector.shape_cast %51 : vector<1x128x128xf32> to vector<128x128xf32>
    %cst_57 = arith.constant dense<0.000000e+00> : vector<256x128xf32>
    %53 = tpu.matmul %49, %52, %cst_57 {dimension_numbers = #tpu.dot_dimension_numbers<[1], [0], [0], [1], [0, 0, 1, 1], [], []>} : vector<256x128xf32>, vector<128x128xf32>, vector<256x128xf32> -> vector<256x128xf32>
    %c2_58 = arith.constant 2 : index
    %c0_59 = arith.constant 0 : index
    %c0_60 = arith.constant 0 : index
    %54 = vector.load %arg4[%c2_58, %c0_59, %c0_60] : memref<6x96x128xf32, #tpu.memory_space<vmem>>, vector<1x96x128xf32>
    %55 = vector.shape_cast %54 : vector<1x96x128xf32> to vector<96x128xf32>
    %cst_61 = arith.constant dense<0.000000e+00> : vector<256x128xf32>
    %56 = tpu.matmul %50, %55, %cst_61 {dimension_numbers = #tpu.dot_dimension_numbers<[1], [0], [0], [1], [0, 0, 1, 1], [], []>} : vector<256x96xf32>, vector<96x128xf32>, vector<256x128xf32> -> vector<256x128xf32>
    %57 = arith.addf %53, %56 : vector<256x128xf32>
    %c2_62 = arith.constant 2 : index
    %c0_63 = arith.constant 0 : index
    %c0_64 = arith.constant 0 : index
    %58 = vector.load %arg6[%c2_62, %c0_63, %c0_64] : memref<6x1x128xf32, #tpu.memory_space<vmem>>, vector<1x1x128xf32>
    %59 = vector.shape_cast %58 : vector<1x1x128xf32> to vector<1x128xf32>
    %60 = vector.broadcast %59 : vector<1x128xf32> to vector<256x128xf32>
    %61 = arith.addf %57, %60 : vector<256x128xf32>
    %cst_65 = arith.constant 0.000000e+00 : f32
    %62 = vector.broadcast %cst_65 : f32 to vector<256x128xf32>
    %63 = arith.maximumf %61, %62 : vector<256x128xf32>
    %c2_66 = arith.constant 2 : index
    %c0_67 = arith.constant 0 : index
    %c0_68 = arith.constant 0 : index
    %64 = vector.load %arg5[%c2_66, %c0_67, %c0_68] : memref<6x128x128xf32, #tpu.memory_space<vmem>>, vector<1x128x128xf32>
    %65 = vector.shape_cast %64 : vector<1x128x128xf32> to vector<128x128xf32>
    %cst_69 = arith.constant dense<0.000000e+00> : vector<256x128xf32>
    %66 = tpu.matmul %63, %65, %cst_69 {dimension_numbers = #tpu.dot_dimension_numbers<[1], [0], [0], [1], [0, 0, 1, 1], [], []>} : vector<256x128xf32>, vector<128x128xf32>, vector<256x128xf32> -> vector<256x128xf32>
    %c2_70 = arith.constant 2 : index
    %c0_71 = arith.constant 0 : index
    %c0_72 = arith.constant 0 : index
    %67 = vector.load %arg7[%c2_70, %c0_71, %c0_72] : memref<6x1x128xf32, #tpu.memory_space<vmem>>, vector<1x1x128xf32>
    %68 = vector.shape_cast %67 : vector<1x1x128xf32> to vector<1x128xf32>
    %69 = vector.broadcast %68 : vector<1x128xf32> to vector<256x128xf32>
    %70 = arith.addf %66, %69 : vector<256x128xf32>
    %71 = arith.addf %70, %49 : vector<256x128xf32>
    %c0_73 = arith.constant 0 : index
    %c0_74 = arith.constant 0 : index
    %72 = vector.load %arg9[%c0_73, %c0_74] : memref<256x128xf32, #tpu.memory_space<vmem>>, vector<256x128xf32>
    tpu.vector_store %arg9[%c0_73, %c0_74], %71 {strides = array<i32>} : memref<256x128xf32, #tpu.memory_space<vmem>>, vector<256x128xf32>,
    %c0_75 = arith.constant 0 : index
    %c0_76 = arith.constant 0 : index
    %73 = vector.load %arg9[%c0_75, %c0_76] : memref<256x128xf32, #tpu.memory_space<vmem>>, vector<256x128xf32>
    %c0_77 = arith.constant 0 : index
    %c0_78 = arith.constant 0 : index
    %74 = vector.load %arg2[%c0_77, %c0_78] : memref<256x96xf32, #tpu.memory_space<vmem>>, vector<256x96xf32>
    %c3 = arith.constant 3 : index
    %c0_79 = arith.constant 0 : index
    %c0_80 = arith.constant 0 : index
    %75 = vector.load %arg3[%c3, %c0_79, %c0_80] : memref<6x128x128xf32, #tpu.memory_space<vmem>>, vector<1x128x128xf32>
    %76 = vector.shape_cast %75 : vector<1x128x128xf32> to vector<128x128xf32>
    %cst_81 = arith.constant dense<0.000000e+00> : vector<256x128xf32>
    %77 = tpu.matmul %73, %76, %cst_81 {dimension_numbers = #tpu.dot_dimension_numbers<[1], [0], [0], [1], [0, 0, 1, 1], [], []>} : vector<256x128xf32>, vector<128x128xf32>, vector<256x128xf32> -> vector<256x128xf32>
    %c3_82 = arith.constant 3 : index
    %c0_83 = arith.constant 0 : index
    %c0_84 = arith.constant 0 : index
    %78 = vector.load %arg4[%c3_82, %c0_83, %c0_84] : memref<6x96x128xf32, #tpu.memory_space<vmem>>, vector<1x96x128xf32>
    %79 = vector.shape_cast %78 : vector<1x96x128xf32> to vector<96x128xf32>
    %cst_85 = arith.constant dense<0.000000e+00> : vector<256x128xf32>
    %80 = tpu.matmul %74, %79, %cst_85 {dimension_numbers = #tpu.dot_dimension_numbers<[1], [0], [0], [1], [0, 0, 1, 1], [], []>} : vector<256x96xf32>, vector<96x128xf32>, vector<256x128xf32> -> vector<256x128xf32>
    %81 = arith.addf %77, %80 : vector<256x128xf32>
    %c3_86 = arith.constant 3 : index
    %c0_87 = arith.constant 0 : index
    %c0_88 = arith.constant 0 : index
    %82 = vector.load %arg6[%c3_86, %c0_87, %c0_88] : memref<6x1x128xf32, #tpu.memory_space<vmem>>, vector<1x1x128xf32>
    %83 = vector.shape_cast %82 : vector<1x1x128xf32> to vector<1x128xf32>
    %84 = vector.broadcast %83 : vector<1x128xf32> to vector<256x128xf32>
    %85 = arith.addf %81, %84 : vector<256x128xf32>
    %cst_89 = arith.constant 0.000000e+00 : f32
    %86 = vector.broadcast %cst_89 : f32 to vector<256x128xf32>
    %87 = arith.maximumf %85, %86 : vector<256x128xf32>
    %c3_90 = arith.constant 3 : index
    %c0_91 = arith.constant 0 : index
    %c0_92 = arith.constant 0 : index
    %88 = vector.load %arg5[%c3_90, %c0_91, %c0_92] : memref<6x128x128xf32, #tpu.memory_space<vmem>>, vector<1x128x128xf32>
    %89 = vector.shape_cast %88 : vector<1x128x128xf32> to vector<128x128xf32>
    %cst_93 = arith.constant dense<0.000000e+00> : vector<256x128xf32>
    %90 = tpu.matmul %87, %89, %cst_93 {dimension_numbers = #tpu.dot_dimension_numbers<[1], [0], [0], [1], [0, 0, 1, 1], [], []>} : vector<256x128xf32>, vector<128x128xf32>, vector<256x128xf32> -> vector<256x128xf32>
    %c3_94 = arith.constant 3 : index
    %c0_95 = arith.constant 0 : index
    %c0_96 = arith.constant 0 : index
    %91 = vector.load %arg7[%c3_94, %c0_95, %c0_96] : memref<6x1x128xf32, #tpu.memory_space<vmem>>, vector<1x1x128xf32>
    %92 = vector.shape_cast %91 : vector<1x1x128xf32> to vector<1x128xf32>
    %93 = vector.broadcast %92 : vector<1x128xf32> to vector<256x128xf32>
    %94 = arith.addf %90, %93 : vector<256x128xf32>
    %95 = arith.addf %94, %73 : vector<256x128xf32>
    %c0_97 = arith.constant 0 : index
    %c0_98 = arith.constant 0 : index
    %96 = vector.load %arg9[%c0_97, %c0_98] : memref<256x128xf32, #tpu.memory_space<vmem>>, vector<256x128xf32>
    tpu.vector_store %arg9[%c0_97, %c0_98], %95 {strides = array<i32>} : memref<256x128xf32, #tpu.memory_space<vmem>>, vector<256x128xf32>,
    %c0_99 = arith.constant 0 : index
    %c0_100 = arith.constant 0 : index
    %97 = vector.load %arg9[%c0_99, %c0_100] : memref<256x128xf32, #tpu.memory_space<vmem>>, vector<256x128xf32>
    %c0_101 = arith.constant 0 : index
    %c0_102 = arith.constant 0 : index
    %98 = vector.load %arg2[%c0_101, %c0_102] : memref<256x96xf32, #tpu.memory_space<vmem>>, vector<256x96xf32>
    %c4 = arith.constant 4 : index
    %c0_103 = arith.constant 0 : index
    %c0_104 = arith.constant 0 : index
    %99 = vector.load %arg3[%c4, %c0_103, %c0_104] : memref<6x128x128xf32, #tpu.memory_space<vmem>>, vector<1x128x128xf32>
    %100 = vector.shape_cast %99 : vector<1x128x128xf32> to vector<128x128xf32>
    %cst_105 = arith.constant dense<0.000000e+00> : vector<256x128xf32>
    %101 = tpu.matmul %97, %100, %cst_105 {dimension_numbers = #tpu.dot_dimension_numbers<[1], [0], [0], [1], [0, 0, 1, 1], [], []>} : vector<256x128xf32>, vector<128x128xf32>, vector<256x128xf32> -> vector<256x128xf32>
    %c4_106 = arith.constant 4 : index
    %c0_107 = arith.constant 0 : index
    %c0_108 = arith.constant 0 : index
    %102 = vector.load %arg4[%c4_106, %c0_107, %c0_108] : memref<6x96x128xf32, #tpu.memory_space<vmem>>, vector<1x96x128xf32>
    %103 = vector.shape_cast %102 : vector<1x96x128xf32> to vector<96x128xf32>
    %cst_109 = arith.constant dense<0.000000e+00> : vector<256x128xf32>
    %104 = tpu.matmul %98, %103, %cst_109 {dimension_numbers = #tpu.dot_dimension_numbers<[1], [0], [0], [1], [0, 0, 1, 1], [], []>} : vector<256x96xf32>, vector<96x128xf32>, vector<256x128xf32> -> vector<256x128xf32>
    %105 = arith.addf %101, %104 : vector<256x128xf32>
    %c4_110 = arith.constant 4 : index
    %c0_111 = arith.constant 0 : index
    %c0_112 = arith.constant 0 : index
    %106 = vector.load %arg6[%c4_110, %c0_111, %c0_112] : memref<6x1x128xf32, #tpu.memory_space<vmem>>, vector<1x1x128xf32>
    %107 = vector.shape_cast %106 : vector<1x1x128xf32> to vector<1x128xf32>
    %108 = vector.broadcast %107 : vector<1x128xf32> to vector<256x128xf32>
    %109 = arith.addf %105, %108 : vector<256x128xf32>
    %cst_113 = arith.constant 0.000000e+00 : f32
    %110 = vector.broadcast %cst_113 : f32 to vector<256x128xf32>
    %111 = arith.maximumf %109, %110 : vector<256x128xf32>
    %c4_114 = arith.constant 4 : index
    %c0_115 = arith.constant 0 : index
    %c0_116 = arith.constant 0 : index
    %112 = vector.load %arg5[%c4_114, %c0_115, %c0_116] : memref<6x128x128xf32, #tpu.memory_space<vmem>>, vector<1x128x128xf32>
    %113 = vector.shape_cast %112 : vector<1x128x128xf32> to vector<128x128xf32>
    %cst_117 = arith.constant dense<0.000000e+00> : vector<256x128xf32>
    %114 = tpu.matmul %111, %113, %cst_117 {dimension_numbers = #tpu.dot_dimension_numbers<[1], [0], [0], [1], [0, 0, 1, 1], [], []>} : vector<256x128xf32>, vector<128x128xf32>, vector<256x128xf32> -> vector<256x128xf32>
    %c4_118 = arith.constant 4 : index
    %c0_119 = arith.constant 0 : index
    %c0_120 = arith.constant 0 : index
    %115 = vector.load %arg7[%c4_118, %c0_119, %c0_120] : memref<6x1x128xf32, #tpu.memory_space<vmem>>, vector<1x1x128xf32>
    %116 = vector.shape_cast %115 : vector<1x1x128xf32> to vector<1x128xf32>
    %117 = vector.broadcast %116 : vector<1x128xf32> to vector<256x128xf32>
    %118 = arith.addf %114, %117 : vector<256x128xf32>
    %119 = arith.addf %118, %97 : vector<256x128xf32>
    %c0_121 = arith.constant 0 : index
    %c0_122 = arith.constant 0 : index
    %120 = vector.load %arg9[%c0_121, %c0_122] : memref<256x128xf32, #tpu.memory_space<vmem>>, vector<256x128xf32>
    tpu.vector_store %arg9[%c0_121, %c0_122], %119 {strides = array<i32>} : memref<256x128xf32, #tpu.memory_space<vmem>>, vector<256x128xf32>,
    %c0_123 = arith.constant 0 : index
    %c0_124 = arith.constant 0 : index
    %121 = vector.load %arg9[%c0_123, %c0_124] : memref<256x128xf32, #tpu.memory_space<vmem>>, vector<256x128xf32>
    %c0_125 = arith.constant 0 : index
    %c0_126 = arith.constant 0 : index
    %122 = vector.load %arg2[%c0_125, %c0_126] : memref<256x96xf32, #tpu.memory_space<vmem>>, vector<256x96xf32>
    %c5 = arith.constant 5 : index
    %c0_127 = arith.constant 0 : index
    %c0_128 = arith.constant 0 : index
    %123 = vector.load %arg3[%c5, %c0_127, %c0_128] : memref<6x128x128xf32, #tpu.memory_space<vmem>>, vector<1x128x128xf32>
    %124 = vector.shape_cast %123 : vector<1x128x128xf32> to vector<128x128xf32>
    %cst_129 = arith.constant dense<0.000000e+00> : vector<256x128xf32>
    %125 = tpu.matmul %121, %124, %cst_129 {dimension_numbers = #tpu.dot_dimension_numbers<[1], [0], [0], [1], [0, 0, 1, 1], [], []>} : vector<256x128xf32>, vector<128x128xf32>, vector<256x128xf32> -> vector<256x128xf32>
    %c5_130 = arith.constant 5 : index
    %c0_131 = arith.constant 0 : index
    %c0_132 = arith.constant 0 : index
    %126 = vector.load %arg4[%c5_130, %c0_131, %c0_132] : memref<6x96x128xf32, #tpu.memory_space<vmem>>, vector<1x96x128xf32>
    %127 = vector.shape_cast %126 : vector<1x96x128xf32> to vector<96x128xf32>
    %cst_133 = arith.constant dense<0.000000e+00> : vector<256x128xf32>
    %128 = tpu.matmul %122, %127, %cst_133 {dimension_numbers = #tpu.dot_dimension_numbers<[1], [0], [0], [1], [0, 0, 1, 1], [], []>} : vector<256x96xf32>, vector<96x128xf32>, vector<256x128xf32> -> vector<256x128xf32>
    %129 = arith.addf %125, %128 : vector<256x128xf32>
    %c5_134 = arith.constant 5 : index
    %c0_135 = arith.constant 0 : index
    %c0_136 = arith.constant 0 : index
    %130 = vector.load %arg6[%c5_134, %c0_135, %c0_136] : memref<6x1x128xf32, #tpu.memory_space<vmem>>, vector<1x1x128xf32>
    %131 = vector.shape_cast %130 : vector<1x1x128xf32> to vector<1x128xf32>
    %132 = vector.broadcast %131 : vector<1x128xf32> to vector<256x128xf32>
    %133 = arith.addf %129, %132 : vector<256x128xf32>
    %cst_137 = arith.constant 0.000000e+00 : f32
    %134 = vector.broadcast %cst_137 : f32 to vector<256x128xf32>
    %135 = arith.maximumf %133, %134 : vector<256x128xf32>
    %c5_138 = arith.constant 5 : index
    %c0_139 = arith.constant 0 : index
    %c0_140 = arith.constant 0 : index
    %136 = vector.load %arg5[%c5_138, %c0_139, %c0_140] : memref<6x128x128xf32, #tpu.memory_space<vmem>>, vector<1x128x128xf32>
    %137 = vector.shape_cast %136 : vector<1x128x128xf32> to vector<128x128xf32>
    %cst_141 = arith.constant dense<0.000000e+00> : vector<256x128xf32>
    %138 = tpu.matmul %135, %137, %cst_141 {dimension_numbers = #tpu.dot_dimension_numbers<[1], [0], [0], [1], [0, 0, 1, 1], [], []>} : vector<256x128xf32>, vector<128x128xf32>, vector<256x128xf32> -> vector<256x128xf32>
    %c5_142 = arith.constant 5 : index
    %c0_143 = arith.constant 0 : index
    %c0_144 = arith.constant 0 : index
    %139 = vector.load %arg7[%c5_142, %c0_143, %c0_144] : memref<6x1x128xf32, #tpu.memory_space<vmem>>, vector<1x1x128xf32>
    %140 = vector.shape_cast %139 : vector<1x1x128xf32> to vector<1x128xf32>
    %141 = vector.broadcast %140 : vector<1x128xf32> to vector<256x128xf32>
    %142 = arith.addf %138, %141 : vector<256x128xf32>
    %143 = arith.addf %142, %121 : vector<256x128xf32>
    %c0_145 = arith.constant 0 : index
    %c0_146 = arith.constant 0 : index
    %144 = vector.load %arg9[%c0_145, %c0_146] : memref<256x128xf32, #tpu.memory_space<vmem>>, vector<256x128xf32>
    tpu.vector_store %arg9[%c0_145, %c0_146], %143 {strides = array<i32>} : memref<256x128xf32, #tpu.memory_space<vmem>>, vector<256x128xf32>,
    %c0_147 = arith.constant 0 : index
    %c0_148 = arith.constant 0 : index
    %145 = vector.load %arg9[%c0_147, %c0_148] : memref<256x128xf32, #tpu.memory_space<vmem>>, vector<256x128xf32>
    %c0_149 = arith.constant 0 : index
    %c0_150 = arith.constant 0 : index
    %146 = vector.load %arg8[%c0_149, %c0_150] : memref<256x128xf32, #tpu.memory_space<vmem>>, vector<256x128xf32>
    tpu.vector_store %arg8[%c0_149, %c0_150], %145 {strides = array<i32>} : memref<256x128xf32, #tpu.memory_space<vmem>>, vector<256x128xf32>,
    return
  }
  func.func @transform_0(%arg0: i32) -> (i32, i32) {
    %c0_i32 = arith.constant 0 : i32
    %c0_i32_0 = arith.constant 0 : i32
    return %arg0, %c0_i32 : i32, i32
  }
  func.func @transform_1(%arg0: i32) -> (i32, i32) {
    %c0_i32 = arith.constant 0 : i32
    %c0_i32_0 = arith.constant 0 : i32
    return %arg0, %c0_i32 : i32, i32
  }
  func.func @transform_2(%arg0: i32) -> (i32, i32, i32) {
    %c0_i32 = arith.constant 0 : i32
    %c0_i32_0 = arith.constant 0 : i32
    %c0_i32_1 = arith.constant 0 : i32
    %c0_i32_2 = arith.constant 0 : i32
    return %c0_i32, %c0_i32_0, %c0_i32_1 : i32, i32, i32
  }
  func.func @transform_3(%arg0: i32) -> (i32, i32, i32) {
    %c0_i32 = arith.constant 0 : i32
    %c0_i32_0 = arith.constant 0 : i32
    %c0_i32_1 = arith.constant 0 : i32
    %c0_i32_2 = arith.constant 0 : i32
    return %c0_i32, %c0_i32_0, %c0_i32_1 : i32, i32, i32
  }
  func.func @transform_4(%arg0: i32) -> (i32, i32, i32) {
    %c0_i32 = arith.constant 0 : i32
    %c0_i32_0 = arith.constant 0 : i32
    %c0_i32_1 = arith.constant 0 : i32
    %c0_i32_2 = arith.constant 0 : i32
    return %c0_i32, %c0_i32_0, %c0_i32_1 : i32, i32, i32
  }
  func.func @transform_5(%arg0: i32) -> (i32, i32, i32) {
    %c0_i32 = arith.constant 0 : i32
    %c0_i32_0 = arith.constant 0 : i32
    %c0_i32_1 = arith.constant 0 : i32
    %c0_i32_2 = arith.constant 0 : i32
    return %c0_i32, %c0_i32_0, %c0_i32_1 : i32, i32, i32
  }
  func.func @transform_6(%arg0: i32) -> (i32, i32, i32) {
    %c0_i32 = arith.constant 0 : i32
    %c0_i32_0 = arith.constant 0 : i32
    %c0_i32_1 = arith.constant 0 : i32
    %c0_i32_2 = arith.constant 0 : i32
    return %c0_i32, %c0_i32_0, %c0_i32_1 : i32, i32, i32
  }
  func.func @transform_7(%arg0: i32) -> (i32, i32) {
    %c0_i32 = arith.constant 0 : i32
    %c0_i32_0 = arith.constant 0 : i32
    return %arg0, %c0_i32 : i32, i32
  }
}

</mosaic_0001>

<llo_original>
// kernel: tpu_custom_call.1
$region0: #{tpu_custom_call.1}
  #allocation0 [shape = 'u32[]', space=smem, size = 0x4, offset = 0x4, fixed_abs, tag = 'smem constant byte address 0x4 - core index']
  #allocation1 [shape = 'u32[144,128]{1,0:T(1,128)}', space=vmem, size = 0x12000, scoped, tag = 'internal scratch']
  #allocation2 [shape = 'f32[256,128]{1,0:T(8,128)}', space=vmem, size = 0x20000, scoped, tag = 'scratch operand']
  %s0 = inlined_call_operand.hbm [shape: f32[512,128], index: 0, kind: input, shape index: {}]
  %s1 = inlined_call_operand.vmem [shape: f32[512,96], index: 1, kind: input, shape index: {}]
  %s2 = inlined_call_operand.vmem [shape: f32[6,128,128], index: 2, kind: input, shape index: {}]
  %s3 = inlined_call_operand.hbm [shape: f32[6,96,128], index: 3, kind: input, shape index: {}]
  %s4 = inlined_call_operand.hbm [shape: f32[6,128,128], index: 4, kind: input, shape index: {}]
  %s5 = inlined_call_operand.vmem [shape: f32[6,1,128], index: 5, kind: input, shape index: {}]
  %s6 = inlined_call_operand.vmem [shape: f32[6,1,128], index: 6, kind: input, shape index: {}]
  %s7 = inlined_call_operand.hbm [shape: f32[512,128], index: 7, kind: output, shape index: {}]
  %s8 = sld [smem:[#allocation0]]
  $region73: #{tpu_custom_call.1} parent=0
    _
  %s10 = ssub.s32 1, %s8
  %s11 = scalar_select 0, %s10, %s8
  $region1: #{tpu_custom_call.1} parent=0
    #allocation3 [shape = 'u8[262144]{0}', space=vmem, size = 0x40000, scoped, tag = 'input window, operand 0']
    #allocation4 [shape = 's32[2]{0}', space=sflag, size = 0x8, scoped, tag = 'scoped memory for tpu_custom_call.1']
    #allocation5 [shape = 's32[2]{0}', space=sflag, size = 0x8, scoped, tag = 'scoped memory for tpu_custom_call.1']
    #allocation6 [shape = 'u8[294912]{0}', space=vmem, size = 0x48000, scoped, tag = 'input window, operand 3, single buffered']
    #allocation7 [shape = 's32[1]{0}', space=sflag, size = 0x4, scoped, tag = 'scoped memory for tpu_custom_call.1']
    #allocation8 [shape = 'u8[393216]{0}', space=vmem, size = 0x60000, scoped, tag = 'input window, operand 4, single buffered']
    #allocation9 [shape = 'u8[262144]{0}', space=vmem, size = 0x40000, scoped, tag = 'output window, operand 0']
    %12 = vsyncpa [#allocation4], 0
    %s13 = scalar_lea.sflag [#allocation4], 1
    %14 = vsyncpa %s13, 0
    %15 = vsyncpa [#allocation7], 0
    %16 = vsyncpa [#allocation5], 0
    %s17 = scalar_lea.sflag [#allocation5], 1
    %18 = vsyncpa %s17, 0
    loop: start=0, step=1, limit=4
    $region2: #{tpu_custom_call.1} parent=1 // loop_pre_header
      _
    $region3: #{tpu_custom_call.1} parent=1 // loop_header
      %s20 = sphi 0, %s24
      %p21 = scmp.ge.s32.totalorder %s20, 4
      %s30 = sphi 0, %s32
      %s33 = sphi 0, %s30
      %s34 = sphi 0, %s33
      %s50 = sphi 0, %s34
      %s56 = sphi 0, %s58
      %s59 = sphi 0, %s56
      %s60 = sphi 0, %s59
      %s76 = sphi 0, %s60
      %s80 = sphi 0, %s80
      %s82 = sphi 0, %s80
      %s83 = sphi 0, %s82
      %s97 = sphi 0, %s83
      %s101 = sphi 0, %s101
      %s103 = sphi 0, %s101
      %s104 = sphi 0, %s103
      %s118 = sphi 0, %s104
      %s122 = sphi 0, %s122
      %s124 = sphi 0, %s122
      %s125 = sphi 0, %s124
      %s139 = sphi 0, %s125
      %s143 = sphi 0, %s143
      %s145 = sphi 0, %s143
      %s146 = sphi 0, %s145
      %s160 = sphi 0, %s146
      %s164 = sphi 0, %s164
      %s166 = sphi 0, %s164
      %s167 = sphi 0, %s166
      %s181 = sphi 0, %s167
      %s187 = sphi 0, %s189
      %s190 = sphi 0, %s187
      %s191 = sphi 0, %s190
      %s207 = sphi 0, %s191
    $region4: #{tpu_custom_call.1} parent=1 // loop_header_branch
      %23 = sbr.rel (%p21) target = $region8
    $region5: #{tpu_custom_call.1} parent=1 // loop_body
      %s25 = ssub.s32 %s20, 1
      %s26 = ssub.s32 %s20, 2
      %s27 = sadd.s32 %s20, 1
      %s28 = ssub.s32 %s20, %s27
      %p29 = scmp.eq.s32.totalorder %s28, 0
      %s31 = sadd.s32 %s30, 1
      %s32 = scalar_select %p29, %s30, %s31
      %p35 = pneg %p29
      %p36 = scmp.eq.s32.totalorder %s20, 1
      %p37 = por %p35, %p36
      %p38 = scmp.ne.s32.totalorder %s30, %s33
      %p39 = scmp.eq.s32.totalorder %s20, 0
      %p40 = por %p38, %p39
      %p41 = scmp.ne.s32.totalorder %s30, %s33
      %p42 = scmp.eq.s32.totalorder %s25, 1
      %p43 = por %p41, %p42
      %p44 = scmp.ne.s32.totalorder %s33, %s34
      %p45 = scmp.eq.s32.totalorder %s25, 0
      %p46 = por %p44, %p45
      %p47 = scmp.ne.s32.totalorder %s33, %s34
      %p48 = scmp.eq.s32.totalorder %s26, 1
      %p49 = por %p47, %p48
      %p51 = scmp.ne.s32.totalorder %s34, %s50
      %p52 = scmp.eq.s32.totalorder %s26, 0
      %p53 = por %p51, %p52
      %s54 = ssub.s32 %s20, %s27
      %p55 = scmp.eq.s32.totalorder %s54, 0
      %s57 = sadd.s32 %s56, 1
      %s58 = scalar_select %p55, %s56, %s57
      %p61 = pneg %p55
      %p62 = scmp.eq.s32.totalorder %s20, 1
      %p63 = por %p61, %p62
      %p64 = scmp.ne.s32.totalorder %s56, %s59
      %p65 = scmp.eq.s32.totalorder %s20, 0
      %p66 = por %p64, %p65
      %p67 = scmp.ne.s32.totalorder %s56, %s59
      %p68 = scmp.eq.s32.totalorder %s25, 1
      %p69 = por %p67, %p68
      %p70 = scmp.ne.s32.totalorder %s59, %s60
      %p71 = scmp.eq.s32.totalorder %s25, 0
      %p72 = por %p70, %p71
      %p73 = scmp.ne.s32.totalorder %s59, %s60
      %p74 = scmp.eq.s32.totalorder %s26, 1
      %p75 = por %p73, %p74
      %p77 = scmp.ne.s32.totalorder %s60, %s76
      %p78 = scmp.eq.s32.totalorder %s26, 0
      %p79 = por %p77, %p78
      %s81 = sadd.s32 %s80, 1
      %p84 = scmp.eq.s32.totalorder %s20, 1
      %p85 = scmp.ne.s32.totalorder %s80, %s82
      %p86 = scmp.eq.s32.totalorder %s20, 0
      %p87 = por %p85, %p86
      %p88 = scmp.ne.s32.totalorder %s80, %s82
      %p89 = scmp.eq.s32.totalorder %s25, 1
      %p90 = por %p88, %p89
      %p91 = scmp.ne.s32.totalorder %s82, %s83
      %p92 = scmp.eq.s32.totalorder %s25, 0
      %p93 = por %p91, %p92
      %p94 = scmp.ne.s32.totalorder %s82, %s83
      %p95 = scmp.eq.s32.totalorder %s26, 1
      %p96 = por %p94, %p95
      %p98 = scmp.ne.s32.totalorder %s83, %s97
      %p99 = scmp.eq.s32.totalorder %s26, 0
      %p100 = por %p98, %p99
      %s102 = sadd.s32 %s101, 1
      %p105 = scmp.eq.s32.totalorder %s20, 1
      %p106 = scmp.ne.s32.totalorder %s101, %s103
      %p107 = scmp.eq.s32.totalorder %s20, 0
      %p108 = por %p106, %p107
      %p109 = scmp.ne.s32.totalorder %s101, %s103
      %p110 = scmp.eq.s32.totalorder %s25, 1
      %p111 = por %p109, %p110
      %p112 = scmp.ne.s32.totalorder %s103, %s104
      %p113 = scmp.eq.s32.totalorder %s25, 0
      %p114 = por %p112, %p113
      %p115 = scmp.ne.s32.totalorder %s103, %s104
      %p116 = scmp.eq.s32.totalorder %s26, 1
      %p117 = por %p115, %p116
      %p119 = scmp.ne.s32.totalorder %s104, %s118
      %p120 = scmp.eq.s32.totalorder %s26, 0
      %p121 = por %p119, %p120
      %s123 = sadd.s32 %s122, 1
      %p126 = scmp.eq.s32.totalorder %s20, 1
      %p127 = scmp.ne.s32.totalorder %s122, %s124
      %p128 = scmp.eq.s32.totalorder %s20, 0
      %p129 = por %p127, %p128
      %p130 = scmp.ne.s32.totalorder %s122, %s124
      %p131 = scmp.eq.s32.totalorder %s25, 1
      %p132 = por %p130, %p131
      %p133 = scmp.ne.s32.totalorder %s124, %s125
      %p134 = scmp.eq.s32.totalorder %s25, 0
      %p135 = por %p133, %p134
      %p136 = scmp.ne.s32.totalorder %s124, %s125
      %p137 = scmp.eq.s32.totalorder %s26, 1
      %p138 = por %p136, %p137
      %p140 = scmp.ne.s32.totalorder %s125, %s139
      %p141 = scmp.eq.s32.totalorder %s26, 0
      %p142 = por %p140, %p141
      %s144 = sadd.s32 %s143, 1
      %p147 = scmp.eq.s32.totalorder %s20, 1
      %p148 = scmp.ne.s32.totalorder %s143, %s145
      %p149 = scmp.eq.s32.totalorder %s20, 0
      %p150 = por %p148, %p149
      %p151 = scmp.ne.s32.totalorder %s143, %s145
      %p152 = scmp.eq.s32.totalorder %s25, 1
      %p153 = por %p151, %p152
      %p154 = scmp.ne.s32.totalorder %s145, %s146
      %p155 = scmp.eq.s32.totalorder %s25, 0
      %p156 = por %p154, %p155
      %p157 = scmp.ne.s32.totalorder %s145, %s146
      %p158 = scmp.eq.s32.totalorder %s26, 1
      %p159 = por %p157, %p158
      %p161 = scmp.ne.s32.totalorder %s146, %s160
      %p162 = scmp.eq.s32.totalorder %s26, 0
      %p163 = por %p161, %p162
      %s165 = sadd.s32 %s164, 1
      %p168 = scmp.eq.s32.totalorder %s20, 1
      %p169 = scmp.ne.s32.totalorder %s164, %s166
      %p170 = scmp.eq.s32.totalorder %s20, 0
      %p171 = por %p169, %p170
      %p172 = scmp.ne.s32.totalorder %s164, %s166
      %p173 = scmp.eq.s32.totalorder %s25, 1
      %p174 = por %p172, %p173
      %p175 = scmp.ne.s32.totalorder %s166, %s167
      %p176 = scmp.eq.s32.totalorder %s25, 0
      %p177 = por %p175, %p176
      %p178 = scmp.ne.s32.totalorder %s166, %s167
      %p179 = scmp.eq.s32.totalorder %s26, 1
      %p180 = por %p178, %p179
      %p182 = scmp.ne.s32.totalorder %s167, %s181
      %p183 = scmp.eq.s32.totalorder %s26, 0
      %p184 = por %p182, %p183
      %s185 = ssub.s32 %s20, %s27
      %p186 = scmp.eq.s32.totalorder %s185, 0
      %s188 = sadd.s32 %s187, 1
      %s189 = scalar_select %p186, %s187, %s188
      %p192 = pneg %p186
      %p193 = scmp.eq.s32.totalorder %s20, 1
      %p194 = por %p192, %p193
      %p195 = scmp.ne.s32.totalorder %s187, %s190
      %p196 = scmp.eq.s32.totalorder %s20, 0
      %p197 = por %p195, %p196
      %p198 = scmp.ne.s32.totalorder %s187, %s190
      %p199 = scmp.eq.s32.totalorder %s25, 1
      %p200 = por %p198, %p199
      %p201 = scmp.ne.s32.totalorder %s190, %s191
      %p202 = scmp.eq.s32.totalorder %s25, 0
      %p203 = por %p201, %p202
      %p204 = scmp.ne.s32.totalorder %s190, %s191
      %p205 = scmp.eq.s32.totalorder %s26, 1
      %p206 = por %p204, %p205
      %p208 = scmp.ne.s32.totalorder %s191, %s207
      %p209 = scmp.eq.s32.totalorder %s26, 0
      %p210 = por %p208, %p209
      %p211 = scmp.le.s32.totalorder 1, %s20
      %p212 = scmp.lt.s32.totalorder %s20, 3
      %p213 = pnand %p211, %p212
      %p214 = pneg %p213
      // Predicated region
      $region9: #{tpu_custom_call.1} parent=5 // pred_check
        _
      $region10: #{tpu_custom_call.1} parent=5 // pred_check_branch
        %216 = sbr.rel (%p213) target = $region12
      $region11: #{tpu_custom_call.1} parent=5 // pred_region
        %s217 = ssub.s32 %s20, 1
        // Predicated region
        $region13: #{tpu_custom_call.1} parent=11 // pred_check
          %p218 = pneg %p93
        $region14: #{tpu_custom_call.1} parent=11 // pred_check_branch
          %220 = sbr.rel (%p218) target = $region16
        $region15: #{tpu_custom_call.1} parent=11 // pred_region
          _
        $region16: #{tpu_custom_call.1} parent=11 // pred_fallthru
          _
        // Predicated region
        $region17: #{tpu_custom_call.1} parent=11 // pred_check
          %p221 = pneg %p114
        $region18: #{tpu_custom_call.1} parent=11 // pred_check_branch
          %223 = sbr.rel (%p221) target = $region20
        $region19: #{tpu_custom_call.1} parent=11 // pred_region
          %s225 = ssub.s32 9216, 9216
          %226 = vsyncadd [#allocation7], %s225
          %s227 = sshll.u32 [#allocation6], 4
          %s228 = int_to_ptr.vmem [resolvable:$true] %s227
          %233 = dma.hbm_to_vmem [thread:$0]  %s3, 9216, %s228, [#allocation7], 128, 128, 8
        $region20: #{tpu_custom_call.1} parent=11 // pred_fallthru
          _
        // Predicated region
        $region21: #{tpu_custom_call.1} parent=11 // pred_check
          %p234 = pneg %p135
        $region22: #{tpu_custom_call.1} parent=11 // pred_check_branch
          %236 = sbr.rel (%p234) target = $region24
        $region23: #{tpu_custom_call.1} parent=11 // pred_region
          %s238 = ssub.s32 12288, 12288
          %239 = vsyncadd [#allocation7], %s238
          %s240 = sshll.u32 [#allocation8], 4
          %s241 = int_to_ptr.vmem [resolvable:$true] %s240
          %246 = dma.hbm_to_vmem [thread:$0]  %s4, 12288, %s241, [#allocation7], 128, 128, 8
        $region24: #{tpu_custom_call.1} parent=11 // pred_fallthru
          _
        // Predicated region
        $region25: #{tpu_custom_call.1} parent=11 // pred_check
          %p247 = pneg %p156
        $region26: #{tpu_custom_call.1} parent=11 // pred_check_branch
          %249 = sbr.rel (%p247) target = $region28
        $region27: #{tpu_custom_call.1} parent=11 // pred_region
          _
        $region28: #{tpu_custom_call.1} parent=11 // pred_fallthru
          _
        // Predicated region
        $region29: #{tpu_custom_call.1} parent=11 // pred_check
          %p250 = pneg %p177
        $region30: #{tpu_custom_call.1} parent=11 // pred_check_branch
          %252 = sbr.rel (%p250) target = $region32
        $region31: #{tpu_custom_call.1} parent=11 // pred_region
          _
        $region32: #{tpu_custom_call.1} parent=11 // pred_fallthru
          _
      $region12: #{tpu_custom_call.1} parent=5 // pred_fallthru
        _
      %p253 = scmp.lt.s32.totalorder %s20, 2
      // Predicated region
      $region33: #{tpu_custom_call.1} parent=5 // pred_check
        %p254 = pneg %p253
      $region34: #{tpu_custom_call.1} parent=5 // pred_check_branch
        %256 = sbr.rel (%p254) target = $region36
      $region35: #{tpu_custom_call.1} parent=5 // pred_region
        // Predicated region
        $region37: #{tpu_custom_call.1} parent=35 // pred_check
          %p257 = pneg %p40
        $region38: #{tpu_custom_call.1} parent=35 // pred_check_branch
          %259 = sbr.rel (%p257) target = $region40
        $region39: #{tpu_custom_call.1} parent=35 // pred_region
          %s260 = sand.u32 %s30, 1
          %s261 = scalar_lea.sflag [#allocation4], %s260
          %s262 = sand.u32 %s30, 1
          %s263 = smul.addr %s262, 256
          %s264 = scalar_lea.vmem [#allocation3], %s263
          %s265 = smul.u32 32, %s20
          %s267 = ssub.s32 4096, 4096
          %268 = vsyncadd %s261, %s267
          %s269 = smul.addr %s265, 128
          %s270 = scalar_lea.hbm %s0, %s269
          %s271 = sshll.u32 %s264, 4
          %s272 = int_to_ptr.vmem [resolvable:$true] %s271
          %277 = dma.hbm_to_vmem [thread:$0]  %s270, 4096, %s272, %s261, 128, 128, 8
        $region40: #{tpu_custom_call.1} parent=35 // pred_fallthru
          _
        // Predicated region
        $region41: #{tpu_custom_call.1} parent=35 // pred_check
          %p278 = pneg %p66
        $region42: #{tpu_custom_call.1} parent=35 // pred_check_branch
          %280 = sbr.rel (%p278) target = $region44
        $region43: #{tpu_custom_call.1} parent=35 // pred_region
          %s281 = smul.u32 32, %s20
          %p282 = scmp.lt.s32.totalorder %s281, 63
          %s283 = scalar_select %p282, %s281, 63
          %s284 = smul.addr %s283, 8
          %s285 = scalar_lea.vmem %s1, %s284
          %s286 = smul.u32 32, %s20
        $region44: #{tpu_custom_call.1} parent=35 // pred_fallthru
          _
      $region36: #{tpu_custom_call.1} parent=5 // pred_fallthru
        _
      %p287 = scmp.le.s32.totalorder 1, %s20
      %p288 = scmp.lt.s32.totalorder %s20, 3
      %p289 = pnand %p287, %p288
      %p290 = pneg %p289
      // Predicated region
      $region45: #{tpu_custom_call.1} parent=5 // pred_check
        _
      $region46: #{tpu_custom_call.1} parent=5 // pred_check_branch
        %292 = sbr.rel (%p289) target = $region48
      $region47: #{tpu_custom_call.1} parent=5 // pred_region
        %s293 = ssub.s32 %s20, 1
        %s294 = sand.u32 %s33, 1
        %s295 = scalar_lea.sflag [#allocation4], %s294
        %s296 = sand.u32 %s33, 1
        %s297 = smul.addr %s296, 256
        %s298 = scalar_lea.vmem [#allocation3], %s297
        // Predicated region
        $region49: #{tpu_custom_call.1} parent=47 // pred_check
          %p299 = pneg %p46
        $region50: #{tpu_custom_call.1} parent=47 // pred_check_branch
          %301 = sbr.rel (%p299) target = $region52
        $region51: #{tpu_custom_call.1} parent=47 // pred_region
          %302 = dma.done %s295, 4096
        $region52: #{tpu_custom_call.1} parent=47 // pred_fallthru
          _
        // Predicated region
        $region53: #{tpu_custom_call.1} parent=47 // pred_check
          %p303 = pneg %p114
        $region54: #{tpu_custom_call.1} parent=47 // pred_check_branch
          %305 = sbr.rel (%p303) target = $region56
        $region55: #{tpu_custom_call.1} parent=47 // pred_region
          %306 = dma.done [#allocation7], 9216
        $region56: #{tpu_custom_call.1} parent=47 // pred_fallthru
          _
        // Predicated region
        $region57: #{tpu_custom_call.1} parent=47 // pred_check
          %p307 = pneg %p135
        $region58: #{tpu_custom_call.1} parent=47 // pred_check_branch
          %309 = sbr.rel (%p307) target = $region60
        $region59: #{tpu_custom_call.1} parent=47 // pred_region
          %310 = dma.done [#allocation7], 12288
        $region60: #{tpu_custom_call.1} parent=47 // pred_fallthru
          _
        %s311 = sand.u32 %s33, 1
        %s312 = scalar_lea.sflag [#allocation4], %s311
        %s313 = sand.u32 %s33, 1
        %s314 = smul.addr %s313, 256
        %s315 = scalar_lea.vmem [#allocation3], %s314
        %p316 = pneg %p46
        %p317 = pneg %p43
        %s318 = smul.u32 32, %s25
        %p319 = scmp.lt.s32.totalorder %s318, 63
        %s320 = scalar_select %p319, %s318, 63
        %s321 = smul.addr %s320, 8
        %s322 = scalar_lea.vmem %s1, %s321
        %p323 = pneg %p72
        %p324 = pneg %p69
        %p325 = pneg %p93
        %p326 = pneg %p90
        %p327 = pneg %p114
        %p328 = pneg %p111
        %p329 = pneg %p135
        %p330 = pneg %p132
        %p331 = pneg %p156
        %p332 = pneg %p153
        %p333 = pneg %p177
        %p334 = pneg %p174
        %p335 = pneg %p203
        %p336 = pneg %p200
        %s337 = sand.u32 %s190, 1
        %s338 = scalar_lea.sflag [#allocation5], %s337
        %s339 = sand.u32 %s190, 1
        %s340 = smul.addr %s339, 256
        %s341 = scalar_lea.vmem [#allocation9], %s340
        %s342 = smul.u32 32, %s25
        %s343 = smul.u32 32, %s25
        %p344 = scmp.lt.s32.totalorder %s343, 63
        %s345 = scalar_select %p344, %s343, 63
        %s346 = smul.addr %s345, 8
        %s347 = scalar_lea.vmem %s1, %s346
        %s348 = smul.u32 32, %s25
        %s349 = smul.u32 32, %s25
        %v350 = vld [vmem:[%s298] sm:$0xff]
        %v351 = vld [vmem:[%s298 + $0x8] sm:$0xff]
        %v352 = vld [vmem:[%s298 + $0x10] sm:$0xff]
        %v353 = vld [vmem:[%s298 + $0x18] sm:$0xff]
        %v354 = vld [vmem:[%s298 + $0x20] sm:$0xff]
        %v355 = vld [vmem:[%s298 + $0x28] sm:$0xff]
        %v356 = vld [vmem:[%s298 + $0x30] sm:$0xff]
        %v357 = vld [vmem:[%s298 + $0x38] sm:$0xff]
        %v358 = vld [vmem:[%s298 + $0x40] sm:$0xff]
        %v359 = vld [vmem:[%s298 + $0x48] sm:$0xff]
        %v360 = vld [vmem:[%s298 + $0x50] sm:$0xff]
        %v361 = vld [vmem:[%s298 + $0x58] sm:$0xff]
        %v362 = vld [vmem:[%s298 + $0x60] sm:$0xff]
        %v363 = vld [vmem:[%s298 + $0x68] sm:$0xff]
        %v364 = vld [vmem:[%s298 + $0x70] sm:$0xff]
        %v365 = vld [vmem:[%s298 + $0x78] sm:$0xff]
        %v366 = vld [vmem:[%s298 + $0x80] sm:$0xff]
        %v367 = vld [vmem:[%s298 + $0x88] sm:$0xff]
        %v368 = vld [vmem:[%s298 + $0x90] sm:$0xff]
        %v369 = vld [vmem:[%s298 + $0x98] sm:$0xff]
        %v370 = vld [vmem:[%s298 + $0xa0] sm:$0xff]
        %v371 = vld [vmem:[%s298 + $0xa8] sm:$0xff]
        %v372 = vld [vmem:[%s298 + $0xb0] sm:$0xff]
        %v373 = vld [vmem:[%s298 + $0xb8] sm:$0xff]
        %v374 = vld [vmem:[%s298 + $0xc0] sm:$0xff]
        %v375 = vld [vmem:[%s298 + $0xc8] sm:$0xff]
        %v376 = vld [vmem:[%s298 + $0xd0] sm:$0xff]
        %v377 = vld [vmem:[%s298 + $0xd8] sm:$0xff]
        %v378 = vld [vmem:[%s298 + $0xe0] sm:$0xff]
        %v379 = vld [vmem:[%s298 + $0xe8] sm:$0xff]
        %v380 = vld [vmem:[%s298 + $0xf0] sm:$0xff]
        %v381 = vld [vmem:[%s298 + $0xf8] sm:$0xff]
        %382 = vst [vmem:[#allocation2] sm:$0xff] %v350
        %383 = vst [vmem:[#allocation2 + $0x8] sm:$0xff] %v351
        %384 = vst [vmem:[#allocation2 + $0x10] sm:$0xff] %v352
        %385 = vst [vmem:[#allocation2 + $0x18] sm:$0xff] %v353
        %386 = vst [vmem:[#allocation2 + $0x20] sm:$0xff] %v354
        %387 = vst [vmem:[#allocation2 + $0x28] sm:$0xff] %v355
        %388 = vst [vmem:[#allocation2 + $0x30] sm:$0xff] %v356
        %389 = vst [vmem:[#allocation2 + $0x38] sm:$0xff] %v357
        %390 = vst [vmem:[#allocation2 + $0x40] sm:$0xff] %v358
        %391 = vst [vmem:[#allocation2 + $0x48] sm:$0xff] %v359
        %392 = vst [vmem:[#allocation2 + $0x50] sm:$0xff] %v360
        %393 = vst [vmem:[#allocation2 + $0x58] sm:$0xff] %v361
        %394 = vst [vmem:[#allocation2 + $0x60] sm:$0xff] %v362
        %395 = vst [vmem:[#allocation2 + $0x68] sm:$0xff] %v363
        %396 = vst [vmem:[#allocation2 + $0x70] sm:$0xff] %v364
        %397 = vst [vmem:[#allocation2 + $0x78] sm:$0xff] %v365
        %398 = vst [vmem:[#allocation2 + $0x80] sm:$0xff] %v366
        %399 = vst [vmem:[#allocation2 + $0x88] sm:$0xff] %v367
        %400 = vst [vmem:[#allocation2 + $0x90] sm:$0xff] %v368
        %401 = vst [vmem:[#allocation2 + $0x98] sm:$0xff] %v369
        %402 = vst [vmem:[#allocation2 + $0xa0] sm:$0xff] %v370
        %403 = vst [vmem:[#allocation2 + $0xa8] sm:$0xff] %v371
        %404 = vst [vmem:[#allocation2 + $0xb0] sm:$0xff] %v372
        %405 = vst [vmem:[#allocation2 + $0xb8] sm:$0xff] %v373
        %406 = vst [vmem:[#allocation2 + $0xc0] sm:$0xff] %v374
        %407 = vst [vmem:[#allocation2 + $0xc8] sm:$0xff] %v375
        %408 = vst [vmem:[#allocation2 + $0xd0] sm:$0xff] %v376
        %409 = vst [vmem:[#allocation2 + $0xd8] sm:$0xff] %v377
        %410 = vst [vmem:[#allocation2 + $0xe0] sm:$0xff] %v378
        %411 = vst [vmem:[#allocation2 + $0xe8] sm:$0xff] %v379
        %412 = vst [vmem:[#allocation2 + $0xf0] sm:$0xff] %v380
        %413 = vst [vmem:[#allocation2 + $0xf8] sm:$0xff] %v381
        %v414 = vld [vmem:[#allocation2] sm:$0xff]
        %v415 = vld [vmem:[#allocation2 + $0x8] sm:$0xff]
        %v416 = vld [vmem:[#allocation2 + $0x10] sm:$0xff]
        %v417 = vld [vmem:[#allocation2 + $0x18] sm:$0xff]
        %v418 = vld [vmem:[#allocation2 + $0x20] sm:$0xff]
        %v419 = vld [vmem:[#allocation2 + $0x28] sm:$0xff]
        %v420 = vld [vmem:[#allocation2 + $0x30] sm:$0xff]
        %v421 = vld [vmem:[#allocation2 + $0x38] sm:$0xff]
        %v422 = vld [vmem:[#allocation2 + $0x40] sm:$0xff]
        %v423 = vld [vmem:[#allocation2 + $0x48] sm:$0xff]
        %v424 = vld [vmem:[#allocation2 + $0x50] sm:$0xff]
        %v425 = vld [vmem:[#allocation2 + $0x58] sm:$0xff]
        %v426 = vld [vmem:[#allocation2 + $0x60] sm:$0xff]
        %v427 = vld [vmem:[#allocation2 + $0x68] sm:$0xff]
        %v428 = vld [vmem:[#allocation2 + $0x70] sm:$0xff]
        %v429 = vld [vmem:[#allocation2 + $0x78] sm:$0xff]
        %v430 = vld [vmem:[#allocation2 + $0x80] sm:$0xff]
        %v431 = vld [vmem:[#allocation2 + $0x88] sm:$0xff]
        %v432 = vld [vmem:[#allocation2 + $0x90] sm:$0xff]
        %v433 = vld [vmem:[#allocation2 + $0x98] sm:$0xff]
        %v434 = vld [vmem:[#allocation2 + $0xa0] sm:$0xff]
        %v435 = vld [vmem:[#allocation2 + $0xa8] sm:$0xff]
        %v436 = vld [vmem:[#allocation2 + $0xb0] sm:$0xff]
        %v437 = vld [vmem:[#allocation2 + $0xb8] sm:$0xff]
        %v438 = vld [vmem:[#allocation2 + $0xc0] sm:$0xff]
        %v439 = vld [vmem:[#allocation2 + $0xc8] sm:$0xff]
        %v440 = vld [vmem:[#allocation2 + $0xd0] sm:$0xff]
        %v441 = vld [vmem:[#allocation2 + $0xd8] sm:$0xff]
        %v442 = vld [vmem:[#allocation2 + $0xe0] sm:$0xff]
        %v443 = vld [vmem:[#allocation2 + $0xe8] sm:$0xff]
        %v444 = vld [vmem:[#allocation2 + $0xf0] sm:$0xff]
        %v445 = vld [vmem:[#allocation2 + $0xf8] sm:$0xff]
        %v446 = vld [vmem:[%s347] sm:$0xff]
        %v447 = vld [vmem:[%s347 + $0x8] sm:$0xff]
        %v448 = vld [vmem:[%s347 + $0x10] sm:$0xff]
        %v449 = vld [vmem:[%s347 + $0x18] sm:$0xff]
        %v450 = vld [vmem:[%s347 + $0x20] sm:$0xff]
        %v451 = vld [vmem:[%s347 + $0x28] sm:$0xff]
        %v452 = vld [vmem:[%s347 + $0x30] sm:$0xff]
        %v453 = vld [vmem:[%s347 + $0x38] sm:$0xff]
        %v454 = vld [vmem:[%s347 + $0x40] sm:$0xff]
        %v455 = vld [vmem:[%s347 + $0x48] sm:$0xff]
        %v456 = vld [vmem:[%s347 + $0x50] sm:$0xff]
        %v457 = vld [vmem:[%s347 + $0x58] sm:$0xff]
        %v458 = vld [vmem:[%s347 + $0x60] sm:$0xff]
        %v459 = vld [vmem:[%s347 + $0x68] sm:$0xff]
        %v460 = vld [vmem:[%s347 + $0x70] sm:$0xff]
        %v461 = vld [vmem:[%s347 + $0x78] sm:$0xff]
        %v462 = vld [vmem:[%s347 + $0x80] sm:$0xff]
        %v463 = vld [vmem:[%s347 + $0x88] sm:$0xff]
        %v464 = vld [vmem:[%s347 + $0x90] sm:$0xff]
        %v465 = vld [vmem:[%s347 + $0x98] sm:$0xff]
        %v466 = vld [vmem:[%s347 + $0xa0] sm:$0xff]
        %v467 = vld [vmem:[%s347 + $0xa8] sm:$0xff]
        %v468 = vld [vmem:[%s347 + $0xb0] sm:$0xff]
        %v469 = vld [vmem:[%s347 + $0xb8] sm:$0xff]
        %v470 = vld [vmem:[%s347 + $0xc0] sm:$0xff]
        %v471 = vld [vmem:[%s347 + $0xc8] sm:$0xff]
        %v472 = vld [vmem:[%s347 + $0xd0] sm:$0xff]
        %v473 = vld [vmem:[%s347 + $0xd8] sm:$0xff]
        %v474 = vld [vmem:[%s347 + $0xe0] sm:$0xff]
        %v475 = vld [vmem:[%s347 + $0xe8] sm:$0xff]
        %v476 = vld [vmem:[%s347 + $0xf0] sm:$0xff]
        %v477 = vld [vmem:[%s347 + $0xf8] sm:$0xff]
        %v478 = vld [vmem:[%s2] sm:$0xff]
        %v479 = vld [vmem:[%s2 + $0x8] sm:$0xff]
        %v480 = vld [vmem:[%s2 + $0x10] sm:$0xff]
        %v481 = vld [vmem:[%s2 + $0x18] sm:$0xff]
        %v482 = vld [vmem:[%s2 + $0x20] sm:$0xff]
        %v483 = vld [vmem:[%s2 + $0x28] sm:$0xff]
        %v484 = vld [vmem:[%s2 + $0x30] sm:$0xff]
        %v485 = vld [vmem:[%s2 + $0x38] sm:$0xff]
        %v486 = vld [vmem:[%s2 + $0x40] sm:$0xff]
        %v487 = vld [vmem:[%s2 + $0x48] sm:$0xff]
        %v488 = vld [vmem:[%s2 + $0x50] sm:$0xff]
        %v489 = vld [vmem:[%s2 + $0x58] sm:$0xff]
        %v490 = vld [vmem:[%s2 + $0x60] sm:$0xff]
        %v491 = vld [vmem:[%s2 + $0x68] sm:$0xff]
        %v492 = vld [vmem:[%s2 + $0x70] sm:$0xff]
        %v493 = vld [vmem:[%s2 + $0x78] sm:$0xff]
        %v494 = vld [vmem:[#allocation6] sm:$0xff]
        %v495 = vld [vmem:[#allocation6 + $0x8] sm:$0xff]
        %v496 = vld [vmem:[#allocation6 + $0x10] sm:$0xff]
        %v497 = vld [vmem:[#allocation6 + $0x18] sm:$0xff]
        %v498 = vld [vmem:[#allocation6 + $0x20] sm:$0xff]
        %v499 = vld [vmem:[#allocation6 + $0x28] sm:$0xff]
        %v500 = vld [vmem:[#allocation6 + $0x30] sm:$0xff]
        %v501 = vld [vmem:[#allocation6 + $0x38] sm:$0xff]
        %v502 = vld [vmem:[#allocation6 + $0x40] sm:$0xff]
        %v503 = vld [vmem:[#allocation6 + $0x48] sm:$0xff]
        %v504 = vld [vmem:[#allocation6 + $0x50] sm:$0xff]
        %v505 = vld [vmem:[#allocation6 + $0x58] sm:$0xff]
        %vm506 = vcmask 785408
        %v508 = vsel %vm506, %v446, 0
        %v511 = vsel %vm506, %v447, 0
        %v514 = vsel %vm506, %v448, 0
        %v517 = vsel %vm506, %v449, 0
        %v520 = vsel %vm506, %v450, 0
        %v523 = vsel %vm506, %v451, 0
        %v526 = vsel %vm506, %v452, 0
        %v529 = vsel %vm506, %v453, 0
        %v532 = vsel %vm506, %v454, 0
        %v535 = vsel %vm506, %v455, 0
        %v538 = vsel %vm506, %v456, 0
        %v541 = vsel %vm506, %v457, 0
        %v544 = vsel %vm506, %v458, 0
        %v547 = vsel %vm506, %v459, 0
        %v550 = vsel %vm506, %v460, 0
        %v553 = vsel %vm506, %v461, 0
        %v556 = vsel %vm506, %v462, 0
        %v559 = vsel %vm506, %v463, 0
        %v562 = vsel %vm506, %v464, 0
        %v565 = vsel %vm506, %v465, 0
        %v568 = vsel %vm506, %v466, 0
        %v571 = vsel %vm506, %v467, 0
        %v574 = vsel %vm506, %v468, 0
        %v577 = vsel %vm506, %v469, 0
        %v580 = vsel %vm506, %v470, 0
        %v583 = vsel %vm506, %v471, 0
        %v586 = vsel %vm506, %v472, 0
        %v589 = vsel %vm506, %v473, 0
        %v592 = vsel %vm506, %v474, 0
        %v595 = vsel %vm506, %v475, 0
        %v598 = vsel %vm506, %v476, 0
        %v601 = vsel %vm506, %v477, 0
        %603 = vmatprep.subr.mxu0 0.0
        %604 = vmatpush1.msra.mxu0 0.0
        %605 = vmatprep.subr.mxu0 0.0
        %606 = vmatpush1.msra.mxu0 0.0
        %607 = vmatprep.subr.mxu0 0.0
        %608 = vmatpush1.msra.mxu0 0.0
        %609 = vmatprep.subr.mxu0 0.0
        %610 = vmatpush1.msra.mxu0 0.0
        %611 = vmatprep.subr.mxu0 0.0
        %612 = vmatpush1.msra.mxu0 %v505
        %613 = vmatprep.subr.mxu0 0.0
        %614 = vmatpush1.msra.mxu0 %v504
        %615 = vmatprep.subr.mxu0 0.0
        %616 = vmatpush1.msra.mxu0 %v503
        %617 = vmatprep.subr.mxu0 0.0
        %618 = vmatpush1.msra.mxu0 %v502
        %619 = vmatprep.subr.mxu0 0.0
        %620 = vmatpush1.msra.mxu0 %v501
        %621 = vmatprep.subr.mxu0 0.0
        %622 = vmatpush1.msra.mxu0 %v500
        %623 = vmatprep.subr.mxu0 0.0
        %624 = vmatpush1.msra.mxu0 %v499
        %625 = vmatprep.subr.mxu0 0.0
        %626 = vmatpush1.msra.mxu0 %v498
        %627 = vmatprep.subr.mxu0 0.0
        %628 = vmatpush1.msra.mxu0 %v497
        %629 = vmatprep.subr.mxu0 0.0
        %630 = vmatpush1.msra.mxu0 %v496
        %631 = vmatprep.subr.mxu0 0.0
        %632 = vmatpush1.msra.mxu0 %v495
        %633 = vmatprep.subr.mxu0 0.0
        %634 = vmatpush1.msra.mxu0 %v494
        %635 = vmatprep.subr.mxu0 0.0
        %636 = vmatpush2.msra.mxu0 0.0
        %637 = vmatprep.subr.mxu0 0.0
        %638 = vmatpush2.msra.mxu0 0.0
        %639 = vmatprep.subr.mxu0 0.0
        %640 = vmatpush2.msra.mxu0 0.0
        %641 = vmatprep.subr.mxu0 0.0
        %642 = vmatpush2.msra.mxu0 0.0
        %643 = vmatprep.subr.mxu0 0.0
        %644 = vmatpush2.msra.mxu0 0.0
        %645 = vmatprep.subr.mxu0 0.0
        %646 = vmatpush2.msra.mxu0 0.0
        %647 = vmatprep.subr.mxu0 0.0
        %648 = vmatpush2.msra.mxu0 0.0
        %649 = vmatprep.subr.mxu0 0.0
        %650 = vmatpush2.msra.mxu0 0.0
        %651 = vmatprep.subr.mxu0 0.0
        %652 = vmatpush2.msra.mxu0 0.0
        %653 = vmatprep.subr.mxu0 0.0
        %654 = vmatpush2.msra.mxu0 0.0
        %655 = vmatprep.subr.mxu0 0.0
        %656 = vmatpush2.msra.mxu0 0.0
        %657 = vmatprep.subr.mxu0 0.0
        %658 = vmatpush2.msra.mxu0 0.0
        %659 = vmatprep.subr.mxu0 0.0
        %660 = vmatpush2.msra.mxu0 0.0
        %661 = vmatprep.subr.mxu0 0.0
        %662 = vmatpush2.msra.mxu0 0.0
        %663 = vmatprep.subr.mxu0 0.0
        %664 = vmatpush2.msra.mxu0 0.0
        %665 = vmatprep.subr.mxu0 0.0
        %666 = vmatpush2.msra.mxu0 0.0
        %667 = vmatprep.mubr.f32.mxu0 0.0
        %668 = vmatmul.mubr.f32.gmra.mxu0 %v508
        %v669 = vpop.f32.mrf.mxu0
        %v670 = vadd.f32 0.0, %v669
        %v671 = vpop.f32.mrf.mxu0
        %672 = vmatprep.mubr.f32.mxu0 0.0
        %673 = vmatmul.mubr.f32.gmra.mxu0 %v511
        %v674 = vpop.f32.mrf.mxu0
        %v675 = vadd.f32 0.0, %v674
        %v676 = vpop.f32.mrf.mxu0
        %677 = vmatprep.mubr.f32.mxu0 0.0
        %678 = vmatmul.mubr.f32.gmra.mxu0 %v514
        %v679 = vpop.f32.mrf.mxu0
        %v680 = vadd.f32 0.0, %v679
        %v681 = vpop.f32.mrf.mxu0
        %682 = vmatprep.mubr.f32.mxu0 0.0
        %683 = vmatmul.mubr.f32.gmra.mxu0 %v517
        %v684 = vpop.f32.mrf.mxu0
        %v685 = vadd.f32 0.0, %v684
        %v686 = vpop.f32.mrf.mxu0
        %687 = vmatprep.mubr.f32.mxu0 0.0
        %688 = vmatmul.mubr.f32.gmra.mxu0 %v520
        %v689 = vpop.f32.mrf.mxu0
        %v690 = vadd.f32 0.0, %v689
        %v691 = vpop.f32.mrf.mxu0
        %692 = vmatprep.mubr.f32.mxu0 0.0
        %693 = vmatmul.mubr.f32.gmra.mxu0 %v523
        %v694 = vpop.f32.mrf.mxu0
        %v695 = vadd.f32 0.0, %v694
        %v696 = vpop.f32.mrf.mxu0
        %697 = vmatprep.mubr.f32.mxu0 0.0
        %698 = vmatmul.mubr.f32.gmra.mxu0 %v526
        %v699 = vpop.f32.mrf.mxu0
        %v700 = vadd.f32 0.0, %v699
        %v701 = vpop.f32.mrf.mxu0
        %702 = vmatprep.mubr.f32.mxu0 0.0
        %703 = vmatmul.mubr.f32.gmra.mxu0 %v529
        %v704 = vpop.f32.mrf.mxu0
        %v705 = vadd.f32 0.0, %v704
        %v706 = vpop.f32.mrf.mxu0
        %707 = vmatprep.mubr.f32.mxu0 0.0
        %708 = vmatmul.mubr.f32.gmra.mxu0 %v532
        %v709 = vpop.f32.mrf.mxu0
        %v710 = vadd.f32 0.0, %v709
        %v711 = vpop.f32.mrf.mxu0
        %712 = vmatprep.mubr.f32.mxu0 0.0
        %713 = vmatmul.mubr.f32.gmra.mxu0 %v535
        %v714 = vpop.f32.mrf.mxu0
        %v715 = vadd.f32 0.0, %v714
        %v716 = vpop.f32.mrf.mxu0
        %717 = vmatprep.mubr.f32.mxu0 0.0
        %718 = vmatmul.mubr.f32.gmra.mxu0 %v538
        %v719 = vpop.f32.mrf.mxu0
        %v720 = vadd.f32 0.0, %v719
        %v721 = vpop.f32.mrf.mxu0
        %722 = vmatprep.mubr.f32.mxu0 0.0
        %723 = vmatmul.mubr.f32.gmra.mxu0 %v541
        %v724 = vpop.f32.mrf.mxu0
        %v725 = vadd.f32 0.0, %v724
        %v726 = vpop.f32.mrf.mxu0
        %727 = vmatprep.mubr.f32.mxu0 0.0
        %728 = vmatmul.mubr.f32.gmra.mxu0 %v544
        %v729 = vpop.f32.mrf.mxu0
        %v730 = vadd.f32 0.0, %v729
        %v731 = vpop.f32.mrf.mxu0
        %732 = vmatprep.mubr.f32.mxu0 0.0
        %733 = vmatmul.mubr.f32.gmra.mxu0 %v547
        %v734 = vpop.f32.mrf.mxu0
        %v735 = vadd.f32 0.0, %v734
        %v736 = vpop.f32.mrf.mxu0
        %737 = vmatprep.mubr.f32.mxu0 0.0
        %738 = vmatmul.mubr.f32.gmra.mxu0 %v550
        %v739 = vpop.f32.mrf.mxu0
        %v740 = vadd.f32 0.0, %v739
        %v741 = vpop.f32.mrf.mxu0
        %742 = vmatprep.mubr.f32.mxu0 0.0
        %743 = vmatmul.mubr.f32.gmra.mxu0 %v553
        %v744 = vpop.f32.mrf.mxu0
        %v745 = vadd.f32 0.0, %v744
        %v746 = vpop.f32.mrf.mxu0
        %747 = vmatprep.mubr.f32.mxu0 0.0
        %748 = vmatmul.mubr.f32.gmra.mxu0 %v556
        %v749 = vpop.f32.mrf.mxu0
        %v750 = vadd.f32 0.0, %v749
        %v751 = vpop.f32.mrf.mxu0
        %752 = vmatprep.mubr.f32.mxu0 0.0
        %753 = vmatmul.mubr.f32.gmra.mxu0 %v559
        %v754 = vpop.f32.mrf.mxu0
        %v755 = vadd.f32 0.0, %v754
        %v756 = vpop.f32.mrf.mxu0
        %757 = vmatprep.mubr.f32.mxu0 0.0
        %758 = vmatmul.mubr.f32.gmra.mxu0 %v562
        %v759 = vpop.f32.mrf.mxu0
        %v760 = vadd.f32 0.0, %v759
        %v761 = vpop.f32.mrf.mxu0
        %762 = vmatprep.mubr.f32.mxu0 0.0
        %763 = vmatmul.mubr.f32.gmra.mxu0 %v565
        %v764 = vpop.f32.mrf.mxu0
        %v765 = vadd.f32 0.0, %v764
        %v766 = vpop.f32.mrf.mxu0
        %767 = vmatprep.mubr.f32.mxu0 0.0
        %768 = vmatmul.mubr.f32.gmra.mxu0 %v568
        %v769 = vpop.f32.mrf.mxu0
        %v770 = vadd.f32 0.0, %v769
        %v771 = vpop.f32.mrf.mxu0
        %772 = vmatprep.mubr.f32.mxu0 0.0
        %773 = vmatmul.mubr.f32.gmra.mxu0 %v571
        %v774 = vpop.f32.mrf.mxu0
        %v775 = vadd.f32 0.0, %v774
        %v776 = vpop.f32.mrf.mxu0
        %777 = vmatprep.mubr.f32.mxu0 0.0
        %778 = vmatmul.mubr.f32.gmra.mxu0 %v574
        %v779 = vpop.f32.mrf.mxu0
        %v780 = vadd.f32 0.0, %v779
        %v781 = vpop.f32.mrf.mxu0
        %782 = vmatprep.mubr.f32.mxu0 0.0
        %783 = vmatmul.mubr.f32.gmra.mxu0 %v577
        %v784 = vpop.f32.mrf.mxu0
        %v785 = vadd.f32 0.0, %v784
        %v786 = vpop.f32.mrf.mxu0
        %787 = vmatprep.mubr.f32.mxu0 0.0
        %788 = vmatmul.mubr.f32.gmra.mxu0 %v580
        %v789 = vpop.f32.mrf.mxu0
        %v790 = vadd.f32 0.0, %v789
        %v791 = vpop.f32.mrf.mxu0
        %792 = vmatprep.mubr.f32.mxu0 0.0
        %793 = vmatmul.mubr.f32.gmra.mxu0 %v583
        %v794 = vpop.f32.mrf.mxu0
        %v795 = vadd.f32 0.0, %v794
        %v796 = vpop.f32.mrf.mxu0
        %797 = vmatprep.mubr.f32.mxu0 0.0
        %798 = vmatmul.mubr.f32.gmra.mxu0 %v586
        %v799 = vpop.f32.mrf.mxu0
        %v800 = vadd.f32 0.0, %v799
        %v801 = vpop.f32.mrf.mxu0
        %802 = vmatprep.mubr.f32.mxu0 0.0
        %803 = vmatmul.mubr.f32.gmra.mxu0 %v589
        %v804 = vpop.f32.mrf.mxu0
        %v805 = vadd.f32 0.0, %v804
        %v806 = vpop.f32.mrf.mxu0
        %807 = vmatprep.mubr.f32.mxu0 0.0
        %808 = vmatmul.mubr.f32.gmra.mxu0 %v592
        %v809 = vpop.f32.mrf.mxu0
        %v810 = vadd.f32 0.0, %v809
        %v811 = vpop.f32.mrf.mxu0
        %812 = vmatprep.mubr.f32.mxu0 0.0
        %813 = vmatmul.mubr.f32.gmra.mxu0 %v595
        %v814 = vpop.f32.mrf.mxu0
        %v815 = vadd.f32 0.0, %v814
        %v816 = vpop.f32.mrf.mxu0
        %817 = vmatprep.mubr.f32.mxu0 0.0
        %818 = vmatmul.mubr.f32.gmra.mxu0 %v598
        %v819 = vpop.f32.mrf.mxu0
        %v820 = vadd.f32 0.0, %v819
        %v821 = vpop.f32.mrf.mxu0
        %822 = vmatprep.mubr.f32.mxu0 0.0
        %823 = vmatmul.mubr.f32.gmra.mxu0 %v601
        %v824 = vpop.f32.mrf.mxu0
        %v825 = vadd.f32 0.0, %v824
        %v826 = vpop.f32.mrf.mxu0
        %827 = vdwg.mxu0
        %828 = vmatprep.subr.mxu0 0.0
        %829 = vmatpush1.msra.mxu0 %v493
        %830 = vmatprep.subr.mxu0 0.0
        %831 = vmatpush1.msra.mxu0 %v492
        %832 = vmatprep.subr.mxu0 0.0
        %833 = vmatpush1.msra.mxu0 %v491
        %834 = vmatprep.subr.mxu0 0.0
        %835 = vmatpush1.msra.mxu0 %v490
        %836 = vmatprep.subr.mxu0 0.0
        %837 = vmatpush1.msra.mxu0 %v489
        %838 = vmatprep.subr.mxu0 0.0
        %839 = vmatpush1.msra.mxu0 %v488
        %840 = vmatprep.subr.mxu0 0.0
        %841 = vmatpush1.msra.mxu0 %v487
        %842 = vmatprep.subr.mxu0 0.0
        %843 = vmatpush1.msra.mxu0 %v486
        %844 = vmatprep.subr.mxu0 0.0
        %845 = vmatpush1.msra.mxu0 %v485
        %846 = vmatprep.subr.mxu0 0.0
        %847 = vmatpush1.msra.mxu0 %v484
        %848 = vmatprep.subr.mxu0 0.0
        %849 = vmatpush1.msra.mxu0 %v483
        %850 = vmatprep.subr.mxu0 0.0
        %851 = vmatpush1.msra.mxu0 %v482
        %852 = vmatprep.subr.mxu0 0.0
        %853 = vmatpush1.msra.mxu0 %v481
        %854 = vmatprep.subr.mxu0 0.0
        %855 = vmatpush1.msra.mxu0 %v480
        %856 = vmatprep.subr.mxu0 0.0
        %857 = vmatpush1.msra.mxu0 %v479
        %858 = vmatprep.subr.mxu0 0.0
        %859 = vmatpush1.msra.mxu0 %v478
        %860 = vmatprep.subr.mxu0 0.0
        %861 = vmatpush2.msra.mxu0 0.0
        %862 = vmatprep.subr.mxu0 0.0
        %863 = vmatpush2.msra.mxu0 0.0
        %864 = vmatprep.subr.mxu0 0.0
        %865 = vmatpush2.msra.mxu0 0.0
        %866 = vmatprep.subr.mxu0 0.0
        %867 = vmatpush2.msra.mxu0 0.0
        %868 = vmatprep.subr.mxu0 0.0
        %869 = vmatpush2.msra.mxu0 0.0
        %870 = vmatprep.subr.mxu0 0.0
        %871 = vmatpush2.msra.mxu0 0.0
        %872 = vmatprep.subr.mxu0 0.0
        %873 = vmatpush2.msra.mxu0 0.0
        %874 = vmatprep.subr.mxu0 0.0
        %875 = vmatpush2.msra.mxu0 0.0
        %876 = vmatprep.subr.mxu0 0.0
        %877 = vmatpush2.msra.mxu0 0.0
        %878 = vmatprep.subr.mxu0 0.0
        %879 = vmatpush2.msra.mxu0 0.0
        %880 = vmatprep.subr.mxu0 0.0
        %881 = vmatpush2.msra.mxu0 0.0
        %882 = vmatprep.subr.mxu0 0.0
        %883 = vmatpush2.msra.mxu0 0.0
        %884 = vmatprep.subr.mxu0 0.0
        %885 = vmatpush2.msra.mxu0 0.0
        %886 = vmatprep.subr.mxu0 0.0
        %887 = vmatpush2.msra.mxu0 0.0
        %888 = vmatprep.subr.mxu0 0.0
        %889 = vmatpush2.msra.mxu0 0.0
        %890 = vmatprep.subr.mxu0 0.0
        %891 = vmatpush2.msra.mxu0 0.0
        %892 = vmatprep.mubr.f32.mxu0 0.0
        %893 = vmatmul.mubr.f32.gmra.mxu0 %v414
        %v894 = vpop.f32.mrf.mxu0
        %v895 = vadd.f32 %v670, %v894
        %v896 = vpop.f32.mrf.mxu0
        %897 = vmatprep.mubr.f32.mxu0 0.0
        %898 = vmatmul.mubr.f32.gmra.mxu0 %v415
        %v899 = vpop.f32.mrf.mxu0
        %v900 = vadd.f32 %v675, %v899
        %v901 = vpop.f32.mrf.mxu0
        %902 = vmatprep.mubr.f32.mxu0 0.0
        %903 = vmatmul.mubr.f32.gmra.mxu0 %v416
        %v904 = vpop.f32.mrf.mxu0
        %v905 = vadd.f32 %v680, %v904
        %v906 = vpop.f32.mrf.mxu0
        %907 = vmatprep.mubr.f32.mxu0 0.0
        %908 = vmatmul.mubr.f32.gmra.mxu0 %v417
        %v909 = vpop.f32.mrf.mxu0
        %v910 = vadd.f32 %v685, %v909
        %v911 = vpop.f32.mrf.mxu0
        %912 = vmatprep.mubr.f32.mxu0 0.0
        %913 = vmatmul.mubr.f32.gmra.mxu0 %v418
        %v914 = vpop.f32.mrf.mxu0
        %v915 = vadd.f32 %v690, %v914
        %v916 = vpop.f32.mrf.mxu0
        %917 = vmatprep.mubr.f32.mxu0 0.0
        %918 = vmatmul.mubr.f32.gmra.mxu0 %v419
        %v919 = vpop.f32.mrf.mxu0
        %v920 = vadd.f32 %v695, %v919
        %v921 = vpop.f32.mrf.mxu0
        %922 = vmatprep.mubr.f32.mxu0 0.0
        %923 = vmatmul.mubr.f32.gmra.mxu0 %v420
        %v924 = vpop.f32.mrf.mxu0
        %v925 = vadd.f32 %v700, %v924
        %v926 = vpop.f32.mrf.mxu0
        %927 = vmatprep.mubr.f32.mxu0 0.0
        %928 = vmatmul.mubr.f32.gmra.mxu0 %v421
        %v929 = vpop.f32.mrf.mxu0
        %v930 = vadd.f32 %v705, %v929
        %v931 = vpop.f32.mrf.mxu0
        %932 = vmatprep.mubr.f32.mxu0 0.0
        %933 = vmatmul.mubr.f32.gmra.mxu0 %v422
        %v934 = vpop.f32.mrf.mxu0
        %v935 = vadd.f32 %v710, %v934
        %v936 = vpop.f32.mrf.mxu0
        %937 = vmatprep.mubr.f32.mxu0 0.0
        %938 = vmatmul.mubr.f32.gmra.mxu0 %v423
        %v939 = vpop.f32.mrf.mxu0
        %v940 = vadd.f32 %v715, %v939
        %v941 = vpop.f32.mrf.mxu0
        %942 = vmatprep.mubr.f32.mxu0 0.0
        %943 = vmatmul.mubr.f32.gmra.mxu0 %v424
        %v944 = vpop.f32.mrf.mxu0
        %v945 = vadd.f32 %v720, %v944
        %v946 = vpop.f32.mrf.mxu0
        %947 = vmatprep.mubr.f32.mxu0 0.0
        %948 = vmatmul.mubr.f32.gmra.mxu0 %v425
        %v949 = vpop.f32.mrf.mxu0
        %v950 = vadd.f32 %v725, %v949
        %v951 = vpop.f32.mrf.mxu0
        %952 = vmatprep.mubr.f32.mxu0 0.0
        %953 = vmatmul.mubr.f32.gmra.mxu0 %v426
        %v954 = vpop.f32.mrf.mxu0
        %v955 = vadd.f32 %v730, %v954
        %v956 = vpop.f32.mrf.mxu0
        %957 = vmatprep.mubr.f32.mxu0 0.0
        %958 = vmatmul.mubr.f32.gmra.mxu0 %v427
        %v959 = vpop.f32.mrf.mxu0
        %v960 = vadd.f32 %v735, %v959
        %v961 = vpop.f32.mrf.mxu0
        %962 = vmatprep.mubr.f32.mxu0 0.0
        %963 = vmatmul.mubr.f32.gmra.mxu0 %v428
        %v964 = vpop.f32.mrf.mxu0
        %v965 = vadd.f32 %v740, %v964
        %v966 = vpop.f32.mrf.mxu0
        %967 = vmatprep.mubr.f32.mxu0 0.0
        %968 = vmatmul.mubr.f32.gmra.mxu0 %v429
        %v969 = vpop.f32.mrf.mxu0
        %v970 = vadd.f32 %v745, %v969
        %v971 = vpop.f32.mrf.mxu0
        %972 = vmatprep.mubr.f32.mxu0 0.0
        %973 = vmatmul.mubr.f32.gmra.mxu0 %v430
        %v974 = vpop.f32.mrf.mxu0
        %v975 = vadd.f32 %v750, %v974
        %v976 = vpop.f32.mrf.mxu0
        %977 = vmatprep.mubr.f32.mxu0 0.0
        %978 = vmatmul.mubr.f32.gmra.mxu0 %v431
        %v979 = vpop.f32.mrf.mxu0
        %v980 = vadd.f32 %v755, %v979
        %v981 = vpop.f32.mrf.mxu0
        %982 = vmatprep.mubr.f32.mxu0 0.0
        %983 = vmatmul.mubr.f32.gmra.mxu0 %v432
        %v984 = vpop.f32.mrf.mxu0
        %v985 = vadd.f32 %v760, %v984
        %v986 = vpop.f32.mrf.mxu0
        %987 = vmatprep.mubr.f32.mxu0 0.0
        %988 = vmatmul.mubr.f32.gmra.mxu0 %v433
        %v989 = vpop.f32.mrf.mxu0
        %v990 = vadd.f32 %v765, %v989
        %v991 = vpop.f32.mrf.mxu0
        %992 = vmatprep.mubr.f32.mxu0 0.0
        %993 = vmatmul.mubr.f32.gmra.mxu0 %v434
        %v994 = vpop.f32.mrf.mxu0
        %v995 = vadd.f32 %v770, %v994
        %v996 = vpop.f32.mrf.mxu0
        %997 = vmatprep.mubr.f32.mxu0 0.0
        %998 = vmatmul.mubr.f32.gmra.mxu0 %v435
        %v999 = vpop.f32.mrf.mxu0
        %v1000 = vadd.f32 %v775, %v999
        %v1001 = vpop.f32.mrf.mxu0
        %1002 = vmatprep.mubr.f32.mxu0 0.0
        %1003 = vmatmul.mubr.f32.gmra.mxu0 %v436
        %v1004 = vpop.f32.mrf.mxu0
        %v1005 = vadd.f32 %v780, %v1004
        %v1006 = vpop.f32.mrf.mxu0
        %1007 = vmatprep.mubr.f32.mxu0 0.0
        %1008 = vmatmul.mubr.f32.gmra.mxu0 %v437
        %v1009 = vpop.f32.mrf.mxu0
        %v1010 = vadd.f32 %v785, %v1009
        %v1011 = vpop.f32.mrf.mxu0
        %1012 = vmatprep.mubr.f32.mxu0 0.0
        %1013 = vmatmul.mubr.f32.gmra.mxu0 %v438
        %v1014 = vpop.f32.mrf.mxu0
        %v1015 = vadd.f32 %v790, %v1014
        %v1016 = vpop.f32.mrf.mxu0
        %1017 = vmatprep.mubr.f32.mxu0 0.0
        %1018 = vmatmul.mubr.f32.gmra.mxu0 %v439
        %v1019 = vpop.f32.mrf.mxu0
        %v1020 = vadd.f32 %v795, %v1019
        %v1021 = vpop.f32.mrf.mxu0
        %1022 = vmatprep.mubr.f32.mxu0 0.0
        %1023 = vmatmul.mubr.f32.gmra.mxu0 %v440
        %v1024 = vpop.f32.mrf.mxu0
        %v1025 = vadd.f32 %v800, %v1024
        %v1026 = vpop.f32.mrf.mxu0
        %1027 = vmatprep.mubr.f32.mxu0 0.0
        %1028 = vmatmul.mubr.f32.gmra.mxu0 %v441
        %v1029 = vpop.f32.mrf.mxu0
        %v1030 = vadd.f32 %v805, %v1029
        %v1031 = vpop.f32.mrf.mxu0
        %1032 = vmatprep.mubr.f32.mxu0 0.0
        %1033 = vmatmul.mubr.f32.gmra.mxu0 %v442
        %v1034 = vpop.f32.mrf.mxu0
        %v1035 = vadd.f32 %v810, %v1034
        %v1036 = vpop.f32.mrf.mxu0
        %1037 = vmatprep.mubr.f32.mxu0 0.0
        %1038 = vmatmul.mubr.f32.gmra.mxu0 %v443
        %v1039 = vpop.f32.mrf.mxu0
        %v1040 = vadd.f32 %v815, %v1039
        %v1041 = vpop.f32.mrf.mxu0
        %1042 = vmatprep.mubr.f32.mxu0 0.0
        %1043 = vmatmul.mubr.f32.gmra.mxu0 %v444
        %v1044 = vpop.f32.mrf.mxu0
        %v1045 = vadd.f32 %v820, %v1044
        %v1046 = vpop.f32.mrf.mxu0
        %1047 = vmatprep.mubr.f32.mxu0 0.0
        %1048 = vmatmul.mubr.f32.gmra.mxu0 %v445
        %v1049 = vpop.f32.mrf.mxu0
        %v1050 = vadd.f32 %v825, %v1049
        %v1051 = vpop.f32.mrf.mxu0
        %1052 = vdwg.mxu0
        %v1053 = vld [vmem:[%s5] sm:$0x1]
        %v1055 = vlaneseq
        %v1056 = vshrl.u32 %v1055, 7
        %v1057 = vsub.s32 0, %v1056
        %v1058 = vrot.slane %v1053, %v1057
        %v1060 = vadd.f32 %v895, %v1058
        %v1061 = vadd.f32 %v900, %v1058
        %v1062 = vadd.f32 %v905, %v1058
        %v1063 = vadd.f32 %v910, %v1058
        %v1064 = vadd.f32 %v915, %v1058
        %v1065 = vadd.f32 %v920, %v1058
        %v1066 = vadd.f32 %v925, %v1058
        %v1067 = vadd.f32 %v930, %v1058
        %v1068 = vadd.f32 %v935, %v1058
        %v1069 = vadd.f32 %v940, %v1058
        %v1070 = vadd.f32 %v945, %v1058
        %v1071 = vadd.f32 %v950, %v1058
        %v1072 = vadd.f32 %v955, %v1058
        %v1073 = vadd.f32 %v960, %v1058
        %v1074 = vadd.f32 %v965, %v1058
        %v1075 = vadd.f32 %v970, %v1058
        %v1076 = vadd.f32 %v975, %v1058
        %v1077 = vadd.f32 %v980, %v1058
        %v1078 = vadd.f32 %v985, %v1058
        %v1079 = vadd.f32 %v990, %v1058
        %v1080 = vadd.f32 %v995, %v1058
        %v1081 = vadd.f32 %v1000, %v1058
        %v1082 = vadd.f32 %v1005, %v1058
        %v1083 = vadd.f32 %v1010, %v1058
        %v1084 = vadd.f32 %v1015, %v1058
        %v1085 = vadd.f32 %v1020, %v1058
        %v1086 = vadd.f32 %v1025, %v1058
        %v1087 = vadd.f32 %v1030, %v1058
        %v1088 = vadd.f32 %v1035, %v1058
        %v1089 = vadd.f32 %v1040, %v1058
        %v1090 = vadd.f32 %v1045, %v1058
        %v1091 = vadd.f32 %v1050, %v1058
        %v1092 = vmax.f32 %v1060, 0.0
        %v1093 = vmax.f32 %v1061, 0.0
        %v1094 = vmax.f32 %v1062, 0.0
        %v1095 = vmax.f32 %v1063, 0.0
        %v1096 = vmax.f32 %v1064, 0.0
        %v1097 = vmax.f32 %v1065, 0.0
        %v1098 = vmax.f32 %v1066, 0.0
        %v1099 = vmax.f32 %v1067, 0.0
        %v1100 = vmax.f32 %v1068, 0.0
        %v1101 = vmax.f32 %v1069, 0.0
        %v1102 = vmax.f32 %v1070, 0.0
        %v1103 = vmax.f32 %v1071, 0.0
        %v1104 = vmax.f32 %v1072, 0.0
        %v1105 = vmax.f32 %v1073, 0.0
        %v1106 = vmax.f32 %v1074, 0.0
        %v1107 = vmax.f32 %v1075, 0.0
        %v1108 = vmax.f32 %v1076, 0.0
        %v1109 = vmax.f32 %v1077, 0.0
        %v1110 = vmax.f32 %v1078, 0.0
        %v1111 = vmax.f32 %v1079, 0.0
        %v1112 = vmax.f32 %v1080, 0.0
        %v1113 = vmax.f32 %v1081, 0.0
        %v1114 = vmax.f32 %v1082, 0.0
        %v1115 = vmax.f32 %v1083, 0.0
        %v1116 = vmax.f32 %v1084, 0.0
        %v1117 = vmax.f32 %v1085, 0.0
        %v1118 = vmax.f32 %v1086, 0.0
        %v1119 = vmax.f32 %v1087, 0.0
        %v1120 = vmax.f32 %v1088, 0.0
        %v1121 = vmax.f32 %v1089, 0.0
        %v1122 = vmax.f32 %v1090, 0.0
        %v1123 = vmax.f32 %v1091, 0.0
        %v1124 = vld [vmem:[#allocation8] sm:$0xff]
        %v1125 = vld [vmem:[#allocation8 + $0x8] sm:$0xff]
        %v1126 = vld [vmem:[#allocation8 + $0x10] sm:$0xff]
        %v1127 = vld [vmem:[#allocation8 + $0x18] sm:$0xff]
        %v1128 = vld [vmem:[#allocation8 + $0x20] sm:$0xff]
        %v1129 = vld [vmem:[#allocation8 + $0x28] sm:$0xff]
        %v1130 = vld [vmem:[#allocation8 + $0x30] sm:$0xff]
        %v1131 = vld [vmem:[#allocation8 + $0x38] sm:$0xff]
        %v1132 = vld [vmem:[#allocation8 + $0x40] sm:$0xff]
        %v1133 = vld [vmem:[#allocation8 + $0x48] sm:$0xff]
        %v1134 = vld [vmem:[#allocation8 + $0x50] sm:$0xff]
        %v1135 = vld [vmem:[#allocation8 + $0x58] sm:$0xff]
        %v1136 = vld [vmem:[#allocation8 + $0x60] sm:$0xff]
        %v1137 = vld [vmem:[#allocation8 + $0x68] sm:$0xff]
        %v1138 = vld [vmem:[#allocation8 + $0x70] sm:$0xff]
        %v1139 = vld [vmem:[#allocation8 + $0x78] sm:$0xff]
        %v1140 = vld [vmem:[%s6] sm:$0x1]
        %v1142 = vlaneseq
        %v1143 = vshrl.u32 %v1142, 7
        %v1144 = vsub.s32 0, %v1143
        %v1145 = vrot.slane %v1140, %v1144
        %1147 = vmatprep.subr.mxu0 0.0
        %1148 = vmatpush1.msra.mxu0 %v1139
        %1149 = vmatprep.subr.mxu0 0.0
        %1150 = vmatpush1.msra.mxu0 %v1138
        %1151 = vmatprep.subr.mxu0 0.0
        %1152 = vmatpush1.msra.mxu0 %v1137
        %1153 = vmatprep.subr.mxu0 0.0
        %1154 = vmatpush1.msra.mxu0 %v1136
        %1155 = vmatprep.subr.mxu0 0.0
        %1156 = vmatpush1.msra.mxu0 %v1135
        %1157 = vmatprep.subr.mxu0 0.0
        %1158 = vmatpush1.msra.mxu0 %v1134
        %1159 = vmatprep.subr.mxu0 0.0
        %1160 = vmatpush1.msra.mxu0 %v1133
        %1161 = vmatprep.subr.mxu0 0.0
        %1162 = vmatpush1.msra.mxu0 %v1132
        %1163 = vmatprep.subr.mxu0 0.0
        %1164 = vmatpush1.msra.mxu0 %v1131
        %1165 = vmatprep.subr.mxu0 0.0
        %1166 = vmatpush1.msra.mxu0 %v1130
        %1167 = vmatprep.subr.mxu0 0.0
        %1168 = vmatpush1.msra.mxu0 %v1129
        %1169 = vmatprep.subr.mxu0 0.0
        %1170 = vmatpush1.msra.mxu0 %v1128
        %1171 = vmatprep.subr.mxu0 0.0
        %1172 = vmatpush1.msra.mxu0 %v1127
        %1173 = vmatprep.subr.mxu0 0.0
        %1174 = vmatpush1.msra.mxu0 %v1126
        %1175 = vmatprep.subr.mxu0 0.0
        %1176 = vmatpush1.msra.mxu0 %v1125
        %1177 = vmatprep.subr.mxu0 0.0
        %1178 = vmatpush1.msra.mxu0 %v1124
        %1179 = vmatprep.subr.mxu0 0.0
        %1180 = vmatpush2.msra.mxu0 0.0
        %1181 = vmatprep.subr.mxu0 0.0
        %1182 = vmatpush2.msra.mxu0 0.0
        %1183 = vmatprep.subr.mxu0 0.0
        %1184 = vmatpush2.msra.mxu0 0.0
        %1185 = vmatprep.subr.mxu0 0.0
        %1186 = vmatpush2.msra.mxu0 0.0
        %1187 = vmatprep.subr.mxu0 0.0
        %1188 = vmatpush2.msra.mxu0 0.0
        %1189 = vmatprep.subr.mxu0 0.0
        %1190 = vmatpush2.msra.mxu0 0.0
        %1191 = vmatprep.subr.mxu0 0.0
        %1192 = vmatpush2.msra.mxu0 0.0
        %1193 = vmatprep.subr.mxu0 0.0
        %1194 = vmatpush2.msra.mxu0 0.0
        %1195 = vmatprep.subr.mxu0 0.0
        %1196 = vmatpush2.msra.mxu0 0.0
        %1197 = vmatprep.subr.mxu0 0.0
        %1198 = vmatpush2.msra.mxu0 0.0
        %1199 = vmatprep.subr.mxu0 0.0
        %1200 = vmatpush2.msra.mxu0 0.0
        %1201 = vmatprep.subr.mxu0 0.0
        %1202 = vmatpush2.msra.mxu0 0.0
        %1203 = vmatprep.subr.mxu0 0.0
        %1204 = vmatpush2.msra.mxu0 0.0
        %1205 = vmatprep.subr.mxu0 0.0
        %1206 = vmatpush2.msra.mxu0 0.0
        %1207 = vmatprep.subr.mxu0 0.0
        %1208 = vmatpush2.msra.mxu0 0.0
        %1209 = vmatprep.subr.mxu0 0.0
        %1210 = vmatpush2.msra.mxu0 0.0
        %1211 = vmatprep.mubr.f32.mxu0 0.0
        %1212 = vmatmul.mubr.f32.gmra.mxu0 %v1092
        %v1213 = vpop.f32.mrf.mxu0
        %v1214 = vadd.f32 %v1145, %v1213
        %v1215 = vpop.f32.mrf.mxu0
        %1216 = vmatprep.mubr.f32.mxu0 0.0
        %1217 = vmatmul.mubr.f32.gmra.mxu0 %v1093
        %v1218 = vpop.f32.mrf.mxu0
        %v1219 = vadd.f32 %v1145, %v1218
        %v1220 = vpop.f32.mrf.mxu0
        %1221 = vmatprep.mubr.f32.mxu0 0.0
        %1222 = vmatmul.mubr.f32.gmra.mxu0 %v1094
        %v1223 = vpop.f32.mrf.mxu0
        %v1224 = vadd.f32 %v1145, %v1223
        %v1225 = vpop.f32.mrf.mxu0
        %1226 = vmatprep.mubr.f32.mxu0 0.0
        %1227 = vmatmul.mubr.f32.gmra.mxu0 %v1095
        %v1228 = vpop.f32.mrf.mxu0
        %v1229 = vadd.f32 %v1145, %v1228
        %v1230 = vpop.f32.mrf.mxu0
        %1231 = vmatprep.mubr.f32.mxu0 0.0
        %1232 = vmatmul.mubr.f32.gmra.mxu0 %v1096
        %v1233 = vpop.f32.mrf.mxu0
        %v1234 = vadd.f32 %v1145, %v1233
        %v1235 = vpop.f32.mrf.mxu0
        %1236 = vmatprep.mubr.f32.mxu0 0.0
        %1237 = vmatmul.mubr.f32.gmra.mxu0 %v1097
        %v1238 = vpop.f32.mrf.mxu0
        %v1239 = vadd.f32 %v1145, %v1238
        %v1240 = vpop.f32.mrf.mxu0
        %1241 = vmatprep.mubr.f32.mxu0 0.0
        %1242 = vmatmul.mubr.f32.gmra.mxu0 %v1098
        %v1243 = vpop.f32.mrf.mxu0
        %v1244 = vadd.f32 %v1145, %v1243
        %v1245 = vpop.f32.mrf.mxu0
        %1246 = vmatprep.mubr.f32.mxu0 0.0
        %1247 = vmatmul.mubr.f32.gmra.mxu0 %v1099
        %v1248 = vpop.f32.mrf.mxu0
        %v1249 = vadd.f32 %v1145, %v1248
        %v1250 = vpop.f32.mrf.mxu0
        %1251 = vmatprep.mubr.f32.mxu0 0.0
        %1252 = vmatmul.mubr.f32.gmra.mxu0 %v1100
        %v1253 = vpop.f32.mrf.mxu0
        %v1254 = vadd.f32 %v1145, %v1253
        %v1255 = vpop.f32.mrf.mxu0
        %1256 = vmatprep.mubr.f32.mxu0 0.0
        %1257 = vmatmul.mubr.f32.gmra.mxu0 %v1101
        %v1258 = vpop.f32.mrf.mxu0
        %v1259 = vadd.f32 %v1145, %v1258
        %v1260 = vpop.f32.mrf.mxu0
        %1261 = vmatprep.mubr.f32.mxu0 0.0
        %1262 = vmatmul.mubr.f32.gmra.mxu0 %v1102
        %v1263 = vpop.f32.mrf.mxu0
        %v1264 = vadd.f32 %v1145, %v1263
        %v1265 = vpop.f32.mrf.mxu0
        %1266 = vmatprep.mubr.f32.mxu0 0.0
        %1267 = vmatmul.mubr.f32.gmra.mxu0 %v1103
        %v1268 = vpop.f32.mrf.mxu0
        %v1269 = vadd.f32 %v1145, %v1268
        %v1270 = vpop.f32.mrf.mxu0
        %1271 = vmatprep.mubr.f32.mxu0 0.0
        %1272 = vmatmul.mubr.f32.gmra.mxu0 %v1104
        %v1273 = vpop.f32.mrf.mxu0
        %v1274 = vadd.f32 %v1145, %v1273
        %v1275 = vpop.f32.mrf.mxu0
        %1276 = vmatprep.mubr.f32.mxu0 0.0
        %1277 = vmatmul.mubr.f32.gmra.mxu0 %v1105
        %v1278 = vpop.f32.mrf.mxu0
        %v1279 = vadd.f32 %v1145, %v1278
        %v1280 = vpop.f32.mrf.mxu0
        %1281 = vmatprep.mubr.f32.mxu0 0.0
        %1282 = vmatmul.mubr.f32.gmra.mxu0 %v1106
        %v1283 = vpop.f32.mrf.mxu0
        %v1284 = vadd.f32 %v1145, %v1283
        %v1285 = vpop.f32.mrf.mxu0
        %1286 = vmatprep.mubr.f32.mxu0 0.0
        %1287 = vmatmul.mubr.f32.gmra.mxu0 %v1107
        %v1288 = vpop.f32.mrf.mxu0
        %v1289 = vadd.f32 %v1145, %v1288
        %v1290 = vpop.f32.mrf.mxu0
        %1291 = vmatprep.mubr.f32.mxu0 0.0
        %1292 = vmatmul.mubr.f32.gmra.mxu0 %v1108
        %v1293 = vpop.f32.mrf.mxu0
        %v1294 = vadd.f32 %v1145, %v1293
        %v1295 = vpop.f32.mrf.mxu0
        %1296 = vmatprep.mubr.f32.mxu0 0.0
        %1297 = vmatmul.mubr.f32.gmra.mxu0 %v1109
        %v1298 = vpop.f32.mrf.mxu0
        %v1299 = vadd.f32 %v1145, %v1298
        %v1300 = vpop.f32.mrf.mxu0
        %1301 = vmatprep.mubr.f32.mxu0 0.0
        %1302 = vmatmul.mubr.f32.gmra.mxu0 %v1110
        %v1303 = vpop.f32.mrf.mxu0
        %v1304 = vadd.f32 %v1145, %v1303
        %v1305 = vpop.f32.mrf.mxu0
        %1306 = vmatprep.mubr.f32.mxu0 0.0
        %1307 = vmatmul.mubr.f32.gmra.mxu0 %v1111
        %v1308 = vpop.f32.mrf.mxu0
        %v1309 = vadd.f32 %v1145, %v1308
        %v1310 = vpop.f32.mrf.mxu0
        %1311 = vmatprep.mubr.f32.mxu0 0.0
        %1312 = vmatmul.mubr.f32.gmra.mxu0 %v1112
        %v1313 = vpop.f32.mrf.mxu0
        %v1314 = vadd.f32 %v1145, %v1313
        %v1315 = vpop.f32.mrf.mxu0
        %1316 = vmatprep.mubr.f32.mxu0 0.0
        %1317 = vmatmul.mubr.f32.gmra.mxu0 %v1113
        %v1318 = vpop.f32.mrf.mxu0
        %v1319 = vadd.f32 %v1145, %v1318
        %v1320 = vpop.f32.mrf.mxu0
        %1321 = vmatprep.mubr.f32.mxu0 0.0
        %1322 = vmatmul.mubr.f32.gmra.mxu0 %v1114
        %v1323 = vpop.f32.mrf.mxu0
        %v1324 = vadd.f32 %v1145, %v1323
        %v1325 = vpop.f32.mrf.mxu0
        %1326 = vmatprep.mubr.f32.mxu0 0.0
        %1327 = vmatmul.mubr.f32.gmra.mxu0 %v1115
        %v1328 = vpop.f32.mrf.mxu0
        %v1329 = vadd.f32 %v1145, %v1328
        %v1330 = vpop.f32.mrf.mxu0
        %1331 = vmatprep.mubr.f32.mxu0 0.0
        %1332 = vmatmul.mubr.f32.gmra.mxu0 %v1116
        %v1333 = vpop.f32.mrf.mxu0
        %v1334 = vadd.f32 %v1145, %v1333
        %v1335 = vpop.f32.mrf.mxu0
        %1336 = vmatprep.mubr.f32.mxu0 0.0
        %1337 = vmatmul.mubr.f32.gmra.mxu0 %v1117
        %v1338 = vpop.f32.mrf.mxu0
        %v1339 = vadd.f32 %v1145, %v1338
        %v1340 = vpop.f32.mrf.mxu0
        %1341 = vmatprep.mubr.f32.mxu0 0.0
        %1342 = vmatmul.mubr.f32.gmra.mxu0 %v1118
        %v1343 = vpop.f32.mrf.mxu0
        %v1344 = vadd.f32 %v1145, %v1343
        %v1345 = vpop.f32.mrf.mxu0
        %1346 = vmatprep.mubr.f32.mxu0 0.0
        %1347 = vmatmul.mubr.f32.gmra.mxu0 %v1119
        %v1348 = vpop.f32.mrf.mxu0
        %v1349 = vadd.f32 %v1145, %v1348
        %v1350 = vpop.f32.mrf.mxu0
        %1351 = vmatprep.mubr.f32.mxu0 0.0
        %1352 = vmatmul.mubr.f32.gmra.mxu0 %v1120
        %v1353 = vpop.f32.mrf.mxu0
        %v1354 = vadd.f32 %v1145, %v1353
        %v1355 = vpop.f32.mrf.mxu0
        %1356 = vmatprep.mubr.f32.mxu0 0.0
        %1357 = vmatmul.mubr.f32.gmra.mxu0 %v1121
        %v1358 = vpop.f32.mrf.mxu0
        %v1359 = vadd.f32 %v1145, %v1358
        %v1360 = vpop.f32.mrf.mxu0
        %1361 = vmatprep.mubr.f32.mxu0 0.0
        %1362 = vmatmul.mubr.f32.gmra.mxu0 %v1122
        %v1363 = vpop.f32.mrf.mxu0
        %v1364 = vadd.f32 %v1145, %v1363
        %v1365 = vpop.f32.mrf.mxu0
        %1366 = vmatprep.mubr.f32.mxu0 0.0
        %1367 = vmatmul.mubr.f32.gmra.mxu0 %v1123
        %v1368 = vpop.f32.mrf.mxu0
        %v1369 = vadd.f32 %v1145, %v1368
        %v1370 = vpop.f32.mrf.mxu0
        %1371 = vdwg.mxu0
        %1372 = vst [vmem:[#allocation2] sm:$0xff] %v1214
        %1373 = vst [vmem:[#allocation2 + $0x8] sm:$0xff] %v1219
        %1374 = vst [vmem:[#allocation2 + $0x10] sm:$0xff] %v1224
        %1375 = vst [vmem:[#allocation2 + $0x18] sm:$0xff] %v1229
        %1376 = vst [vmem:[#allocation2 + $0x20] sm:$0xff] %v1234
        %1377 = vst [vmem:[#allocation2 + $0x28] sm:$0xff] %v1239
        %1378 = vst [vmem:[#allocation2 + $0x30] sm:$0xff] %v1244
        %1379 = vst [vmem:[#allocation2 + $0x38] sm:$0xff] %v1249
        %1380 = vst [vmem:[#allocation2 + $0x40] sm:$0xff] %v1254
        %1381 = vst [vmem:[#allocation2 + $0x48] sm:$0xff] %v1259
        %1382 = vst [vmem:[#allocation2 + $0x50] sm:$0xff] %v1264
        %1383 = vst [vmem:[#allocation2 + $0x58] sm:$0xff] %v1269
        %1384 = vst [vmem:[#allocation2 + $0x60] sm:$0xff] %v1274
        %1385 = vst [vmem:[#allocation2 + $0x68] sm:$0xff] %v1279
        %1386 = vst [vmem:[#allocation2 + $0x70] sm:$0xff] %v1284
        %1387 = vst [vmem:[#allocation2 + $0x78] sm:$0xff] %v1289
        %1388 = vst [vmem:[#allocation2 + $0x80] sm:$0xff] %v1294
        %1389 = vst [vmem:[#allocation2 + $0x88] sm:$0xff] %v1299
        %1390 = vst [vmem:[#allocation2 + $0x90] sm:$0xff] %v1304
        %1391 = vst [vmem:[#allocation2 + $0x98] sm:$0xff] %v1309
        %1392 = vst [vmem:[#allocation2 + $0xa0] sm:$0xff] %v1314
        %1393 = vst [vmem:[#allocation2 + $0xa8] sm:$0xff] %v1319
        %1394 = vst [vmem:[#allocation2 + $0xb0] sm:$0xff] %v1324
        %1395 = vst [vmem:[#allocation2 + $0xb8] sm:$0xff] %v1329
        %1396 = vst [vmem:[#allocation2 + $0xc0] sm:$0xff] %v1334
        %1397 = vst [vmem:[#allocation2 + $0xc8] sm:$0xff] %v1339
        %1398 = vst [vmem:[#allocation2 + $0xd0] sm:$0xff] %v1344
        %1399 = vst [vmem:[#allocation2 + $0xd8] sm:$0xff] %v1349
        %1400 = vst [vmem:[#allocation2 + $0xe0] sm:$0xff] %v1354
        %1401 = vst [vmem:[#allocation2 + $0xe8] sm:$0xff] %v1359
        %1402 = vst [vmem:[#allocation2 + $0xf0] sm:$0xff] %v1364
        %1403 = vst [vmem:[#allocation2 + $0xf8] sm:$0xff] %v1369
        %v1404 = vld [vmem:[#allocation2] sm:$0xff]
        %v1405 = vld [vmem:[#allocation2 + $0x8] sm:$0xff]
        %v1406 = vld [vmem:[#allocation2 + $0x10] sm:$0xff]
        %v1407 = vld [vmem:[#allocation2 + $0x18] sm:$0xff]
        %v1408 = vld [vmem:[#allocation2 + $0x20] sm:$0xff]
        %v1409 = vld [vmem:[#allocation2 + $0x28] sm:$0xff]
        %v1410 = vld [vmem:[#allocation2 + $0x30] sm:$0xff]
        %v1411 = vld [vmem:[#allocation2 + $0x38] sm:$0xff]
        %v1412 = vld [vmem:[#allocation2 + $0x40] sm:$0xff]
        %v1413 = vld [vmem:[#allocation2 + $0x48] sm:$0xff]
        %v1414 = vld [vmem:[#allocation2 + $0x50] sm:$0xff]
        %v1415 = vld [vmem:[#allocation2 + $0x58] sm:$0xff]
        %v1416 = vld [vmem:[#allocation2 + $0x60] sm:$0xff]
        %v1417 = vld [vmem:[#allocation2 + $0x68] sm:$0xff]
        %v1418 = vld [vmem:[#allocation2 + $0x70] sm:$0xff]
        %v1419 = vld [vmem:[#allocation2 + $0x78] sm:$0xff]
        %v1420 = vld [vmem:[#allocation2 + $0x80] sm:$0xff]
        %v1421 = vld [vmem:[#allocation2 + $0x88] sm:$0xff]
        %v1422 = vld [vmem:[#allocation2 + $0x90] sm:$0xff]
        %v1423 = vld [vmem:[#allocation2 + $0x98] sm:$0xff]
        %v1424 = vld [vmem:[#allocation2 + $0xa0] sm:$0xff]
        %v1425 = vld [vmem:[#allocation2 + $0xa8] sm:$0xff]
        %v1426 = vld [vmem:[#allocation2 + $0xb0] sm:$0xff]
        %v1427 = vld [vmem:[#allocation2 + $0xb8] sm:$0xff]
        %v1428 = vld [vmem:[#allocation2 + $0xc0] sm:$0xff]
        %v1429 = vld [vmem:[#allocation2 + $0xc8] sm:$0xff]
        %v1430 = vld [vmem:[#allocation2 + $0xd0] sm:$0xff]
        %v1431 = vld [vmem:[#allocation2 + $0xd8] sm:$0xff]
        %v1432 = vld [vmem:[#allocation2 + $0xe0] sm:$0xff]
        %v1433 = vld [vmem:[#allocation2 + $0xe8] sm:$0xff]
        %v1434 = vld [vmem:[#allocation2 + $0xf0] sm:$0xff]
        %v1435 = vld [vmem:[#allocation2 + $0xf8] sm:$0xff]
        %v1436 = vld [vmem:[%s347] sm:$0xff]
        %v1437 = vld [vmem:[%s347 + $0x8] sm:$0xff]
        %v1438 = vld [vmem:[%s347 + $0x10] sm:$0xff]
        %v1439 = vld [vmem:[%s347 + $0x18] sm:$0xff]
        %v1440 = vld [vmem:[%s347 + $0x20] sm:$0xff]
        %v1441 = vld [vmem:[%s347 + $0x28] sm:$0xff]
        %v1442 = vld [vmem:[%s347 + $0x30] sm:$0xff]
        %v1443 = vld [vmem:[%s347 + $0x38] sm:$0xff]
        %v1444 = vld [vmem:[%s347 + $0x40] sm:$0xff]
        %v1445 = vld [vmem:[%s347 + $0x48] sm:$0xff]
        %v1446 = vld [vmem:[%s347 + $0x50] sm:$0xff]
        %v1447 = vld [vmem:[%s347 + $0x58] sm:$0xff]
        %v1448 = vld [vmem:[%s347 + $0x60] sm:$0xff]
        %v1449 = vld [vmem:[%s347 + $0x68] sm:$0xff]
        %v1450 = vld [vmem:[%s347 + $0x70] sm:$0xff]
        %v1451 = vld [vmem:[%s347 + $0x78] sm:$0xff]
        %v1452 = vld [vmem:[%s347 + $0x80] sm:$0xff]
        %v1453 = vld [vmem:[%s347 + $0x88] sm:$0xff]
        %v1454 = vld [vmem:[%s347 + $0x90] sm:$0xff]
        %v1455 = vld [vmem:[%s347 + $0x98] sm:$0xff]
        %v1456 = vld [vmem:[%s347 + $0xa0] sm:$0xff]
        %v1457 = vld [vmem:[%s347 + $0xa8] sm:$0xff]
        %v1458 = vld [vmem:[%s347 + $0xb0] sm:$0xff]
        %v1459 = vld [vmem:[%s347 + $0xb8] sm:$0xff]
        %v1460 = vld [vmem:[%s347 + $0xc0] sm:$0xff]
        %v1461 = vld [vmem:[%s347 + $0xc8] sm:$0xff]
        %v1462 = vld [vmem:[%s347 + $0xd0] sm:$0xff]
        %v1463 = vld [vmem:[%s347 + $0xd8] sm:$0xff]
        %v1464 = vld [vmem:[%s347 + $0xe0] sm:$0xff]
        %v1465 = vld [vmem:[%s347 + $0xe8] sm:$0xff]
        %v1466 = vld [vmem:[%s347 + $0xf0] sm:$0xff]
        %v1467 = vld [vmem:[%s347 + $0xf8] sm:$0xff]
        %s1468 = scalar_lea.vmem %s2, 128
        %v1469 = vld [vmem:[%s1468] sm:$0xff]
        %v1470 = vld [vmem:[%s1468 + $0x8] sm:$0xff]
        %v1471 = vld [vmem:[%s1468 + $0x10] sm:$0xff]
        %v1472 = vld [vmem:[%s1468 + $0x18] sm:$0xff]
        %v1473 = vld [vmem:[%s1468 + $0x20] sm:$0xff]
        %v1474 = vld [vmem:[%s1468 + $0x28] sm:$0xff]
        %v1475 = vld [vmem:[%s1468 + $0x30] sm:$0xff]
        %v1476 = vld [vmem:[%s1468 + $0x38] sm:$0xff]
        %v1477 = vld [vmem:[%s1468 + $0x40] sm:$0xff]
        %v1478 = vld [vmem:[%s1468 + $0x48] sm:$0xff]
        %v1479 = vld [vmem:[%s1468 + $0x50] sm:$0xff]
        %v1480 = vld [vmem:[%s1468 + $0x58] sm:$0xff]
        %v1481 = vld [vmem:[%s1468 + $0x60] sm:$0xff]
        %v1482 = vld [vmem:[%s1468 + $0x68] sm:$0xff]
        %v1483 = vld [vmem:[%s1468 + $0x70] sm:$0xff]
        %v1484 = vld [vmem:[%s1468 + $0x78] sm:$0xff]
        %s1485 = scalar_lea.vmem [#allocation6], 96
        %v1486 = vld [vmem:[%s1485] sm:$0xff]
        %v1487 = vld [vmem:[%s1485 + $0x8] sm:$0xff]
        %v1488 = vld [vmem:[%s1485 + $0x10] sm:$0xff]
        %v1489 = vld [vmem:[%s1485 + $0x18] sm:$0xff]
        %v1490 = vld [vmem:[%s1485 + $0x20] sm:$0xff]
        %v1491 = vld [vmem:[%s1485 + $0x28] sm:$0xff]
        %v1492 = vld [vmem:[%s1485 + $0x30] sm:$0xff]
        %v1493 = vld [vmem:[%s1485 + $0x38] sm:$0xff]
        %v1494 = vld [vmem:[%s1485 + $0x40] sm:$0xff]
        %v1495 = vld [vmem:[%s1485 + $0x48] sm:$0xff]
        %v1496 = vld [vmem:[%s1485 + $0x50] sm:$0xff]
        %v1497 = vld [vmem:[%s1485 + $0x58] sm:$0xff]
        %v1499 = vsel %vm506, %v1436, 0
        %v1502 = vsel %vm506, %v1437, 0
        %v1505 = vsel %vm506, %v1438, 0
        %v1508 = vsel %vm506, %v1439, 0
        %v1511 = vsel %vm506, %v1440, 0
        %v1514 = vsel %vm506, %v1441, 0
        %v1517 = vsel %vm506, %v1442, 0
        %v1520 = vsel %vm506, %v1443, 0
        %v1523 = vsel %vm506, %v1444, 0
        %v1526 = vsel %vm506, %v1445, 0
        %v1529 = vsel %vm506, %v1446, 0
        %v1532 = vsel %vm506, %v1447, 0
        %v1535 = vsel %vm506, %v1448, 0
        %v1538 = vsel %vm506, %v1449, 0
        %v1541 = vsel %vm506, %v1450, 0
        %v1544 = vsel %vm506, %v1451, 0
        %v1547 = vsel %vm506, %v1452, 0
        %v1550 = vsel %vm506, %v1453, 0
        %v1553 = vsel %vm506, %v1454, 0
        %v1556 = vsel %vm506, %v1455, 0
        %v1559 = vsel %vm506, %v1456, 0
        %v1562 = vsel %vm506, %v1457, 0
        %v1565 = vsel %vm506, %v1458, 0
        %v1568 = vsel %vm506, %v1459, 0
        %v1571 = vsel %vm506, %v1460, 0
        %v1574 = vsel %vm506, %v1461, 0
        %v1577 = vsel %vm506, %v1462, 0
        %v1580 = vsel %vm506, %v1463, 0
        %v1583 = vsel %vm506, %v1464, 0
        %v1586 = vsel %vm506, %v1465, 0
        %v1589 = vsel %vm506, %v1466, 0
        %v1592 = vsel %vm506, %v1467, 0
        %1594 = vmatprep.subr.mxu0 0.0
        %1595 = vmatpush1.msra.mxu0 0.0
        %1596 = vmatprep.subr.mxu0 0.0
        %1597 = vmatpush1.msra.mxu0 0.0
        %1598 = vmatprep.subr.mxu0 0.0
        %1599 = vmatpush1.msra.mxu0 0.0
        %1600 = vmatprep.subr.mxu0 0.0
        %1601 = vmatpush1.msra.mxu0 0.0
        %1602 = vmatprep.subr.mxu0 0.0
        %1603 = vmatpush1.msra.mxu0 %v1497
        %1604 = vmatprep.subr.mxu0 0.0
        %1605 = vmatpush1.msra.mxu0 %v1496
        %1606 = vmatprep.subr.mxu0 0.0
        %1607 = vmatpush1.msra.mxu0 %v1495
        %1608 = vmatprep.subr.mxu0 0.0
        %1609 = vmatpush1.msra.mxu0 %v1494
        %1610 = vmatprep.subr.mxu0 0.0
        %1611 = vmatpush1.msra.mxu0 %v1493
        %1612 = vmatprep.subr.mxu0 0.0
        %1613 = vmatpush1.msra.mxu0 %v1492
        %1614 = vmatprep.subr.mxu0 0.0
        %1615 = vmatpush1.msra.mxu0 %v1491
        %1616 = vmatprep.subr.mxu0 0.0
        %1617 = vmatpush1.msra.mxu0 %v1490
        %1618 = vmatprep.subr.mxu0 0.0
        %1619 = vmatpush1.msra.mxu0 %v1489
        %1620 = vmatprep.subr.mxu0 0.0
        %1621 = vmatpush1.msra.mxu0 %v1488
        %1622 = vmatprep.subr.mxu0 0.0
        %1623 = vmatpush1.msra.mxu0 %v1487
        %1624 = vmatprep.subr.mxu0 0.0
        %1625 = vmatpush1.msra.mxu0 %v1486
        %1626 = vmatprep.subr.mxu0 0.0
        %1627 = vmatpush2.msra.mxu0 0.0
        %1628 = vmatprep.subr.mxu0 0.0
        %1629 = vmatpush2.msra.mxu0 0.0
        %1630 = vmatprep.subr.mxu0 0.0
        %1631 = vmatpush2.msra.mxu0 0.0
        %1632 = vmatprep.subr.mxu0 0.0
        %1633 = vmatpush2.msra.mxu0 0.0
        %1634 = vmatprep.subr.mxu0 0.0
        %1635 = vmatpush2.msra.mxu0 0.0
        %1636 = vmatprep.subr.mxu0 0.0
        %1637 = vmatpush2.msra.mxu0 0.0
        %1638 = vmatprep.subr.mxu0 0.0
        %1639 = vmatpush2.msra.mxu0 0.0
        %1640 = vmatprep.subr.mxu0 0.0
        %1641 = vmatpush2.msra.mxu0 0.0
        %1642 = vmatprep.subr.mxu0 0.0
        %1643 = vmatpush2.msra.mxu0 0.0
        %1644 = vmatprep.subr.mxu0 0.0
        %1645 = vmatpush2.msra.mxu0 0.0
        %1646 = vmatprep.subr.mxu0 0.0
        %1647 = vmatpush2.msra.mxu0 0.0
        %1648 = vmatprep.subr.mxu0 0.0
        %1649 = vmatpush2.msra.mxu0 0.0
        %1650 = vmatprep.subr.mxu0 0.0
        %1651 = vmatpush2.msra.mxu0 0.0
        %1652 = vmatprep.subr.mxu0 0.0
        %1653 = vmatpush2.msra.mxu0 0.0
        %1654 = vmatprep.subr.mxu0 0.0
        %1655 = vmatpush2.msra.mxu0 0.0
        %1656 = vmatprep.subr.mxu0 0.0
        %1657 = vmatpush2.msra.mxu0 0.0
        %1658 = vmatprep.mubr.f32.mxu0 0.0
        %1659 = vmatmul.mubr.f32.gmra.mxu0 %v1499
        %v1660 = vpop.f32.mrf.mxu0
        %v1661 = vadd.f32 0.0, %v1660
        %v1662 = vpop.f32.mrf.mxu0
        %1663 = vmatprep.mubr.f32.mxu0 0.0
        %1664 = vmatmul.mubr.f32.gmra.mxu0 %v1502
        %v1665 = vpop.f32.mrf.mxu0
        %v1666 = vadd.f32 0.0, %v1665
        %v1667 = vpop.f32.mrf.mxu0
        %1668 = vmatprep.mubr.f32.mxu0 0.0
        %1669 = vmatmul.mubr.f32.gmra.mxu0 %v1505
        %v1670 = vpop.f32.mrf.mxu0
        %v1671 = vadd.f32 0.0, %v1670
        %v1672 = vpop.f32.mrf.mxu0
        %1673 = vmatprep.mubr.f32.mxu0 0.0
        %1674 = vmatmul.mubr.f32.gmra.mxu0 %v1508
        %v1675 = vpop.f32.mrf.mxu0
        %v1676 = vadd.f32 0.0, %v1675
        %v1677 = vpop.f32.mrf.mxu0
        %1678 = vmatprep.mubr.f32.mxu0 0.0
        %1679 = vmatmul.mubr.f32.gmra.mxu0 %v1511
        %v1680 = vpop.f32.mrf.mxu0
        %v1681 = vadd.f32 0.0, %v1680
        %v1682 = vpop.f32.mrf.mxu0
        %1683 = vmatprep.mubr.f32.mxu0 0.0
        %1684 = vmatmul.mubr.f32.gmra.mxu0 %v1514
        %v1685 = vpop.f32.mrf.mxu0
        %v1686 = vadd.f32 0.0, %v1685
        %v1687 = vpop.f32.mrf.mxu0
        %1688 = vmatprep.mubr.f32.mxu0 0.0
        %1689 = vmatmul.mubr.f32.gmra.mxu0 %v1517
        %v1690 = vpop.f32.mrf.mxu0
        %v1691 = vadd.f32 0.0, %v1690
        %v1692 = vpop.f32.mrf.mxu0
        %1693 = vmatprep.mubr.f32.mxu0 0.0
        %1694 = vmatmul.mubr.f32.gmra.mxu0 %v1520
        %v1695 = vpop.f32.mrf.mxu0
        %v1696 = vadd.f32 0.0, %v1695
        %v1697 = vpop.f32.mrf.mxu0
        %1698 = vmatprep.mubr.f32.mxu0 0.0
        %1699 = vmatmul.mubr.f32.gmra.mxu0 %v1523
        %v1700 = vpop.f32.mrf.mxu0
        %v1701 = vadd.f32 0.0, %v1700
        %v1702 = vpop.f32.mrf.mxu0
        %1703 = vmatprep.mubr.f32.mxu0 0.0
        %1704 = vmatmul.mubr.f32.gmra.mxu0 %v1526
        %v1705 = vpop.f32.mrf.mxu0
        %v1706 = vadd.f32 0.0, %v1705
        %v1707 = vpop.f32.mrf.mxu0
        %1708 = vmatprep.mubr.f32.mxu0 0.0
        %1709 = vmatmul.mubr.f32.gmra.mxu0 %v1529
        %v1710 = vpop.f32.mrf.mxu0
        %v1711 = vadd.f32 0.0, %v1710
        %v1712 = vpop.f32.mrf.mxu0
        %1713 = vmatprep.mubr.f32.mxu0 0.0
        %1714 = vmatmul.mubr.f32.gmra.mxu0 %v1532
        %v1715 = vpop.f32.mrf.mxu0
        %v1716 = vadd.f32 0.0, %v1715
        %v1717 = vpop.f32.mrf.mxu0
        %1718 = vmatprep.mubr.f32.mxu0 0.0
        %1719 = vmatmul.mubr.f32.gmra.mxu0 %v1535
        %v1720 = vpop.f32.mrf.mxu0
        %v1721 = vadd.f32 0.0, %v1720
        %v1722 = vpop.f32.mrf.mxu0
        %1723 = vmatprep.mubr.f32.mxu0 0.0
        %1724 = vmatmul.mubr.f32.gmra.mxu0 %v1538
        %v1725 = vpop.f32.mrf.mxu0
        %v1726 = vadd.f32 0.0, %v1725
        %v1727 = vpop.f32.mrf.mxu0
        %1728 = vmatprep.mubr.f32.mxu0 0.0
        %1729 = vmatmul.mubr.f32.gmra.mxu0 %v1541
        %v1730 = vpop.f32.mrf.mxu0
        %v1731 = vadd.f32 0.0, %v1730
        %v1732 = vpop.f32.mrf.mxu0
        %1733 = vmatprep.mubr.f32.mxu0 0.0
        %1734 = vmatmul.mubr.f32.gmra.mxu0 %v1544
        %v1735 = vpop.f32.mrf.mxu0
        %v1736 = vadd.f32 0.0, %v1735
        %v1737 = vpop.f32.mrf.mxu0
        %1738 = vmatprep.mubr.f32.mxu0 0.0
        %1739 = vmatmul.mubr.f32.gmra.mxu0 %v1547
        %v1740 = vpop.f32.mrf.mxu0
        %v1741 = vadd.f32 0.0, %v1740
        %v1742 = vpop.f32.mrf.mxu0
        %1743 = vmatprep.mubr.f32.mxu0 0.0
        %1744 = vmatmul.mubr.f32.gmra.mxu0 %v1550
        %v1745 = vpop.f32.mrf.mxu0
        %v1746 = vadd.f32 0.0, %v1745
        %v1747 = vpop.f32.mrf.mxu0
        %1748 = vmatprep.mubr.f32.mxu0 0.0
        %1749 = vmatmul.mubr.f32.gmra.mxu0 %v1553
        %v1750 = vpop.f32.mrf.mxu0
        %v1751 = vadd.f32 0.0, %v1750
        %v1752 = vpop.f32.mrf.mxu0
        %1753 = vmatprep.mubr.f32.mxu0 0.0
        %1754 = vmatmul.mubr.f32.gmra.mxu0 %v1556
        %v1755 = vpop.f32.mrf.mxu0
        %v1756 = vadd.f32 0.0, %v1755
        %v1757 = vpop.f32.mrf.mxu0
        %1758 = vmatprep.mubr.f32.mxu0 0.0
        %1759 = vmatmul.mubr.f32.gmra.mxu0 %v1559
        %v1760 = vpop.f32.mrf.mxu0
        %v1761 = vadd.f32 0.0, %v1760
        %v1762 = vpop.f32.mrf.mxu0
        %1763 = vmatprep.mubr.f32.mxu0 0.0
        %1764 = vmatmul.mubr.f32.gmra.mxu0 %v1562
        %v1765 = vpop.f32.mrf.mxu0
        %v1766 = vadd.f32 0.0, %v1765
        %v1767 = vpop.f32.mrf.mxu0
        %1768 = vmatprep.mubr.f32.mxu0 0.0
        %1769 = vmatmul.mubr.f32.gmra.mxu0 %v1565
        %v1770 = vpop.f32.mrf.mxu0
        %v1771 = vadd.f32 0.0, %v1770
        %v1772 = vpop.f32.mrf.mxu0
        %1773 = vmatprep.mubr.f32.mxu0 0.0
        %1774 = vmatmul.mubr.f32.gmra.mxu0 %v1568
        %v1775 = vpop.f32.mrf.mxu0
        %v1776 = vadd.f32 0.0, %v1775
        %v1777 = vpop.f32.mrf.mxu0
        %1778 = vmatprep.mubr.f32.mxu0 0.0
        %1779 = vmatmul.mubr.f32.gmra.mxu0 %v1571
        %v1780 = vpop.f32.mrf.mxu0
        %v1781 = vadd.f32 0.0, %v1780
        %v1782 = vpop.f32.mrf.mxu0
        %1783 = vmatprep.mubr.f32.mxu0 0.0
        %1784 = vmatmul.mubr.f32.gmra.mxu0 %v1574
        %v1785 = vpop.f32.mrf.mxu0
        %v1786 = vadd.f32 0.0, %v1785
        %v1787 = vpop.f32.mrf.mxu0
        %1788 = vmatprep.mubr.f32.mxu0 0.0
        %1789 = vmatmul.mubr.f32.gmra.mxu0 %v1577
        %v1790 = vpop.f32.mrf.mxu0
        %v1791 = vadd.f32 0.0, %v1790
        %v1792 = vpop.f32.mrf.mxu0
        %1793 = vmatprep.mubr.f32.mxu0 0.0
        %1794 = vmatmul.mubr.f32.gmra.mxu0 %v1580
        %v1795 = vpop.f32.mrf.mxu0
        %v1796 = vadd.f32 0.0, %v1795
        %v1797 = vpop.f32.mrf.mxu0
        %1798 = vmatprep.mubr.f32.mxu0 0.0
        %1799 = vmatmul.mubr.f32.gmra.mxu0 %v1583
        %v1800 = vpop.f32.mrf.mxu0
        %v1801 = vadd.f32 0.0, %v1800
        %v1802 = vpop.f32.mrf.mxu0
        %1803 = vmatprep.mubr.f32.mxu0 0.0
        %1804 = vmatmul.mubr.f32.gmra.mxu0 %v1586
        %v1805 = vpop.f32.mrf.mxu0
        %v1806 = vadd.f32 0.0, %v1805
        %v1807 = vpop.f32.mrf.mxu0
        %1808 = vmatprep.mubr.f32.mxu0 0.0
        %1809 = vmatmul.mubr.f32.gmra.mxu0 %v1589
        %v1810 = vpop.f32.mrf.mxu0
        %v1811 = vadd.f32 0.0, %v1810
        %v1812 = vpop.f32.mrf.mxu0
        %1813 = vmatprep.mubr.f32.mxu0 0.0
        %1814 = vmatmul.mubr.f32.gmra.mxu0 %v1592
        %v1815 = vpop.f32.mrf.mxu0
        %v1816 = vadd.f32 0.0, %v1815
        %v1817 = vpop.f32.mrf.mxu0
        %1818 = vdwg.mxu0
        %1819 = vmatprep.subr.mxu0 0.0
        %1820 = vmatpush1.msra.mxu0 %v1484
        %1821 = vmatprep.subr.mxu0 0.0
        %1822 = vmatpush1.msra.mxu0 %v1483
        %1823 = vmatprep.subr.mxu0 0.0
        %1824 = vmatpush1.msra.mxu0 %v1482
        %1825 = vmatprep.subr.mxu0 0.0
        %1826 = vmatpush1.msra.mxu0 %v1481
        %1827 = vmatprep.subr.mxu0 0.0
        %1828 = vmatpush1.msra.mxu0 %v1480
        %1829 = vmatprep.subr.mxu0 0.0
        %1830 = vmatpush1.msra.mxu0 %v1479
        %1831 = vmatprep.subr.mxu0 0.0
        %1832 = vmatpush1.msra.mxu0 %v1478
        %1833 = vmatprep.subr.mxu0 0.0
        %1834 = vmatpush1.msra.mxu0 %v1477
        %1835 = vmatprep.subr.mxu0 0.0
        %1836 = vmatpush1.msra.mxu0 %v1476
        %1837 = vmatprep.subr.mxu0 0.0
        %1838 = vmatpush1.msra.mxu0 %v1475
        %1839 = vmatprep.subr.mxu0 0.0
        %1840 = vmatpush1.msra.mxu0 %v1474
        %1841 = vmatprep.subr.mxu0 0.0
        %1842 = vmatpush1.msra.mxu0 %v1473
        %1843 = vmatprep.subr.mxu0 0.0
        %1844 = vmatpush1.msra.mxu0 %v1472
        %1845 = vmatprep.subr.mxu0 0.0
        %1846 = vmatpush1.msra.mxu0 %v1471
        %1847 = vmatprep.subr.mxu0 0.0
        %1848 = vmatpush1.msra.mxu0 %v1470
        %1849 = vmatprep.subr.mxu0 0.0
        %1850 = vmatpush1.msra.mxu0 %v1469
        %1851 = vmatprep.subr.mxu0 0.0
        %1852 = vmatpush2.msra.mxu0 0.0
        %1853 = vmatprep.subr.mxu0 0.0
        %1854 = vmatpush2.msra.mxu0 0.0
        %1855 = vmatprep.subr.mxu0 0.0
        %1856 = vmatpush2.msra.mxu0 0.0
        %1857 = vmatprep.subr.mxu0 0.0
        %1858 = vmatpush2.msra.mxu0 0.0
        %1859 = vmatprep.subr.mxu0 0.0
        %1860 = vmatpush2.msra.mxu0 0.0
        %1861 = vmatprep.subr.mxu0 0.0
        %1862 = vmatpush2.msra.mxu0 0.0
        %1863 = vmatprep.subr.mxu0 0.0
        %1864 = vmatpush2.msra.mxu0 0.0
        %1865 = vmatprep.subr.mxu0 0.0
        %1866 = vmatpush2.msra.mxu0 0.0
        %1867 = vmatprep.subr.mxu0 0.0
        %1868 = vmatpush2.msra.mxu0 0.0
        %1869 = vmatprep.subr.mxu0 0.0
        %1870 = vmatpush2.msra.mxu0 0.0
        %1871 = vmatprep.subr.mxu0 0.0
        %1872 = vmatpush2.msra.mxu0 0.0
        %1873 = vmatprep.subr.mxu0 0.0
        %1874 = vmatpush2.msra.mxu0 0.0
        %1875 = vmatprep.subr.mxu0 0.0
        %1876 = vmatpush2.msra.mxu0 0.0
        %1877 = vmatprep.subr.mxu0 0.0
        %1878 = vmatpush2.msra.mxu0 0.0
        %1879 = vmatprep.subr.mxu0 0.0
        %1880 = vmatpush2.msra.mxu0 0.0
        %1881 = vmatprep.subr.mxu0 0.0
        %1882 = vmatpush2.msra.mxu0 0.0
        %1883 = vmatprep.mubr.f32.mxu0 0.0
        %1884 = vmatmul.mubr.f32.gmra.mxu0 %v1404
        %v1885 = vpop.f32.mrf.mxu0
        %v1886 = vadd.f32 %v1661, %v1885
        %v1887 = vpop.f32.mrf.mxu0
        %1888 = vmatprep.mubr.f32.mxu0 0.0
        %1889 = vmatmul.mubr.f32.gmra.mxu0 %v1405
        %v1890 = vpop.f32.mrf.mxu0
        %v1891 = vadd.f32 %v1666, %v1890
        %v1892 = vpop.f32.mrf.mxu0
        %1893 = vmatprep.mubr.f32.mxu0 0.0
        %1894 = vmatmul.mubr.f32.gmra.mxu0 %v1406
        %v1895 = vpop.f32.mrf.mxu0
        %v1896 = vadd.f32 %v1671, %v1895
        %v1897 = vpop.f32.mrf.mxu0
        %1898 = vmatprep.mubr.f32.mxu0 0.0
        %1899 = vmatmul.mubr.f32.gmra.mxu0 %v1407
        %v1900 = vpop.f32.mrf.mxu0
        %v1901 = vadd.f32 %v1676, %v1900
        %v1902 = vpop.f32.mrf.mxu0
        %1903 = vmatprep.mubr.f32.mxu0 0.0
        %1904 = vmatmul.mubr.f32.gmra.mxu0 %v1408
        %v1905 = vpop.f32.mrf.mxu0
        %v1906 = vadd.f32 %v1681, %v1905
        %v1907 = vpop.f32.mrf.mxu0
        %1908 = vmatprep.mubr.f32.mxu0 0.0
        %1909 = vmatmul.mubr.f32.gmra.mxu0 %v1409
        %v1910 = vpop.f32.mrf.mxu0
        %v1911 = vadd.f32 %v1686, %v1910
        %v1912 = vpop.f32.mrf.mxu0
        %1913 = vmatprep.mubr.f32.mxu0 0.0
        %1914 = vmatmul.mubr.f32.gmra.mxu0 %v1410
        %v1915 = vpop.f32.mrf.mxu0
        %v1916 = vadd.f32 %v1691, %v1915
        %v1917 = vpop.f32.mrf.mxu0
        %1918 = vmatprep.mubr.f32.mxu0 0.0
        %1919 = vmatmul.mubr.f32.gmra.mxu0 %v1411
        %v1920 = vpop.f32.mrf.mxu0
        %v1921 = vadd.f32 %v1696, %v1920
        %v1922 = vpop.f32.mrf.mxu0
        %1923 = vmatprep.mubr.f32.mxu0 0.0
        %1924 = vmatmul.mubr.f32.gmra.mxu0 %v1412
        %v1925 = vpop.f32.mrf.mxu0
        %v1926 = vadd.f32 %v1701, %v1925
        %v1927 = vpop.f32.mrf.mxu0
        %1928 = vmatprep.mubr.f32.mxu0 0.0
        %1929 = vmatmul.mubr.f32.gmra.mxu0 %v1413
        %v1930 = vpop.f32.mrf.mxu0
        %v1931 = vadd.f32 %v1706, %v1930
        %v1932 = vpop.f32.mrf.mxu0
        %1933 = vmatprep.mubr.f32.mxu0 0.0
        %1934 = vmatmul.mubr.f32.gmra.mxu0 %v1414
        %v1935 = vpop.f32.mrf.mxu0
        %v1936 = vadd.f32 %v1711, %v1935
        %v1937 = vpop.f32.mrf.mxu0
        %1938 = vmatprep.mubr.f32.mxu0 0.0
        %1939 = vmatmul.mubr.f32.gmra.mxu0 %v1415
        %v1940 = vpop.f32.mrf.mxu0
        %v1941 = vadd.f32 %v1716, %v1940
        %v1942 = vpop.f32.mrf.mxu0
        %1943 = vmatprep.mubr.f32.mxu0 0.0
        %1944 = vmatmul.mubr.f32.gmra.mxu0 %v1416
        %v1945 = vpop.f32.mrf.mxu0
        %v1946 = vadd.f32 %v1721, %v1945
        %v1947 = vpop.f32.mrf.mxu0
        %1948 = vmatprep.mubr.f32.mxu0 0.0
        %1949 = vmatmul.mubr.f32.gmra.mxu0 %v1417
        %v1950 = vpop.f32.mrf.mxu0
        %v1951 = vadd.f32 %v1726, %v1950
        %v1952 = vpop.f32.mrf.mxu0
        %1953 = vmatprep.mubr.f32.mxu0 0.0
        %1954 = vmatmul.mubr.f32.gmra.mxu0 %v1418
        %v1955 = vpop.f32.mrf.mxu0
        %v1956 = vadd.f32 %v1731, %v1955
        %v1957 = vpop.f32.mrf.mxu0
        %1958 = vmatprep.mubr.f32.mxu0 0.0
        %1959 = vmatmul.mubr.f32.gmra.mxu0 %v1419
        %v1960 = vpop.f32.mrf.mxu0
        %v1961 = vadd.f32 %v1736, %v1960
        %v1962 = vpop.f32.mrf.mxu0
        %1963 = vmatprep.mubr.f32.mxu0 0.0
        %1964 = vmatmul.mubr.f32.gmra.mxu0 %v1420
        %v1965 = vpop.f32.mrf.mxu0
        %v1966 = vadd.f32 %v1741, %v1965
        %v1967 = vpop.f32.mrf.mxu0
        %1968 = vmatprep.mubr.f32.mxu0 0.0
        %1969 = vmatmul.mubr.f32.gmra.mxu0 %v1421
        %v1970 = vpop.f32.mrf.mxu0
        %v1971 = vadd.f32 %v1746, %v1970
        %v1972 = vpop.f32.mrf.mxu0
        %1973 = vmatprep.mubr.f32.mxu0 0.0
        %1974 = vmatmul.mubr.f32.gmra.mxu0 %v1422
        %v1975 = vpop.f32.mrf.mxu0
        %v1976 = vadd.f32 %v1751, %v1975
        %v1977 = vpop.f32.mrf.mxu0
        %1978 = vmatprep.mubr.f32.mxu0 0.0
        %1979 = vmatmul.mubr.f32.gmra.mxu0 %v1423
        %v1980 = vpop.f32.mrf.mxu0
        %v1981 = vadd.f32 %v1756, %v1980
        %v1982 = vpop.f32.mrf.mxu0
        %1983 = vmatprep.mubr.f32.mxu0 0.0
        %1984 = vmatmul.mubr.f32.gmra.mxu0 %v1424
        %v1985 = vpop.f32.mrf.mxu0
        %v1986 = vadd.f32 %v1761, %v1985
        %v1987 = vpop.f32.mrf.mxu0
        %1988 = vmatprep.mubr.f32.mxu0 0.0
        %1989 = vmatmul.mubr.f32.gmra.mxu0 %v1425
        %v1990 = vpop.f32.mrf.mxu0
        %v1991 = vadd.f32 %v1766, %v1990
        %v1992 = vpop.f32.mrf.mxu0
        %1993 = vmatprep.mubr.f32.mxu0 0.0
        %1994 = vmatmul.mubr.f32.gmra.mxu0 %v1426
        %v1995 = vpop.f32.mrf.mxu0
        %v1996 = vadd.f32 %v1771, %v1995
        %v1997 = vpop.f32.mrf.mxu0
        %1998 = vmatprep.mubr.f32.mxu0 0.0
        %1999 = vmatmul.mubr.f32.gmra.mxu0 %v1427
        %v2000 = vpop.f32.mrf.mxu0
        %v2001 = vadd.f32 %v1776, %v2000
        %v2002 = vpop.f32.mrf.mxu0
        %2003 = vmatprep.mubr.f32.mxu0 0.0
        %2004 = vmatmul.mubr.f32.gmra.mxu0 %v1428
        %v2005 = vpop.f32.mrf.mxu0
        %v2006 = vadd.f32 %v1781, %v2005
        %v2007 = vpop.f32.mrf.mxu0
        %2008 = vmatprep.mubr.f32.mxu0 0.0
        %2009 = vmatmul.mubr.f32.gmra.mxu0 %v1429
        %v2010 = vpop.f32.mrf.mxu0
        %v2011 = vadd.f32 %v1786, %v2010
        %v2012 = vpop.f32.mrf.mxu0
        %2013 = vmatprep.mubr.f32.mxu0 0.0
        %2014 = vmatmul.mubr.f32.gmra.mxu0 %v1430
        %v2015 = vpop.f32.mrf.mxu0
        %v2016 = vadd.f32 %v1791, %v2015
        %v2017 = vpop.f32.mrf.mxu0
        %2018 = vmatprep.mubr.f32.mxu0 0.0
        %2019 = vmatmul.mubr.f32.gmra.mxu0 %v1431
        %v2020 = vpop.f32.mrf.mxu0
        %v2021 = vadd.f32 %v1796, %v2020
        %v2022 = vpop.f32.mrf.mxu0
        %2023 = vmatprep.mubr.f32.mxu0 0.0
        %2024 = vmatmul.mubr.f32.gmra.mxu0 %v1432
        %v2025 = vpop.f32.mrf.mxu0
        %v2026 = vadd.f32 %v1801, %v2025
        %v2027 = vpop.f32.mrf.mxu0
        %2028 = vmatprep.mubr.f32.mxu0 0.0
        %2029 = vmatmul.mubr.f32.gmra.mxu0 %v1433
        %v2030 = vpop.f32.mrf.mxu0
        %v2031 = vadd.f32 %v1806, %v2030
        %v2032 = vpop.f32.mrf.mxu0
        %2033 = vmatprep.mubr.f32.mxu0 0.0
        %2034 = vmatmul.mubr.f32.gmra.mxu0 %v1434
        %v2035 = vpop.f32.mrf.mxu0
        %v2036 = vadd.f32 %v1811, %v2035
        %v2037 = vpop.f32.mrf.mxu0
        %2038 = vmatprep.mubr.f32.mxu0 0.0
        %2039 = vmatmul.mubr.f32.gmra.mxu0 %v1435
        %v2040 = vpop.f32.mrf.mxu0
        %v2041 = vadd.f32 %v1816, %v2040
        %v2042 = vpop.f32.mrf.mxu0
        %2043 = vdwg.mxu0
        %s2044 = scalar_lea.vmem %s5, 1
        %v2045 = vld [vmem:[%s2044] sm:$0x1]
        %v2047 = vlaneseq
        %v2048 = vshrl.u32 %v2047, 7
        %v2049 = vsub.s32 0, %v2048
        %v2050 = vrot.slane %v2045, %v2049
        %v2052 = vadd.f32 %v1886, %v2050
        %v2053 = vadd.f32 %v1891, %v2050
        %v2054 = vadd.f32 %v1896, %v2050
        %v2055 = vadd.f32 %v1901, %v2050
        %v2056 = vadd.f32 %v1906, %v2050
        %v2057 = vadd.f32 %v1911, %v2050
        %v2058 = vadd.f32 %v1916, %v2050
        %v2059 = vadd.f32 %v1921, %v2050
        %v2060 = vadd.f32 %v1926, %v2050
        %v2061 = vadd.f32 %v1931, %v2050
        %v2062 = vadd.f32 %v1936, %v2050
        %v2063 = vadd.f32 %v1941, %v2050
        %v2064 = vadd.f32 %v1946, %v2050
        %v2065 = vadd.f32 %v1951, %v2050
        %v2066 = vadd.f32 %v1956, %v2050
        %v2067 = vadd.f32 %v1961, %v2050
        %v2068 = vadd.f32 %v1966, %v2050
        %v2069 = vadd.f32 %v1971, %v2050
        %v2070 = vadd.f32 %v1976, %v2050
        %v2071 = vadd.f32 %v1981, %v2050
        %v2072 = vadd.f32 %v1986, %v2050
        %v2073 = vadd.f32 %v1991, %v2050
        %v2074 = vadd.f32 %v1996, %v2050
        %v2075 = vadd.f32 %v2001, %v2050
        %v2076 = vadd.f32 %v2006, %v2050
        %v2077 = vadd.f32 %v2011, %v2050
        %v2078 = vadd.f32 %v2016, %v2050
        %v2079 = vadd.f32 %v2021, %v2050
        %v2080 = vadd.f32 %v2026, %v2050
        %v2081 = vadd.f32 %v2031, %v2050
        %v2082 = vadd.f32 %v2036, %v2050
        %v2083 = vadd.f32 %v2041, %v2050
        %v2084 = vmax.f32 %v2052, 0.0
        %v2085 = vmax.f32 %v2053, 0.0
        %v2086 = vmax.f32 %v2054, 0.0
        %v2087 = vmax.f32 %v2055, 0.0
        %v2088 = vmax.f32 %v2056, 0.0
        %v2089 = vmax.f32 %v2057, 0.0
        %v2090 = vmax.f32 %v2058, 0.0
        %v2091 = vmax.f32 %v2059, 0.0
        %v2092 = vmax.f32 %v2060, 0.0
        %v2093 = vmax.f32 %v2061, 0.0
        %v2094 = vmax.f32 %v2062, 0.0
        %v2095 = vmax.f32 %v2063, 0.0
        %v2096 = vmax.f32 %v2064, 0.0
        %v2097 = vmax.f32 %v2065, 0.0
        %v2098 = vmax.f32 %v2066, 0.0
        %v2099 = vmax.f32 %v2067, 0.0
        %v2100 = vmax.f32 %v2068, 0.0
        %v2101 = vmax.f32 %v2069, 0.0
        %v2102 = vmax.f32 %v2070, 0.0
        %v2103 = vmax.f32 %v2071, 0.0
        %v2104 = vmax.f32 %v2072, 0.0
        %v2105 = vmax.f32 %v2073, 0.0
        %v2106 = vmax.f32 %v2074, 0.0
        %v2107 = vmax.f32 %v2075, 0.0
        %v2108 = vmax.f32 %v2076, 0.0
        %v2109 = vmax.f32 %v2077, 0.0
        %v2110 = vmax.f32 %v2078, 0.0
        %v2111 = vmax.f32 %v2079, 0.0
        %v2112 = vmax.f32 %v2080, 0.0
        %v2113 = vmax.f32 %v2081, 0.0
        %v2114 = vmax.f32 %v2082, 0.0
        %v2115 = vmax.f32 %v2083, 0.0
        %s2116 = scalar_lea.vmem [#allocation8], 128
        %v2117 = vld [vmem:[%s2116] sm:$0xff]
        %v2118 = vld [vmem:[%s2116 + $0x8] sm:$0xff]
        %v2119 = vld [vmem:[%s2116 + $0x10] sm:$0xff]
        %v2120 = vld [vmem:[%s2116 + $0x18] sm:$0xff]
        %v2121 = vld [vmem:[%s2116 + $0x20] sm:$0xff]
        %v2122 = vld [vmem:[%s2116 + $0x28] sm:$0xff]
        %v2123 = vld [vmem:[%s2116 + $0x30] sm:$0xff]
        %v2124 = vld [vmem:[%s2116 + $0x38] sm:$0xff]
        %v2125 = vld [vmem:[%s2116 + $0x40] sm:$0xff]
        %v2126 = vld [vmem:[%s2116 + $0x48] sm:$0xff]
        %v2127 = vld [vmem:[%s2116 + $0x50] sm:$0xff]
        %v2128 = vld [vmem:[%s2116 + $0x58] sm:$0xff]
        %v2129 = vld [vmem:[%s2116 + $0x60] sm:$0xff]
        %v2130 = vld [vmem:[%s2116 + $0x68] sm:$0xff]
        %v2131 = vld [vmem:[%s2116 + $0x70] sm:$0xff]
        %v2132 = vld [vmem:[%s2116 + $0x78] sm:$0xff]
        %s2133 = scalar_lea.vmem %s6, 1
        %v2134 = vld [vmem:[%s2133] sm:$0x1]
        %v2136 = vlaneseq
        %v2137 = vshrl.u32 %v2136, 7
        %v2138 = vsub.s32 0, %v2137
        %v2139 = vrot.slane %v2134, %v2138
        %2141 = vmatprep.subr.mxu0 0.0
        %2142 = vmatpush1.msra.mxu0 %v2132
        %2143 = vmatprep.subr.mxu0 0.0
        %2144 = vmatpush1.msra.mxu0 %v2131
        %2145 = vmatprep.subr.mxu0 0.0
        %2146 = vmatpush1.msra.mxu0 %v2130
        %2147 = vmatprep.subr.mxu0 0.0
        %2148 = vmatpush1.msra.mxu0 %v2129
        %2149 = vmatprep.subr.mxu0 0.0
        %2150 = vmatpush1.msra.mxu0 %v2128
        %2151 = vmatprep.subr.mxu0 0.0
        %2152 = vmatpush1.msra.mxu0 %v2127
        %2153 = vmatprep.subr.mxu0 0.0
        %2154 = vmatpush1.msra.mxu0 %v2126
        %2155 = vmatprep.subr.mxu0 0.0
        %2156 = vmatpush1.msra.mxu0 %v2125
        %2157 = vmatprep.subr.mxu0 0.0
        %2158 = vmatpush1.msra.mxu0 %v2124
        %2159 = vmatprep.subr.mxu0 0.0
        %2160 = vmatpush1.msra.mxu0 %v2123
        %2161 = vmatprep.subr.mxu0 0.0
        %2162 = vmatpush1.msra.mxu0 %v2122
        %2163 = vmatprep.subr.mxu0 0.0
        %2164 = vmatpush1.msra.mxu0 %v2121
        %2165 = vmatprep.subr.mxu0 0.0
        %2166 = vmatpush1.msra.mxu0 %v2120
        %2167 = vmatprep.subr.mxu0 0.0
        %2168 = vmatpush1.msra.mxu0 %v2119
        %2169 = vmatprep.subr.mxu0 0.0
        %2170 = vmatpush1.msra.mxu0 %v2118
        %2171 = vmatprep.subr.mxu0 0.0
        %2172 = vmatpush1.msra.mxu0 %v2117
        %2173 = vmatprep.subr.mxu0 0.0
        %2174 = vmatpush2.msra.mxu0 0.0
        %2175 = vmatprep.subr.mxu0 0.0
        %2176 = vmatpush2.msra.mxu0 0.0
        %2177 = vmatprep.subr.mxu0 0.0
        %2178 = vmatpush2.msra.mxu0 0.0
        %2179 = vmatprep.subr.mxu0 0.0
        %2180 = vmatpush2.msra.mxu0 0.0
        %2181 = vmatprep.subr.mxu0 0.0
        %2182 = vmatpush2.msra.mxu0 0.0
        %2183 = vmatprep.subr.mxu0 0.0
        %2184 = vmatpush2.msra.mxu0 0.0
        %2185 = vmatprep.subr.mxu0 0.0
        %2186 = vmatpush2.msra.mxu0 0.0
        %2187 = vmatprep.subr.mxu0 0.0
        %2188 = vmatpush2.msra.mxu0 0.0
        %2189 = vmatprep.subr.mxu0 0.0
        %2190 = vmatpush2.msra.mxu0 0.0
        %2191 = vmatprep.subr.mxu0 0.0
        %2192 = vmatpush2.msra.mxu0 0.0
        %2193 = vmatprep.subr.mxu0 0.0
        %2194 = vmatpush2.msra.mxu0 0.0
        %2195 = vmatprep.subr.mxu0 0.0
        %2196 = vmatpush2.msra.mxu0 0.0
        %2197 = vmatprep.subr.mxu0 0.0
        %2198 = vmatpush2.msra.mxu0 0.0
        %2199 = vmatprep.subr.mxu0 0.0
        %2200 = vmatpush2.msra.mxu0 0.0
        %2201 = vmatprep.subr.mxu0 0.0
        %2202 = vmatpush2.msra.mxu0 0.0
        %2203 = vmatprep.subr.mxu0 0.0
        %2204 = vmatpush2.msra.mxu0 0.0
        %2205 = vmatprep.mubr.f32.mxu0 0.0
        %2206 = vmatmul.mubr.f32.gmra.mxu0 %v2084
        %v2207 = vpop.f32.mrf.mxu0
        %v2208 = vadd.f32 %v2139, %v2207
        %v2209 = vpop.f32.mrf.mxu0
        %2210 = vmatprep.mubr.f32.mxu0 0.0
        %2211 = vmatmul.mubr.f32.gmra.mxu0 %v2085
        %v2212 = vpop.f32.mrf.mxu0
        %v2213 = vadd.f32 %v2139, %v2212
        %v2214 = vpop.f32.mrf.mxu0
        %2215 = vmatprep.mubr.f32.mxu0 0.0
        %2216 = vmatmul.mubr.f32.gmra.mxu0 %v2086
        %v2217 = vpop.f32.mrf.mxu0
        %v2218 = vadd.f32 %v2139, %v2217
        %v2219 = vpop.f32.mrf.mxu0
        %2220 = vmatprep.mubr.f32.mxu0 0.0
        %2221 = vmatmul.mubr.f32.gmra.mxu0 %v2087
        %v2222 = vpop.f32.mrf.mxu0
        %v2223 = vadd.f32 %v2139, %v2222
        %v2224 = vpop.f32.mrf.mxu0
        %2225 = vmatprep.mubr.f32.mxu0 0.0
        %2226 = vmatmul.mubr.f32.gmra.mxu0 %v2088
        %v2227 = vpop.f32.mrf.mxu0
        %v2228 = vadd.f32 %v2139, %v2227
        %v2229 = vpop.f32.mrf.mxu0
        %2230 = vmatprep.mubr.f32.mxu0 0.0
        %2231 = vmatmul.mubr.f32.gmra.mxu0 %v2089
        %v2232 = vpop.f32.mrf.mxu0
        %v2233 = vadd.f32 %v2139, %v2232
        %v2234 = vpop.f32.mrf.mxu0
        %2235 = vmatprep.mubr.f32.mxu0 0.0
        %2236 = vmatmul.mubr.f32.gmra.mxu0 %v2090
        %v2237 = vpop.f32.mrf.mxu0
        %v2238 = vadd.f32 %v2139, %v2237
        %v2239 = vpop.f32.mrf.mxu0
        %2240 = vmatprep.mubr.f32.mxu0 0.0
        %2241 = vmatmul.mubr.f32.gmra.mxu0 %v2091
        %v2242 = vpop.f32.mrf.mxu0
        %v2243 = vadd.f32 %v2139, %v2242
        %v2244 = vpop.f32.mrf.mxu0
        %2245 = vmatprep.mubr.f32.mxu0 0.0
        %2246 = vmatmul.mubr.f32.gmra.mxu0 %v2092
        %v2247 = vpop.f32.mrf.mxu0
        %v2248 = vadd.f32 %v2139, %v2247
        %v2249 = vpop.f32.mrf.mxu0
        %2250 = vmatprep.mubr.f32.mxu0 0.0
        %2251 = vmatmul.mubr.f32.gmra.mxu0 %v2093
        %v2252 = vpop.f32.mrf.mxu0
        %v2253 = vadd.f32 %v2139, %v2252
        %v2254 = vpop.f32.mrf.mxu0
        %2255 = vmatprep.mubr.f32.mxu0 0.0
        %2256 = vmatmul.mubr.f32.gmra.mxu0 %v2094
        %v2257 = vpop.f32.mrf.mxu0
        %v2258 = vadd.f32 %v2139, %v2257
        %v2259 = vpop.f32.mrf.mxu0
        %2260 = vmatprep.mubr.f32.mxu0 0.0
        %2261 = vmatmul.mubr.f32.gmra.mxu0 %v2095
        %v2262 = vpop.f32.mrf.mxu0
        %v2263 = vadd.f32 %v2139, %v2262
        %v2264 = vpop.f32.mrf.mxu0
        %2265 = vmatprep.mubr.f32.mxu0 0.0
        %2266 = vmatmul.mubr.f32.gmra.mxu0 %v2096
        %v2267 = vpop.f32.mrf.mxu0
        %v2268 = vadd.f32 %v2139, %v2267
        %v2269 = vpop.f32.mrf.mxu0
        %2270 = vmatprep.mubr.f32.mxu0 0.0
        %2271 = vmatmul.mubr.f32.gmra.mxu0 %v2097
        %v2272 = vpop.f32.mrf.mxu0
        %v2273 = vadd.f32 %v2139, %v2272
        %v2274 = vpop.f32.mrf.mxu0
        %2275 = vmatprep.mubr.f32.mxu0 0.0
        %2276 = vmatmul.mubr.f32.gmra.mxu0 %v2098
        %v2277 = vpop.f32.mrf.mxu0
        %v2278 = vadd.f32 %v2139, %v2277
        %v2279 = vpop.f32.mrf.mxu0
        %2280 = vmatprep.mubr.f32.mxu0 0.0
        %2281 = vmatmul.mubr.f32.gmra.mxu0 %v2099
        %v2282 = vpop.f32.mrf.mxu0
        %v2283 = vadd.f32 %v2139, %v2282
        %v2284 = vpop.f32.mrf.mxu0
        %2285 = vmatprep.mubr.f32.mxu0 0.0
        %2286 = vmatmul.mubr.f32.gmra.mxu0 %v2100
        %v2287 = vpop.f32.mrf.mxu0
        %v2288 = vadd.f32 %v2139, %v2287
        %v2289 = vpop.f32.mrf.mxu0
        %2290 = vmatprep.mubr.f32.mxu0 0.0
        %2291 = vmatmul.mubr.f32.gmra.mxu0 %v2101
        %v2292 = vpop.f32.mrf.mxu0
        %v2293 = vadd.f32 %v2139, %v2292
        %v2294 = vpop.f32.mrf.mxu0
        %2295 = vmatprep.mubr.f32.mxu0 0.0
        %2296 = vmatmul.mubr.f32.gmra.mxu0 %v2102
        %v2297 = vpop.f32.mrf.mxu0
        %v2298 = vadd.f32 %v2139, %v2297
        %v2299 = vpop.f32.mrf.mxu0
        %2300 = vmatprep.mubr.f32.mxu0 0.0
        %2301 = vmatmul.mubr.f32.gmra.mxu0 %v2103
        %v2302 = vpop.f32.mrf.mxu0
        %v2303 = vadd.f32 %v2139, %v2302
        %v2304 = vpop.f32.mrf.mxu0
        %2305 = vmatprep.mubr.f32.mxu0 0.0
        %2306 = vmatmul.mubr.f32.gmra.mxu0 %v2104
        %v2307 = vpop.f32.mrf.mxu0
        %v2308 = vadd.f32 %v2139, %v2307
        %v2309 = vpop.f32.mrf.mxu0
        %2310 = vmatprep.mubr.f32.mxu0 0.0
        %2311 = vmatmul.mubr.f32.gmra.mxu0 %v2105
        %v2312 = vpop.f32.mrf.mxu0
        %v2313 = vadd.f32 %v2139, %v2312
        %v2314 = vpop.f32.mrf.mxu0
        %2315 = vmatprep.mubr.f32.mxu0 0.0
        %2316 = vmatmul.mubr.f32.gmra.mxu0 %v2106
        %v2317 = vpop.f32.mrf.mxu0
        %v2318 = vadd.f32 %v2139, %v2317
        %v2319 = vpop.f32.mrf.mxu0
        %2320 = vmatprep.mubr.f32.mxu0 0.0
        %2321 = vmatmul.mubr.f32.gmra.mxu0 %v2107
        %v2322 = vpop.f32.mrf.mxu0
        %v2323 = vadd.f32 %v2139, %v2322
        %v2324 = vpop.f32.mrf.mxu0
        %2325 = vmatprep.mubr.f32.mxu0 0.0
        %2326 = vmatmul.mubr.f32.gmra.mxu0 %v2108
        %v2327 = vpop.f32.mrf.mxu0
        %v2328 = vadd.f32 %v2139, %v2327
        %v2329 = vpop.f32.mrf.mxu0
        %2330 = vmatprep.mubr.f32.mxu0 0.0
        %2331 = vmatmul.mubr.f32.gmra.mxu0 %v2109
        %v2332 = vpop.f32.mrf.mxu0
        %v2333 = vadd.f32 %v2139, %v2332
        %v2334 = vpop.f32.mrf.mxu0
        %2335 = vmatprep.mubr.f32.mxu0 0.0
        %2336 = vmatmul.mubr.f32.gmra.mxu0 %v2110
        %v2337 = vpop.f32.mrf.mxu0
        %v2338 = vadd.f32 %v2139, %v2337
        %v2339 = vpop.f32.mrf.mxu0
        %2340 = vmatprep.mubr.f32.mxu0 0.0
        %2341 = vmatmul.mubr.f32.gmra.mxu0 %v2111
        %v2342 = vpop.f32.mrf.mxu0
        %v2343 = vadd.f32 %v2139, %v2342
        %v2344 = vpop.f32.mrf.mxu0
        %2345 = vmatprep.mubr.f32.mxu0 0.0
        %2346 = vmatmul.mubr.f32.gmra.mxu0 %v2112
        %v2347 = vpop.f32.mrf.mxu0
        %v2348 = vadd.f32 %v2139, %v2347
        %v2349 = vpop.f32.mrf.mxu0
        %2350 = vmatprep.mubr.f32.mxu0 0.0
        %2351 = vmatmul.mubr.f32.gmra.mxu0 %v2113
        %v2352 = vpop.f32.mrf.mxu0
        %v2353 = vadd.f32 %v2139, %v2352
        %v2354 = vpop.f32.mrf.mxu0
        %2355 = vmatprep.mubr.f32.mxu0 0.0
        %2356 = vmatmul.mubr.f32.gmra.mxu0 %v2114
        %v2357 = vpop.f32.mrf.mxu0
        %v2358 = vadd.f32 %v2139, %v2357
        %v2359 = vpop.f32.mrf.mxu0
        %2360 = vmatprep.mubr.f32.mxu0 0.0
        %2361 = vmatmul.mubr.f32.gmra.mxu0 %v2115
        %v2362 = vpop.f32.mrf.mxu0
        %v2363 = vadd.f32 %v2139, %v2362
        %v2364 = vpop.f32.mrf.mxu0
        %2365 = vdwg.mxu0
        %v2366 = vadd.f32 %v2208, %v1404
        %v2367 = vadd.f32 %v2213, %v1405
        %v2368 = vadd.f32 %v2218, %v1406
        %v2369 = vadd.f32 %v2223, %v1407
        %v2370 = vadd.f32 %v2228, %v1408
        %v2371 = vadd.f32 %v2233, %v1409
        %v2372 = vadd.f32 %v2238, %v1410
        %v2373 = vadd.f32 %v2243, %v1411
        %v2374 = vadd.f32 %v2248, %v1412
        %v2375 = vadd.f32 %v2253, %v1413
        %v2376 = vadd.f32 %v2258, %v1414
        %v2377 = vadd.f32 %v2263, %v1415
        %v2378 = vadd.f32 %v2268, %v1416
        %v2379 = vadd.f32 %v2273, %v1417
        %v2380 = vadd.f32 %v2278, %v1418
        %v2381 = vadd.f32 %v2283, %v1419
        %v2382 = vadd.f32 %v2288, %v1420
        %v2383 = vadd.f32 %v2293, %v1421
        %v2384 = vadd.f32 %v2298, %v1422
        %v2385 = vadd.f32 %v2303, %v1423
        %v2386 = vadd.f32 %v2308, %v1424
        %v2387 = vadd.f32 %v2313, %v1425
        %v2388 = vadd.f32 %v2318, %v1426
        %v2389 = vadd.f32 %v2323, %v1427
        %v2390 = vadd.f32 %v2328, %v1428
        %v2391 = vadd.f32 %v2333, %v1429
        %v2392 = vadd.f32 %v2338, %v1430
        %v2393 = vadd.f32 %v2343, %v1431
        %v2394 = vadd.f32 %v2348, %v1432
        %v2395 = vadd.f32 %v2353, %v1433
        %v2396 = vadd.f32 %v2358, %v1434
        %v2397 = vadd.f32 %v2363, %v1435
        %2398 = vst [vmem:[#allocation2] sm:$0xff] %v2366
        %2399 = vst [vmem:[#allocation2 + $0x8] sm:$0xff] %v2367
        %2400 = vst [vmem:[#allocation2 + $0x10] sm:$0xff] %v2368
        %2401 = vst [vmem:[#allocation2 + $0x18] sm:$0xff] %v2369
        %2402 = vst [vmem:[#allocation2 + $0x20] sm:$0xff] %v2370
        %2403 = vst [vmem:[#allocation2 + $0x28] sm:$0xff] %v2371
        %2404 = vst [vmem:[#allocation2 + $0x30] sm:$0xff] %v2372
        %2405 = vst [vmem:[#allocation2 + $0x38] sm:$0xff] %v2373
        %2406 = vst [vmem:[#allocation2 + $0x40] sm:$0xff] %v2374
        %2407 = vst [vmem:[#allocation2 + $0x48] sm:$0xff] %v2375
        %2408 = vst [vmem:[#allocation2 + $0x50] sm:$0xff] %v2376
        %2409 = vst [vmem:[#allocation2 + $0x58] sm:$0xff] %v2377
        %2410 = vst [vmem:[#allocation2 + $0x60] sm:$0xff] %v2378
        %2411 = vst [vmem:[#allocation2 + $0x68] sm:$0xff] %v2379
        %2412 = vst [vmem:[#allocation2 + $0x70] sm:$0xff] %v2380
        %2413 = vst [vmem:[#allocation2 + $0x78] sm:$0xff] %v2381
        %2414 = vst [vmem:[#allocation2 + $0x80] sm:$0xff] %v2382
        %2415 = vst [vmem:[#allocation2 + $0x88] sm:$0xff] %v2383
        %2416 = vst [vmem:[#allocation2 + $0x90] sm:$0xff] %v2384
        %2417 = vst [vmem:[#allocation2 + $0x98] sm:$0xff] %v2385
        %2418 = vst [vmem:[#allocation2 + $0xa0] sm:$0xff] %v2386
        %2419 = vst [vmem:[#allocation2 + $0xa8] sm:$0xff] %v2387
        %2420 = vst [vmem:[#allocation2 + $0xb0] sm:$0xff] %v2388
        %2421 = vst [vmem:[#allocation2 + $0xb8] sm:$0xff] %v2389
        %2422 = vst [vmem:[#allocation2 + $0xc0] sm:$0xff] %v2390
        %2423 = vst [vmem:[#allocation2 + $0xc8] sm:$0xff] %v2391
        %2424 = vst [vmem:[#allocation2 + $0xd0] sm:$0xff] %v2392
        %2425 = vst [vmem:[#allocation2 + $0xd8] sm:$0xff] %v2393
        %2426 = vst [vmem:[#allocation2 + $0xe0] sm:$0xff] %v2394
        %2427 = vst [vmem:[#allocation2 + $0xe8] sm:$0xff] %v2395
        %2428 = vst [vmem:[#allocation2 + $0xf0] sm:$0xff] %v2396
        %2429 = vst [vmem:[#allocation2 + $0xf8] sm:$0xff] %v2397
        %v2430 = vld [vmem:[#allocation2] sm:$0xff]
        %v2431 = vld [vmem:[#allocation2 + $0x8] sm:$0xff]
        %v2432 = vld [vmem:[#allocation2 + $0x10] sm:$0xff]
        %v2433 = vld [vmem:[#allocation2 + $0x18] sm:$0xff]
        %v2434 = vld [vmem:[#allocation2 + $0x20] sm:$0xff]
        %v2435 = vld [vmem:[#allocation2 + $0x28] sm:$0xff]
        %v2436 = vld [vmem:[#allocation2 + $0x30] sm:$0xff]
        %v2437 = vld [vmem:[#allocation2 + $0x38] sm:$0xff]
        %v2438 = vld [vmem:[#allocation2 + $0x40] sm:$0xff]
        %v2439 = vld [vmem:[#allocation2 + $0x48] sm:$0xff]
        %v2440 = vld [vmem:[#allocation2 + $0x50] sm:$0xff]
        %v2441 = vld [vmem:[#allocation2 + $0x58] sm:$0xff]
        %v2442 = vld [vmem:[#allocation2 + $0x60] sm:$0xff]
        %v2443 = vld [vmem:[#allocation2 + $0x68] sm:$0xff]
        %v2444 = vld [vmem:[#allocation2 + $0x70] sm:$0xff]
        %v2445 = vld [vmem:[#allocation2 + $0x78] sm:$0xff]
        %v2446 = vld [vmem:[#allocation2 + $0x80] sm:$0xff]
        %v2447 = vld [vmem:[#allocation2 + $0x88] sm:$0xff]
        %v2448 = vld [vmem:[#allocation2 + $0x90] sm:$0xff]
        %v2449 = vld [vmem:[#allocation2 + $0x98] sm:$0xff]
        %v2450 = vld [vmem:[#allocation2 + $0xa0] sm:$0xff]
        %v2451 = vld [vmem:[#allocation2 + $0xa8] sm:$0xff]
        %v2452 = vld [vmem:[#allocation2 + $0xb0] sm:$0xff]
        %v2453 = vld [vmem:[#allocation2 + $0xb8] sm:$0xff]
        %v2454 = vld [vmem:[#allocation2 + $0xc0] sm:$0xff]
        %v2455 = vld [vmem:[#allocation2 + $0xc8] sm:$0xff]
        %v2456 = vld [vmem:[#allocation2 + $0xd0] sm:$0xff]
        %v2457 = vld [vmem:[#allocation2 + $0xd8] sm:$0xff]
        %v2458 = vld [vmem:[#allocation2 + $0xe0] sm:$0xff]
        %v2459 = vld [vmem:[#allocation2 + $0xe8] sm:$0xff]
        %v2460 = vld [vmem:[#allocation2 + $0xf0] sm:$0xff]
        %v2461 = vld [vmem:[#allocation2 + $0xf8] sm:$0xff]
        %v2462 = vld [vmem:[%s347] sm:$0xff]
        %v2463 = vld [vmem:[%s347 + $0x8] sm:$0xff]
        %v2464 = vld [vmem:[%s347 + $0x10] sm:$0xff]
        %v2465 = vld [vmem:[%s347 + $0x18] sm:$0xff]
        %v2466 = vld [vmem:[%s347 + $0x20] sm:$0xff]
        %v2467 = vld [vmem:[%s347 + $0x28] sm:$0xff]
        %v2468 = vld [vmem:[%s347 + $0x30] sm:$0xff]
        %v2469 = vld [vmem:[%s347 + $0x38] sm:$0xff]
        %v2470 = vld [vmem:[%s347 + $0x40] sm:$0xff]
        %v2471 = vld [vmem:[%s347 + $0x48] sm:$0xff]
        %v2472 = vld [vmem:[%s347 + $0x50] sm:$0xff]
        %v2473 = vld [vmem:[%s347 + $0x58] sm:$0xff]
        %v2474 = vld [vmem:[%s347 + $0x60] sm:$0xff]
        %v2475 = vld [vmem:[%s347 + $0x68] sm:$0xff]
        %v2476 = vld [vmem:[%s347 + $0x70] sm:$0xff]
        %v2477 = vld [vmem:[%s347 + $0x78] sm:$0xff]
        %v2478 = vld [vmem:[%s347 + $0x80] sm:$0xff]
        %v2479 = vld [vmem:[%s347 + $0x88] sm:$0xff]
        %v2480 = vld [vmem:[%s347 + $0x90] sm:$0xff]
        %v2481 = vld [vmem:[%s347 + $0x98] sm:$0xff]
        %v2482 = vld [vmem:[%s347 + $0xa0] sm:$0xff]
        %v2483 = vld [vmem:[%s347 + $0xa8] sm:$0xff]
        %v2484 = vld [vmem:[%s347 + $0xb0] sm:$0xff]
        %v2485 = vld [vmem:[%s347 + $0xb8] sm:$0xff]
        %v2486 = vld [vmem:[%s347 + $0xc0] sm:$0xff]
        %v2487 = vld [vmem:[%s347 + $0xc8] sm:$0xff]
        %v2488 = vld [vmem:[%s347 + $0xd0] sm:$0xff]
        %v2489 = vld [vmem:[%s347 + $0xd8] sm:$0xff]
        %v2490 = vld [vmem:[%s347 + $0xe0] sm:$0xff]
        %v2491 = vld [vmem:[%s347 + $0xe8] sm:$0xff]
        %v2492 = vld [vmem:[%s347 + $0xf0] sm:$0xff]
        %v2493 = vld [vmem:[%s347 + $0xf8] sm:$0xff]
        %s2494 = scalar_lea.vmem %s2, 256
        %v2495 = vld [vmem:[%s2494] sm:$0xff]
        %v2496 = vld [vmem:[%s2494 + $0x8] sm:$0xff]
        %v2497 = vld [vmem:[%s2494 + $0x10] sm:$0xff]
        %v2498 = vld [vmem:[%s2494 + $0x18] sm:$0xff]
        %v2499 = vld [vmem:[%s2494 + $0x20] sm:$0xff]
        %v2500 = vld [vmem:[%s2494 + $0x28] sm:$0xff]
        %v2501 = vld [vmem:[%s2494 + $0x30] sm:$0xff]
        %v2502 = vld [vmem:[%s2494 + $0x38] sm:$0xff]
        %v2503 = vld [vmem:[%s2494 + $0x40] sm:$0xff]
        %v2504 = vld [vmem:[%s2494 + $0x48] sm:$0xff]
        %v2505 = vld [vmem:[%s2494 + $0x50] sm:$0xff]
        %v2506 = vld [vmem:[%s2494 + $0x58] sm:$0xff]
        %v2507 = vld [vmem:[%s2494 + $0x60] sm:$0xff]
        %v2508 = vld [vmem:[%s2494 + $0x68] sm:$0xff]
        %v2509 = vld [vmem:[%s2494 + $0x70] sm:$0xff]
        %v2510 = vld [vmem:[%s2494 + $0x78] sm:$0xff]
        %s2511 = scalar_lea.vmem [#allocation6], 192
        %v2512 = vld [vmem:[%s2511] sm:$0xff]
        %v2513 = vld [vmem:[%s2511 + $0x8] sm:$0xff]
        %v2514 = vld [vmem:[%s2511 + $0x10] sm:$0xff]
        %v2515 = vld [vmem:[%s2511 + $0x18] sm:$0xff]
        %v2516 = vld [vmem:[%s2511 + $0x20] sm:$0xff]
        %v2517 = vld [vmem:[%s2511 + $0x28] sm:$0xff]
        %v2518 = vld [vmem:[%s2511 + $0x30] sm:$0xff]
        %v2519 = vld [vmem:[%s2511 + $0x38] sm:$0xff]
        %v2520 = vld [vmem:[%s2511 + $0x40] sm:$0xff]
        %v2521 = vld [vmem:[%s2511 + $0x48] sm:$0xff]
        %v2522 = vld [vmem:[%s2511 + $0x50] sm:$0xff]
        %v2523 = vld [vmem:[%s2511 + $0x58] sm:$0xff]
        %v2525 = vsel %vm506, %v2462, 0
        %v2528 = vsel %vm506, %v2463, 0
        %v2531 = vsel %vm506, %v2464, 0
        %v2534 = vsel %vm506, %v2465, 0
        %v2537 = vsel %vm506, %v2466, 0
        %v2540 = vsel %vm506, %v2467, 0
        %v2543 = vsel %vm506, %v2468, 0
        %v2546 = vsel %vm506, %v2469, 0
        %v2549 = vsel %vm506, %v2470, 0
        %v2552 = vsel %vm506, %v2471, 0
        %v2555 = vsel %vm506, %v2472, 0
        %v2558 = vsel %vm506, %v2473, 0
        %v2561 = vsel %vm506, %v2474, 0
        %v2564 = vsel %vm506, %v2475, 0
        %v2567 = vsel %vm506, %v2476, 0
        %v2570 = vsel %vm506, %v2477, 0
        %v2573 = vsel %vm506, %v2478, 0
        %v2576 = vsel %vm506, %v2479, 0
        %v2579 = vsel %vm506, %v2480, 0
        %v2582 = vsel %vm506, %v2481, 0
        %v2585 = vsel %vm506, %v2482, 0
        %v2588 = vsel %vm506, %v2483, 0
        %v2591 = vsel %vm506, %v2484, 0
        %v2594 = vsel %vm506, %v2485, 0
        %v2597 = vsel %vm506, %v2486, 0
        %v2600 = vsel %vm506, %v2487, 0
        %v2603 = vsel %vm506, %v2488, 0
        %v2606 = vsel %vm506, %v2489, 0
        %v2609 = vsel %vm506, %v2490, 0
        %v2612 = vsel %vm506, %v2491, 0
        %v2615 = vsel %vm506, %v2492, 0
        %v2618 = vsel %vm506, %v2493, 0
        %2620 = vmatprep.subr.mxu0 0.0
        %2621 = vmatpush1.msra.mxu0 0.0
        %2622 = vmatprep.subr.mxu0 0.0
        %2623 = vmatpush1.msra.mxu0 0.0
        %2624 = vmatprep.subr.mxu0 0.0
        %2625 = vmatpush1.msra.mxu0 0.0
        %2626 = vmatprep.subr.mxu0 0.0
        %2627 = vmatpush1.msra.mxu0 0.0
        %2628 = vmatprep.subr.mxu0 0.0
        %2629 = vmatpush1.msra.mxu0 %v2523
        %2630 = vmatprep.subr.mxu0 0.0
        %2631 = vmatpush1.msra.mxu0 %v2522
        %2632 = vmatprep.subr.mxu0 0.0
        %2633 = vmatpush1.msra.mxu0 %v2521
        %2634 = vmatprep.subr.mxu0 0.0
        %2635 = vmatpush1.msra.mxu0 %v2520
        %2636 = vmatprep.subr.mxu0 0.0
        %2637 = vmatpush1.msra.mxu0 %v2519
        %2638 = vmatprep.subr.mxu0 0.0
        %2639 = vmatpush1.msra.mxu0 %v2518
        %2640 = vmatprep.subr.mxu0 0.0
        %2641 = vmatpush1.msra.mxu0 %v2517
        %2642 = vmatprep.subr.mxu0 0.0
        %2643 = vmatpush1.msra.mxu0 %v2516
        %2644 = vmatprep.subr.mxu0 0.0
        %2645 = vmatpush1.msra.mxu0 %v2515
        %2646 = vmatprep.subr.mxu0 0.0
        %2647 = vmatpush1.msra.mxu0 %v2514
        %2648 = vmatprep.subr.mxu0 0.0
        %2649 = vmatpush1.msra.mxu0 %v2513
        %2650 = vmatprep.subr.mxu0 0.0
        %2651 = vmatpush1.msra.mxu0 %v2512
        %2652 = vmatprep.subr.mxu0 0.0
        %2653 = vmatpush2.msra.mxu0 0.0
        %2654 = vmatprep.subr.mxu0 0.0
        %2655 = vmatpush2.msra.mxu0 0.0
        %2656 = vmatprep.subr.mxu0 0.0
        %2657 = vmatpush2.msra.mxu0 0.0
        %2658 = vmatprep.subr.mxu0 0.0
        %2659 = vmatpush2.msra.mxu0 0.0
        %2660 = vmatprep.subr.mxu0 0.0
        %2661 = vmatpush2.msra.mxu0 0.0
        %2662 = vmatprep.subr.mxu0 0.0
        %2663 = vmatpush2.msra.mxu0 0.0
        %2664 = vmatprep.subr.mxu0 0.0
        %2665 = vmatpush2.msra.mxu0 0.0
        %2666 = vmatprep.subr.mxu0 0.0
        %2667 = vmatpush2.msra.mxu0 0.0
        %2668 = vmatprep.subr.mxu0 0.0
        %2669 = vmatpush2.msra.mxu0 0.0
        %2670 = vmatprep.subr.mxu0 0.0
        %2671 = vmatpush2.msra.mxu0 0.0
        %2672 = vmatprep.subr.mxu0 0.0
        %2673 = vmatpush2.msra.mxu0 0.0
        %2674 = vmatprep.subr.mxu0 0.0
        %2675 = vmatpush2.msra.mxu0 0.0
        %2676 = vmatprep.subr.mxu0 0.0
        %2677 = vmatpush2.msra.mxu0 0.0
        %2678 = vmatprep.subr.mxu0 0.0
        %2679 = vmatpush2.msra.mxu0 0.0
        %2680 = vmatprep.subr.mxu0 0.0
        %2681 = vmatpush2.msra.mxu0 0.0
        %2682 = vmatprep.subr.mxu0 0.0
        %2683 = vmatpush2.msra.mxu0 0.0
        %2684 = vmatprep.mubr.f32.mxu0 0.0
        %2685 = vmatmul.mubr.f32.gmra.mxu0 %v2525
        %v2686 = vpop.f32.mrf.mxu0
        %v2687 = vadd.f32 0.0, %v2686
        %v2688 = vpop.f32.mrf.mxu0
        %2689 = vmatprep.mubr.f32.mxu0 0.0
        %2690 = vmatmul.mubr.f32.gmra.mxu0 %v2528
        %v2691 = vpop.f32.mrf.mxu0
        %v2692 = vadd.f32 0.0, %v2691
        %v2693 = vpop.f32.mrf.mxu0
        %2694 = vmatprep.mubr.f32.mxu0 0.0
        %2695 = vmatmul.mubr.f32.gmra.mxu0 %v2531
        %v2696 = vpop.f32.mrf.mxu0
        %v2697 = vadd.f32 0.0, %v2696
        %v2698 = vpop.f32.mrf.mxu0
        %2699 = vmatprep.mubr.f32.mxu0 0.0
        %2700 = vmatmul.mubr.f32.gmra.mxu0 %v2534
        %v2701 = vpop.f32.mrf.mxu0
        %v2702 = vadd.f32 0.0, %v2701
        %v2703 = vpop.f32.mrf.mxu0
        %2704 = vmatprep.mubr.f32.mxu0 0.0
        %2705 = vmatmul.mubr.f32.gmra.mxu0 %v2537
        %v2706 = vpop.f32.mrf.mxu0
        %v2707 = vadd.f32 0.0, %v2706
        %v2708 = vpop.f32.mrf.mxu0
        %2709 = vmatprep.mubr.f32.mxu0 0.0
        %2710 = vmatmul.mubr.f32.gmra.mxu0 %v2540
        %v2711 = vpop.f32.mrf.mxu0
        %v2712 = vadd.f32 0.0, %v2711
        %v2713 = vpop.f32.mrf.mxu0
        %2714 = vmatprep.mubr.f32.mxu0 0.0
        %2715 = vmatmul.mubr.f32.gmra.mxu0 %v2543
        %v2716 = vpop.f32.mrf.mxu0
        %v2717 = vadd.f32 0.0, %v2716
        %v2718 = vpop.f32.mrf.mxu0
        %2719 = vmatprep.mubr.f32.mxu0 0.0
        %2720 = vmatmul.mubr.f32.gmra.mxu0 %v2546
        %v2721 = vpop.f32.mrf.mxu0
        %v2722 = vadd.f32 0.0, %v2721
        %v2723 = vpop.f32.mrf.mxu0
        %2724 = vmatprep.mubr.f32.mxu0 0.0
        %2725 = vmatmul.mubr.f32.gmra.mxu0 %v2549
        %v2726 = vpop.f32.mrf.mxu0
        %v2727 = vadd.f32 0.0, %v2726
        %v2728 = vpop.f32.mrf.mxu0
        %2729 = vmatprep.mubr.f32.mxu0 0.0
        %2730 = vmatmul.mubr.f32.gmra.mxu0 %v2552
        %v2731 = vpop.f32.mrf.mxu0
        %v2732 = vadd.f32 0.0, %v2731
        %v2733 = vpop.f32.mrf.mxu0
        %2734 = vmatprep.mubr.f32.mxu0 0.0
        %2735 = vmatmul.mubr.f32.gmra.mxu0 %v2555
        %v2736 = vpop.f32.mrf.mxu0
        %v2737 = vadd.f32 0.0, %v2736
        %v2738 = vpop.f32.mrf.mxu0
        %2739 = vmatprep.mubr.f32.mxu0 0.0
        %2740 = vmatmul.mubr.f32.gmra.mxu0 %v2558
        %v2741 = vpop.f32.mrf.mxu0
        %v2742 = vadd.f32 0.0, %v2741
        %v2743 = vpop.f32.mrf.mxu0
        %2744 = vmatprep.mubr.f32.mxu0 0.0
        %2745 = vmatmul.mubr.f32.gmra.mxu0 %v2561
        %v2746 = vpop.f32.mrf.mxu0
        %v2747 = vadd.f32 0.0, %v2746
        %v2748 = vpop.f32.mrf.mxu0
        %2749 = vmatprep.mubr.f32.mxu0 0.0
        %2750 = vmatmul.mubr.f32.gmra.mxu0 %v2564
        %v2751 = vpop.f32.mrf.mxu0
        %v2752 = vadd.f32 0.0, %v2751
        %v2753 = vpop.f32.mrf.mxu0
        %2754 = vmatprep.mubr.f32.mxu0 0.0
        %2755 = vmatmul.mubr.f32.gmra.mxu0 %v2567
        %v2756 = vpop.f32.mrf.mxu0
        %v2757 = vadd.f32 0.0, %v2756
        %v2758 = vpop.f32.mrf.mxu0
        %2759 = vmatprep.mubr.f32.mxu0 0.0
        %2760 = vmatmul.mubr.f32.gmra.mxu0 %v2570
        %v2761 = vpop.f32.mrf.mxu0
        %v2762 = vadd.f32 0.0, %v2761
        %v2763 = vpop.f32.mrf.mxu0
        %2764 = vmatprep.mubr.f32.mxu0 0.0
        %2765 = vmatmul.mubr.f32.gmra.mxu0 %v2573
        %v2766 = vpop.f32.mrf.mxu0
        %v2767 = vadd.f32 0.0, %v2766
        %v2768 = vpop.f32.mrf.mxu0
        %2769 = vmatprep.mubr.f32.mxu0 0.0
        %2770 = vmatmul.mubr.f32.gmra.mxu0 %v2576
        %v2771 = vpop.f32.mrf.mxu0
        %v2772 = vadd.f32 0.0, %v2771
        %v2773 = vpop.f32.mrf.mxu0
        %2774 = vmatprep.mubr.f32.mxu0 0.0
        %2775 = vmatmul.mubr.f32.gmra.mxu0 %v2579
        %v2776 = vpop.f32.mrf.mxu0
        %v2777 = vadd.f32 0.0, %v2776
        %v2778 = vpop.f32.mrf.mxu0
        %2779 = vmatprep.mubr.f32.mxu0 0.0
        %2780 = vmatmul.mubr.f32.gmra.mxu0 %v2582
        %v2781 = vpop.f32.mrf.mxu0
        %v2782 = vadd.f32 0.0, %v2781
        %v2783 = vpop.f32.mrf.mxu0
        %2784 = vmatprep.mubr.f32.mxu0 0.0
        %2785 = vmatmul.mubr.f32.gmra.mxu0 %v2585
        %v2786 = vpop.f32.mrf.mxu0
        %v2787 = vadd.f32 0.0, %v2786
        %v2788 = vpop.f32.mrf.mxu0
        %2789 = vmatprep.mubr.f32.mxu0 0.0
        %2790 = vmatmul.mubr.f32.gmra.mxu0 %v2588
        %v2791 = vpop.f32.mrf.mxu0
        %v2792 = vadd.f32 0.0, %v2791
        %v2793 = vpop.f32.mrf.mxu0
        %2794 = vmatprep.mubr.f32.mxu0 0.0
        %2795 = vmatmul.mubr.f32.gmra.mxu0 %v2591
        %v2796 = vpop.f32.mrf.mxu0
        %v2797 = vadd.f32 0.0, %v2796
        %v2798 = vpop.f32.mrf.mxu0
        %2799 = vmatprep.mubr.f32.mxu0 0.0
        %2800 = vmatmul.mubr.f32.gmra.mxu0 %v2594
        %v2801 = vpop.f32.mrf.mxu0
        %v2802 = vadd.f32 0.0, %v2801
        %v2803 = vpop.f32.mrf.mxu0
        %2804 = vmatprep.mubr.f32.mxu0 0.0
        %2805 = vmatmul.mubr.f32.gmra.mxu0 %v2597
        %v2806 = vpop.f32.mrf.mxu0
        %v2807 = vadd.f32 0.0, %v2806
        %v2808 = vpop.f32.mrf.mxu0
        %2809 = vmatprep.mubr.f32.mxu0 0.0
        %2810 = vmatmul.mubr.f32.gmra.mxu0 %v2600
        %v2811 = vpop.f32.mrf.mxu0
        %v2812 = vadd.f32 0.0, %v2811
        %v2813 = vpop.f32.mrf.mxu0
        %2814 = vmatprep.mubr.f32.mxu0 0.0
        %2815 = vmatmul.mubr.f32.gmra.mxu0 %v2603
        %v2816 = vpop.f32.mrf.mxu0
        %v2817 = vadd.f32 0.0, %v2816
        %v2818 = vpop.f32.mrf.mxu0
        %2819 = vmatprep.mubr.f32.mxu0 0.0
        %2820 = vmatmul.mubr.f32.gmra.mxu0 %v2606
        %v2821 = vpop.f32.mrf.mxu0
        %v2822 = vadd.f32 0.0, %v2821
        %v2823 = vpop.f32.mrf.mxu0
        %2824 = vmatprep.mubr.f32.mxu0 0.0
        %2825 = vmatmul.mubr.f32.gmra.mxu0 %v2609
        %v2826 = vpop.f32.mrf.mxu0
        %v2827 = vadd.f32 0.0, %v2826
        %v2828 = vpop.f32.mrf.mxu0
        %2829 = vmatprep.mubr.f32.mxu0 0.0
        %2830 = vmatmul.mubr.f32.gmra.mxu0 %v2612
        %v2831 = vpop.f32.mrf.mxu0
        %v2832 = vadd.f32 0.0, %v2831
        %v2833 = vpop.f32.mrf.mxu0
        %2834 = vmatprep.mubr.f32.mxu0 0.0
        %2835 = vmatmul.mubr.f32.gmra.mxu0 %v2615
        %v2836 = vpop.f32.mrf.mxu0
        %v2837 = vadd.f32 0.0, %v2836
        %v2838 = vpop.f32.mrf.mxu0
        %2839 = vmatprep.mubr.f32.mxu0 0.0
        %2840 = vmatmul.mubr.f32.gmra.mxu0 %v2618
        %v2841 = vpop.f32.mrf.mxu0
        %v2842 = vadd.f32 0.0, %v2841
        %v2843 = vpop.f32.mrf.mxu0
        %2844 = vdwg.mxu0
        %2845 = vmatprep.subr.mxu0 0.0
        %2846 = vmatpush1.msra.mxu0 %v2510
        %2847 = vmatprep.subr.mxu0 0.0
        %2848 = vmatpush1.msra.mxu0 %v2509
        %2849 = vmatprep.subr.mxu0 0.0
        %2850 = vmatpush1.msra.mxu0 %v2508
        %2851 = vmatprep.subr.mxu0 0.0
        %2852 = vmatpush1.msra.mxu0 %v2507
        %2853 = vmatprep.subr.mxu0 0.0
        %2854 = vmatpush1.msra.mxu0 %v2506
        %2855 = vmatprep.subr.mxu0 0.0
        %2856 = vmatpush1.msra.mxu0 %v2505
        %2857 = vmatprep.subr.mxu0 0.0
        %2858 = vmatpush1.msra.mxu0 %v2504
        %2859 = vmatprep.subr.mxu0 0.0
        %2860 = vmatpush1.msra.mxu0 %v2503
        %2861 = vmatprep.subr.mxu0 0.0
        %2862 = vmatpush1.msra.mxu0 %v2502
        %2863 = vmatprep.subr.mxu0 0.0
        %2864 = vmatpush1.msra.mxu0 %v2501
        %2865 = vmatprep.subr.mxu0 0.0
        %2866 = vmatpush1.msra.mxu0 %v2500
        %2867 = vmatprep.subr.mxu0 0.0
        %2868 = vmatpush1.msra.mxu0 %v2499
        %2869 = vmatprep.subr.mxu0 0.0
        %2870 = vmatpush1.msra.mxu0 %v2498
        %2871 = vmatprep.subr.mxu0 0.0
        %2872 = vmatpush1.msra.mxu0 %v2497
        %2873 = vmatprep.subr.mxu0 0.0
        %2874 = vmatpush1.msra.mxu0 %v2496
        %2875 = vmatprep.subr.mxu0 0.0
        %2876 = vmatpush1.msra.mxu0 %v2495
        %2877 = vmatprep.subr.mxu0 0.0
        %2878 = vmatpush2.msra.mxu0 0.0
        %2879 = vmatprep.subr.mxu0 0.0
        %2880 = vmatpush2.msra.mxu0 0.0
        %2881 = vmatprep.subr.mxu0 0.0
        %2882 = vmatpush2.msra.mxu0 0.0
        %2883 = vmatprep.subr.mxu0 0.0
        %2884 = vmatpush2.msra.mxu0 0.0
        %2885 = vmatprep.subr.mxu0 0.0
        %2886 = vmatpush2.msra.mxu0 0.0
        %2887 = vmatprep.subr.mxu0 0.0
        %2888 = vmatpush2.msra.mxu0 0.0
        %2889 = vmatprep.subr.mxu0 0.0
        %2890 = vmatpush2.msra.mxu0 0.0
        %2891 = vmatprep.subr.mxu0 0.0
        %2892 = vmatpush2.msra.mxu0 0.0
        %2893 = vmatprep.subr.mxu0 0.0
        %2894 = vmatpush2.msra.mxu0 0.0
        %2895 = vmatprep.subr.mxu0 0.0
        %2896 = vmatpush2.msra.mxu0 0.0
        %2897 = vmatprep.subr.mxu0 0.0
        %2898 = vmatpush2.msra.mxu0 0.0
        %2899 = vmatprep.subr.mxu0 0.0
        %2900 = vmatpush2.msra.mxu0 0.0
        %2901 = vmatprep.subr.mxu0 0.0
        %2902 = vmatpush2.msra.mxu0 0.0
        %2903 = vmatprep.subr.mxu0 0.0
        %2904 = vmatpush2.msra.mxu0 0.0
        %2905 = vmatprep.subr.mxu0 0.0
        %2906 = vmatpush2.msra.mxu0 0.0
        %2907 = vmatprep.subr.mxu0 0.0
        %2908 = vmatpush2.msra.mxu0 0.0
        %2909 = vmatprep.mubr.f32.mxu0 0.0
        %2910 = vmatmul.mubr.f32.gmra.mxu0 %v2430
        %v2911 = vpop.f32.mrf.mxu0
        %v2912 = vadd.f32 %v2687, %v2911
        %v2913 = vpop.f32.mrf.mxu0
        %2914 = vmatprep.mubr.f32.mxu0 0.0
        %2915 = vmatmul.mubr.f32.gmra.mxu0 %v2431
        %v2916 = vpop.f32.mrf.mxu0
        %v2917 = vadd.f32 %v2692, %v2916
        %v2918 = vpop.f32.mrf.mxu0
        %2919 = vmatprep.mubr.f32.mxu0 0.0
        %2920 = vmatmul.mubr.f32.gmra.mxu0 %v2432
        %v2921 = vpop.f32.mrf.mxu0
        %v2922 = vadd.f32 %v2697, %v2921
        %v2923 = vpop.f32.mrf.mxu0
        %2924 = vmatprep.mubr.f32.mxu0 0.0
        %2925 = vmatmul.mubr.f32.gmra.mxu0 %v2433
        %v2926 = vpop.f32.mrf.mxu0
        %v2927 = vadd.f32 %v2702, %v2926
        %v2928 = vpop.f32.mrf.mxu0
        %2929 = vmatprep.mubr.f32.mxu0 0.0
        %2930 = vmatmul.mubr.f32.gmra.mxu0 %v2434
        %v2931 = vpop.f32.mrf.mxu0
        %v2932 = vadd.f32 %v2707, %v2931
        %v2933 = vpop.f32.mrf.mxu0
        %2934 = vmatprep.mubr.f32.mxu0 0.0
        %2935 = vmatmul.mubr.f32.gmra.mxu0 %v2435
        %v2936 = vpop.f32.mrf.mxu0
        %v2937 = vadd.f32 %v2712, %v2936
        %v2938 = vpop.f32.mrf.mxu0
        %2939 = vmatprep.mubr.f32.mxu0 0.0
        %2940 = vmatmul.mubr.f32.gmra.mxu0 %v2436
        %v2941 = vpop.f32.mrf.mxu0
        %v2942 = vadd.f32 %v2717, %v2941
        %v2943 = vpop.f32.mrf.mxu0
        %2944 = vmatprep.mubr.f32.mxu0 0.0
        %2945 = vmatmul.mubr.f32.gmra.mxu0 %v2437
        %v2946 = vpop.f32.mrf.mxu0
        %v2947 = vadd.f32 %v2722, %v2946
        %v2948 = vpop.f32.mrf.mxu0
        %2949 = vmatprep.mubr.f32.mxu0 0.0
        %2950 = vmatmul.mubr.f32.gmra.mxu0 %v2438
        %v2951 = vpop.f32.mrf.mxu0
        %v2952 = vadd.f32 %v2727, %v2951
        %v2953 = vpop.f32.mrf.mxu0
        %2954 = vmatprep.mubr.f32.mxu0 0.0
        %2955 = vmatmul.mubr.f32.gmra.mxu0 %v2439
        %v2956 = vpop.f32.mrf.mxu0
        %v2957 = vadd.f32 %v2732, %v2956
        %v2958 = vpop.f32.mrf.mxu0
        %2959 = vmatprep.mubr.f32.mxu0 0.0
        %2960 = vmatmul.mubr.f32.gmra.mxu0 %v2440
        %v2961 = vpop.f32.mrf.mxu0
        %v2962 = vadd.f32 %v2737, %v2961
        %v2963 = vpop.f32.mrf.mxu0
        %2964 = vmatprep.mubr.f32.mxu0 0.0
        %2965 = vmatmul.mubr.f32.gmra.mxu0 %v2441
        %v2966 = vpop.f32.mrf.mxu0
        %v2967 = vadd.f32 %v2742, %v2966
        %v2968 = vpop.f32.mrf.mxu0
        %2969 = vmatprep.mubr.f32.mxu0 0.0
        %2970 = vmatmul.mubr.f32.gmra.mxu0 %v2442
        %v2971 = vpop.f32.mrf.mxu0
        %v2972 = vadd.f32 %v2747, %v2971
        %v2973 = vpop.f32.mrf.mxu0
        %2974 = vmatprep.mubr.f32.mxu0 0.0
        %2975 = vmatmul.mubr.f32.gmra.mxu0 %v2443
        %v2976 = vpop.f32.mrf.mxu0
        %v2977 = vadd.f32 %v2752, %v2976
        %v2978 = vpop.f32.mrf.mxu0
        %2979 = vmatprep.mubr.f32.mxu0 0.0
        %2980 = vmatmul.mubr.f32.gmra.mxu0 %v2444
        %v2981 = vpop.f32.mrf.mxu0
        %v2982 = vadd.f32 %v2757, %v2981
        %v2983 = vpop.f32.mrf.mxu0
        %2984 = vmatprep.mubr.f32.mxu0 0.0
        %2985 = vmatmul.mubr.f32.gmra.mxu0 %v2445
        %v2986 = vpop.f32.mrf.mxu0
        %v2987 = vadd.f32 %v2762, %v2986
        %v2988 = vpop.f32.mrf.mxu0
        %2989 = vmatprep.mubr.f32.mxu0 0.0
        %2990 = vmatmul.mubr.f32.gmra.mxu0 %v2446
        %v2991 = vpop.f32.mrf.mxu0
        %v2992 = vadd.f32 %v2767, %v2991
        %v2993 = vpop.f32.mrf.mxu0
        %2994 = vmatprep.mubr.f32.mxu0 0.0
        %2995 = vmatmul.mubr.f32.gmra.mxu0 %v2447
        %v2996 = vpop.f32.mrf.mxu0
        %v2997 = vadd.f32 %v2772, %v2996
        %v2998 = vpop.f32.mrf.mxu0
        %2999 = vmatprep.mubr.f32.mxu0 0.0
        %3000 = vmatmul.mubr.f32.gmra.mxu0 %v2448
        %v3001 = vpop.f32.mrf.mxu0
        %v3002 = vadd.f32 %v2777, %v3001
        %v3003 = vpop.f32.mrf.mxu0
        %3004 = vmatprep.mubr.f32.mxu0 0.0
        %3005 = vmatmul.mubr.f32.gmra.mxu0 %v2449
        %v3006 = vpop.f32.mrf.mxu0
        %v3007 = vadd.f32 %v2782, %v3006
        %v3008 = vpop.f32.mrf.mxu0
        %3009 = vmatprep.mubr.f32.mxu0 0.0
        %3010 = vmatmul.mubr.f32.gmra.mxu0 %v2450
        %v3011 = vpop.f32.mrf.mxu0
        %v3012 = vadd.f32 %v2787, %v3011
        %v3013 = vpop.f32.mrf.mxu0
        %3014 = vmatprep.mubr.f32.mxu0 0.0
        %3015 = vmatmul.mubr.f32.gmra.mxu0 %v2451
        %v3016 = vpop.f32.mrf.mxu0
        %v3017 = vadd.f32 %v2792, %v3016
        %v3018 = vpop.f32.mrf.mxu0
        %3019 = vmatprep.mubr.f32.mxu0 0.0
        %3020 = vmatmul.mubr.f32.gmra.mxu0 %v2452
        %v3021 = vpop.f32.mrf.mxu0
        %v3022 = vadd.f32 %v2797, %v3021
        %v3023 = vpop.f32.mrf.mxu0
        %3024 = vmatprep.mubr.f32.mxu0 0.0
        %3025 = vmatmul.mubr.f32.gmra.mxu0 %v2453
        %v3026 = vpop.f32.mrf.mxu0
        %v3027 = vadd.f32 %v2802, %v3026
        %v3028 = vpop.f32.mrf.mxu0
        %3029 = vmatprep.mubr.f32.mxu0 0.0
        %3030 = vmatmul.mubr.f32.gmra.mxu0 %v2454
        %v3031 = vpop.f32.mrf.mxu0
        %v3032 = vadd.f32 %v2807, %v3031
        %v3033 = vpop.f32.mrf.mxu0
        %3034 = vmatprep.mubr.f32.mxu0 0.0
        %3035 = vmatmul.mubr.f32.gmra.mxu0 %v2455
        %v3036 = vpop.f32.mrf.mxu0
        %v3037 = vadd.f32 %v2812, %v3036
        %v3038 = vpop.f32.mrf.mxu0
        %3039 = vmatprep.mubr.f32.mxu0 0.0
        %3040 = vmatmul.mubr.f32.gmra.mxu0 %v2456
        %v3041 = vpop.f32.mrf.mxu0
        %v3042 = vadd.f32 %v2817, %v3041
        %v3043 = vpop.f32.mrf.mxu0
        %3044 = vmatprep.mubr.f32.mxu0 0.0
        %3045 = vmatmul.mubr.f32.gmra.mxu0 %v2457
        %v3046 = vpop.f32.mrf.mxu0
        %v3047 = vadd.f32 %v2822, %v3046
        %v3048 = vpop.f32.mrf.mxu0
        %3049 = vmatprep.mubr.f32.mxu0 0.0
        %3050 = vmatmul.mubr.f32.gmra.mxu0 %v2458
        %v3051 = vpop.f32.mrf.mxu0
        %v3052 = vadd.f32 %v2827, %v3051
        %v3053 = vpop.f32.mrf.mxu0
        %3054 = vmatprep.mubr.f32.mxu0 0.0
        %3055 = vmatmul.mubr.f32.gmra.mxu0 %v2459
        %v3056 = vpop.f32.mrf.mxu0
        %v3057 = vadd.f32 %v2832, %v3056
        %v3058 = vpop.f32.mrf.mxu0
        %3059 = vmatprep.mubr.f32.mxu0 0.0
        %3060 = vmatmul.mubr.f32.gmra.mxu0 %v2460
        %v3061 = vpop.f32.mrf.mxu0
        %v3062 = vadd.f32 %v2837, %v3061
        %v3063 = vpop.f32.mrf.mxu0
        %3064 = vmatprep.mubr.f32.mxu0 0.0
        %3065 = vmatmul.mubr.f32.gmra.mxu0 %v2461
        %v3066 = vpop.f32.mrf.mxu0
        %v3067 = vadd.f32 %v2842, %v3066
        %v3068 = vpop.f32.mrf.mxu0
        %3069 = vdwg.mxu0
        %s3070 = scalar_lea.vmem %s5, 2
        %v3071 = vld [vmem:[%s3070] sm:$0x1]
        %v3073 = vlaneseq
        %v3074 = vshrl.u32 %v3073, 7
        %v3075 = vsub.s32 0, %v3074
        %v3076 = vrot.slane %v3071, %v3075
        %v3078 = vadd.f32 %v2912, %v3076
        %v3079 = vadd.f32 %v2917, %v3076
        %v3080 = vadd.f32 %v2922, %v3076
        %v3081 = vadd.f32 %v2927, %v3076
        %v3082 = vadd.f32 %v2932, %v3076
        %v3083 = vadd.f32 %v2937, %v3076
        %v3084 = vadd.f32 %v2942, %v3076
        %v3085 = vadd.f32 %v2947, %v3076
        %v3086 = vadd.f32 %v2952, %v3076
        %v3087 = vadd.f32 %v2957, %v3076
        %v3088 = vadd.f32 %v2962, %v3076
        %v3089 = vadd.f32 %v2967, %v3076
        %v3090 = vadd.f32 %v2972, %v3076
        %v3091 = vadd.f32 %v2977, %v3076
        %v3092 = vadd.f32 %v2982, %v3076
        %v3093 = vadd.f32 %v2987, %v3076
        %v3094 = vadd.f32 %v2992, %v3076
        %v3095 = vadd.f32 %v2997, %v3076
        %v3096 = vadd.f32 %v3002, %v3076
        %v3097 = vadd.f32 %v3007, %v3076
        %v3098 = vadd.f32 %v3012, %v3076
        %v3099 = vadd.f32 %v3017, %v3076
        %v3100 = vadd.f32 %v3022, %v3076
        %v3101 = vadd.f32 %v3027, %v3076
        %v3102 = vadd.f32 %v3032, %v3076
        %v3103 = vadd.f32 %v3037, %v3076
        %v3104 = vadd.f32 %v3042, %v3076
        %v3105 = vadd.f32 %v3047, %v3076
        %v3106 = vadd.f32 %v3052, %v3076
        %v3107 = vadd.f32 %v3057, %v3076
        %v3108 = vadd.f32 %v3062, %v3076
        %v3109 = vadd.f32 %v3067, %v3076
        %v3110 = vmax.f32 %v3078, 0.0
        %v3111 = vmax.f32 %v3079, 0.0
        %v3112 = vmax.f32 %v3080, 0.0
        %v3113 = vmax.f32 %v3081, 0.0
        %v3114 = vmax.f32 %v3082, 0.0
        %v3115 = vmax.f32 %v3083, 0.0
        %v3116 = vmax.f32 %v3084, 0.0
        %v3117 = vmax.f32 %v3085, 0.0
        %v3118 = vmax.f32 %v3086, 0.0
        %v3119 = vmax.f32 %v3087, 0.0
        %v3120 = vmax.f32 %v3088, 0.0
        %v3121 = vmax.f32 %v3089, 0.0
        %v3122 = vmax.f32 %v3090, 0.0
        %v3123 = vmax.f32 %v3091, 0.0
        %v3124 = vmax.f32 %v3092, 0.0
        %v3125 = vmax.f32 %v3093, 0.0
        %v3126 = vmax.f32 %v3094, 0.0
        %v3127 = vmax.f32 %v3095, 0.0
        %v3128 = vmax.f32 %v3096, 0.0
        %v3129 = vmax.f32 %v3097, 0.0
        %v3130 = vmax.f32 %v3098, 0.0
        %v3131 = vmax.f32 %v3099, 0.0
        %v3132 = vmax.f32 %v3100, 0.0
        %v3133 = vmax.f32 %v3101, 0.0
        %v3134 = vmax.f32 %v3102, 0.0
        %v3135 = vmax.f32 %v3103, 0.0
        %v3136 = vmax.f32 %v3104, 0.0
        %v3137 = vmax.f32 %v3105, 0.0
        %v3138 = vmax.f32 %v3106, 0.0
        %v3139 = vmax.f32 %v3107, 0.0
        %v3140 = vmax.f32 %v3108, 0.0
        %v3141 = vmax.f32 %v3109, 0.0
        %s3142 = scalar_lea.vmem [#allocation8], 256
        %v3143 = vld [vmem:[%s3142] sm:$0xff]
        %v3144 = vld [vmem:[%s3142 + $0x8] sm:$0xff]
        %v3145 = vld [vmem:[%s3142 + $0x10] sm:$0xff]
        %v3146 = vld [vmem:[%s3142 + $0x18] sm:$0xff]
        %v3147 = vld [vmem:[%s3142 + $0x20] sm:$0xff]
        %v3148 = vld [vmem:[%s3142 + $0x28] sm:$0xff]
        %v3149 = vld [vmem:[%s3142 + $0x30] sm:$0xff]
        %v3150 = vld [vmem:[%s3142 + $0x38] sm:$0xff]
        %v3151 = vld [vmem:[%s3142 + $0x40] sm:$0xff]
        %v3152 = vld [vmem:[%s3142 + $0x48] sm:$0xff]
        %v3153 = vld [vmem:[%s3142 + $0x50] sm:$0xff]
        %v3154 = vld [vmem:[%s3142 + $0x58] sm:$0xff]
        %v3155 = vld [vmem:[%s3142 + $0x60] sm:$0xff]
        %v3156 = vld [vmem:[%s3142 + $0x68] sm:$0xff]
        %v3157 = vld [vmem:[%s3142 + $0x70] sm:$0xff]
        %v3158 = vld [vmem:[%s3142 + $0x78] sm:$0xff]
        %s3159 = scalar_lea.vmem %s6, 2
        %v3160 = vld [vmem:[%s3159] sm:$0x1]
        %v3162 = vlaneseq
        %v3163 = vshrl.u32 %v3162, 7
        %v3164 = vsub.s32 0, %v3163
        %v3165 = vrot.slane %v3160, %v3164
        %3167 = vmatprep.subr.mxu0 0.0
        %3168 = vmatpush1.msra.mxu0 %v3158
        %3169 = vmatprep.subr.mxu0 0.0
        %3170 = vmatpush1.msra.mxu0 %v3157
        %3171 = vmatprep.subr.mxu0 0.0
        %3172 = vmatpush1.msra.mxu0 %v3156
        %3173 = vmatprep.subr.mxu0 0.0
        %3174 = vmatpush1.msra.mxu0 %v3155
        %3175 = vmatprep.subr.mxu0 0.0
        %3176 = vmatpush1.msra.mxu0 %v3154
        %3177 = vmatprep.subr.mxu0 0.0
        %3178 = vmatpush1.msra.mxu0 %v3153
        %3179 = vmatprep.subr.mxu0 0.0
        %3180 = vmatpush1.msra.mxu0 %v3152
        %3181 = vmatprep.subr.mxu0 0.0
        %3182 = vmatpush1.msra.mxu0 %v3151
        %3183 = vmatprep.subr.mxu0 0.0
        %3184 = vmatpush1.msra.mxu0 %v3150
        %3185 = vmatprep.subr.mxu0 0.0
        %3186 = vmatpush1.msra.mxu0 %v3149
        %3187 = vmatprep.subr.mxu0 0.0
        %3188 = vmatpush1.msra.mxu0 %v3148
        %3189 = vmatprep.subr.mxu0 0.0
        %3190 = vmatpush1.msra.mxu0 %v3147
        %3191 = vmatprep.subr.mxu0 0.0
        %3192 = vmatpush1.msra.mxu0 %v3146
        %3193 = vmatprep.subr.mxu0 0.0
        %3194 = vmatpush1.msra.mxu0 %v3145
        %3195 = vmatprep.subr.mxu0 0.0
        %3196 = vmatpush1.msra.mxu0 %v3144
        %3197 = vmatprep.subr.mxu0 0.0
        %3198 = vmatpush1.msra.mxu0 %v3143
        %3199 = vmatprep.subr.mxu0 0.0
        %3200 = vmatpush2.msra.mxu0 0.0
        %3201 = vmatprep.subr.mxu0 0.0
        %3202 = vmatpush2.msra.mxu0 0.0
        %3203 = vmatprep.subr.mxu0 0.0
        %3204 = vmatpush2.msra.mxu0 0.0
        %3205 = vmatprep.subr.mxu0 0.0
        %3206 = vmatpush2.msra.mxu0 0.0
        %3207 = vmatprep.subr.mxu0 0.0
        %3208 = vmatpush2.msra.mxu0 0.0
        %3209 = vmatprep.subr.mxu0 0.0
        %3210 = vmatpush2.msra.mxu0 0.0
        %3211 = vmatprep.subr.mxu0 0.0
        %3212 = vmatpush2.msra.mxu0 0.0
        %3213 = vmatprep.subr.mxu0 0.0
        %3214 = vmatpush2.msra.mxu0 0.0
        %3215 = vmatprep.subr.mxu0 0.0
        %3216 = vmatpush2.msra.mxu0 0.0
        %3217 = vmatprep.subr.mxu0 0.0
        %3218 = vmatpush2.msra.mxu0 0.0
        %3219 = vmatprep.subr.mxu0 0.0
        %3220 = vmatpush2.msra.mxu0 0.0
        %3221 = vmatprep.subr.mxu0 0.0
        %3222 = vmatpush2.msra.mxu0 0.0
        %3223 = vmatprep.subr.mxu0 0.0
        %3224 = vmatpush2.msra.mxu0 0.0
        %3225 = vmatprep.subr.mxu0 0.0
        %3226 = vmatpush2.msra.mxu0 0.0
        %3227 = vmatprep.subr.mxu0 0.0
        %3228 = vmatpush2.msra.mxu0 0.0
        %3229 = vmatprep.subr.mxu0 0.0
        %3230 = vmatpush2.msra.mxu0 0.0
        %3231 = vmatprep.mubr.f32.mxu0 0.0
        %3232 = vmatmul.mubr.f32.gmra.mxu0 %v3110
        %v3233 = vpop.f32.mrf.mxu0
        %v3234 = vadd.f32 %v3165, %v3233
        %v3235 = vpop.f32.mrf.mxu0
        %3236 = vmatprep.mubr.f32.mxu0 0.0
        %3237 = vmatmul.mubr.f32.gmra.mxu0 %v3111
        %v3238 = vpop.f32.mrf.mxu0
        %v3239 = vadd.f32 %v3165, %v3238
        %v3240 = vpop.f32.mrf.mxu0
        %3241 = vmatprep.mubr.f32.mxu0 0.0
        %3242 = vmatmul.mubr.f32.gmra.mxu0 %v3112
        %v3243 = vpop.f32.mrf.mxu0
        %v3244 = vadd.f32 %v3165, %v3243
        %v3245 = vpop.f32.mrf.mxu0
        %3246 = vmatprep.mubr.f32.mxu0 0.0
        %3247 = vmatmul.mubr.f32.gmra.mxu0 %v3113
        %v3248 = vpop.f32.mrf.mxu0
        %v3249 = vadd.f32 %v3165, %v3248
        %v3250 = vpop.f32.mrf.mxu0
        %3251 = vmatprep.mubr.f32.mxu0 0.0
        %3252 = vmatmul.mubr.f32.gmra.mxu0 %v3114
        %v3253 = vpop.f32.mrf.mxu0
        %v3254 = vadd.f32 %v3165, %v3253
        %v3255 = vpop.f32.mrf.mxu0
        %3256 = vmatprep.mubr.f32.mxu0 0.0
        %3257 = vmatmul.mubr.f32.gmra.mxu0 %v3115
        %v3258 = vpop.f32.mrf.mxu0
        %v3259 = vadd.f32 %v3165, %v3258
        %v3260 = vpop.f32.mrf.mxu0
        %3261 = vmatprep.mubr.f32.mxu0 0.0
        %3262 = vmatmul.mubr.f32.gmra.mxu0 %v3116
        %v3263 = vpop.f32.mrf.mxu0
        %v3264 = vadd.f32 %v3165, %v3263
        %v3265 = vpop.f32.mrf.mxu0
        %3266 = vmatprep.mubr.f32.mxu0 0.0
        %3267 = vmatmul.mubr.f32.gmra.mxu0 %v3117
        %v3268 = vpop.f32.mrf.mxu0
        %v3269 = vadd.f32 %v3165, %v3268
        %v3270 = vpop.f32.mrf.mxu0
        %3271 = vmatprep.mubr.f32.mxu0 0.0
        %3272 = vmatmul.mubr.f32.gmra.mxu0 %v3118
        %v3273 = vpop.f32.mrf.mxu0
        %v3274 = vadd.f32 %v3165, %v3273
        %v3275 = vpop.f32.mrf.mxu0
        %3276 = vmatprep.mubr.f32.mxu0 0.0
        %3277 = vmatmul.mubr.f32.gmra.mxu0 %v3119
        %v3278 = vpop.f32.mrf.mxu0
        %v3279 = vadd.f32 %v3165, %v3278
        %v3280 = vpop.f32.mrf.mxu0
        %3281 = vmatprep.mubr.f32.mxu0 0.0
        %3282 = vmatmul.mubr.f32.gmra.mxu0 %v3120
        %v3283 = vpop.f32.mrf.mxu0
        %v3284 = vadd.f32 %v3165, %v3283
        %v3285 = vpop.f32.mrf.mxu0
        %3286 = vmatprep.mubr.f32.mxu0 0.0
        %3287 = vmatmul.mubr.f32.gmra.mxu0 %v3121
        %v3288 = vpop.f32.mrf.mxu0
        %v3289 = vadd.f32 %v3165, %v3288
        %v3290 = vpop.f32.mrf.mxu0
        %3291 = vmatprep.mubr.f32.mxu0 0.0
        %3292 = vmatmul.mubr.f32.gmra.mxu0 %v3122
        %v3293 = vpop.f32.mrf.mxu0
        %v3294 = vadd.f32 %v3165, %v3293
        %v3295 = vpop.f32.mrf.mxu0
        %3296 = vmatprep.mubr.f32.mxu0 0.0
        %3297 = vmatmul.mubr.f32.gmra.mxu0 %v3123
        %v3298 = vpop.f32.mrf.mxu0
        %v3299 = vadd.f32 %v3165, %v3298
        %v3300 = vpop.f32.mrf.mxu0
        %3301 = vmatprep.mubr.f32.mxu0 0.0
        %3302 = vmatmul.mubr.f32.gmra.mxu0 %v3124
        %v3303 = vpop.f32.mrf.mxu0
        %v3304 = vadd.f32 %v3165, %v3303
        %v3305 = vpop.f32.mrf.mxu0
        %3306 = vmatprep.mubr.f32.mxu0 0.0
        %3307 = vmatmul.mubr.f32.gmra.mxu0 %v3125
        %v3308 = vpop.f32.mrf.mxu0
        %v3309 = vadd.f32 %v3165, %v3308
        %v3310 = vpop.f32.mrf.mxu0
        %3311 = vmatprep.mubr.f32.mxu0 0.0
        %3312 = vmatmul.mubr.f32.gmra.mxu0 %v3126
        %v3313 = vpop.f32.mrf.mxu0
        %v3314 = vadd.f32 %v3165, %v3313
        %v3315 = vpop.f32.mrf.mxu0
        %3316 = vmatprep.mubr.f32.mxu0 0.0
        %3317 = vmatmul.mubr.f32.gmra.mxu0 %v3127
        %v3318 = vpop.f32.mrf.mxu0
        %v3319 = vadd.f32 %v3165, %v3318
        %v3320 = vpop.f32.mrf.mxu0
        %3321 = vmatprep.mubr.f32.mxu0 0.0
        %3322 = vmatmul.mubr.f32.gmra.mxu0 %v3128
        %v3323 = vpop.f32.mrf.mxu0
        %v3324 = vadd.f32 %v3165, %v3323
        %v3325 = vpop.f32.mrf.mxu0
        %3326 = vmatprep.mubr.f32.mxu0 0.0
        %3327 = vmatmul.mubr.f32.gmra.mxu0 %v3129
        %v3328 = vpop.f32.mrf.mxu0
        %v3329 = vadd.f32 %v3165, %v3328
        %v3330 = vpop.f32.mrf.mxu0
        %3331 = vmatprep.mubr.f32.mxu0 0.0
        %3332 = vmatmul.mubr.f32.gmra.mxu0 %v3130
        %v3333 = vpop.f32.mrf.mxu0
        %v3334 = vadd.f32 %v3165, %v3333
        %v3335 = vpop.f32.mrf.mxu0
        %3336 = vmatprep.mubr.f32.mxu0 0.0
        %3337 = vmatmul.mubr.f32.gmra.mxu0 %v3131
        %v3338 = vpop.f32.mrf.mxu0
        %v3339 = vadd.f32 %v3165, %v3338
        %v3340 = vpop.f32.mrf.mxu0
        %3341 = vmatprep.mubr.f32.mxu0 0.0
        %3342 = vmatmul.mubr.f32.gmra.mxu0 %v3132
        %v3343 = vpop.f32.mrf.mxu0
        %v3344 = vadd.f32 %v3165, %v3343
        %v3345 = vpop.f32.mrf.mxu0
        %3346 = vmatprep.mubr.f32.mxu0 0.0
        %3347 = vmatmul.mubr.f32.gmra.mxu0 %v3133
        %v3348 = vpop.f32.mrf.mxu0
        %v3349 = vadd.f32 %v3165, %v3348
        %v3350 = vpop.f32.mrf.mxu0
        %3351 = vmatprep.mubr.f32.mxu0 0.0
        %3352 = vmatmul.mubr.f32.gmra.mxu0 %v3134
        %v3353 = vpop.f32.mrf.mxu0
        %v3354 = vadd.f32 %v3165, %v3353
        %v3355 = vpop.f32.mrf.mxu0
        %3356 = vmatprep.mubr.f32.mxu0 0.0
        %3357 = vmatmul.mubr.f32.gmra.mxu0 %v3135
        %v3358 = vpop.f32.mrf.mxu0
        %v3359 = vadd.f32 %v3165, %v3358
        %v3360 = vpop.f32.mrf.mxu0
        %3361 = vmatprep.mubr.f32.mxu0 0.0
        %3362 = vmatmul.mubr.f32.gmra.mxu0 %v3136
        %v3363 = vpop.f32.mrf.mxu0
        %v3364 = vadd.f32 %v3165, %v3363
        %v3365 = vpop.f32.mrf.mxu0
        %3366 = vmatprep.mubr.f32.mxu0 0.0
        %3367 = vmatmul.mubr.f32.gmra.mxu0 %v3137
        %v3368 = vpop.f32.mrf.mxu0
        %v3369 = vadd.f32 %v3165, %v3368
        %v3370 = vpop.f32.mrf.mxu0
        %3371 = vmatprep.mubr.f32.mxu0 0.0
        %3372 = vmatmul.mubr.f32.gmra.mxu0 %v3138
        %v3373 = vpop.f32.mrf.mxu0
        %v3374 = vadd.f32 %v3165, %v3373
        %v3375 = vpop.f32.mrf.mxu0
        %3376 = vmatprep.mubr.f32.mxu0 0.0
        %3377 = vmatmul.mubr.f32.gmra.mxu0 %v3139
        %v3378 = vpop.f32.mrf.mxu0
        %v3379 = vadd.f32 %v3165, %v3378
        %v3380 = vpop.f32.mrf.mxu0
        %3381 = vmatprep.mubr.f32.mxu0 0.0
        %3382 = vmatmul.mubr.f32.gmra.mxu0 %v3140
        %v3383 = vpop.f32.mrf.mxu0
        %v3384 = vadd.f32 %v3165, %v3383
        %v3385 = vpop.f32.mrf.mxu0
        %3386 = vmatprep.mubr.f32.mxu0 0.0
        %3387 = vmatmul.mubr.f32.gmra.mxu0 %v3141
        %v3388 = vpop.f32.mrf.mxu0
        %v3389 = vadd.f32 %v3165, %v3388
        %v3390 = vpop.f32.mrf.mxu0
        %3391 = vdwg.mxu0
        %v3392 = vadd.f32 %v3234, %v2430
        %v3393 = vadd.f32 %v3239, %v2431
        %v3394 = vadd.f32 %v3244, %v2432
        %v3395 = vadd.f32 %v3249, %v2433
        %v3396 = vadd.f32 %v3254, %v2434
        %v3397 = vadd.f32 %v3259, %v2435
        %v3398 = vadd.f32 %v3264, %v2436
        %v3399 = vadd.f32 %v3269, %v2437
        %v3400 = vadd.f32 %v3274, %v2438
        %v3401 = vadd.f32 %v3279, %v2439
        %v3402 = vadd.f32 %v3284, %v2440
        %v3403 = vadd.f32 %v3289, %v2441
        %v3404 = vadd.f32 %v3294, %v2442
        %v3405 = vadd.f32 %v3299, %v2443
        %v3406 = vadd.f32 %v3304, %v2444
        %v3407 = vadd.f32 %v3309, %v2445
        %v3408 = vadd.f32 %v3314, %v2446
        %v3409 = vadd.f32 %v3319, %v2447
        %v3410 = vadd.f32 %v3324, %v2448
        %v3411 = vadd.f32 %v3329, %v2449
        %v3412 = vadd.f32 %v3334, %v2450
        %v3413 = vadd.f32 %v3339, %v2451
        %v3414 = vadd.f32 %v3344, %v2452
        %v3415 = vadd.f32 %v3349, %v2453
        %v3416 = vadd.f32 %v3354, %v2454
        %v3417 = vadd.f32 %v3359, %v2455
        %v3418 = vadd.f32 %v3364, %v2456
        %v3419 = vadd.f32 %v3369, %v2457
        %v3420 = vadd.f32 %v3374, %v2458
        %v3421 = vadd.f32 %v3379, %v2459
        %v3422 = vadd.f32 %v3384, %v2460
        %v3423 = vadd.f32 %v3389, %v2461
        %3424 = vst [vmem:[#allocation2] sm:$0xff] %v3392
        %3425 = vst [vmem:[#allocation2 + $0x8] sm:$0xff] %v3393
        %3426 = vst [vmem:[#allocation2 + $0x10] sm:$0xff] %v3394
        %3427 = vst [vmem:[#allocation2 + $0x18] sm:$0xff] %v3395
        %3428 = vst [vmem:[#allocation2 + $0x20] sm:$0xff] %v3396
        %3429 = vst [vmem:[#allocation2 + $0x28] sm:$0xff] %v3397
        %3430 = vst [vmem:[#allocation2 + $0x30] sm:$0xff] %v3398
        %3431 = vst [vmem:[#allocation2 + $0x38] sm:$0xff] %v3399
        %3432 = vst [vmem:[#allocation2 + $0x40] sm:$0xff] %v3400
        %3433 = vst [vmem:[#allocation2 + $0x48] sm:$0xff] %v3401
        %3434 = vst [vmem:[#allocation2 + $0x50] sm:$0xff] %v3402
        %3435 = vst [vmem:[#allocation2 + $0x58] sm:$0xff] %v3403
        %3436 = vst [vmem:[#allocation2 + $0x60] sm:$0xff] %v3404
        %3437 = vst [vmem:[#allocation2 + $0x68] sm:$0xff] %v3405
        %3438 = vst [vmem:[#allocation2 + $0x70] sm:$0xff] %v3406
        %3439 = vst [vmem:[#allocation2 + $0x78] sm:$0xff] %v3407
        %3440 = vst [vmem:[#allocation2 + $0x80] sm:$0xff] %v3408
        %3441 = vst [vmem:[#allocation2 + $0x88] sm:$0xff] %v3409
        %3442 = vst [vmem:[#allocation2 + $0x90] sm:$0xff] %v3410
        %3443 = vst [vmem:[#allocation2 + $0x98] sm:$0xff] %v3411
        %3444 = vst [vmem:[#allocation2 + $0xa0] sm:$0xff] %v3412
        %3445 = vst [vmem:[#allocation2 + $0xa8] sm:$0xff] %v3413
        %3446 = vst [vmem:[#allocation2 + $0xb0] sm:$0xff] %v3414
        %3447 = vst [vmem:[#allocation2 + $0xb8] sm:$0xff] %v3415
        %3448 = vst [vmem:[#allocation2 + $0xc0] sm:$0xff] %v3416
        %3449 = vst [vmem:[#allocation2 + $0xc8] sm:$0xff] %v3417
        %3450 = vst [vmem:[#allocation2 + $0xd0] sm:$0xff] %v3418
        %3451 = vst [vmem:[#allocation2 + $0xd8] sm:$0xff] %v3419
        %3452 = vst [vmem:[#allocation2 + $0xe0] sm:$0xff] %v3420
        %3453 = vst [vmem:[#allocation2 + $0xe8] sm:$0xff] %v3421
        %3454 = vst [vmem:[#allocation2 + $0xf0] sm:$0xff] %v3422
        %3455 = vst [vmem:[#allocation2 + $0xf8] sm:$0xff] %v3423
        %v3456 = vld [vmem:[#allocation2] sm:$0xff]
        %v3457 = vld [vmem:[#allocation2 + $0x8] sm:$0xff]
        %v3458 = vld [vmem:[#allocation2 + $0x10] sm:$0xff]
        %v3459 = vld [vmem:[#allocation2 + $0x18] sm:$0xff]
        %v3460 = vld [vmem:[#allocation2 + $0x20] sm:$0xff]
        %v3461 = vld [vmem:[#allocation2 + $0x28] sm:$0xff]
        %v3462 = vld [vmem:[#allocation2 + $0x30] sm:$0xff]
        %v3463 = vld [vmem:[#allocation2 + $0x38] sm:$0xff]
        %v3464 = vld [vmem:[#allocation2 + $0x40] sm:$0xff]
        %v3465 = vld [vmem:[#allocation2 + $0x48] sm:$0xff]
        %v3466 = vld [vmem:[#allocation2 + $0x50] sm:$0xff]
        %v3467 = vld [vmem:[#allocation2 + $0x58] sm:$0xff]
        %v3468 = vld [vmem:[#allocation2 + $0x60] sm:$0xff]
        %v3469 = vld [vmem:[#allocation2 + $0x68] sm:$0xff]
        %v3470 = vld [vmem:[#allocation2 + $0x70] sm:$0xff]
        %v3471 = vld [vmem:[#allocation2 + $0x78] sm:$0xff]
        %v3472 = vld [vmem:[#allocation2 + $0x80] sm:$0xff]
        %v3473 = vld [vmem:[#allocation2 + $0x88] sm:$0xff]
        %v3474 = vld [vmem:[#allocation2 + $0x90] sm:$0xff]
        %v3475 = vld [vmem:[#allocation2 + $0x98] sm:$0xff]
        %v3476 = vld [vmem:[#allocation2 + $0xa0] sm:$0xff]
        %v3477 = vld [vmem:[#allocation2 + $0xa8] sm:$0xff]
        %v3478 = vld [vmem:[#allocation2 + $0xb0] sm:$0xff]
        %v3479 = vld [vmem:[#allocation2 + $0xb8] sm:$0xff]
        %v3480 = vld [vmem:[#allocation2 + $0xc0] sm:$0xff]
        %v3481 = vld [vmem:[#allocation2 + $0xc8] sm:$0xff]
        %v3482 = vld [vmem:[#allocation2 + $0xd0] sm:$0xff]
        %v3483 = vld [vmem:[#allocation2 + $0xd8] sm:$0xff]
        %v3484 = vld [vmem:[#allocation2 + $0xe0] sm:$0xff]
        %v3485 = vld [vmem:[#allocation2 + $0xe8] sm:$0xff]
        %v3486 = vld [vmem:[#allocation2 + $0xf0] sm:$0xff]
        %v3487 = vld [vmem:[#allocation2 + $0xf8] sm:$0xff]
        %v3488 = vld [vmem:[%s347] sm:$0xff]
        %v3489 = vld [vmem:[%s347 + $0x8] sm:$0xff]
        %v3490 = vld [vmem:[%s347 + $0x10] sm:$0xff]
        %v3491 = vld [vmem:[%s347 + $0x18] sm:$0xff]
        %v3492 = vld [vmem:[%s347 + $0x20] sm:$0xff]
        %v3493 = vld [vmem:[%s347 + $0x28] sm:$0xff]
        %v3494 = vld [vmem:[%s347 + $0x30] sm:$0xff]
        %v3495 = vld [vmem:[%s347 + $0x38] sm:$0xff]
        %v3496 = vld [vmem:[%s347 + $0x40] sm:$0xff]
        %v3497 = vld [vmem:[%s347 + $0x48] sm:$0xff]
        %v3498 = vld [vmem:[%s347 + $0x50] sm:$0xff]
        %v3499 = vld [vmem:[%s347 + $0x58] sm:$0xff]
        %v3500 = vld [vmem:[%s347 + $0x60] sm:$0xff]
        %v3501 = vld [vmem:[%s347 + $0x68] sm:$0xff]
        %v3502 = vld [vmem:[%s347 + $0x70] sm:$0xff]
        %v3503 = vld [vmem:[%s347 + $0x78] sm:$0xff]
        %v3504 = vld [vmem:[%s347 + $0x80] sm:$0xff]
        %v3505 = vld [vmem:[%s347 + $0x88] sm:$0xff]
        %v3506 = vld [vmem:[%s347 + $0x90] sm:$0xff]
        %v3507 = vld [vmem:[%s347 + $0x98] sm:$0xff]
        %v3508 = vld [vmem:[%s347 + $0xa0] sm:$0xff]
        %v3509 = vld [vmem:[%s347 + $0xa8] sm:$0xff]
        %v3510 = vld [vmem:[%s347 + $0xb0] sm:$0xff]
        %v3511 = vld [vmem:[%s347 + $0xb8] sm:$0xff]
        %v3512 = vld [vmem:[%s347 + $0xc0] sm:$0xff]
        %v3513 = vld [vmem:[%s347 + $0xc8] sm:$0xff]
        %v3514 = vld [vmem:[%s347 + $0xd0] sm:$0xff]
        %v3515 = vld [vmem:[%s347 + $0xd8] sm:$0xff]
        %v3516 = vld [vmem:[%s347 + $0xe0] sm:$0xff]
        %v3517 = vld [vmem:[%s347 + $0xe8] sm:$0xff]
        %v3518 = vld [vmem:[%s347 + $0xf0] sm:$0xff]
        %v3519 = vld [vmem:[%s347 + $0xf8] sm:$0xff]
        %s3520 = scalar_lea.vmem %s2, 384
        %v3521 = vld [vmem:[%s3520] sm:$0xff]
        %v3522 = vld [vmem:[%s3520 + $0x8] sm:$0xff]
        %v3523 = vld [vmem:[%s3520 + $0x10] sm:$0xff]
        %v3524 = vld [vmem:[%s3520 + $0x18] sm:$0xff]
        %v3525 = vld [vmem:[%s3520 + $0x20] sm:$0xff]
        %v3526 = vld [vmem:[%s3520 + $0x28] sm:$0xff]
        %v3527 = vld [vmem:[%s3520 + $0x30] sm:$0xff]
        %v3528 = vld [vmem:[%s3520 + $0x38] sm:$0xff]
        %v3529 = vld [vmem:[%s3520 + $0x40] sm:$0xff]
        %v3530 = vld [vmem:[%s3520 + $0x48] sm:$0xff]
        %v3531 = vld [vmem:[%s3520 + $0x50] sm:$0xff]
        %v3532 = vld [vmem:[%s3520 + $0x58] sm:$0xff]
        %v3533 = vld [vmem:[%s3520 + $0x60] sm:$0xff]
        %v3534 = vld [vmem:[%s3520 + $0x68] sm:$0xff]
        %v3535 = vld [vmem:[%s3520 + $0x70] sm:$0xff]
        %v3536 = vld [vmem:[%s3520 + $0x78] sm:$0xff]
        %s3537 = scalar_lea.vmem [#allocation6], 288
        %v3538 = vld [vmem:[%s3537] sm:$0xff]
        %v3539 = vld [vmem:[%s3537 + $0x8] sm:$0xff]
        %v3540 = vld [vmem:[%s3537 + $0x10] sm:$0xff]
        %v3541 = vld [vmem:[%s3537 + $0x18] sm:$0xff]
        %v3542 = vld [vmem:[%s3537 + $0x20] sm:$0xff]
        %v3543 = vld [vmem:[%s3537 + $0x28] sm:$0xff]
        %v3544 = vld [vmem:[%s3537 + $0x30] sm:$0xff]
        %v3545 = vld [vmem:[%s3537 + $0x38] sm:$0xff]
        %v3546 = vld [vmem:[%s3537 + $0x40] sm:$0xff]
        %v3547 = vld [vmem:[%s3537 + $0x48] sm:$0xff]
        %v3548 = vld [vmem:[%s3537 + $0x50] sm:$0xff]
        %v3549 = vld [vmem:[%s3537 + $0x58] sm:$0xff]
        %v3551 = vsel %vm506, %v3488, 0
        %v3554 = vsel %vm506, %v3489, 0
        %v3557 = vsel %vm506, %v3490, 0
        %v3560 = vsel %vm506, %v3491, 0
        %v3563 = vsel %vm506, %v3492, 0
        %v3566 = vsel %vm506, %v3493, 0
        %v3569 = vsel %vm506, %v3494, 0
        %v3572 = vsel %vm506, %v3495, 0
        %v3575 = vsel %vm506, %v3496, 0
        %v3578 = vsel %vm506, %v3497, 0
        %v3581 = vsel %vm506, %v3498, 0
        %v3584 = vsel %vm506, %v3499, 0
        %v3587 = vsel %vm506, %v3500, 0
        %v3590 = vsel %vm506, %v3501, 0
        %v3593 = vsel %vm506, %v3502, 0
        %v3596 = vsel %vm506, %v3503, 0
        %v3599 = vsel %vm506, %v3504, 0
        %v3602 = vsel %vm506, %v3505, 0
        %v3605 = vsel %vm506, %v3506, 0
        %v3608 = vsel %vm506, %v3507, 0
        %v3611 = vsel %vm506, %v3508, 0
        %v3614 = vsel %vm506, %v3509, 0
        %v3617 = vsel %vm506, %v3510, 0
        %v3620 = vsel %vm506, %v3511, 0
        %v3623 = vsel %vm506, %v3512, 0
        %v3626 = vsel %vm506, %v3513, 0
        %v3629 = vsel %vm506, %v3514, 0
        %v3632 = vsel %vm506, %v3515, 0
        %v3635 = vsel %vm506, %v3516, 0
        %v3638 = vsel %vm506, %v3517, 0
        %v3641 = vsel %vm506, %v3518, 0
        %v3644 = vsel %vm506, %v3519, 0
        %3646 = vmatprep.subr.mxu0 0.0
        %3647 = vmatpush1.msra.mxu0 0.0
        %3648 = vmatprep.subr.mxu0 0.0
        %3649 = vmatpush1.msra.mxu0 0.0
        %3650 = vmatprep.subr.mxu0 0.0
        %3651 = vmatpush1.msra.mxu0 0.0
        %3652 = vmatprep.subr.mxu0 0.0
        %3653 = vmatpush1.msra.mxu0 0.0
        %3654 = vmatprep.subr.mxu0 0.0
        %3655 = vmatpush1.msra.mxu0 %v3549
        %3656 = vmatprep.subr.mxu0 0.0
        %3657 = vmatpush1.msra.mxu0 %v3548
        %3658 = vmatprep.subr.mxu0 0.0
        %3659 = vmatpush1.msra.mxu0 %v3547
        %3660 = vmatprep.subr.mxu0 0.0
        %3661 = vmatpush1.msra.mxu0 %v3546
        %3662 = vmatprep.subr.mxu0 0.0
        %3663 = vmatpush1.msra.mxu0 %v3545
        %3664 = vmatprep.subr.mxu0 0.0
        %3665 = vmatpush1.msra.mxu0 %v3544
        %3666 = vmatprep.subr.mxu0 0.0
        %3667 = vmatpush1.msra.mxu0 %v3543
        %3668 = vmatprep.subr.mxu0 0.0
        %3669 = vmatpush1.msra.mxu0 %v3542
        %3670 = vmatprep.subr.mxu0 0.0
        %3671 = vmatpush1.msra.mxu0 %v3541
        %3672 = vmatprep.subr.mxu0 0.0
        %3673 = vmatpush1.msra.mxu0 %v3540
        %3674 = vmatprep.subr.mxu0 0.0
        %3675 = vmatpush1.msra.mxu0 %v3539
        %3676 = vmatprep.subr.mxu0 0.0
        %3677 = vmatpush1.msra.mxu0 %v3538
        %3678 = vmatprep.subr.mxu0 0.0
        %3679 = vmatpush2.msra.mxu0 0.0
        %3680 = vmatprep.subr.mxu0 0.0
        %3681 = vmatpush2.msra.mxu0 0.0
        %3682 = vmatprep.subr.mxu0 0.0
        %3683 = vmatpush2.msra.mxu0 0.0
        %3684 = vmatprep.subr.mxu0 0.0
        %3685 = vmatpush2.msra.mxu0 0.0
        %3686 = vmatprep.subr.mxu0 0.0
        %3687 = vmatpush2.msra.mxu0 0.0
        %3688 = vmatprep.subr.mxu0 0.0
        %3689 = vmatpush2.msra.mxu0 0.0
        %3690 = vmatprep.subr.mxu0 0.0
        %3691 = vmatpush2.msra.mxu0 0.0
        %3692 = vmatprep.subr.mxu0 0.0
        %3693 = vmatpush2.msra.mxu0 0.0
        %3694 = vmatprep.subr.mxu0 0.0
        %3695 = vmatpush2.msra.mxu0 0.0
        %3696 = vmatprep.subr.mxu0 0.0
        %3697 = vmatpush2.msra.mxu0 0.0
        %3698 = vmatprep.subr.mxu0 0.0
        %3699 = vmatpush2.msra.mxu0 0.0
        %3700 = vmatprep.subr.mxu0 0.0
        %3701 = vmatpush2.msra.mxu0 0.0
        %3702 = vmatprep.subr.mxu0 0.0
        %3703 = vmatpush2.msra.mxu0 0.0
        %3704 = vmatprep.subr.mxu0 0.0
        %3705 = vmatpush2.msra.mxu0 0.0
        %3706 = vmatprep.subr.mxu0 0.0
        %3707 = vmatpush2.msra.mxu0 0.0
        %3708 = vmatprep.subr.mxu0 0.0
        %3709 = vmatpush2.msra.mxu0 0.0
        %3710 = vmatprep.mubr.f32.mxu0 0.0
        %3711 = vmatmul.mubr.f32.gmra.mxu0 %v3551
        %v3712 = vpop.f32.mrf.mxu0
        %v3713 = vadd.f32 0.0, %v3712
        %v3714 = vpop.f32.mrf.mxu0
        %3715 = vmatprep.mubr.f32.mxu0 0.0
        %3716 = vmatmul.mubr.f32.gmra.mxu0 %v3554
        %v3717 = vpop.f32.mrf.mxu0
        %v3718 = vadd.f32 0.0, %v3717
        %v3719 = vpop.f32.mrf.mxu0
        %3720 = vmatprep.mubr.f32.mxu0 0.0
        %3721 = vmatmul.mubr.f32.gmra.mxu0 %v3557
        %v3722 = vpop.f32.mrf.mxu0
        %v3723 = vadd.f32 0.0, %v3722
        %v3724 = vpop.f32.mrf.mxu0
        %3725 = vmatprep.mubr.f32.mxu0 0.0
        %3726 = vmatmul.mubr.f32.gmra.mxu0 %v3560
        %v3727 = vpop.f32.mrf.mxu0
        %v3728 = vadd.f32 0.0, %v3727
        %v3729 = vpop.f32.mrf.mxu0
        %3730 = vmatprep.mubr.f32.mxu0 0.0
        %3731 = vmatmul.mubr.f32.gmra.mxu0 %v3563
        %v3732 = vpop.f32.mrf.mxu0
        %v3733 = vadd.f32 0.0, %v3732
        %v3734 = vpop.f32.mrf.mxu0
        %3735 = vmatprep.mubr.f32.mxu0 0.0
        %3736 = vmatmul.mubr.f32.gmra.mxu0 %v3566
        %v3737 = vpop.f32.mrf.mxu0
        %v3738 = vadd.f32 0.0, %v3737
        %v3739 = vpop.f32.mrf.mxu0
        %3740 = vmatprep.mubr.f32.mxu0 0.0
        %3741 = vmatmul.mubr.f32.gmra.mxu0 %v3569
        %v3742 = vpop.f32.mrf.mxu0
        %v3743 = vadd.f32 0.0, %v3742
        %v3744 = vpop.f32.mrf.mxu0
        %3745 = vmatprep.mubr.f32.mxu0 0.0
        %3746 = vmatmul.mubr.f32.gmra.mxu0 %v3572
        %v3747 = vpop.f32.mrf.mxu0
        %v3748 = vadd.f32 0.0, %v3747
        %v3749 = vpop.f32.mrf.mxu0
        %3750 = vmatprep.mubr.f32.mxu0 0.0
        %3751 = vmatmul.mubr.f32.gmra.mxu0 %v3575
        %v3752 = vpop.f32.mrf.mxu0
        %v3753 = vadd.f32 0.0, %v3752
        %v3754 = vpop.f32.mrf.mxu0
        %3755 = vmatprep.mubr.f32.mxu0 0.0
        %3756 = vmatmul.mubr.f32.gmra.mxu0 %v3578
        %v3757 = vpop.f32.mrf.mxu0
        %v3758 = vadd.f32 0.0, %v3757
        %v3759 = vpop.f32.mrf.mxu0
        %3760 = vmatprep.mubr.f32.mxu0 0.0
        %3761 = vmatmul.mubr.f32.gmra.mxu0 %v3581
        %v3762 = vpop.f32.mrf.mxu0
        %v3763 = vadd.f32 0.0, %v3762
        %v3764 = vpop.f32.mrf.mxu0
        %3765 = vmatprep.mubr.f32.mxu0 0.0
        %3766 = vmatmul.mubr.f32.gmra.mxu0 %v3584
        %v3767 = vpop.f32.mrf.mxu0
        %v3768 = vadd.f32 0.0, %v3767
        %v3769 = vpop.f32.mrf.mxu0
        %3770 = vmatprep.mubr.f32.mxu0 0.0
        %3771 = vmatmul.mubr.f32.gmra.mxu0 %v3587
        %v3772 = vpop.f32.mrf.mxu0
        %v3773 = vadd.f32 0.0, %v3772
        %v3774 = vpop.f32.mrf.mxu0
        %3775 = vmatprep.mubr.f32.mxu0 0.0
        %3776 = vmatmul.mubr.f32.gmra.mxu0 %v3590
        %v3777 = vpop.f32.mrf.mxu0
        %v3778 = vadd.f32 0.0, %v3777
        %v3779 = vpop.f32.mrf.mxu0
        %3780 = vmatprep.mubr.f32.mxu0 0.0
        %3781 = vmatmul.mubr.f32.gmra.mxu0 %v3593
        %v3782 = vpop.f32.mrf.mxu0
        %v3783 = vadd.f32 0.0, %v3782
        %v3784 = vpop.f32.mrf.mxu0
        %3785 = vmatprep.mubr.f32.mxu0 0.0
        %3786 = vmatmul.mubr.f32.gmra.mxu0 %v3596
        %v3787 = vpop.f32.mrf.mxu0
        %v3788 = vadd.f32 0.0, %v3787
        %v3789 = vpop.f32.mrf.mxu0
        %3790 = vmatprep.mubr.f32.mxu0 0.0
        %3791 = vmatmul.mubr.f32.gmra.mxu0 %v3599
        %v3792 = vpop.f32.mrf.mxu0
        %v3793 = vadd.f32 0.0, %v3792
        %v3794 = vpop.f32.mrf.mxu0
        %3795 = vmatprep.mubr.f32.mxu0 0.0
        %3796 = vmatmul.mubr.f32.gmra.mxu0 %v3602
        %v3797 = vpop.f32.mrf.mxu0
        %v3798 = vadd.f32 0.0, %v3797
        %v3799 = vpop.f32.mrf.mxu0
        %3800 = vmatprep.mubr.f32.mxu0 0.0
        %3801 = vmatmul.mubr.f32.gmra.mxu0 %v3605
        %v3802 = vpop.f32.mrf.mxu0
        %v3803 = vadd.f32 0.0, %v3802
        %v3804 = vpop.f32.mrf.mxu0
        %3805 = vmatprep.mubr.f32.mxu0 0.0
        %3806 = vmatmul.mubr.f32.gmra.mxu0 %v3608
        %v3807 = vpop.f32.mrf.mxu0
        %v3808 = vadd.f32 0.0, %v3807
        %v3809 = vpop.f32.mrf.mxu0
        %3810 = vmatprep.mubr.f32.mxu0 0.0
        %3811 = vmatmul.mubr.f32.gmra.mxu0 %v3611
        %v3812 = vpop.f32.mrf.mxu0
        %v3813 = vadd.f32 0.0, %v3812
        %v3814 = vpop.f32.mrf.mxu0
        %3815 = vmatprep.mubr.f32.mxu0 0.0
        %3816 = vmatmul.mubr.f32.gmra.mxu0 %v3614
        %v3817 = vpop.f32.mrf.mxu0
        %v3818 = vadd.f32 0.0, %v3817
        %v3819 = vpop.f32.mrf.mxu0
        %3820 = vmatprep.mubr.f32.mxu0 0.0
        %3821 = vmatmul.mubr.f32.gmra.mxu0 %v3617
        %v3822 = vpop.f32.mrf.mxu0
        %v3823 = vadd.f32 0.0, %v3822
        %v3824 = vpop.f32.mrf.mxu0
        %3825 = vmatprep.mubr.f32.mxu0 0.0
        %3826 = vmatmul.mubr.f32.gmra.mxu0 %v3620
        %v3827 = vpop.f32.mrf.mxu0
        %v3828 = vadd.f32 0.0, %v3827
        %v3829 = vpop.f32.mrf.mxu0
        %3830 = vmatprep.mubr.f32.mxu0 0.0
        %3831 = vmatmul.mubr.f32.gmra.mxu0 %v3623
        %v3832 = vpop.f32.mrf.mxu0
        %v3833 = vadd.f32 0.0, %v3832
        %v3834 = vpop.f32.mrf.mxu0
        %3835 = vmatprep.mubr.f32.mxu0 0.0
        %3836 = vmatmul.mubr.f32.gmra.mxu0 %v3626
        %v3837 = vpop.f32.mrf.mxu0
        %v3838 = vadd.f32 0.0, %v3837
        %v3839 = vpop.f32.mrf.mxu0
        %3840 = vmatprep.mubr.f32.mxu0 0.0
        %3841 = vmatmul.mubr.f32.gmra.mxu0 %v3629
        %v3842 = vpop.f32.mrf.mxu0
        %v3843 = vadd.f32 0.0, %v3842
        %v3844 = vpop.f32.mrf.mxu0
        %3845 = vmatprep.mubr.f32.mxu0 0.0
        %3846 = vmatmul.mubr.f32.gmra.mxu0 %v3632
        %v3847 = vpop.f32.mrf.mxu0
        %v3848 = vadd.f32 0.0, %v3847
        %v3849 = vpop.f32.mrf.mxu0
        %3850 = vmatprep.mubr.f32.mxu0 0.0
        %3851 = vmatmul.mubr.f32.gmra.mxu0 %v3635
        %v3852 = vpop.f32.mrf.mxu0
        %v3853 = vadd.f32 0.0, %v3852
        %v3854 = vpop.f32.mrf.mxu0
        %3855 = vmatprep.mubr.f32.mxu0 0.0
        %3856 = vmatmul.mubr.f32.gmra.mxu0 %v3638
        %v3857 = vpop.f32.mrf.mxu0
        %v3858 = vadd.f32 0.0, %v3857
        %v3859 = vpop.f32.mrf.mxu0
        %3860 = vmatprep.mubr.f32.mxu0 0.0
        %3861 = vmatmul.mubr.f32.gmra.mxu0 %v3641
        %v3862 = vpop.f32.mrf.mxu0
        %v3863 = vadd.f32 0.0, %v3862
        %v3864 = vpop.f32.mrf.mxu0
        %3865 = vmatprep.mubr.f32.mxu0 0.0
        %3866 = vmatmul.mubr.f32.gmra.mxu0 %v3644
        %v3867 = vpop.f32.mrf.mxu0
        %v3868 = vadd.f32 0.0, %v3867
        %v3869 = vpop.f32.mrf.mxu0
        %3870 = vdwg.mxu0
        %3871 = vmatprep.subr.mxu0 0.0
        %3872 = vmatpush1.msra.mxu0 %v3536
        %3873 = vmatprep.subr.mxu0 0.0
        %3874 = vmatpush1.msra.mxu0 %v3535
        %3875 = vmatprep.subr.mxu0 0.0
        %3876 = vmatpush1.msra.mxu0 %v3534
        %3877 = vmatprep.subr.mxu0 0.0
        %3878 = vmatpush1.msra.mxu0 %v3533
        %3879 = vmatprep.subr.mxu0 0.0
        %3880 = vmatpush1.msra.mxu0 %v3532
        %3881 = vmatprep.subr.mxu0 0.0
        %3882 = vmatpush1.msra.mxu0 %v3531
        %3883 = vmatprep.subr.mxu0 0.0
        %3884 = vmatpush1.msra.mxu0 %v3530
        %3885 = vmatprep.subr.mxu0 0.0
        %3886 = vmatpush1.msra.mxu0 %v3529
        %3887 = vmatprep.subr.mxu0 0.0
        %3888 = vmatpush1.msra.mxu0 %v3528
        %3889 = vmatprep.subr.mxu0 0.0
        %3890 = vmatpush1.msra.mxu0 %v3527
        %3891 = vmatprep.subr.mxu0 0.0
        %3892 = vmatpush1.msra.mxu0 %v3526
        %3893 = vmatprep.subr.mxu0 0.0
        %3894 = vmatpush1.msra.mxu0 %v3525
        %3895 = vmatprep.subr.mxu0 0.0
        %3896 = vmatpush1.msra.mxu0 %v3524
        %3897 = vmatprep.subr.mxu0 0.0
        %3898 = vmatpush1.msra.mxu0 %v3523
        %3899 = vmatprep.subr.mxu0 0.0
        %3900 = vmatpush1.msra.mxu0 %v3522
        %3901 = vmatprep.subr.mxu0 0.0
        %3902 = vmatpush1.msra.mxu0 %v3521
        %3903 = vmatprep.subr.mxu0 0.0
        %3904 = vmatpush2.msra.mxu0 0.0
        %3905 = vmatprep.subr.mxu0 0.0
        %3906 = vmatpush2.msra.mxu0 0.0
        %3907 = vmatprep.subr.mxu0 0.0
        %3908 = vmatpush2.msra.mxu0 0.0
        %3909 = vmatprep.subr.mxu0 0.0
        %3910 = vmatpush2.msra.mxu0 0.0
        %3911 = vmatprep.subr.mxu0 0.0
        %3912 = vmatpush2.msra.mxu0 0.0
        %3913 = vmatprep.subr.mxu0 0.0
        %3914 = vmatpush2.msra.mxu0 0.0
        %3915 = vmatprep.subr.mxu0 0.0
        %3916 = vmatpush2.msra.mxu0 0.0
        %3917 = vmatprep.subr.mxu0 0.0
        %3918 = vmatpush2.msra.mxu0 0.0
        %3919 = vmatprep.subr.mxu0 0.0
        %3920 = vmatpush2.msra.mxu0 0.0
        %3921 = vmatprep.subr.mxu0 0.0
        %3922 = vmatpush2.msra.mxu0 0.0
        %3923 = vmatprep.subr.mxu0 0.0
        %3924 = vmatpush2.msra.mxu0 0.0
        %3925 = vmatprep.subr.mxu0 0.0
        %3926 = vmatpush2.msra.mxu0 0.0
        %3927 = vmatprep.subr.mxu0 0.0
        %3928 = vmatpush2.msra.mxu0 0.0
        %3929 = vmatprep.subr.mxu0 0.0
        %3930 = vmatpush2.msra.mxu0 0.0
        %3931 = vmatprep.subr.mxu0 0.0
        %3932 = vmatpush2.msra.mxu0 0.0
        %3933 = vmatprep.subr.mxu0 0.0
        %3934 = vmatpush2.msra.mxu0 0.0
        %3935 = vmatprep.mubr.f32.mxu0 0.0
        %3936 = vmatmul.mubr.f32.gmra.mxu0 %v3456
        %v3937 = vpop.f32.mrf.mxu0
        %v3938 = vadd.f32 %v3713, %v3937
        %v3939 = vpop.f32.mrf.mxu0
        %3940 = vmatprep.mubr.f32.mxu0 0.0
        %3941 = vmatmul.mubr.f32.gmra.mxu0 %v3457
        %v3942 = vpop.f32.mrf.mxu0
        %v3943 = vadd.f32 %v3718, %v3942
        %v3944 = vpop.f32.mrf.mxu0
        %3945 = vmatprep.mubr.f32.mxu0 0.0
        %3946 = vmatmul.mubr.f32.gmra.mxu0 %v3458
        %v3947 = vpop.f32.mrf.mxu0
        %v3948 = vadd.f32 %v3723, %v3947
        %v3949 = vpop.f32.mrf.mxu0
        %3950 = vmatprep.mubr.f32.mxu0 0.0
        %3951 = vmatmul.mubr.f32.gmra.mxu0 %v3459
        %v3952 = vpop.f32.mrf.mxu0
        %v3953 = vadd.f32 %v3728, %v3952
        %v3954 = vpop.f32.mrf.mxu0
        %3955 = vmatprep.mubr.f32.mxu0 0.0
        %3956 = vmatmul.mubr.f32.gmra.mxu0 %v3460
        %v3957 = vpop.f32.mrf.mxu0
        %v3958 = vadd.f32 %v3733, %v3957
        %v3959 = vpop.f32.mrf.mxu0
        %3960 = vmatprep.mubr.f32.mxu0 0.0
        %3961 = vmatmul.mubr.f32.gmra.mxu0 %v3461
        %v3962 = vpop.f32.mrf.mxu0
        %v3963 = vadd.f32 %v3738, %v3962
        %v3964 = vpop.f32.mrf.mxu0
        %3965 = vmatprep.mubr.f32.mxu0 0.0
        %3966 = vmatmul.mubr.f32.gmra.mxu0 %v3462
        %v3967 = vpop.f32.mrf.mxu0
        %v3968 = vadd.f32 %v3743, %v3967
        %v3969 = vpop.f32.mrf.mxu0
        %3970 = vmatprep.mubr.f32.mxu0 0.0
        %3971 = vmatmul.mubr.f32.gmra.mxu0 %v3463
        %v3972 = vpop.f32.mrf.mxu0
        %v3973 = vadd.f32 %v3748, %v3972
        %v3974 = vpop.f32.mrf.mxu0
        %3975 = vmatprep.mubr.f32.mxu0 0.0
        %3976 = vmatmul.mubr.f32.gmra.mxu0 %v3464
        %v3977 = vpop.f32.mrf.mxu0
        %v3978 = vadd.f32 %v3753, %v3977
        %v3979 = vpop.f32.mrf.mxu0
        %3980 = vmatprep.mubr.f32.mxu0 0.0
        %3981 = vmatmul.mubr.f32.gmra.mxu0 %v3465
        %v3982 = vpop.f32.mrf.mxu0
        %v3983 = vadd.f32 %v3758, %v3982
        %v3984 = vpop.f32.mrf.mxu0
        %3985 = vmatprep.mubr.f32.mxu0 0.0
        %3986 = vmatmul.mubr.f32.gmra.mxu0 %v3466
        %v3987 = vpop.f32.mrf.mxu0
        %v3988 = vadd.f32 %v3763, %v3987
        %v3989 = vpop.f32.mrf.mxu0
        %3990 = vmatprep.mubr.f32.mxu0 0.0
        %3991 = vmatmul.mubr.f32.gmra.mxu0 %v3467
        %v3992 = vpop.f32.mrf.mxu0
        %v3993 = vadd.f32 %v3768, %v3992
        %v3994 = vpop.f32.mrf.mxu0
        %3995 = vmatprep.mubr.f32.mxu0 0.0
        %3996 = vmatmul.mubr.f32.gmra.mxu0 %v3468
        %v3997 = vpop.f32.mrf.mxu0
        %v3998 = vadd.f32 %v3773, %v3997
        %v3999 = vpop.f32.mrf.mxu0
        %4000 = vmatprep.mubr.f32.mxu0 0.0
        %4001 = vmatmul.mubr.f32.gmra.mxu0 %v3469
        %v4002 = vpop.f32.mrf.mxu0
        %v4003 = vadd.f32 %v3778, %v4002
        %v4004 = vpop.f32.mrf.mxu0
        %4005 = vmatprep.mubr.f32.mxu0 0.0
        %4006 = vmatmul.mubr.f32.gmra.mxu0 %v3470
        %v4007 = vpop.f32.mrf.mxu0
        %v4008 = vadd.f32 %v3783, %v4007
        %v4009 = vpop.f32.mrf.mxu0
        %4010 = vmatprep.mubr.f32.mxu0 0.0
        %4011 = vmatmul.mubr.f32.gmra.mxu0 %v3471
        %v4012 = vpop.f32.mrf.mxu0
        %v4013 = vadd.f32 %v3788, %v4012
        %v4014 = vpop.f32.mrf.mxu0
        %4015 = vmatprep.mubr.f32.mxu0 0.0
        %4016 = vmatmul.mubr.f32.gmra.mxu0 %v3472
        %v4017 = vpop.f32.mrf.mxu0
        %v4018 = vadd.f32 %v3793, %v4017
        %v4019 = vpop.f32.mrf.mxu0
        %4020 = vmatprep.mubr.f32.mxu0 0.0
        %4021 = vmatmul.mubr.f32.gmra.mxu0 %v3473
        %v4022 = vpop.f32.mrf.mxu0
        %v4023 = vadd.f32 %v3798, %v4022
        %v4024 = vpop.f32.mrf.mxu0
        %4025 = vmatprep.mubr.f32.mxu0 0.0
        %4026 = vmatmul.mubr.f32.gmra.mxu0 %v3474
        %v4027 = vpop.f32.mrf.mxu0
        %v4028 = vadd.f32 %v3803, %v4027
        %v4029 = vpop.f32.mrf.mxu0
        %4030 = vmatprep.mubr.f32.mxu0 0.0
        %4031 = vmatmul.mubr.f32.gmra.mxu0 %v3475
        %v4032 = vpop.f32.mrf.mxu0
        %v4033 = vadd.f32 %v3808, %v4032
        %v4034 = vpop.f32.mrf.mxu0
        %4035 = vmatprep.mubr.f32.mxu0 0.0
        %4036 = vmatmul.mubr.f32.gmra.mxu0 %v3476
        %v4037 = vpop.f32.mrf.mxu0
        %v4038 = vadd.f32 %v3813, %v4037
        %v4039 = vpop.f32.mrf.mxu0
        %4040 = vmatprep.mubr.f32.mxu0 0.0
        %4041 = vmatmul.mubr.f32.gmra.mxu0 %v3477
        %v4042 = vpop.f32.mrf.mxu0
        %v4043 = vadd.f32 %v3818, %v4042
        %v4044 = vpop.f32.mrf.mxu0
        %4045 = vmatprep.mubr.f32.mxu0 0.0
        %4046 = vmatmul.mubr.f32.gmra.mxu0 %v3478
        %v4047 = vpop.f32.mrf.mxu0
        %v4048 = vadd.f32 %v3823, %v4047
        %v4049 = vpop.f32.mrf.mxu0
        %4050 = vmatprep.mubr.f32.mxu0 0.0
        %4051 = vmatmul.mubr.f32.gmra.mxu0 %v3479
        %v4052 = vpop.f32.mrf.mxu0
        %v4053 = vadd.f32 %v3828, %v4052
        %v4054 = vpop.f32.mrf.mxu0
        %4055 = vmatprep.mubr.f32.mxu0 0.0
        %4056 = vmatmul.mubr.f32.gmra.mxu0 %v3480
        %v4057 = vpop.f32.mrf.mxu0
        %v4058 = vadd.f32 %v3833, %v4057
        %v4059 = vpop.f32.mrf.mxu0
        %4060 = vmatprep.mubr.f32.mxu0 0.0
        %4061 = vmatmul.mubr.f32.gmra.mxu0 %v3481
        %v4062 = vpop.f32.mrf.mxu0
        %v4063 = vadd.f32 %v3838, %v4062
        %v4064 = vpop.f32.mrf.mxu0
        %4065 = vmatprep.mubr.f32.mxu0 0.0
        %4066 = vmatmul.mubr.f32.gmra.mxu0 %v3482
        %v4067 = vpop.f32.mrf.mxu0
        %v4068 = vadd.f32 %v3843, %v4067
        %v4069 = vpop.f32.mrf.mxu0
        %4070 = vmatprep.mubr.f32.mxu0 0.0
        %4071 = vmatmul.mubr.f32.gmra.mxu0 %v3483
        %v4072 = vpop.f32.mrf.mxu0
        %v4073 = vadd.f32 %v3848, %v4072
        %v4074 = vpop.f32.mrf.mxu0
        %4075 = vmatprep.mubr.f32.mxu0 0.0
        %4076 = vmatmul.mubr.f32.gmra.mxu0 %v3484
        %v4077 = vpop.f32.mrf.mxu0
        %v4078 = vadd.f32 %v3853, %v4077
        %v4079 = vpop.f32.mrf.mxu0
        %4080 = vmatprep.mubr.f32.mxu0 0.0
        %4081 = vmatmul.mubr.f32.gmra.mxu0 %v3485
        %v4082 = vpop.f32.mrf.mxu0
        %v4083 = vadd.f32 %v3858, %v4082
        %v4084 = vpop.f32.mrf.mxu0
        %4085 = vmatprep.mubr.f32.mxu0 0.0
        %4086 = vmatmul.mubr.f32.gmra.mxu0 %v3486
        %v4087 = vpop.f32.mrf.mxu0
        %v4088 = vadd.f32 %v3863, %v4087
        %v4089 = vpop.f32.mrf.mxu0
        %4090 = vmatprep.mubr.f32.mxu0 0.0
        %4091 = vmatmul.mubr.f32.gmra.mxu0 %v3487
        %v4092 = vpop.f32.mrf.mxu0
        %v4093 = vadd.f32 %v3868, %v4092
        %v4094 = vpop.f32.mrf.mxu0
        %4095 = vdwg.mxu0
        %s4096 = scalar_lea.vmem %s5, 3
        %v4097 = vld [vmem:[%s4096] sm:$0x1]
        %v4099 = vlaneseq
        %v4100 = vshrl.u32 %v4099, 7
        %v4101 = vsub.s32 0, %v4100
        %v4102 = vrot.slane %v4097, %v4101
        %v4104 = vadd.f32 %v3938, %v4102
        %v4105 = vadd.f32 %v3943, %v4102
        %v4106 = vadd.f32 %v3948, %v4102
        %v4107 = vadd.f32 %v3953, %v4102
        %v4108 = vadd.f32 %v3958, %v4102
        %v4109 = vadd.f32 %v3963, %v4102
        %v4110 = vadd.f32 %v3968, %v4102
        %v4111 = vadd.f32 %v3973, %v4102
        %v4112 = vadd.f32 %v3978, %v4102
        %v4113 = vadd.f32 %v3983, %v4102
        %v4114 = vadd.f32 %v3988, %v4102
        %v4115 = vadd.f32 %v3993, %v4102
        %v4116 = vadd.f32 %v3998, %v4102
        %v4117 = vadd.f32 %v4003, %v4102
        %v4118 = vadd.f32 %v4008, %v4102
        %v4119 = vadd.f32 %v4013, %v4102
        %v4120 = vadd.f32 %v4018, %v4102
        %v4121 = vadd.f32 %v4023, %v4102
        %v4122 = vadd.f32 %v4028, %v4102
        %v4123 = vadd.f32 %v4033, %v4102
        %v4124 = vadd.f32 %v4038, %v4102
        %v4125 = vadd.f32 %v4043, %v4102
        %v4126 = vadd.f32 %v4048, %v4102
        %v4127 = vadd.f32 %v4053, %v4102
        %v4128 = vadd.f32 %v4058, %v4102
        %v4129 = vadd.f32 %v4063, %v4102
        %v4130 = vadd.f32 %v4068, %v4102
        %v4131 = vadd.f32 %v4073, %v4102
        %v4132 = vadd.f32 %v4078, %v4102
        %v4133 = vadd.f32 %v4083, %v4102
        %v4134 = vadd.f32 %v4088, %v4102
        %v4135 = vadd.f32 %v4093, %v4102
        %v4136 = vmax.f32 %v4104, 0.0
        %v4137 = vmax.f32 %v4105, 0.0
        %v4138 = vmax.f32 %v4106, 0.0
        %v4139 = vmax.f32 %v4107, 0.0
        %v4140 = vmax.f32 %v4108, 0.0
        %v4141 = vmax.f32 %v4109, 0.0
        %v4142 = vmax.f32 %v4110, 0.0
        %v4143 = vmax.f32 %v4111, 0.0
        %v4144 = vmax.f32 %v4112, 0.0
        %v4145 = vmax.f32 %v4113, 0.0
        %v4146 = vmax.f32 %v4114, 0.0
        %v4147 = vmax.f32 %v4115, 0.0
        %v4148 = vmax.f32 %v4116, 0.0
        %v4149 = vmax.f32 %v4117, 0.0
        %v4150 = vmax.f32 %v4118, 0.0
        %v4151 = vmax.f32 %v4119, 0.0
        %v4152 = vmax.f32 %v4120, 0.0
        %v4153 = vmax.f32 %v4121, 0.0
        %v4154 = vmax.f32 %v4122, 0.0
        %v4155 = vmax.f32 %v4123, 0.0
        %v4156 = vmax.f32 %v4124, 0.0
        %v4157 = vmax.f32 %v4125, 0.0
        %v4158 = vmax.f32 %v4126, 0.0
        %v4159 = vmax.f32 %v4127, 0.0
        %v4160 = vmax.f32 %v4128, 0.0
        %v4161 = vmax.f32 %v4129, 0.0
        %v4162 = vmax.f32 %v4130, 0.0
        %v4163 = vmax.f32 %v4131, 0.0
        %v4164 = vmax.f32 %v4132, 0.0
        %v4165 = vmax.f32 %v4133, 0.0
        %v4166 = vmax.f32 %v4134, 0.0
        %v4167 = vmax.f32 %v4135, 0.0
        %s4168 = scalar_lea.vmem [#allocation8], 384
        %v4169 = vld [vmem:[%s4168] sm:$0xff]
        %v4170 = vld [vmem:[%s4168 + $0x8] sm:$0xff]
        %v4171 = vld [vmem:[%s4168 + $0x10] sm:$0xff]
        %v4172 = vld [vmem:[%s4168 + $0x18] sm:$0xff]
        %v4173 = vld [vmem:[%s4168 + $0x20] sm:$0xff]
        %v4174 = vld [vmem:[%s4168 + $0x28] sm:$0xff]
        %v4175 = vld [vmem:[%s4168 + $0x30] sm:$0xff]
        %v4176 = vld [vmem:[%s4168 + $0x38] sm:$0xff]
        %v4177 = vld [vmem:[%s4168 + $0x40] sm:$0xff]
        %v4178 = vld [vmem:[%s4168 + $0x48] sm:$0xff]
        %v4179 = vld [vmem:[%s4168 + $0x50] sm:$0xff]
        %v4180 = vld [vmem:[%s4168 + $0x58] sm:$0xff]
        %v4181 = vld [vmem:[%s4168 + $0x60] sm:$0xff]
        %v4182 = vld [vmem:[%s4168 + $0x68] sm:$0xff]
        %v4183 = vld [vmem:[%s4168 + $0x70] sm:$0xff]
        %v4184 = vld [vmem:[%s4168 + $0x78] sm:$0xff]
        %s4185 = scalar_lea.vmem %s6, 3
        %v4186 = vld [vmem:[%s4185] sm:$0x1]
        %v4188 = vlaneseq
        %v4189 = vshrl.u32 %v4188, 7
        %v4190 = vsub.s32 0, %v4189
        %v4191 = vrot.slane %v4186, %v4190
        %4193 = vmatprep.subr.mxu0 0.0
        %4194 = vmatpush1.msra.mxu0 %v4184
        %4195 = vmatprep.subr.mxu0 0.0
        %4196 = vmatpush1.msra.mxu0 %v4183
        %4197 = vmatprep.subr.mxu0 0.0
        %4198 = vmatpush1.msra.mxu0 %v4182
        %4199 = vmatprep.subr.mxu0 0.0
        %4200 = vmatpush1.msra.mxu0 %v4181
        %4201 = vmatprep.subr.mxu0 0.0
        %4202 = vmatpush1.msra.mxu0 %v4180
        %4203 = vmatprep.subr.mxu0 0.0
        %4204 = vmatpush1.msra.mxu0 %v4179
        %4205 = vmatprep.subr.mxu0 0.0
        %4206 = vmatpush1.msra.mxu0 %v4178
        %4207 = vmatprep.subr.mxu0 0.0
        %4208 = vmatpush1.msra.mxu0 %v4177
        %4209 = vmatprep.subr.mxu0 0.0
        %4210 = vmatpush1.msra.mxu0 %v4176
        %4211 = vmatprep.subr.mxu0 0.0
        %4212 = vmatpush1.msra.mxu0 %v4175
        %4213 = vmatprep.subr.mxu0 0.0
        %4214 = vmatpush1.msra.mxu0 %v4174
        %4215 = vmatprep.subr.mxu0 0.0
        %4216 = vmatpush1.msra.mxu0 %v4173
        %4217 = vmatprep.subr.mxu0 0.0
        %4218 = vmatpush1.msra.mxu0 %v4172
        %4219 = vmatprep.subr.mxu0 0.0
        %4220 = vmatpush1.msra.mxu0 %v4171
        %4221 = vmatprep.subr.mxu0 0.0
        %4222 = vmatpush1.msra.mxu0 %v4170
        %4223 = vmatprep.subr.mxu0 0.0
        %4224 = vmatpush1.msra.mxu0 %v4169
        %4225 = vmatprep.subr.mxu0 0.0
        %4226 = vmatpush2.msra.mxu0 0.0
        %4227 = vmatprep.subr.mxu0 0.0
        %4228 = vmatpush2.msra.mxu0 0.0
        %4229 = vmatprep.subr.mxu0 0.0
        %4230 = vmatpush2.msra.mxu0 0.0
        %4231 = vmatprep.subr.mxu0 0.0
        %4232 = vmatpush2.msra.mxu0 0.0
        %4233 = vmatprep.subr.mxu0 0.0
        %4234 = vmatpush2.msra.mxu0 0.0
        %4235 = vmatprep.subr.mxu0 0.0
        %4236 = vmatpush2.msra.mxu0 0.0
        %4237 = vmatprep.subr.mxu0 0.0
        %4238 = vmatpush2.msra.mxu0 0.0
        %4239 = vmatprep.subr.mxu0 0.0
        %4240 = vmatpush2.msra.mxu0 0.0
        %4241 = vmatprep.subr.mxu0 0.0
        %4242 = vmatpush2.msra.mxu0 0.0
        %4243 = vmatprep.subr.mxu0 0.0
        %4244 = vmatpush2.msra.mxu0 0.0
        %4245 = vmatprep.subr.mxu0 0.0
        %4246 = vmatpush2.msra.mxu0 0.0
        %4247 = vmatprep.subr.mxu0 0.0
        %4248 = vmatpush2.msra.mxu0 0.0
        %4249 = vmatprep.subr.mxu0 0.0
        %4250 = vmatpush2.msra.mxu0 0.0
        %4251 = vmatprep.subr.mxu0 0.0
        %4252 = vmatpush2.msra.mxu0 0.0
        %4253 = vmatprep.subr.mxu0 0.0
        %4254 = vmatpush2.msra.mxu0 0.0
        %4255 = vmatprep.subr.mxu0 0.0
        %4256 = vmatpush2.msra.mxu0 0.0
        %4257 = vmatprep.mubr.f32.mxu0 0.0
        %4258 = vmatmul.mubr.f32.gmra.mxu0 %v4136
        %v4259 = vpop.f32.mrf.mxu0
        %v4260 = vadd.f32 %v4191, %v4259
        %v4261 = vpop.f32.mrf.mxu0
        %4262 = vmatprep.mubr.f32.mxu0 0.0
        %4263 = vmatmul.mubr.f32.gmra.mxu0 %v4137
        %v4264 = vpop.f32.mrf.mxu0
        %v4265 = vadd.f32 %v4191, %v4264
        %v4266 = vpop.f32.mrf.mxu0
        %4267 = vmatprep.mubr.f32.mxu0 0.0
        %4268 = vmatmul.mubr.f32.gmra.mxu0 %v4138
        %v4269 = vpop.f32.mrf.mxu0
        %v4270 = vadd.f32 %v4191, %v4269
        %v4271 = vpop.f32.mrf.mxu0
        %4272 = vmatprep.mubr.f32.mxu0 0.0
        %4273 = vmatmul.mubr.f32.gmra.mxu0 %v4139
        %v4274 = vpop.f32.mrf.mxu0
        %v4275 = vadd.f32 %v4191, %v4274
        %v4276 = vpop.f32.mrf.mxu0
        %4277 = vmatprep.mubr.f32.mxu0 0.0
        %4278 = vmatmul.mubr.f32.gmra.mxu0 %v4140
        %v4279 = vpop.f32.mrf.mxu0
        %v4280 = vadd.f32 %v4191, %v4279
        %v4281 = vpop.f32.mrf.mxu0
        %4282 = vmatprep.mubr.f32.mxu0 0.0
        %4283 = vmatmul.mubr.f32.gmra.mxu0 %v4141
        %v4284 = vpop.f32.mrf.mxu0
        %v4285 = vadd.f32 %v4191, %v4284
        %v4286 = vpop.f32.mrf.mxu0
        %4287 = vmatprep.mubr.f32.mxu0 0.0
        %4288 = vmatmul.mubr.f32.gmra.mxu0 %v4142
        %v4289 = vpop.f32.mrf.mxu0
        %v4290 = vadd.f32 %v4191, %v4289
        %v4291 = vpop.f32.mrf.mxu0
        %4292 = vmatprep.mubr.f32.mxu0 0.0
        %4293 = vmatmul.mubr.f32.gmra.mxu0 %v4143
        %v4294 = vpop.f32.mrf.mxu0
        %v4295 = vadd.f32 %v4191, %v4294
        %v4296 = vpop.f32.mrf.mxu0
        %4297 = vmatprep.mubr.f32.mxu0 0.0
        %4298 = vmatmul.mubr.f32.gmra.mxu0 %v4144
        %v4299 = vpop.f32.mrf.mxu0
        %v4300 = vadd.f32 %v4191, %v4299
        %v4301 = vpop.f32.mrf.mxu0
        %4302 = vmatprep.mubr.f32.mxu0 0.0
        %4303 = vmatmul.mubr.f32.gmra.mxu0 %v4145
        %v4304 = vpop.f32.mrf.mxu0
        %v4305 = vadd.f32 %v4191, %v4304
        %v4306 = vpop.f32.mrf.mxu0
        %4307 = vmatprep.mubr.f32.mxu0 0.0
        %4308 = vmatmul.mubr.f32.gmra.mxu0 %v4146
        %v4309 = vpop.f32.mrf.mxu0
        %v4310 = vadd.f32 %v4191, %v4309
        %v4311 = vpop.f32.mrf.mxu0
        %4312 = vmatprep.mubr.f32.mxu0 0.0
        %4313 = vmatmul.mubr.f32.gmra.mxu0 %v4147
        %v4314 = vpop.f32.mrf.mxu0
        %v4315 = vadd.f32 %v4191, %v4314
        %v4316 = vpop.f32.mrf.mxu0
        %4317 = vmatprep.mubr.f32.mxu0 0.0
        %4318 = vmatmul.mubr.f32.gmra.mxu0 %v4148
        %v4319 = vpop.f32.mrf.mxu0
        %v4320 = vadd.f32 %v4191, %v4319
        %v4321 = vpop.f32.mrf.mxu0
        %4322 = vmatprep.mubr.f32.mxu0 0.0
        %4323 = vmatmul.mubr.f32.gmra.mxu0 %v4149
        %v4324 = vpop.f32.mrf.mxu0
        %v4325 = vadd.f32 %v4191, %v4324
        %v4326 = vpop.f32.mrf.mxu0
        %4327 = vmatprep.mubr.f32.mxu0 0.0
        %4328 = vmatmul.mubr.f32.gmra.mxu0 %v4150
        %v4329 = vpop.f32.mrf.mxu0
        %v4330 = vadd.f32 %v4191, %v4329
        %v4331 = vpop.f32.mrf.mxu0
        %4332 = vmatprep.mubr.f32.mxu0 0.0
        %4333 = vmatmul.mubr.f32.gmra.mxu0 %v4151
        %v4334 = vpop.f32.mrf.mxu0
        %v4335 = vadd.f32 %v4191, %v4334
        %v4336 = vpop.f32.mrf.mxu0
        %4337 = vmatprep.mubr.f32.mxu0 0.0
        %4338 = vmatmul.mubr.f32.gmra.mxu0 %v4152
        %v4339 = vpop.f32.mrf.mxu0
        %v4340 = vadd.f32 %v4191, %v4339
        %v4341 = vpop.f32.mrf.mxu0
        %4342 = vmatprep.mubr.f32.mxu0 0.0
        %4343 = vmatmul.mubr.f32.gmra.mxu0 %v4153
        %v4344 = vpop.f32.mrf.mxu0
        %v4345 = vadd.f32 %v4191, %v4344
        %v4346 = vpop.f32.mrf.mxu0
        %4347 = vmatprep.mubr.f32.mxu0 0.0
        %4348 = vmatmul.mubr.f32.gmra.mxu0 %v4154
        %v4349 = vpop.f32.mrf.mxu0
        %v4350 = vadd.f32 %v4191, %v4349
        %v4351 = vpop.f32.mrf.mxu0
        %4352 = vmatprep.mubr.f32.mxu0 0.0
        %4353 = vmatmul.mubr.f32.gmra.mxu0 %v4155
        %v4354 = vpop.f32.mrf.mxu0
        %v4355 = vadd.f32 %v4191, %v4354
        %v4356 = vpop.f32.mrf.mxu0
        %4357 = vmatprep.mubr.f32.mxu0 0.0
        %4358 = vmatmul.mubr.f32.gmra.mxu0 %v4156
        %v4359 = vpop.f32.mrf.mxu0
        %v4360 = vadd.f32 %v4191, %v4359
        %v4361 = vpop.f32.mrf.mxu0
        %4362 = vmatprep.mubr.f32.mxu0 0.0
        %4363 = vmatmul.mubr.f32.gmra.mxu0 %v4157
        %v4364 = vpop.f32.mrf.mxu0
        %v4365 = vadd.f32 %v4191, %v4364
        %v4366 = vpop.f32.mrf.mxu0
        %4367 = vmatprep.mubr.f32.mxu0 0.0
        %4368 = vmatmul.mubr.f32.gmra.mxu0 %v4158
        %v4369 = vpop.f32.mrf.mxu0
        %v4370 = vadd.f32 %v4191, %v4369
        %v4371 = vpop.f32.mrf.mxu0
        %4372 = vmatprep.mubr.f32.mxu0 0.0
        %4373 = vmatmul.mubr.f32.gmra.mxu0 %v4159
        %v4374 = vpop.f32.mrf.mxu0
        %v4375 = vadd.f32 %v4191, %v4374
        %v4376 = vpop.f32.mrf.mxu0
        %4377 = vmatprep.mubr.f32.mxu0 0.0
        %4378 = vmatmul.mubr.f32.gmra.mxu0 %v4160
        %v4379 = vpop.f32.mrf.mxu0
        %v4380 = vadd.f32 %v4191, %v4379
        %v4381 = vpop.f32.mrf.mxu0
        %4382 = vmatprep.mubr.f32.mxu0 0.0
        %4383 = vmatmul.mubr.f32.gmra.mxu0 %v4161
        %v4384 = vpop.f32.mrf.mxu0
        %v4385 = vadd.f32 %v4191, %v4384
        %v4386 = vpop.f32.mrf.mxu0
        %4387 = vmatprep.mubr.f32.mxu0 0.0
        %4388 = vmatmul.mubr.f32.gmra.mxu0 %v4162
        %v4389 = vpop.f32.mrf.mxu0
        %v4390 = vadd.f32 %v4191, %v4389
        %v4391 = vpop.f32.mrf.mxu0
        %4392 = vmatprep.mubr.f32.mxu0 0.0
        %4393 = vmatmul.mubr.f32.gmra.mxu0 %v4163
        %v4394 = vpop.f32.mrf.mxu0
        %v4395 = vadd.f32 %v4191, %v4394
        %v4396 = vpop.f32.mrf.mxu0
        %4397 = vmatprep.mubr.f32.mxu0 0.0
        %4398 = vmatmul.mubr.f32.gmra.mxu0 %v4164
        %v4399 = vpop.f32.mrf.mxu0
        %v4400 = vadd.f32 %v4191, %v4399
        %v4401 = vpop.f32.mrf.mxu0
        %4402 = vmatprep.mubr.f32.mxu0 0.0
        %4403 = vmatmul.mubr.f32.gmra.mxu0 %v4165
        %v4404 = vpop.f32.mrf.mxu0
        %v4405 = vadd.f32 %v4191, %v4404
        %v4406 = vpop.f32.mrf.mxu0
        %4407 = vmatprep.mubr.f32.mxu0 0.0
        %4408 = vmatmul.mubr.f32.gmra.mxu0 %v4166
        %v4409 = vpop.f32.mrf.mxu0
        %v4410 = vadd.f32 %v4191, %v4409
        %v4411 = vpop.f32.mrf.mxu0
        %4412 = vmatprep.mubr.f32.mxu0 0.0
        %4413 = vmatmul.mubr.f32.gmra.mxu0 %v4167
        %v4414 = vpop.f32.mrf.mxu0
        %v4415 = vadd.f32 %v4191, %v4414
        %v4416 = vpop.f32.mrf.mxu0
        %4417 = vdwg.mxu0
        %v4418 = vadd.f32 %v4260, %v3456
        %v4419 = vadd.f32 %v4265, %v3457
        %v4420 = vadd.f32 %v4270, %v3458
        %v4421 = vadd.f32 %v4275, %v3459
        %v4422 = vadd.f32 %v4280, %v3460
        %v4423 = vadd.f32 %v4285, %v3461
        %v4424 = vadd.f32 %v4290, %v3462
        %v4425 = vadd.f32 %v4295, %v3463
        %v4426 = vadd.f32 %v4300, %v3464
        %v4427 = vadd.f32 %v4305, %v3465
        %v4428 = vadd.f32 %v4310, %v3466
        %v4429 = vadd.f32 %v4315, %v3467
        %v4430 = vadd.f32 %v4320, %v3468
        %v4431 = vadd.f32 %v4325, %v3469
        %v4432 = vadd.f32 %v4330, %v3470
        %v4433 = vadd.f32 %v4335, %v3471
        %v4434 = vadd.f32 %v4340, %v3472
        %v4435 = vadd.f32 %v4345, %v3473
        %v4436 = vadd.f32 %v4350, %v3474
        %v4437 = vadd.f32 %v4355, %v3475
        %v4438 = vadd.f32 %v4360, %v3476
        %v4439 = vadd.f32 %v4365, %v3477
        %v4440 = vadd.f32 %v4370, %v3478
        %v4441 = vadd.f32 %v4375, %v3479
        %v4442 = vadd.f32 %v4380, %v3480
        %v4443 = vadd.f32 %v4385, %v3481
        %v4444 = vadd.f32 %v4390, %v3482
        %v4445 = vadd.f32 %v4395, %v3483
        %v4446 = vadd.f32 %v4400, %v3484
        %v4447 = vadd.f32 %v4405, %v3485
        %v4448 = vadd.f32 %v4410, %v3486
        %v4449 = vadd.f32 %v4415, %v3487
        %4450 = vst [vmem:[#allocation2] sm:$0xff] %v4418
        %4451 = vst [vmem:[#allocation2 + $0x8] sm:$0xff] %v4419
        %4452 = vst [vmem:[#allocation2 + $0x10] sm:$0xff] %v4420
        %4453 = vst [vmem:[#allocation2 + $0x18] sm:$0xff] %v4421
        %4454 = vst [vmem:[#allocation2 + $0x20] sm:$0xff] %v4422
        %4455 = vst [vmem:[#allocation2 + $0x28] sm:$0xff] %v4423
        %4456 = vst [vmem:[#allocation2 + $0x30] sm:$0xff] %v4424
        %4457 = vst [vmem:[#allocation2 + $0x38] sm:$0xff] %v4425
        %4458 = vst [vmem:[#allocation2 + $0x40] sm:$0xff] %v4426
        %4459 = vst [vmem:[#allocation2 + $0x48] sm:$0xff] %v4427
        %4460 = vst [vmem:[#allocation2 + $0x50] sm:$0xff] %v4428
        %4461 = vst [vmem:[#allocation2 + $0x58] sm:$0xff] %v4429
        %4462 = vst [vmem:[#allocation2 + $0x60] sm:$0xff] %v4430
        %4463 = vst [vmem:[#allocation2 + $0x68] sm:$0xff] %v4431
        %4464 = vst [vmem:[#allocation2 + $0x70] sm:$0xff] %v4432
        %4465 = vst [vmem:[#allocation2 + $0x78] sm:$0xff] %v4433
        %4466 = vst [vmem:[#allocation2 + $0x80] sm:$0xff] %v4434
        %4467 = vst [vmem:[#allocation2 + $0x88] sm:$0xff] %v4435
        %4468 = vst [vmem:[#allocation2 + $0x90] sm:$0xff] %v4436
        %4469 = vst [vmem:[#allocation2 + $0x98] sm:$0xff] %v4437
        %4470 = vst [vmem:[#allocation2 + $0xa0] sm:$0xff] %v4438
        %4471 = vst [vmem:[#allocation2 + $0xa8] sm:$0xff] %v4439
        %4472 = vst [vmem:[#allocation2 + $0xb0] sm:$0xff] %v4440
        %4473 = vst [vmem:[#allocation2 + $0xb8] sm:$0xff] %v4441
        %4474 = vst [vmem:[#allocation2 + $0xc0] sm:$0xff] %v4442
        %4475 = vst [vmem:[#allocation2 + $0xc8] sm:$0xff] %v4443
        %4476 = vst [vmem:[#allocation2 + $0xd0] sm:$0xff] %v4444
        %4477 = vst [vmem:[#allocation2 + $0xd8] sm:$0xff] %v4445
        %4478 = vst [vmem:[#allocation2 + $0xe0] sm:$0xff] %v4446
        %4479 = vst [vmem:[#allocation2 + $0xe8] sm:$0xff] %v4447
        %4480 = vst [vmem:[#allocation2 + $0xf0] sm:$0xff] %v4448
        %4481 = vst [vmem:[#allocation2 + $0xf8] sm:$0xff] %v4449
        %v4482 = vld [vmem:[#allocation2] sm:$0xff]
        %v4483 = vld [vmem:[#allocation2 + $0x8] sm:$0xff]
        %v4484 = vld [vmem:[#allocation2 + $0x10] sm:$0xff]
        %v4485 = vld [vmem:[#allocation2 + $0x18] sm:$0xff]
        %v4486 = vld [vmem:[#allocation2 + $0x20] sm:$0xff]
        %v4487 = vld [vmem:[#allocation2 + $0x28] sm:$0xff]
        %v4488 = vld [vmem:[#allocation2 + $0x30] sm:$0xff]
        %v4489 = vld [vmem:[#allocation2 + $0x38] sm:$0xff]
        %v4490 = vld [vmem:[#allocation2 + $0x40] sm:$0xff]
        %v4491 = vld [vmem:[#allocation2 + $0x48] sm:$0xff]
        %v4492 = vld [vmem:[#allocation2 + $0x50] sm:$0xff]
        %v4493 = vld [vmem:[#allocation2 + $0x58] sm:$0xff]
        %v4494 = vld [vmem:[#allocation2 + $0x60] sm:$0xff]
        %v4495 = vld [vmem:[#allocation2 + $0x68] sm:$0xff]
        %v4496 = vld [vmem:[#allocation2 + $0x70] sm:$0xff]
        %v4497 = vld [vmem:[#allocation2 + $0x78] sm:$0xff]
        %v4498 = vld [vmem:[#allocation2 + $0x80] sm:$0xff]
        %v4499 = vld [vmem:[#allocation2 + $0x88] sm:$0xff]
        %v4500 = vld [vmem:[#allocation2 + $0x90] sm:$0xff]
        %v4501 = vld [vmem:[#allocation2 + $0x98] sm:$0xff]
        %v4502 = vld [vmem:[#allocation2 + $0xa0] sm:$0xff]
        %v4503 = vld [vmem:[#allocation2 + $0xa8] sm:$0xff]
        %v4504 = vld [vmem:[#allocation2 + $0xb0] sm:$0xff]
        %v4505 = vld [vmem:[#allocation2 + $0xb8] sm:$0xff]
        %v4506 = vld [vmem:[#allocation2 + $0xc0] sm:$0xff]
        %v4507 = vld [vmem:[#allocation2 + $0xc8] sm:$0xff]
        %v4508 = vld [vmem:[#allocation2 + $0xd0] sm:$0xff]
        %v4509 = vld [vmem:[#allocation2 + $0xd8] sm:$0xff]
        %v4510 = vld [vmem:[#allocation2 + $0xe0] sm:$0xff]
        %v4511 = vld [vmem:[#allocation2 + $0xe8] sm:$0xff]
        %v4512 = vld [vmem:[#allocation2 + $0xf0] sm:$0xff]
        %v4513 = vld [vmem:[#allocation2 + $0xf8] sm:$0xff]
        %v4514 = vld [vmem:[%s347] sm:$0xff]
        %v4515 = vld [vmem:[%s347 + $0x8] sm:$0xff]
        %v4516 = vld [vmem:[%s347 + $0x10] sm:$0xff]
        %v4517 = vld [vmem:[%s347 + $0x18] sm:$0xff]
        %v4518 = vld [vmem:[%s347 + $0x20] sm:$0xff]
        %v4519 = vld [vmem:[%s347 + $0x28] sm:$0xff]
        %v4520 = vld [vmem:[%s347 + $0x30] sm:$0xff]
        %v4521 = vld [vmem:[%s347 + $0x38] sm:$0xff]
        %v4522 = vld [vmem:[%s347 + $0x40] sm:$0xff]
        %v4523 = vld [vmem:[%s347 + $0x48] sm:$0xff]
        %v4524 = vld [vmem:[%s347 + $0x50] sm:$0xff]
        %v4525 = vld [vmem:[%s347 + $0x58] sm:$0xff]
        %v4526 = vld [vmem:[%s347 + $0x60] sm:$0xff]
        %v4527 = vld [vmem:[%s347 + $0x68] sm:$0xff]
        %v4528 = vld [vmem:[%s347 + $0x70] sm:$0xff]
        %v4529 = vld [vmem:[%s347 + $0x78] sm:$0xff]
        %v4530 = vld [vmem:[%s347 + $0x80] sm:$0xff]
        %v4531 = vld [vmem:[%s347 + $0x88] sm:$0xff]
        %v4532 = vld [vmem:[%s347 + $0x90] sm:$0xff]
        %v4533 = vld [vmem:[%s347 + $0x98] sm:$0xff]
        %v4534 = vld [vmem:[%s347 + $0xa0] sm:$0xff]
        %v4535 = vld [vmem:[%s347 + $0xa8] sm:$0xff]
        %v4536 = vld [vmem:[%s347 + $0xb0] sm:$0xff]
        %v4537 = vld [vmem:[%s347 + $0xb8] sm:$0xff]
        %v4538 = vld [vmem:[%s347 + $0xc0] sm:$0xff]
        %v4539 = vld [vmem:[%s347 + $0xc8] sm:$0xff]
        %v4540 = vld [vmem:[%s347 + $0xd0] sm:$0xff]
        %v4541 = vld [vmem:[%s347 + $0xd8] sm:$0xff]
        %v4542 = vld [vmem:[%s347 + $0xe0] sm:$0xff]
        %v4543 = vld [vmem:[%s347 + $0xe8] sm:$0xff]
        %v4544 = vld [vmem:[%s347 + $0xf0] sm:$0xff]
        %v4545 = vld [vmem:[%s347 + $0xf8] sm:$0xff]
        %s4546 = scalar_lea.vmem %s2, 512
        %v4547 = vld [vmem:[%s4546] sm:$0xff]
        %v4548 = vld [vmem:[%s4546 + $0x8] sm:$0xff]
        %v4549 = vld [vmem:[%s4546 + $0x10] sm:$0xff]
        %v4550 = vld [vmem:[%s4546 + $0x18] sm:$0xff]
        %v4551 = vld [vmem:[%s4546 + $0x20] sm:$0xff]
        %v4552 = vld [vmem:[%s4546 + $0x28] sm:$0xff]
        %v4553 = vld [vmem:[%s4546 + $0x30] sm:$0xff]
        %v4554 = vld [vmem:[%s4546 + $0x38] sm:$0xff]
        %v4555 = vld [vmem:[%s4546 + $0x40] sm:$0xff]
        %v4556 = vld [vmem:[%s4546 + $0x48] sm:$0xff]
        %v4557 = vld [vmem:[%s4546 + $0x50] sm:$0xff]
        %v4558 = vld [vmem:[%s4546 + $0x58] sm:$0xff]
        %v4559 = vld [vmem:[%s4546 + $0x60] sm:$0xff]
        %v4560 = vld [vmem:[%s4546 + $0x68] sm:$0xff]
        %v4561 = vld [vmem:[%s4546 + $0x70] sm:$0xff]
        %v4562 = vld [vmem:[%s4546 + $0x78] sm:$0xff]
        %s4563 = scalar_lea.vmem [#allocation6], 384
        %v4564 = vld [vmem:[%s4563] sm:$0xff]
        %v4565 = vld [vmem:[%s4563 + $0x8] sm:$0xff]
        %v4566 = vld [vmem:[%s4563 + $0x10] sm:$0xff]
        %v4567 = vld [vmem:[%s4563 + $0x18] sm:$0xff]
        %v4568 = vld [vmem:[%s4563 + $0x20] sm:$0xff]
        %v4569 = vld [vmem:[%s4563 + $0x28] sm:$0xff]
        %v4570 = vld [vmem:[%s4563 + $0x30] sm:$0xff]
        %v4571 = vld [vmem:[%s4563 + $0x38] sm:$0xff]
        %v4572 = vld [vmem:[%s4563 + $0x40] sm:$0xff]
        %v4573 = vld [vmem:[%s4563 + $0x48] sm:$0xff]
        %v4574 = vld [vmem:[%s4563 + $0x50] sm:$0xff]
        %v4575 = vld [vmem:[%s4563 + $0x58] sm:$0xff]
        %v4577 = vsel %vm506, %v4514, 0
        %v4580 = vsel %vm506, %v4515, 0
        %v4583 = vsel %vm506, %v4516, 0
        %v4586 = vsel %vm506, %v4517, 0
        %v4589 = vsel %vm506, %v4518, 0
        %v4592 = vsel %vm506, %v4519, 0
        %v4595 = vsel %vm506, %v4520, 0
        %v4598 = vsel %vm506, %v4521, 0
        %v4601 = vsel %vm506, %v4522, 0
        %v4604 = vsel %vm506, %v4523, 0
        %v4607 = vsel %vm506, %v4524, 0
        %v4610 = vsel %vm506, %v4525, 0
        %v4613 = vsel %vm506, %v4526, 0
        %v4616 = vsel %vm506, %v4527, 0
        %v4619 = vsel %vm506, %v4528, 0
        %v4622 = vsel %vm506, %v4529, 0
        %v4625 = vsel %vm506, %v4530, 0
        %v4628 = vsel %vm506, %v4531, 0
        %v4631 = vsel %vm506, %v4532, 0
        %v4634 = vsel %vm506, %v4533, 0
        %v4637 = vsel %vm506, %v4534, 0
        %v4640 = vsel %vm506, %v4535, 0
        %v4643 = vsel %vm506, %v4536, 0
        %v4646 = vsel %vm506, %v4537, 0
        %v4649 = vsel %vm506, %v4538, 0
        %v4652 = vsel %vm506, %v4539, 0
        %v4655 = vsel %vm506, %v4540, 0
        %v4658 = vsel %vm506, %v4541, 0
        %v4661 = vsel %vm506, %v4542, 0
        %v4664 = vsel %vm506, %v4543, 0
        %v4667 = vsel %vm506, %v4544, 0
        %v4670 = vsel %vm506, %v4545, 0
        %4672 = vmatprep.subr.mxu0 0.0
        %4673 = vmatpush1.msra.mxu0 0.0
        %4674 = vmatprep.subr.mxu0 0.0
        %4675 = vmatpush1.msra.mxu0 0.0
        %4676 = vmatprep.subr.mxu0 0.0
        %4677 = vmatpush1.msra.mxu0 0.0
        %4678 = vmatprep.subr.mxu0 0.0
        %4679 = vmatpush1.msra.mxu0 0.0
        %4680 = vmatprep.subr.mxu0 0.0
        %4681 = vmatpush1.msra.mxu0 %v4575
        %4682 = vmatprep.subr.mxu0 0.0
        %4683 = vmatpush1.msra.mxu0 %v4574
        %4684 = vmatprep.subr.mxu0 0.0
        %4685 = vmatpush1.msra.mxu0 %v4573
        %4686 = vmatprep.subr.mxu0 0.0
        %4687 = vmatpush1.msra.mxu0 %v4572
        %4688 = vmatprep.subr.mxu0 0.0
        %4689 = vmatpush1.msra.mxu0 %v4571
        %4690 = vmatprep.subr.mxu0 0.0
        %4691 = vmatpush1.msra.mxu0 %v4570
        %4692 = vmatprep.subr.mxu0 0.0
        %4693 = vmatpush1.msra.mxu0 %v4569
        %4694 = vmatprep.subr.mxu0 0.0
        %4695 = vmatpush1.msra.mxu0 %v4568
        %4696 = vmatprep.subr.mxu0 0.0
        %4697 = vmatpush1.msra.mxu0 %v4567
        %4698 = vmatprep.subr.mxu0 0.0
        %4699 = vmatpush1.msra.mxu0 %v4566
        %4700 = vmatprep.subr.mxu0 0.0
        %4701 = vmatpush1.msra.mxu0 %v4565
        %4702 = vmatprep.subr.mxu0 0.0
        %4703 = vmatpush1.msra.mxu0 %v4564
        %4704 = vmatprep.subr.mxu0 0.0
        %4705 = vmatpush2.msra.mxu0 0.0
        %4706 = vmatprep.subr.mxu0 0.0
        %4707 = vmatpush2.msra.mxu0 0.0
        %4708 = vmatprep.subr.mxu0 0.0
        %4709 = vmatpush2.msra.mxu0 0.0
        %4710 = vmatprep.subr.mxu0 0.0
        %4711 = vmatpush2.msra.mxu0 0.0
        %4712 = vmatprep.subr.mxu0 0.0
        %4713 = vmatpush2.msra.mxu0 0.0
        %4714 = vmatprep.subr.mxu0 0.0
        %4715 = vmatpush2.msra.mxu0 0.0
        %4716 = vmatprep.subr.mxu0 0.0
        %4717 = vmatpush2.msra.mxu0 0.0
        %4718 = vmatprep.subr.mxu0 0.0
        %4719 = vmatpush2.msra.mxu0 0.0
        %4720 = vmatprep.subr.mxu0 0.0
        %4721 = vmatpush2.msra.mxu0 0.0
        %4722 = vmatprep.subr.mxu0 0.0
        %4723 = vmatpush2.msra.mxu0 0.0
        %4724 = vmatprep.subr.mxu0 0.0
        %4725 = vmatpush2.msra.mxu0 0.0
        %4726 = vmatprep.subr.mxu0 0.0
        %4727 = vmatpush2.msra.mxu0 0.0
        %4728 = vmatprep.subr.mxu0 0.0
        %4729 = vmatpush2.msra.mxu0 0.0
        %4730 = vmatprep.subr.mxu0 0.0
        %4731 = vmatpush2.msra.mxu0 0.0
        %4732 = vmatprep.subr.mxu0 0.0
        %4733 = vmatpush2.msra.mxu0 0.0
        %4734 = vmatprep.subr.mxu0 0.0
        %4735 = vmatpush2.msra.mxu0 0.0
        %4736 = vmatprep.mubr.f32.mxu0 0.0
        %4737 = vmatmul.mubr.f32.gmra.mxu0 %v4577
        %v4738 = vpop.f32.mrf.mxu0
        %v4739 = vadd.f32 0.0, %v4738
        %v4740 = vpop.f32.mrf.mxu0
        %4741 = vmatprep.mubr.f32.mxu0 0.0
        %4742 = vmatmul.mubr.f32.gmra.mxu0 %v4580
        %v4743 = vpop.f32.mrf.mxu0
        %v4744 = vadd.f32 0.0, %v4743
        %v4745 = vpop.f32.mrf.mxu0
        %4746 = vmatprep.mubr.f32.mxu0 0.0
        %4747 = vmatmul.mubr.f32.gmra.mxu0 %v4583
        %v4748 = vpop.f32.mrf.mxu0
        %v4749 = vadd.f32 0.0, %v4748
        %v4750 = vpop.f32.mrf.mxu0
        %4751 = vmatprep.mubr.f32.mxu0 0.0
        %4752 = vmatmul.mubr.f32.gmra.mxu0 %v4586
        %v4753 = vpop.f32.mrf.mxu0
        %v4754 = vadd.f32 0.0, %v4753
        %v4755 = vpop.f32.mrf.mxu0
        %4756 = vmatprep.mubr.f32.mxu0 0.0
        %4757 = vmatmul.mubr.f32.gmra.mxu0 %v4589
        %v4758 = vpop.f32.mrf.mxu0
        %v4759 = vadd.f32 0.0, %v4758
        %v4760 = vpop.f32.mrf.mxu0
        %4761 = vmatprep.mubr.f32.mxu0 0.0
        %4762 = vmatmul.mubr.f32.gmra.mxu0 %v4592
        %v4763 = vpop.f32.mrf.mxu0
        %v4764 = vadd.f32 0.0, %v4763
        %v4765 = vpop.f32.mrf.mxu0
        %4766 = vmatprep.mubr.f32.mxu0 0.0
        %4767 = vmatmul.mubr.f32.gmra.mxu0 %v4595
        %v4768 = vpop.f32.mrf.mxu0
        %v4769 = vadd.f32 0.0, %v4768
        %v4770 = vpop.f32.mrf.mxu0
        %4771 = vmatprep.mubr.f32.mxu0 0.0
        %4772 = vmatmul.mubr.f32.gmra.mxu0 %v4598
        %v4773 = vpop.f32.mrf.mxu0
        %v4774 = vadd.f32 0.0, %v4773
        %v4775 = vpop.f32.mrf.mxu0
        %4776 = vmatprep.mubr.f32.mxu0 0.0
        %4777 = vmatmul.mubr.f32.gmra.mxu0 %v4601
        %v4778 = vpop.f32.mrf.mxu0
        %v4779 = vadd.f32 0.0, %v4778
        %v4780 = vpop.f32.mrf.mxu0
        %4781 = vmatprep.mubr.f32.mxu0 0.0
        %4782 = vmatmul.mubr.f32.gmra.mxu0 %v4604
        %v4783 = vpop.f32.mrf.mxu0
        %v4784 = vadd.f32 0.0, %v4783
        %v4785 = vpop.f32.mrf.mxu0
        %4786 = vmatprep.mubr.f32.mxu0 0.0
        %4787 = vmatmul.mubr.f32.gmra.mxu0 %v4607
        %v4788 = vpop.f32.mrf.mxu0
        %v4789 = vadd.f32 0.0, %v4788
        %v4790 = vpop.f32.mrf.mxu0
        %4791 = vmatprep.mubr.f32.mxu0 0.0
        %4792 = vmatmul.mubr.f32.gmra.mxu0 %v4610
        %v4793 = vpop.f32.mrf.mxu0
        %v4794 = vadd.f32 0.0, %v4793
        %v4795 = vpop.f32.mrf.mxu0
        %4796 = vmatprep.mubr.f32.mxu0 0.0
        %4797 = vmatmul.mubr.f32.gmra.mxu0 %v4613
        %v4798 = vpop.f32.mrf.mxu0
        %v4799 = vadd.f32 0.0, %v4798
        %v4800 = vpop.f32.mrf.mxu0
        %4801 = vmatprep.mubr.f32.mxu0 0.0
        %4802 = vmatmul.mubr.f32.gmra.mxu0 %v4616
        %v4803 = vpop.f32.mrf.mxu0
        %v4804 = vadd.f32 0.0, %v4803
        %v4805 = vpop.f32.mrf.mxu0
        %4806 = vmatprep.mubr.f32.mxu0 0.0
        %4807 = vmatmul.mubr.f32.gmra.mxu0 %v4619
        %v4808 = vpop.f32.mrf.mxu0
        %v4809 = vadd.f32 0.0, %v4808
        %v4810 = vpop.f32.mrf.mxu0
        %4811 = vmatprep.mubr.f32.mxu0 0.0
        %4812 = vmatmul.mubr.f32.gmra.mxu0 %v4622
        %v4813 = vpop.f32.mrf.mxu0
        %v4814 = vadd.f32 0.0, %v4813
        %v4815 = vpop.f32.mrf.mxu0
        %4816 = vmatprep.mubr.f32.mxu0 0.0
        %4817 = vmatmul.mubr.f32.gmra.mxu0 %v4625
        %v4818 = vpop.f32.mrf.mxu0
        %v4819 = vadd.f32 0.0, %v4818
        %v4820 = vpop.f32.mrf.mxu0
        %4821 = vmatprep.mubr.f32.mxu0 0.0
        %4822 = vmatmul.mubr.f32.gmra.mxu0 %v4628
        %v4823 = vpop.f32.mrf.mxu0
        %v4824 = vadd.f32 0.0, %v4823
        %v4825 = vpop.f32.mrf.mxu0
        %4826 = vmatprep.mubr.f32.mxu0 0.0
        %4827 = vmatmul.mubr.f32.gmra.mxu0 %v4631
        %v4828 = vpop.f32.mrf.mxu0
        %v4829 = vadd.f32 0.0, %v4828
        %v4830 = vpop.f32.mrf.mxu0
        %4831 = vmatprep.mubr.f32.mxu0 0.0
        %4832 = vmatmul.mubr.f32.gmra.mxu0 %v4634
        %v4833 = vpop.f32.mrf.mxu0
        %v4834 = vadd.f32 0.0, %v4833
        %v4835 = vpop.f32.mrf.mxu0
        %4836 = vmatprep.mubr.f32.mxu0 0.0
        %4837 = vmatmul.mubr.f32.gmra.mxu0 %v4637
        %v4838 = vpop.f32.mrf.mxu0
        %v4839 = vadd.f32 0.0, %v4838
        %v4840 = vpop.f32.mrf.mxu0
        %4841 = vmatprep.mubr.f32.mxu0 0.0
        %4842 = vmatmul.mubr.f32.gmra.mxu0 %v4640
        %v4843 = vpop.f32.mrf.mxu0
        %v4844 = vadd.f32 0.0, %v4843
        %v4845 = vpop.f32.mrf.mxu0
        %4846 = vmatprep.mubr.f32.mxu0 0.0
        %4847 = vmatmul.mubr.f32.gmra.mxu0 %v4643
        %v4848 = vpop.f32.mrf.mxu0
        %v4849 = vadd.f32 0.0, %v4848
        %v4850 = vpop.f32.mrf.mxu0
        %4851 = vmatprep.mubr.f32.mxu0 0.0
        %4852 = vmatmul.mubr.f32.gmra.mxu0 %v4646
        %v4853 = vpop.f32.mrf.mxu0
        %v4854 = vadd.f32 0.0, %v4853
        %v4855 = vpop.f32.mrf.mxu0
        %4856 = vmatprep.mubr.f32.mxu0 0.0
        %4857 = vmatmul.mubr.f32.gmra.mxu0 %v4649
        %v4858 = vpop.f32.mrf.mxu0
        %v4859 = vadd.f32 0.0, %v4858
        %v4860 = vpop.f32.mrf.mxu0
        %4861 = vmatprep.mubr.f32.mxu0 0.0
        %4862 = vmatmul.mubr.f32.gmra.mxu0 %v4652
        %v4863 = vpop.f32.mrf.mxu0
        %v4864 = vadd.f32 0.0, %v4863
        %v4865 = vpop.f32.mrf.mxu0
        %4866 = vmatprep.mubr.f32.mxu0 0.0
        %4867 = vmatmul.mubr.f32.gmra.mxu0 %v4655
        %v4868 = vpop.f32.mrf.mxu0
        %v4869 = vadd.f32 0.0, %v4868
        %v4870 = vpop.f32.mrf.mxu0
        %4871 = vmatprep.mubr.f32.mxu0 0.0
        %4872 = vmatmul.mubr.f32.gmra.mxu0 %v4658
        %v4873 = vpop.f32.mrf.mxu0
        %v4874 = vadd.f32 0.0, %v4873
        %v4875 = vpop.f32.mrf.mxu0
        %4876 = vmatprep.mubr.f32.mxu0 0.0
        %4877 = vmatmul.mubr.f32.gmra.mxu0 %v4661
        %v4878 = vpop.f32.mrf.mxu0
        %v4879 = vadd.f32 0.0, %v4878
        %v4880 = vpop.f32.mrf.mxu0
        %4881 = vmatprep.mubr.f32.mxu0 0.0
        %4882 = vmatmul.mubr.f32.gmra.mxu0 %v4664
        %v4883 = vpop.f32.mrf.mxu0
        %v4884 = vadd.f32 0.0, %v4883
        %v4885 = vpop.f32.mrf.mxu0
        %4886 = vmatprep.mubr.f32.mxu0 0.0
        %4887 = vmatmul.mubr.f32.gmra.mxu0 %v4667
        %v4888 = vpop.f32.mrf.mxu0
        %v4889 = vadd.f32 0.0, %v4888
        %v4890 = vpop.f32.mrf.mxu0
        %4891 = vmatprep.mubr.f32.mxu0 0.0
        %4892 = vmatmul.mubr.f32.gmra.mxu0 %v4670
        %v4893 = vpop.f32.mrf.mxu0
        %v4894 = vadd.f32 0.0, %v4893
        %v4895 = vpop.f32.mrf.mxu0
        %4896 = vdwg.mxu0
        %4897 = vmatprep.subr.mxu0 0.0
        %4898 = vmatpush1.msra.mxu0 %v4562
        %4899 = vmatprep.subr.mxu0 0.0
        %4900 = vmatpush1.msra.mxu0 %v4561
        %4901 = vmatprep.subr.mxu0 0.0
        %4902 = vmatpush1.msra.mxu0 %v4560
        %4903 = vmatprep.subr.mxu0 0.0
        %4904 = vmatpush1.msra.mxu0 %v4559
        %4905 = vmatprep.subr.mxu0 0.0
        %4906 = vmatpush1.msra.mxu0 %v4558
        %4907 = vmatprep.subr.mxu0 0.0
        %4908 = vmatpush1.msra.mxu0 %v4557
        %4909 = vmatprep.subr.mxu0 0.0
        %4910 = vmatpush1.msra.mxu0 %v4556
        %4911 = vmatprep.subr.mxu0 0.0
        %4912 = vmatpush1.msra.mxu0 %v4555
        %4913 = vmatprep.subr.mxu0 0.0
        %4914 = vmatpush1.msra.mxu0 %v4554
        %4915 = vmatprep.subr.mxu0 0.0
        %4916 = vmatpush1.msra.mxu0 %v4553
        %4917 = vmatprep.subr.mxu0 0.0
        %4918 = vmatpush1.msra.mxu0 %v4552
        %4919 = vmatprep.subr.mxu0 0.0
        %4920 = vmatpush1.msra.mxu0 %v4551
        %4921 = vmatprep.subr.mxu0 0.0
        %4922 = vmatpush1.msra.mxu0 %v4550
        %4923 = vmatprep.subr.mxu0 0.0
        %4924 = vmatpush1.msra.mxu0 %v4549
        %4925 = vmatprep.subr.mxu0 0.0
        %4926 = vmatpush1.msra.mxu0 %v4548
        %4927 = vmatprep.subr.mxu0 0.0
        %4928 = vmatpush1.msra.mxu0 %v4547
        %4929 = vmatprep.subr.mxu0 0.0
        %4930 = vmatpush2.msra.mxu0 0.0
        %4931 = vmatprep.subr.mxu0 0.0
        %4932 = vmatpush2.msra.mxu0 0.0
        %4933 = vmatprep.subr.mxu0 0.0
        %4934 = vmatpush2.msra.mxu0 0.0
        %4935 = vmatprep.subr.mxu0 0.0
        %4936 = vmatpush2.msra.mxu0 0.0
        %4937 = vmatprep.subr.mxu0 0.0
        %4938 = vmatpush2.msra.mxu0 0.0
        %4939 = vmatprep.subr.mxu0 0.0
        %4940 = vmatpush2.msra.mxu0 0.0
        %4941 = vmatprep.subr.mxu0 0.0
        %4942 = vmatpush2.msra.mxu0 0.0
        %4943 = vmatprep.subr.mxu0 0.0
        %4944 = vmatpush2.msra.mxu0 0.0
        %4945 = vmatprep.subr.mxu0 0.0
        %4946 = vmatpush2.msra.mxu0 0.0
        %4947 = vmatprep.subr.mxu0 0.0
        %4948 = vmatpush2.msra.mxu0 0.0
        %4949 = vmatprep.subr.mxu0 0.0
        %4950 = vmatpush2.msra.mxu0 0.0
        %4951 = vmatprep.subr.mxu0 0.0
        %4952 = vmatpush2.msra.mxu0 0.0
        %4953 = vmatprep.subr.mxu0 0.0
        %4954 = vmatpush2.msra.mxu0 0.0
        %4955 = vmatprep.subr.mxu0 0.0
        %4956 = vmatpush2.msra.mxu0 0.0
        %4957 = vmatprep.subr.mxu0 0.0
        %4958 = vmatpush2.msra.mxu0 0.0
        %4959 = vmatprep.subr.mxu0 0.0
        %4960 = vmatpush2.msra.mxu0 0.0
        %4961 = vmatprep.mubr.f32.mxu0 0.0
        %4962 = vmatmul.mubr.f32.gmra.mxu0 %v4482
        %v4963 = vpop.f32.mrf.mxu0
        %v4964 = vadd.f32 %v4739, %v4963
        %v4965 = vpop.f32.mrf.mxu0
        %4966 = vmatprep.mubr.f32.mxu0 0.0
        %4967 = vmatmul.mubr.f32.gmra.mxu0 %v4483
        %v4968 = vpop.f32.mrf.mxu0
        %v4969 = vadd.f32 %v4744, %v4968
        %v4970 = vpop.f32.mrf.mxu0
        %4971 = vmatprep.mubr.f32.mxu0 0.0
        %4972 = vmatmul.mubr.f32.gmra.mxu0 %v4484
        %v4973 = vpop.f32.mrf.mxu0
        %v4974 = vadd.f32 %v4749, %v4973
        %v4975 = vpop.f32.mrf.mxu0
        %4976 = vmatprep.mubr.f32.mxu0 0.0
        %4977 = vmatmul.mubr.f32.gmra.mxu0 %v4485
        %v4978 = vpop.f32.mrf.mxu0
        %v4979 = vadd.f32 %v4754, %v4978
        %v4980 = vpop.f32.mrf.mxu0
        %4981 = vmatprep.mubr.f32.mxu0 0.0
        %4982 = vmatmul.mubr.f32.gmra.mxu0 %v4486
        %v4983 = vpop.f32.mrf.mxu0
        %v4984 = vadd.f32 %v4759, %v4983
        %v4985 = vpop.f32.mrf.mxu0
        %4986 = vmatprep.mubr.f32.mxu0 0.0
        %4987 = vmatmul.mubr.f32.gmra.mxu0 %v4487
        %v4988 = vpop.f32.mrf.mxu0
        %v4989 = vadd.f32 %v4764, %v4988
        %v4990 = vpop.f32.mrf.mxu0
        %4991 = vmatprep.mubr.f32.mxu0 0.0
        %4992 = vmatmul.mubr.f32.gmra.mxu0 %v4488
        %v4993 = vpop.f32.mrf.mxu0
        %v4994 = vadd.f32 %v4769, %v4993
        %v4995 = vpop.f32.mrf.mxu0
        %4996 = vmatprep.mubr.f32.mxu0 0.0
        %4997 = vmatmul.mubr.f32.gmra.mxu0 %v4489
        %v4998 = vpop.f32.mrf.mxu0
        %v4999 = vadd.f32 %v4774, %v4998
        %v5000 = vpop.f32.mrf.mxu0
        %5001 = vmatprep.mubr.f32.mxu0 0.0
        %5002 = vmatmul.mubr.f32.gmra.mxu0 %v4490
        %v5003 = vpop.f32.mrf.mxu0
        %v5004 = vadd.f32 %v4779, %v5003
        %v5005 = vpop.f32.mrf.mxu0
        %5006 = vmatprep.mubr.f32.mxu0 0.0
        %5007 = vmatmul.mubr.f32.gmra.mxu0 %v4491
        %v5008 = vpop.f32.mrf.mxu0
        %v5009 = vadd.f32 %v4784, %v5008
        %v5010 = vpop.f32.mrf.mxu0
        %5011 = vmatprep.mubr.f32.mxu0 0.0
        %5012 = vmatmul.mubr.f32.gmra.mxu0 %v4492
        %v5013 = vpop.f32.mrf.mxu0
        %v5014 = vadd.f32 %v4789, %v5013
        %v5015 = vpop.f32.mrf.mxu0
        %5016 = vmatprep.mubr.f32.mxu0 0.0
        %5017 = vmatmul.mubr.f32.gmra.mxu0 %v4493
        %v5018 = vpop.f32.mrf.mxu0
        %v5019 = vadd.f32 %v4794, %v5018
        %v5020 = vpop.f32.mrf.mxu0
        %5021 = vmatprep.mubr.f32.mxu0 0.0
        %5022 = vmatmul.mubr.f32.gmra.mxu0 %v4494
        %v5023 = vpop.f32.mrf.mxu0
        %v5024 = vadd.f32 %v4799, %v5023
        %v5025 = vpop.f32.mrf.mxu0
        %5026 = vmatprep.mubr.f32.mxu0 0.0
        %5027 = vmatmul.mubr.f32.gmra.mxu0 %v4495
        %v5028 = vpop.f32.mrf.mxu0
        %v5029 = vadd.f32 %v4804, %v5028
        %v5030 = vpop.f32.mrf.mxu0
        %5031 = vmatprep.mubr.f32.mxu0 0.0
        %5032 = vmatmul.mubr.f32.gmra.mxu0 %v4496
        %v5033 = vpop.f32.mrf.mxu0
        %v5034 = vadd.f32 %v4809, %v5033
        %v5035 = vpop.f32.mrf.mxu0
        %5036 = vmatprep.mubr.f32.mxu0 0.0
        %5037 = vmatmul.mubr.f32.gmra.mxu0 %v4497
        %v5038 = vpop.f32.mrf.mxu0
        %v5039 = vadd.f32 %v4814, %v5038
        %v5040 = vpop.f32.mrf.mxu0
        %5041 = vmatprep.mubr.f32.mxu0 0.0
        %5042 = vmatmul.mubr.f32.gmra.mxu0 %v4498
        %v5043 = vpop.f32.mrf.mxu0
        %v5044 = vadd.f32 %v4819, %v5043
        %v5045 = vpop.f32.mrf.mxu0
        %5046 = vmatprep.mubr.f32.mxu0 0.0
        %5047 = vmatmul.mubr.f32.gmra.mxu0 %v4499
        %v5048 = vpop.f32.mrf.mxu0
        %v5049 = vadd.f32 %v4824, %v5048
        %v5050 = vpop.f32.mrf.mxu0
        %5051 = vmatprep.mubr.f32.mxu0 0.0
        %5052 = vmatmul.mubr.f32.gmra.mxu0 %v4500
        %v5053 = vpop.f32.mrf.mxu0
        %v5054 = vadd.f32 %v4829, %v5053
        %v5055 = vpop.f32.mrf.mxu0
        %5056 = vmatprep.mubr.f32.mxu0 0.0
        %5057 = vmatmul.mubr.f32.gmra.mxu0 %v4501
        %v5058 = vpop.f32.mrf.mxu0
        %v5059 = vadd.f32 %v4834, %v5058
        %v5060 = vpop.f32.mrf.mxu0
        %5061 = vmatprep.mubr.f32.mxu0 0.0
        %5062 = vmatmul.mubr.f32.gmra.mxu0 %v4502
        %v5063 = vpop.f32.mrf.mxu0
        %v5064 = vadd.f32 %v4839, %v5063
        %v5065 = vpop.f32.mrf.mxu0
        %5066 = vmatprep.mubr.f32.mxu0 0.0
        %5067 = vmatmul.mubr.f32.gmra.mxu0 %v4503
        %v5068 = vpop.f32.mrf.mxu0
        %v5069 = vadd.f32 %v4844, %v5068
        %v5070 = vpop.f32.mrf.mxu0
        %5071 = vmatprep.mubr.f32.mxu0 0.0
        %5072 = vmatmul.mubr.f32.gmra.mxu0 %v4504
        %v5073 = vpop.f32.mrf.mxu0
        %v5074 = vadd.f32 %v4849, %v5073
        %v5075 = vpop.f32.mrf.mxu0
        %5076 = vmatprep.mubr.f32.mxu0 0.0
        %5077 = vmatmul.mubr.f32.gmra.mxu0 %v4505
        %v5078 = vpop.f32.mrf.mxu0
        %v5079 = vadd.f32 %v4854, %v5078
        %v5080 = vpop.f32.mrf.mxu0
        %5081 = vmatprep.mubr.f32.mxu0 0.0
        %5082 = vmatmul.mubr.f32.gmra.mxu0 %v4506
        %v5083 = vpop.f32.mrf.mxu0
        %v5084 = vadd.f32 %v4859, %v5083
        %v5085 = vpop.f32.mrf.mxu0
        %5086 = vmatprep.mubr.f32.mxu0 0.0
        %5087 = vmatmul.mubr.f32.gmra.mxu0 %v4507
        %v5088 = vpop.f32.mrf.mxu0
        %v5089 = vadd.f32 %v4864, %v5088
        %v5090 = vpop.f32.mrf.mxu0
        %5091 = vmatprep.mubr.f32.mxu0 0.0
        %5092 = vmatmul.mubr.f32.gmra.mxu0 %v4508
        %v5093 = vpop.f32.mrf.mxu0
        %v5094 = vadd.f32 %v4869, %v5093
        %v5095 = vpop.f32.mrf.mxu0
        %5096 = vmatprep.mubr.f32.mxu0 0.0
        %5097 = vmatmul.mubr.f32.gmra.mxu0 %v4509
        %v5098 = vpop.f32.mrf.mxu0
        %v5099 = vadd.f32 %v4874, %v5098
        %v5100 = vpop.f32.mrf.mxu0
        %5101 = vmatprep.mubr.f32.mxu0 0.0
        %5102 = vmatmul.mubr.f32.gmra.mxu0 %v4510
        %v5103 = vpop.f32.mrf.mxu0
        %v5104 = vadd.f32 %v4879, %v5103
        %v5105 = vpop.f32.mrf.mxu0
        %5106 = vmatprep.mubr.f32.mxu0 0.0
        %5107 = vmatmul.mubr.f32.gmra.mxu0 %v4511
        %v5108 = vpop.f32.mrf.mxu0
        %v5109 = vadd.f32 %v4884, %v5108
        %v5110 = vpop.f32.mrf.mxu0
        %5111 = vmatprep.mubr.f32.mxu0 0.0
        %5112 = vmatmul.mubr.f32.gmra.mxu0 %v4512
        %v5113 = vpop.f32.mrf.mxu0
        %v5114 = vadd.f32 %v4889, %v5113
        %v5115 = vpop.f32.mrf.mxu0
        %5116 = vmatprep.mubr.f32.mxu0 0.0
        %5117 = vmatmul.mubr.f32.gmra.mxu0 %v4513
        %v5118 = vpop.f32.mrf.mxu0
        %v5119 = vadd.f32 %v4894, %v5118
        %v5120 = vpop.f32.mrf.mxu0
        %5121 = vdwg.mxu0
        %s5122 = scalar_lea.vmem %s5, 4
        %v5123 = vld [vmem:[%s5122] sm:$0x1]
        %v5125 = vlaneseq
        %v5126 = vshrl.u32 %v5125, 7
        %v5127 = vsub.s32 0, %v5126
        %v5128 = vrot.slane %v5123, %v5127
        %v5130 = vadd.f32 %v4964, %v5128
        %v5131 = vadd.f32 %v4969, %v5128
        %v5132 = vadd.f32 %v4974, %v5128
        %v5133 = vadd.f32 %v4979, %v5128
        %v5134 = vadd.f32 %v4984, %v5128
        %v5135 = vadd.f32 %v4989, %v5128
        %v5136 = vadd.f32 %v4994, %v5128
        %v5137 = vadd.f32 %v4999, %v5128
        %v5138 = vadd.f32 %v5004, %v5128
        %v5139 = vadd.f32 %v5009, %v5128
        %v5140 = vadd.f32 %v5014, %v5128
        %v5141 = vadd.f32 %v5019, %v5128
        %v5142 = vadd.f32 %v5024, %v5128
        %v5143 = vadd.f32 %v5029, %v5128
        %v5144 = vadd.f32 %v5034, %v5128
        %v5145 = vadd.f32 %v5039, %v5128
        %v5146 = vadd.f32 %v5044, %v5128
        %v5147 = vadd.f32 %v5049, %v5128
        %v5148 = vadd.f32 %v5054, %v5128
        %v5149 = vadd.f32 %v5059, %v5128
        %v5150 = vadd.f32 %v5064, %v5128
        %v5151 = vadd.f32 %v5069, %v5128
        %v5152 = vadd.f32 %v5074, %v5128
        %v5153 = vadd.f32 %v5079, %v5128
        %v5154 = vadd.f32 %v5084, %v5128
        %v5155 = vadd.f32 %v5089, %v5128
        %v5156 = vadd.f32 %v5094, %v5128
        %v5157 = vadd.f32 %v5099, %v5128
        %v5158 = vadd.f32 %v5104, %v5128
        %v5159 = vadd.f32 %v5109, %v5128
        %v5160 = vadd.f32 %v5114, %v5128
        %v5161 = vadd.f32 %v5119, %v5128
        %v5162 = vmax.f32 %v5130, 0.0
        %v5163 = vmax.f32 %v5131, 0.0
        %v5164 = vmax.f32 %v5132, 0.0
        %v5165 = vmax.f32 %v5133, 0.0
        %v5166 = vmax.f32 %v5134, 0.0
        %v5167 = vmax.f32 %v5135, 0.0
        %v5168 = vmax.f32 %v5136, 0.0
        %v5169 = vmax.f32 %v5137, 0.0
        %v5170 = vmax.f32 %v5138, 0.0
        %v5171 = vmax.f32 %v5139, 0.0
        %v5172 = vmax.f32 %v5140, 0.0
        %v5173 = vmax.f32 %v5141, 0.0
        %v5174 = vmax.f32 %v5142, 0.0
        %v5175 = vmax.f32 %v5143, 0.0
        %v5176 = vmax.f32 %v5144, 0.0
        %v5177 = vmax.f32 %v5145, 0.0
        %v5178 = vmax.f32 %v5146, 0.0
        %v5179 = vmax.f32 %v5147, 0.0
        %v5180 = vmax.f32 %v5148, 0.0
        %v5181 = vmax.f32 %v5149, 0.0
        %v5182 = vmax.f32 %v5150, 0.0
        %v5183 = vmax.f32 %v5151, 0.0
        %v5184 = vmax.f32 %v5152, 0.0
        %v5185 = vmax.f32 %v5153, 0.0
        %v5186 = vmax.f32 %v5154, 0.0
        %v5187 = vmax.f32 %v5155, 0.0
        %v5188 = vmax.f32 %v5156, 0.0
        %v5189 = vmax.f32 %v5157, 0.0
        %v5190 = vmax.f32 %v5158, 0.0
        %v5191 = vmax.f32 %v5159, 0.0
        %v5192 = vmax.f32 %v5160, 0.0
        %v5193 = vmax.f32 %v5161, 0.0
        %s5194 = scalar_lea.vmem [#allocation8], 512
        %v5195 = vld [vmem:[%s5194] sm:$0xff]
        %v5196 = vld [vmem:[%s5194 + $0x8] sm:$0xff]
        %v5197 = vld [vmem:[%s5194 + $0x10] sm:$0xff]
        %v5198 = vld [vmem:[%s5194 + $0x18] sm:$0xff]
        %v5199 = vld [vmem:[%s5194 + $0x20] sm:$0xff]
        %v5200 = vld [vmem:[%s5194 + $0x28] sm:$0xff]
        %v5201 = vld [vmem:[%s5194 + $0x30] sm:$0xff]
        %v5202 = vld [vmem:[%s5194 + $0x38] sm:$0xff]
        %v5203 = vld [vmem:[%s5194 + $0x40] sm:$0xff]
        %v5204 = vld [vmem:[%s5194 + $0x48] sm:$0xff]
        %v5205 = vld [vmem:[%s5194 + $0x50] sm:$0xff]
        %v5206 = vld [vmem:[%s5194 + $0x58] sm:$0xff]
        %v5207 = vld [vmem:[%s5194 + $0x60] sm:$0xff]
        %v5208 = vld [vmem:[%s5194 + $0x68] sm:$0xff]
        %v5209 = vld [vmem:[%s5194 + $0x70] sm:$0xff]
        %v5210 = vld [vmem:[%s5194 + $0x78] sm:$0xff]
        %s5211 = scalar_lea.vmem %s6, 4
        %v5212 = vld [vmem:[%s5211] sm:$0x1]
        %v5214 = vlaneseq
        %v5215 = vshrl.u32 %v5214, 7
        %v5216 = vsub.s32 0, %v5215
        %v5217 = vrot.slane %v5212, %v5216
        %5219 = vmatprep.subr.mxu0 0.0
        %5220 = vmatpush1.msra.mxu0 %v5210
        %5221 = vmatprep.subr.mxu0 0.0
        %5222 = vmatpush1.msra.mxu0 %v5209
        %5223 = vmatprep.subr.mxu0 0.0
        %5224 = vmatpush1.msra.mxu0 %v5208
        %5225 = vmatprep.subr.mxu0 0.0
        %5226 = vmatpush1.msra.mxu0 %v5207
        %5227 = vmatprep.subr.mxu0 0.0
        %5228 = vmatpush1.msra.mxu0 %v5206
        %5229 = vmatprep.subr.mxu0 0.0
        %5230 = vmatpush1.msra.mxu0 %v5205
        %5231 = vmatprep.subr.mxu0 0.0
        %5232 = vmatpush1.msra.mxu0 %v5204
        %5233 = vmatprep.subr.mxu0 0.0
        %5234 = vmatpush1.msra.mxu0 %v5203
        %5235 = vmatprep.subr.mxu0 0.0
        %5236 = vmatpush1.msra.mxu0 %v5202
        %5237 = vmatprep.subr.mxu0 0.0
        %5238 = vmatpush1.msra.mxu0 %v5201
        %5239 = vmatprep.subr.mxu0 0.0
        %5240 = vmatpush1.msra.mxu0 %v5200
        %5241 = vmatprep.subr.mxu0 0.0
        %5242 = vmatpush1.msra.mxu0 %v5199
        %5243 = vmatprep.subr.mxu0 0.0
        %5244 = vmatpush1.msra.mxu0 %v5198
        %5245 = vmatprep.subr.mxu0 0.0
        %5246 = vmatpush1.msra.mxu0 %v5197
        %5247 = vmatprep.subr.mxu0 0.0
        %5248 = vmatpush1.msra.mxu0 %v5196
        %5249 = vmatprep.subr.mxu0 0.0
        %5250 = vmatpush1.msra.mxu0 %v5195
        %5251 = vmatprep.subr.mxu0 0.0
        %5252 = vmatpush2.msra.mxu0 0.0
        %5253 = vmatprep.subr.mxu0 0.0
        %5254 = vmatpush2.msra.mxu0 0.0
        %5255 = vmatprep.subr.mxu0 0.0
        %5256 = vmatpush2.msra.mxu0 0.0
        %5257 = vmatprep.subr.mxu0 0.0
        %5258 = vmatpush2.msra.mxu0 0.0
        %5259 = vmatprep.subr.mxu0 0.0
        %5260 = vmatpush2.msra.mxu0 0.0
        %5261 = vmatprep.subr.mxu0 0.0
        %5262 = vmatpush2.msra.mxu0 0.0
        %5263 = vmatprep.subr.mxu0 0.0
        %5264 = vmatpush2.msra.mxu0 0.0
        %5265 = vmatprep.subr.mxu0 0.0
        %5266 = vmatpush2.msra.mxu0 0.0
        %5267 = vmatprep.subr.mxu0 0.0
        %5268 = vmatpush2.msra.mxu0 0.0
        %5269 = vmatprep.subr.mxu0 0.0
        %5270 = vmatpush2.msra.mxu0 0.0
        %5271 = vmatprep.subr.mxu0 0.0
        %5272 = vmatpush2.msra.mxu0 0.0
        %5273 = vmatprep.subr.mxu0 0.0
        %5274 = vmatpush2.msra.mxu0 0.0
        %5275 = vmatprep.subr.mxu0 0.0
        %5276 = vmatpush2.msra.mxu0 0.0
        %5277 = vmatprep.subr.mxu0 0.0
        %5278 = vmatpush2.msra.mxu0 0.0
        %5279 = vmatprep.subr.mxu0 0.0
        %5280 = vmatpush2.msra.mxu0 0.0
        %5281 = vmatprep.subr.mxu0 0.0
        %5282 = vmatpush2.msra.mxu0 0.0
        %5283 = vmatprep.mubr.f32.mxu0 0.0
        %5284 = vmatmul.mubr.f32.gmra.mxu0 %v5162
        %v5285 = vpop.f32.mrf.mxu0
        %v5286 = vadd.f32 %v5217, %v5285
        %v5287 = vpop.f32.mrf.mxu0
        %5288 = vmatprep.mubr.f32.mxu0 0.0
        %5289 = vmatmul.mubr.f32.gmra.mxu0 %v5163
        %v5290 = vpop.f32.mrf.mxu0
        %v5291 = vadd.f32 %v5217, %v5290
        %v5292 = vpop.f32.mrf.mxu0
        %5293 = vmatprep.mubr.f32.mxu0 0.0
        %5294 = vmatmul.mubr.f32.gmra.mxu0 %v5164
        %v5295 = vpop.f32.mrf.mxu0
        %v5296 = vadd.f32 %v5217, %v5295
        %v5297 = vpop.f32.mrf.mxu0
        %5298 = vmatprep.mubr.f32.mxu0 0.0
        %5299 = vmatmul.mubr.f32.gmra.mxu0 %v5165
        %v5300 = vpop.f32.mrf.mxu0
        %v5301 = vadd.f32 %v5217, %v5300
        %v5302 = vpop.f32.mrf.mxu0
        %5303 = vmatprep.mubr.f32.mxu0 0.0
        %5304 = vmatmul.mubr.f32.gmra.mxu0 %v5166
        %v5305 = vpop.f32.mrf.mxu0
        %v5306 = vadd.f32 %v5217, %v5305
        %v5307 = vpop.f32.mrf.mxu0
        %5308 = vmatprep.mubr.f32.mxu0 0.0
        %5309 = vmatmul.mubr.f32.gmra.mxu0 %v5167
        %v5310 = vpop.f32.mrf.mxu0
        %v5311 = vadd.f32 %v5217, %v5310
        %v5312 = vpop.f32.mrf.mxu0
        %5313 = vmatprep.mubr.f32.mxu0 0.0
        %5314 = vmatmul.mubr.f32.gmra.mxu0 %v5168
        %v5315 = vpop.f32.mrf.mxu0
        %v5316 = vadd.f32 %v5217, %v5315
        %v5317 = vpop.f32.mrf.mxu0
        %5318 = vmatprep.mubr.f32.mxu0 0.0
        %5319 = vmatmul.mubr.f32.gmra.mxu0 %v5169
        %v5320 = vpop.f32.mrf.mxu0
        %v5321 = vadd.f32 %v5217, %v5320
        %v5322 = vpop.f32.mrf.mxu0
        %5323 = vmatprep.mubr.f32.mxu0 0.0
        %5324 = vmatmul.mubr.f32.gmra.mxu0 %v5170
        %v5325 = vpop.f32.mrf.mxu0
        %v5326 = vadd.f32 %v5217, %v5325
        %v5327 = vpop.f32.mrf.mxu0
        %5328 = vmatprep.mubr.f32.mxu0 0.0
        %5329 = vmatmul.mubr.f32.gmra.mxu0 %v5171
        %v5330 = vpop.f32.mrf.mxu0
        %v5331 = vadd.f32 %v5217, %v5330
        %v5332 = vpop.f32.mrf.mxu0
        %5333 = vmatprep.mubr.f32.mxu0 0.0
        %5334 = vmatmul.mubr.f32.gmra.mxu0 %v5172
        %v5335 = vpop.f32.mrf.mxu0
        %v5336 = vadd.f32 %v5217, %v5335
        %v5337 = vpop.f32.mrf.mxu0
        %5338 = vmatprep.mubr.f32.mxu0 0.0
        %5339 = vmatmul.mubr.f32.gmra.mxu0 %v5173
        %v5340 = vpop.f32.mrf.mxu0
        %v5341 = vadd.f32 %v5217, %v5340
        %v5342 = vpop.f32.mrf.mxu0
        %5343 = vmatprep.mubr.f32.mxu0 0.0
        %5344 = vmatmul.mubr.f32.gmra.mxu0 %v5174
        %v5345 = vpop.f32.mrf.mxu0
        %v5346 = vadd.f32 %v5217, %v5345
        %v5347 = vpop.f32.mrf.mxu0
        %5348 = vmatprep.mubr.f32.mxu0 0.0
        %5349 = vmatmul.mubr.f32.gmra.mxu0 %v5175
        %v5350 = vpop.f32.mrf.mxu0
        %v5351 = vadd.f32 %v5217, %v5350
        %v5352 = vpop.f32.mrf.mxu0
        %5353 = vmatprep.mubr.f32.mxu0 0.0
        %5354 = vmatmul.mubr.f32.gmra.mxu0 %v5176
        %v5355 = vpop.f32.mrf.mxu0
        %v5356 = vadd.f32 %v5217, %v5355
        %v5357 = vpop.f32.mrf.mxu0
        %5358 = vmatprep.mubr.f32.mxu0 0.0
        %5359 = vmatmul.mubr.f32.gmra.mxu0 %v5177
        %v5360 = vpop.f32.mrf.mxu0
        %v5361 = vadd.f32 %v5217, %v5360
        %v5362 = vpop.f32.mrf.mxu0
        %5363 = vmatprep.mubr.f32.mxu0 0.0
        %5364 = vmatmul.mubr.f32.gmra.mxu0 %v5178
        %v5365 = vpop.f32.mrf.mxu0
        %v5366 = vadd.f32 %v5217, %v5365
        %v5367 = vpop.f32.mrf.mxu0
        %5368 = vmatprep.mubr.f32.mxu0 0.0
        %5369 = vmatmul.mubr.f32.gmra.mxu0 %v5179
        %v5370 = vpop.f32.mrf.mxu0
        %v5371 = vadd.f32 %v5217, %v5370
        %v5372 = vpop.f32.mrf.mxu0
        %5373 = vmatprep.mubr.f32.mxu0 0.0
        %5374 = vmatmul.mubr.f32.gmra.mxu0 %v5180
        %v5375 = vpop.f32.mrf.mxu0
        %v5376 = vadd.f32 %v5217, %v5375
        %v5377 = vpop.f32.mrf.mxu0
        %5378 = vmatprep.mubr.f32.mxu0 0.0
        %5379 = vmatmul.mubr.f32.gmra.mxu0 %v5181
        %v5380 = vpop.f32.mrf.mxu0
        %v5381 = vadd.f32 %v5217, %v5380
        %v5382 = vpop.f32.mrf.mxu0
        %5383 = vmatprep.mubr.f32.mxu0 0.0
        %5384 = vmatmul.mubr.f32.gmra.mxu0 %v5182
        %v5385 = vpop.f32.mrf.mxu0
        %v5386 = vadd.f32 %v5217, %v5385
        %v5387 = vpop.f32.mrf.mxu0
        %5388 = vmatprep.mubr.f32.mxu0 0.0
        %5389 = vmatmul.mubr.f32.gmra.mxu0 %v5183
        %v5390 = vpop.f32.mrf.mxu0
        %v5391 = vadd.f32 %v5217, %v5390
        %v5392 = vpop.f32.mrf.mxu0
        %5393 = vmatprep.mubr.f32.mxu0 0.0
        %5394 = vmatmul.mubr.f32.gmra.mxu0 %v5184
        %v5395 = vpop.f32.mrf.mxu0
        %v5396 = vadd.f32 %v5217, %v5395
        %v5397 = vpop.f32.mrf.mxu0
        %5398 = vmatprep.mubr.f32.mxu0 0.0
        %5399 = vmatmul.mubr.f32.gmra.mxu0 %v5185
        %v5400 = vpop.f32.mrf.mxu0
        %v5401 = vadd.f32 %v5217, %v5400
        %v5402 = vpop.f32.mrf.mxu0
        %5403 = vmatprep.mubr.f32.mxu0 0.0
        %5404 = vmatmul.mubr.f32.gmra.mxu0 %v5186
        %v5405 = vpop.f32.mrf.mxu0
        %v5406 = vadd.f32 %v5217, %v5405
        %v5407 = vpop.f32.mrf.mxu0
        %5408 = vmatprep.mubr.f32.mxu0 0.0
        %5409 = vmatmul.mubr.f32.gmra.mxu0 %v5187
        %v5410 = vpop.f32.mrf.mxu0
        %v5411 = vadd.f32 %v5217, %v5410
        %v5412 = vpop.f32.mrf.mxu0
        %5413 = vmatprep.mubr.f32.mxu0 0.0
        %5414 = vmatmul.mubr.f32.gmra.mxu0 %v5188
        %v5415 = vpop.f32.mrf.mxu0
        %v5416 = vadd.f32 %v5217, %v5415
        %v5417 = vpop.f32.mrf.mxu0
        %5418 = vmatprep.mubr.f32.mxu0 0.0
        %5419 = vmatmul.mubr.f32.gmra.mxu0 %v5189
        %v5420 = vpop.f32.mrf.mxu0
        %v5421 = vadd.f32 %v5217, %v5420
        %v5422 = vpop.f32.mrf.mxu0
        %5423 = vmatprep.mubr.f32.mxu0 0.0
        %5424 = vmatmul.mubr.f32.gmra.mxu0 %v5190
        %v5425 = vpop.f32.mrf.mxu0
        %v5426 = vadd.f32 %v5217, %v5425
        %v5427 = vpop.f32.mrf.mxu0
        %5428 = vmatprep.mubr.f32.mxu0 0.0
        %5429 = vmatmul.mubr.f32.gmra.mxu0 %v5191
        %v5430 = vpop.f32.mrf.mxu0
        %v5431 = vadd.f32 %v5217, %v5430
        %v5432 = vpop.f32.mrf.mxu0
        %5433 = vmatprep.mubr.f32.mxu0 0.0
        %5434 = vmatmul.mubr.f32.gmra.mxu0 %v5192
        %v5435 = vpop.f32.mrf.mxu0
        %v5436 = vadd.f32 %v5217, %v5435
        %v5437 = vpop.f32.mrf.mxu0
        %5438 = vmatprep.mubr.f32.mxu0 0.0
        %5439 = vmatmul.mubr.f32.gmra.mxu0 %v5193
        %v5440 = vpop.f32.mrf.mxu0
        %v5441 = vadd.f32 %v5217, %v5440
        %v5442 = vpop.f32.mrf.mxu0
        %5443 = vdwg.mxu0
        %v5444 = vadd.f32 %v5286, %v4482
        %v5445 = vadd.f32 %v5291, %v4483
        %v5446 = vadd.f32 %v5296, %v4484
        %v5447 = vadd.f32 %v5301, %v4485
        %v5448 = vadd.f32 %v5306, %v4486
        %v5449 = vadd.f32 %v5311, %v4487
        %v5450 = vadd.f32 %v5316, %v4488
        %v5451 = vadd.f32 %v5321, %v4489
        %v5452 = vadd.f32 %v5326, %v4490
        %v5453 = vadd.f32 %v5331, %v4491
        %v5454 = vadd.f32 %v5336, %v4492
        %v5455 = vadd.f32 %v5341, %v4493
        %v5456 = vadd.f32 %v5346, %v4494
        %v5457 = vadd.f32 %v5351, %v4495
        %v5458 = vadd.f32 %v5356, %v4496
        %v5459 = vadd.f32 %v5361, %v4497
        %v5460 = vadd.f32 %v5366, %v4498
        %v5461 = vadd.f32 %v5371, %v4499
        %v5462 = vadd.f32 %v5376, %v4500
        %v5463 = vadd.f32 %v5381, %v4501
        %v5464 = vadd.f32 %v5386, %v4502
        %v5465 = vadd.f32 %v5391, %v4503
        %v5466 = vadd.f32 %v5396, %v4504
        %v5467 = vadd.f32 %v5401, %v4505
        %v5468 = vadd.f32 %v5406, %v4506
        %v5469 = vadd.f32 %v5411, %v4507
        %v5470 = vadd.f32 %v5416, %v4508
        %v5471 = vadd.f32 %v5421, %v4509
        %v5472 = vadd.f32 %v5426, %v4510
        %v5473 = vadd.f32 %v5431, %v4511
        %v5474 = vadd.f32 %v5436, %v4512
        %v5475 = vadd.f32 %v5441, %v4513
        %5476 = vst [vmem:[#allocation2] sm:$0xff] %v5444
        %5477 = vst [vmem:[#allocation2 + $0x8] sm:$0xff] %v5445
        %5478 = vst [vmem:[#allocation2 + $0x10] sm:$0xff] %v5446
        %5479 = vst [vmem:[#allocation2 + $0x18] sm:$0xff] %v5447
        %5480 = vst [vmem:[#allocation2 + $0x20] sm:$0xff] %v5448
        %5481 = vst [vmem:[#allocation2 + $0x28] sm:$0xff] %v5449
        %5482 = vst [vmem:[#allocation2 + $0x30] sm:$0xff] %v5450
        %5483 = vst [vmem:[#allocation2 + $0x38] sm:$0xff] %v5451
        %5484 = vst [vmem:[#allocation2 + $0x40] sm:$0xff] %v5452
        %5485 = vst [vmem:[#allocation2 + $0x48] sm:$0xff] %v5453
        %5486 = vst [vmem:[#allocation2 + $0x50] sm:$0xff] %v5454
        %5487 = vst [vmem:[#allocation2 + $0x58] sm:$0xff] %v5455
        %5488 = vst [vmem:[#allocation2 + $0x60] sm:$0xff] %v5456
        %5489 = vst [vmem:[#allocation2 + $0x68] sm:$0xff] %v5457
        %5490 = vst [vmem:[#allocation2 + $0x70] sm:$0xff] %v5458
        %5491 = vst [vmem:[#allocation2 + $0x78] sm:$0xff] %v5459
        %5492 = vst [vmem:[#allocation2 + $0x80] sm:$0xff] %v5460
        %5493 = vst [vmem:[#allocation2 + $0x88] sm:$0xff] %v5461
        %5494 = vst [vmem:[#allocation2 + $0x90] sm:$0xff] %v5462
        %5495 = vst [vmem:[#allocation2 + $0x98] sm:$0xff] %v5463
        %5496 = vst [vmem:[#allocation2 + $0xa0] sm:$0xff] %v5464
        %5497 = vst [vmem:[#allocation2 + $0xa8] sm:$0xff] %v5465
        %5498 = vst [vmem:[#allocation2 + $0xb0] sm:$0xff] %v5466
        %5499 = vst [vmem:[#allocation2 + $0xb8] sm:$0xff] %v5467
        %5500 = vst [vmem:[#allocation2 + $0xc0] sm:$0xff] %v5468
        %5501 = vst [vmem:[#allocation2 + $0xc8] sm:$0xff] %v5469
        %5502 = vst [vmem:[#allocation2 + $0xd0] sm:$0xff] %v5470
        %5503 = vst [vmem:[#allocation2 + $0xd8] sm:$0xff] %v5471
        %5504 = vst [vmem:[#allocation2 + $0xe0] sm:$0xff] %v5472
        %5505 = vst [vmem:[#allocation2 + $0xe8] sm:$0xff] %v5473
        %5506 = vst [vmem:[#allocation2 + $0xf0] sm:$0xff] %v5474
        %5507 = vst [vmem:[#allocation2 + $0xf8] sm:$0xff] %v5475
        %v5508 = vld [vmem:[#allocation2] sm:$0xff]
        %v5509 = vld [vmem:[#allocation2 + $0x8] sm:$0xff]
        %v5510 = vld [vmem:[#allocation2 + $0x10] sm:$0xff]
        %v5511 = vld [vmem:[#allocation2 + $0x18] sm:$0xff]
        %v5512 = vld [vmem:[#allocation2 + $0x20] sm:$0xff]
        %v5513 = vld [vmem:[#allocation2 + $0x28] sm:$0xff]
        %v5514 = vld [vmem:[#allocation2 + $0x30] sm:$0xff]
        %v5515 = vld [vmem:[#allocation2 + $0x38] sm:$0xff]
        %v5516 = vld [vmem:[#allocation2 + $0x40] sm:$0xff]
        %v5517 = vld [vmem:[#allocation2 + $0x48] sm:$0xff]
        %v5518 = vld [vmem:[#allocation2 + $0x50] sm:$0xff]
        %v5519 = vld [vmem:[#allocation2 + $0x58] sm:$0xff]
        %v5520 = vld [vmem:[#allocation2 + $0x60] sm:$0xff]
        %v5521 = vld [vmem:[#allocation2 + $0x68] sm:$0xff]
        %v5522 = vld [vmem:[#allocation2 + $0x70] sm:$0xff]
        %v5523 = vld [vmem:[#allocation2 + $0x78] sm:$0xff]
        %v5524 = vld [vmem:[#allocation2 + $0x80] sm:$0xff]
        %v5525 = vld [vmem:[#allocation2 + $0x88] sm:$0xff]
        %v5526 = vld [vmem:[#allocation2 + $0x90] sm:$0xff]
        %v5527 = vld [vmem:[#allocation2 + $0x98] sm:$0xff]
        %v5528 = vld [vmem:[#allocation2 + $0xa0] sm:$0xff]
        %v5529 = vld [vmem:[#allocation2 + $0xa8] sm:$0xff]
        %v5530 = vld [vmem:[#allocation2 + $0xb0] sm:$0xff]
        %v5531 = vld [vmem:[#allocation2 + $0xb8] sm:$0xff]
        %v5532 = vld [vmem:[#allocation2 + $0xc0] sm:$0xff]
        %v5533 = vld [vmem:[#allocation2 + $0xc8] sm:$0xff]
        %v5534 = vld [vmem:[#allocation2 + $0xd0] sm:$0xff]
        %v5535 = vld [vmem:[#allocation2 + $0xd8] sm:$0xff]
        %v5536 = vld [vmem:[#allocation2 + $0xe0] sm:$0xff]
        %v5537 = vld [vmem:[#allocation2 + $0xe8] sm:$0xff]
        %v5538 = vld [vmem:[#allocation2 + $0xf0] sm:$0xff]
        %v5539 = vld [vmem:[#allocation2 + $0xf8] sm:$0xff]
        %v5540 = vld [vmem:[%s347] sm:$0xff]
        %v5541 = vld [vmem:[%s347 + $0x8] sm:$0xff]
        %v5542 = vld [vmem:[%s347 + $0x10] sm:$0xff]
        %v5543 = vld [vmem:[%s347 + $0x18] sm:$0xff]
        %v5544 = vld [vmem:[%s347 + $0x20] sm:$0xff]
        %v5545 = vld [vmem:[%s347 + $0x28] sm:$0xff]
        %v5546 = vld [vmem:[%s347 + $0x30] sm:$0xff]
        %v5547 = vld [vmem:[%s347 + $0x38] sm:$0xff]
        %v5548 = vld [vmem:[%s347 + $0x40] sm:$0xff]
        %v5549 = vld [vmem:[%s347 + $0x48] sm:$0xff]
        %v5550 = vld [vmem:[%s347 + $0x50] sm:$0xff]
        %v5551 = vld [vmem:[%s347 + $0x58] sm:$0xff]
        %v5552 = vld [vmem:[%s347 + $0x60] sm:$0xff]
        %v5553 = vld [vmem:[%s347 + $0x68] sm:$0xff]
        %v5554 = vld [vmem:[%s347 + $0x70] sm:$0xff]
        %v5555 = vld [vmem:[%s347 + $0x78] sm:$0xff]
        %v5556 = vld [vmem:[%s347 + $0x80] sm:$0xff]
        %v5557 = vld [vmem:[%s347 + $0x88] sm:$0xff]
        %v5558 = vld [vmem:[%s347 + $0x90] sm:$0xff]
        %v5559 = vld [vmem:[%s347 + $0x98] sm:$0xff]
        %v5560 = vld [vmem:[%s347 + $0xa0] sm:$0xff]
        %v5561 = vld [vmem:[%s347 + $0xa8] sm:$0xff]
        %v5562 = vld [vmem:[%s347 + $0xb0] sm:$0xff]
        %v5563 = vld [vmem:[%s347 + $0xb8] sm:$0xff]
        %v5564 = vld [vmem:[%s347 + $0xc0] sm:$0xff]
        %v5565 = vld [vmem:[%s347 + $0xc8] sm:$0xff]
        %v5566 = vld [vmem:[%s347 + $0xd0] sm:$0xff]
        %v5567 = vld [vmem:[%s347 + $0xd8] sm:$0xff]
        %v5568 = vld [vmem:[%s347 + $0xe0] sm:$0xff]
        %v5569 = vld [vmem:[%s347 + $0xe8] sm:$0xff]
        %v5570 = vld [vmem:[%s347 + $0xf0] sm:$0xff]
        %v5571 = vld [vmem:[%s347 + $0xf8] sm:$0xff]
        %s5572 = scalar_lea.vmem %s2, 640
        %v5573 = vld [vmem:[%s5572] sm:$0xff]
        %v5574 = vld [vmem:[%s5572 + $0x8] sm:$0xff]
        %v5575 = vld [vmem:[%s5572 + $0x10] sm:$0xff]
        %v5576 = vld [vmem:[%s5572 + $0x18] sm:$0xff]
        %v5577 = vld [vmem:[%s5572 + $0x20] sm:$0xff]
        %v5578 = vld [vmem:[%s5572 + $0x28] sm:$0xff]
        %v5579 = vld [vmem:[%s5572 + $0x30] sm:$0xff]
        %v5580 = vld [vmem:[%s5572 + $0x38] sm:$0xff]
        %v5581 = vld [vmem:[%s5572 + $0x40] sm:$0xff]
        %v5582 = vld [vmem:[%s5572 + $0x48] sm:$0xff]
        %v5583 = vld [vmem:[%s5572 + $0x50] sm:$0xff]
        %v5584 = vld [vmem:[%s5572 + $0x58] sm:$0xff]
        %v5585 = vld [vmem:[%s5572 + $0x60] sm:$0xff]
        %v5586 = vld [vmem:[%s5572 + $0x68] sm:$0xff]
        %v5587 = vld [vmem:[%s5572 + $0x70] sm:$0xff]
        %v5588 = vld [vmem:[%s5572 + $0x78] sm:$0xff]
        %s5589 = scalar_lea.vmem [#allocation6], 480
        %v5590 = vld [vmem:[%s5589] sm:$0xff]
        %v5591 = vld [vmem:[%s5589 + $0x8] sm:$0xff]
        %v5592 = vld [vmem:[%s5589 + $0x10] sm:$0xff]
        %v5593 = vld [vmem:[%s5589 + $0x18] sm:$0xff]
        %v5594 = vld [vmem:[%s5589 + $0x20] sm:$0xff]
        %v5595 = vld [vmem:[%s5589 + $0x28] sm:$0xff]
        %v5596 = vld [vmem:[%s5589 + $0x30] sm:$0xff]
        %v5597 = vld [vmem:[%s5589 + $0x38] sm:$0xff]
        %v5598 = vld [vmem:[%s5589 + $0x40] sm:$0xff]
        %v5599 = vld [vmem:[%s5589 + $0x48] sm:$0xff]
        %v5600 = vld [vmem:[%s5589 + $0x50] sm:$0xff]
        %v5601 = vld [vmem:[%s5589 + $0x58] sm:$0xff]
        %v5603 = vsel %vm506, %v5540, 0
        %v5606 = vsel %vm506, %v5541, 0
        %v5609 = vsel %vm506, %v5542, 0
        %v5612 = vsel %vm506, %v5543, 0
        %v5615 = vsel %vm506, %v5544, 0
        %v5618 = vsel %vm506, %v5545, 0
        %v5621 = vsel %vm506, %v5546, 0
        %v5624 = vsel %vm506, %v5547, 0
        %v5627 = vsel %vm506, %v5548, 0
        %v5630 = vsel %vm506, %v5549, 0
        %v5633 = vsel %vm506, %v5550, 0
        %v5636 = vsel %vm506, %v5551, 0
        %v5639 = vsel %vm506, %v5552, 0
        %v5642 = vsel %vm506, %v5553, 0
        %v5645 = vsel %vm506, %v5554, 0
        %v5648 = vsel %vm506, %v5555, 0
        %v5651 = vsel %vm506, %v5556, 0
        %v5654 = vsel %vm506, %v5557, 0
        %v5657 = vsel %vm506, %v5558, 0
        %v5660 = vsel %vm506, %v5559, 0
        %v5663 = vsel %vm506, %v5560, 0
        %v5666 = vsel %vm506, %v5561, 0
        %v5669 = vsel %vm506, %v5562, 0
        %v5672 = vsel %vm506, %v5563, 0
        %v5675 = vsel %vm506, %v5564, 0
        %v5678 = vsel %vm506, %v5565, 0
        %v5681 = vsel %vm506, %v5566, 0
        %v5684 = vsel %vm506, %v5567, 0
        %v5687 = vsel %vm506, %v5568, 0
        %v5690 = vsel %vm506, %v5569, 0
        %v5693 = vsel %vm506, %v5570, 0
        %v5696 = vsel %vm506, %v5571, 0
        %5698 = vmatprep.subr.mxu0 0.0
        %5699 = vmatpush1.msra.mxu0 0.0
        %5700 = vmatprep.subr.mxu0 0.0
        %5701 = vmatpush1.msra.mxu0 0.0
        %5702 = vmatprep.subr.mxu0 0.0
        %5703 = vmatpush1.msra.mxu0 0.0
        %5704 = vmatprep.subr.mxu0 0.0
        %5705 = vmatpush1.msra.mxu0 0.0
        %5706 = vmatprep.subr.mxu0 0.0
        %5707 = vmatpush1.msra.mxu0 %v5601
        %5708 = vmatprep.subr.mxu0 0.0
        %5709 = vmatpush1.msra.mxu0 %v5600
        %5710 = vmatprep.subr.mxu0 0.0
        %5711 = vmatpush1.msra.mxu0 %v5599
        %5712 = vmatprep.subr.mxu0 0.0
        %5713 = vmatpush1.msra.mxu0 %v5598
        %5714 = vmatprep.subr.mxu0 0.0
        %5715 = vmatpush1.msra.mxu0 %v5597
        %5716 = vmatprep.subr.mxu0 0.0
        %5717 = vmatpush1.msra.mxu0 %v5596
        %5718 = vmatprep.subr.mxu0 0.0
        %5719 = vmatpush1.msra.mxu0 %v5595
        %5720 = vmatprep.subr.mxu0 0.0
        %5721 = vmatpush1.msra.mxu0 %v5594
        %5722 = vmatprep.subr.mxu0 0.0
        %5723 = vmatpush1.msra.mxu0 %v5593
        %5724 = vmatprep.subr.mxu0 0.0
        %5725 = vmatpush1.msra.mxu0 %v5592
        %5726 = vmatprep.subr.mxu0 0.0
        %5727 = vmatpush1.msra.mxu0 %v5591
        %5728 = vmatprep.subr.mxu0 0.0
        %5729 = vmatpush1.msra.mxu0 %v5590
        %5730 = vmatprep.subr.mxu0 0.0
        %5731 = vmatpush2.msra.mxu0 0.0
        %5732 = vmatprep.subr.mxu0 0.0
        %5733 = vmatpush2.msra.mxu0 0.0
        %5734 = vmatprep.subr.mxu0 0.0
        %5735 = vmatpush2.msra.mxu0 0.0
        %5736 = vmatprep.subr.mxu0 0.0
        %5737 = vmatpush2.msra.mxu0 0.0
        %5738 = vmatprep.subr.mxu0 0.0
        %5739 = vmatpush2.msra.mxu0 0.0
        %5740 = vmatprep.subr.mxu0 0.0
        %5741 = vmatpush2.msra.mxu0 0.0
        %5742 = vmatprep.subr.mxu0 0.0
        %5743 = vmatpush2.msra.mxu0 0.0
        %5744 = vmatprep.subr.mxu0 0.0
        %5745 = vmatpush2.msra.mxu0 0.0
        %5746 = vmatprep.subr.mxu0 0.0
        %5747 = vmatpush2.msra.mxu0 0.0
        %5748 = vmatprep.subr.mxu0 0.0
        %5749 = vmatpush2.msra.mxu0 0.0
        %5750 = vmatprep.subr.mxu0 0.0
        %5751 = vmatpush2.msra.mxu0 0.0
        %5752 = vmatprep.subr.mxu0 0.0
        %5753 = vmatpush2.msra.mxu0 0.0
        %5754 = vmatprep.subr.mxu0 0.0
        %5755 = vmatpush2.msra.mxu0 0.0
        %5756 = vmatprep.subr.mxu0 0.0
        %5757 = vmatpush2.msra.mxu0 0.0
        %5758 = vmatprep.subr.mxu0 0.0
        %5759 = vmatpush2.msra.mxu0 0.0
        %5760 = vmatprep.subr.mxu0 0.0
        %5761 = vmatpush2.msra.mxu0 0.0
        %5762 = vmatprep.mubr.f32.mxu0 0.0
        %5763 = vmatmul.mubr.f32.gmra.mxu0 %v5603
        %v5764 = vpop.f32.mrf.mxu0
        %v5765 = vadd.f32 0.0, %v5764
        %v5766 = vpop.f32.mrf.mxu0
        %5767 = vmatprep.mubr.f32.mxu0 0.0
        %5768 = vmatmul.mubr.f32.gmra.mxu0 %v5606
        %v5769 = vpop.f32.mrf.mxu0
        %v5770 = vadd.f32 0.0, %v5769
        %v5771 = vpop.f32.mrf.mxu0
        %5772 = vmatprep.mubr.f32.mxu0 0.0
        %5773 = vmatmul.mubr.f32.gmra.mxu0 %v5609
        %v5774 = vpop.f32.mrf.mxu0
        %v5775 = vadd.f32 0.0, %v5774
        %v5776 = vpop.f32.mrf.mxu0
        %5777 = vmatprep.mubr.f32.mxu0 0.0
        %5778 = vmatmul.mubr.f32.gmra.mxu0 %v5612
        %v5779 = vpop.f32.mrf.mxu0
        %v5780 = vadd.f32 0.0, %v5779
        %v5781 = vpop.f32.mrf.mxu0
        %5782 = vmatprep.mubr.f32.mxu0 0.0
        %5783 = vmatmul.mubr.f32.gmra.mxu0 %v5615
        %v5784 = vpop.f32.mrf.mxu0
        %v5785 = vadd.f32 0.0, %v5784
        %v5786 = vpop.f32.mrf.mxu0
        %5787 = vmatprep.mubr.f32.mxu0 0.0
        %5788 = vmatmul.mubr.f32.gmra.mxu0 %v5618
        %v5789 = vpop.f32.mrf.mxu0
        %v5790 = vadd.f32 0.0, %v5789
        %v5791 = vpop.f32.mrf.mxu0
        %5792 = vmatprep.mubr.f32.mxu0 0.0
        %5793 = vmatmul.mubr.f32.gmra.mxu0 %v5621
        %v5794 = vpop.f32.mrf.mxu0
        %v5795 = vadd.f32 0.0, %v5794
        %v5796 = vpop.f32.mrf.mxu0
        %5797 = vmatprep.mubr.f32.mxu0 0.0
        %5798 = vmatmul.mubr.f32.gmra.mxu0 %v5624
        %v5799 = vpop.f32.mrf.mxu0
        %v5800 = vadd.f32 0.0, %v5799
        %v5801 = vpop.f32.mrf.mxu0
        %5802 = vmatprep.mubr.f32.mxu0 0.0
        %5803 = vmatmul.mubr.f32.gmra.mxu0 %v5627
        %v5804 = vpop.f32.mrf.mxu0
        %v5805 = vadd.f32 0.0, %v5804
        %v5806 = vpop.f32.mrf.mxu0
        %5807 = vmatprep.mubr.f32.mxu0 0.0
        %5808 = vmatmul.mubr.f32.gmra.mxu0 %v5630
        %v5809 = vpop.f32.mrf.mxu0
        %v5810 = vadd.f32 0.0, %v5809
        %v5811 = vpop.f32.mrf.mxu0
        %5812 = vmatprep.mubr.f32.mxu0 0.0
        %5813 = vmatmul.mubr.f32.gmra.mxu0 %v5633
        %v5814 = vpop.f32.mrf.mxu0
        %v5815 = vadd.f32 0.0, %v5814
        %v5816 = vpop.f32.mrf.mxu0
        %5817 = vmatprep.mubr.f32.mxu0 0.0
        %5818 = vmatmul.mubr.f32.gmra.mxu0 %v5636
        %v5819 = vpop.f32.mrf.mxu0
        %v5820 = vadd.f32 0.0, %v5819
        %v5821 = vpop.f32.mrf.mxu0
        %5822 = vmatprep.mubr.f32.mxu0 0.0
        %5823 = vmatmul.mubr.f32.gmra.mxu0 %v5639
        %v5824 = vpop.f32.mrf.mxu0
        %v5825 = vadd.f32 0.0, %v5824
        %v5826 = vpop.f32.mrf.mxu0
        %5827 = vmatprep.mubr.f32.mxu0 0.0
        %5828 = vmatmul.mubr.f32.gmra.mxu0 %v5642
        %v5829 = vpop.f32.mrf.mxu0
        %v5830 = vadd.f32 0.0, %v5829
        %v5831 = vpop.f32.mrf.mxu0
        %5832 = vmatprep.mubr.f32.mxu0 0.0
        %5833 = vmatmul.mubr.f32.gmra.mxu0 %v5645
        %v5834 = vpop.f32.mrf.mxu0
        %v5835 = vadd.f32 0.0, %v5834
        %v5836 = vpop.f32.mrf.mxu0
        %5837 = vmatprep.mubr.f32.mxu0 0.0
        %5838 = vmatmul.mubr.f32.gmra.mxu0 %v5648
        %v5839 = vpop.f32.mrf.mxu0
        %v5840 = vadd.f32 0.0, %v5839
        %v5841 = vpop.f32.mrf.mxu0
        %5842 = vmatprep.mubr.f32.mxu0 0.0
        %5843 = vmatmul.mubr.f32.gmra.mxu0 %v5651
        %v5844 = vpop.f32.mrf.mxu0
        %v5845 = vadd.f32 0.0, %v5844
        %v5846 = vpop.f32.mrf.mxu0
        %5847 = vmatprep.mubr.f32.mxu0 0.0
        %5848 = vmatmul.mubr.f32.gmra.mxu0 %v5654
        %v5849 = vpop.f32.mrf.mxu0
        %v5850 = vadd.f32 0.0, %v5849
        %v5851 = vpop.f32.mrf.mxu0
        %5852 = vmatprep.mubr.f32.mxu0 0.0
        %5853 = vmatmul.mubr.f32.gmra.mxu0 %v5657
        %v5854 = vpop.f32.mrf.mxu0
        %v5855 = vadd.f32 0.0, %v5854
        %v5856 = vpop.f32.mrf.mxu0
        %5857 = vmatprep.mubr.f32.mxu0 0.0
        %5858 = vmatmul.mubr.f32.gmra.mxu0 %v5660
        %v5859 = vpop.f32.mrf.mxu0
        %v5860 = vadd.f32 0.0, %v5859
        %v5861 = vpop.f32.mrf.mxu0
        %5862 = vmatprep.mubr.f32.mxu0 0.0
        %5863 = vmatmul.mubr.f32.gmra.mxu0 %v5663
        %v5864 = vpop.f32.mrf.mxu0
        %v5865 = vadd.f32 0.0, %v5864
        %v5866 = vpop.f32.mrf.mxu0
        %5867 = vmatprep.mubr.f32.mxu0 0.0
        %5868 = vmatmul.mubr.f32.gmra.mxu0 %v5666
        %v5869 = vpop.f32.mrf.mxu0
        %v5870 = vadd.f32 0.0, %v5869
        %v5871 = vpop.f32.mrf.mxu0
        %5872 = vmatprep.mubr.f32.mxu0 0.0
        %5873 = vmatmul.mubr.f32.gmra.mxu0 %v5669
        %v5874 = vpop.f32.mrf.mxu0
        %v5875 = vadd.f32 0.0, %v5874
        %v5876 = vpop.f32.mrf.mxu0
        %5877 = vmatprep.mubr.f32.mxu0 0.0
        %5878 = vmatmul.mubr.f32.gmra.mxu0 %v5672
        %v5879 = vpop.f32.mrf.mxu0
        %v5880 = vadd.f32 0.0, %v5879
        %v5881 = vpop.f32.mrf.mxu0
        %5882 = vmatprep.mubr.f32.mxu0 0.0
        %5883 = vmatmul.mubr.f32.gmra.mxu0 %v5675
        %v5884 = vpop.f32.mrf.mxu0
        %v5885 = vadd.f32 0.0, %v5884
        %v5886 = vpop.f32.mrf.mxu0
        %5887 = vmatprep.mubr.f32.mxu0 0.0
        %5888 = vmatmul.mubr.f32.gmra.mxu0 %v5678
        %v5889 = vpop.f32.mrf.mxu0
        %v5890 = vadd.f32 0.0, %v5889
        %v5891 = vpop.f32.mrf.mxu0
        %5892 = vmatprep.mubr.f32.mxu0 0.0
        %5893 = vmatmul.mubr.f32.gmra.mxu0 %v5681
        %v5894 = vpop.f32.mrf.mxu0
        %v5895 = vadd.f32 0.0, %v5894
        %v5896 = vpop.f32.mrf.mxu0
        %5897 = vmatprep.mubr.f32.mxu0 0.0
        %5898 = vmatmul.mubr.f32.gmra.mxu0 %v5684
        %v5899 = vpop.f32.mrf.mxu0
        %v5900 = vadd.f32 0.0, %v5899
        %v5901 = vpop.f32.mrf.mxu0
        %5902 = vmatprep.mubr.f32.mxu0 0.0
        %5903 = vmatmul.mubr.f32.gmra.mxu0 %v5687
        %v5904 = vpop.f32.mrf.mxu0
        %v5905 = vadd.f32 0.0, %v5904
        %v5906 = vpop.f32.mrf.mxu0
        %5907 = vmatprep.mubr.f32.mxu0 0.0
        %5908 = vmatmul.mubr.f32.gmra.mxu0 %v5690
        %v5909 = vpop.f32.mrf.mxu0
        %v5910 = vadd.f32 0.0, %v5909
        %v5911 = vpop.f32.mrf.mxu0
        %5912 = vmatprep.mubr.f32.mxu0 0.0
        %5913 = vmatmul.mubr.f32.gmra.mxu0 %v5693
        %v5914 = vpop.f32.mrf.mxu0
        %v5915 = vadd.f32 0.0, %v5914
        %v5916 = vpop.f32.mrf.mxu0
        %5917 = vmatprep.mubr.f32.mxu0 0.0
        %5918 = vmatmul.mubr.f32.gmra.mxu0 %v5696
        %v5919 = vpop.f32.mrf.mxu0
        %v5920 = vadd.f32 0.0, %v5919
        %v5921 = vpop.f32.mrf.mxu0
        %5922 = vdwg.mxu0
        %5923 = vmatprep.subr.mxu0 0.0
        %5924 = vmatpush1.msra.mxu0 %v5588
        %5925 = vmatprep.subr.mxu0 0.0
        %5926 = vmatpush1.msra.mxu0 %v5587
        %5927 = vmatprep.subr.mxu0 0.0
        %5928 = vmatpush1.msra.mxu0 %v5586
        %5929 = vmatprep.subr.mxu0 0.0
        %5930 = vmatpush1.msra.mxu0 %v5585
        %5931 = vmatprep.subr.mxu0 0.0
        %5932 = vmatpush1.msra.mxu0 %v5584
        %5933 = vmatprep.subr.mxu0 0.0
        %5934 = vmatpush1.msra.mxu0 %v5583
        %5935 = vmatprep.subr.mxu0 0.0
        %5936 = vmatpush1.msra.mxu0 %v5582
        %5937 = vmatprep.subr.mxu0 0.0
        %5938 = vmatpush1.msra.mxu0 %v5581
        %5939 = vmatprep.subr.mxu0 0.0
        %5940 = vmatpush1.msra.mxu0 %v5580
        %5941 = vmatprep.subr.mxu0 0.0
        %5942 = vmatpush1.msra.mxu0 %v5579
        %5943 = vmatprep.subr.mxu0 0.0
        %5944 = vmatpush1.msra.mxu0 %v5578
        %5945 = vmatprep.subr.mxu0 0.0
        %5946 = vmatpush1.msra.mxu0 %v5577
        %5947 = vmatprep.subr.mxu0 0.0
        %5948 = vmatpush1.msra.mxu0 %v5576
        %5949 = vmatprep.subr.mxu0 0.0
        %5950 = vmatpush1.msra.mxu0 %v5575
        %5951 = vmatprep.subr.mxu0 0.0
        %5952 = vmatpush1.msra.mxu0 %v5574
        %5953 = vmatprep.subr.mxu0 0.0
        %5954 = vmatpush1.msra.mxu0 %v5573
        %5955 = vmatprep.subr.mxu0 0.0
        %5956 = vmatpush2.msra.mxu0 0.0
        %5957 = vmatprep.subr.mxu0 0.0
        %5958 = vmatpush2.msra.mxu0 0.0
        %5959 = vmatprep.subr.mxu0 0.0
        %5960 = vmatpush2.msra.mxu0 0.0
        %5961 = vmatprep.subr.mxu0 0.0
        %5962 = vmatpush2.msra.mxu0 0.0
        %5963 = vmatprep.subr.mxu0 0.0
        %5964 = vmatpush2.msra.mxu0 0.0
        %5965 = vmatprep.subr.mxu0 0.0
        %5966 = vmatpush2.msra.mxu0 0.0
        %5967 = vmatprep.subr.mxu0 0.0
        %5968 = vmatpush2.msra.mxu0 0.0
        %5969 = vmatprep.subr.mxu0 0.0
        %5970 = vmatpush2.msra.mxu0 0.0
        %5971 = vmatprep.subr.mxu0 0.0
        %5972 = vmatpush2.msra.mxu0 0.0
        %5973 = vmatprep.subr.mxu0 0.0
        %5974 = vmatpush2.msra.mxu0 0.0
        %5975 = vmatprep.subr.mxu0 0.0
        %5976 = vmatpush2.msra.mxu0 0.0
        %5977 = vmatprep.subr.mxu0 0.0
        %5978 = vmatpush2.msra.mxu0 0.0
        %5979 = vmatprep.subr.mxu0 0.0
        %5980 = vmatpush2.msra.mxu0 0.0
        %5981 = vmatprep.subr.mxu0 0.0
        %5982 = vmatpush2.msra.mxu0 0.0
        %5983 = vmatprep.subr.mxu0 0.0
        %5984 = vmatpush2.msra.mxu0 0.0
        %5985 = vmatprep.subr.mxu0 0.0
        %5986 = vmatpush2.msra.mxu0 0.0
        %5987 = vmatprep.mubr.f32.mxu0 0.0
        %5988 = vmatmul.mubr.f32.gmra.mxu0 %v5508
        %v5989 = vpop.f32.mrf.mxu0
        %v5990 = vadd.f32 %v5765, %v5989
        %v5991 = vpop.f32.mrf.mxu0
        %5992 = vmatprep.mubr.f32.mxu0 0.0
        %5993 = vmatmul.mubr.f32.gmra.mxu0 %v5509
        %v5994 = vpop.f32.mrf.mxu0
        %v5995 = vadd.f32 %v5770, %v5994
        %v5996 = vpop.f32.mrf.mxu0
        %5997 = vmatprep.mubr.f32.mxu0 0.0
        %5998 = vmatmul.mubr.f32.gmra.mxu0 %v5510
        %v5999 = vpop.f32.mrf.mxu0
        %v6000 = vadd.f32 %v5775, %v5999
        %v6001 = vpop.f32.mrf.mxu0
        %6002 = vmatprep.mubr.f32.mxu0 0.0
        %6003 = vmatmul.mubr.f32.gmra.mxu0 %v5511
        %v6004 = vpop.f32.mrf.mxu0
        %v6005 = vadd.f32 %v5780, %v6004
        %v6006 = vpop.f32.mrf.mxu0
        %6007 = vmatprep.mubr.f32.mxu0 0.0
        %6008 = vmatmul.mubr.f32.gmra.mxu0 %v5512
        %v6009 = vpop.f32.mrf.mxu0
        %v6010 = vadd.f32 %v5785, %v6009
        %v6011 = vpop.f32.mrf.mxu0
        %6012 = vmatprep.mubr.f32.mxu0 0.0
        %6013 = vmatmul.mubr.f32.gmra.mxu0 %v5513
        %v6014 = vpop.f32.mrf.mxu0
        %v6015 = vadd.f32 %v5790, %v6014
        %v6016 = vpop.f32.mrf.mxu0
        %6017 = vmatprep.mubr.f32.mxu0 0.0
        %6018 = vmatmul.mubr.f32.gmra.mxu0 %v5514
        %v6019 = vpop.f32.mrf.mxu0
        %v6020 = vadd.f32 %v5795, %v6019
        %v6021 = vpop.f32.mrf.mxu0
        %6022 = vmatprep.mubr.f32.mxu0 0.0
        %6023 = vmatmul.mubr.f32.gmra.mxu0 %v5515
        %v6024 = vpop.f32.mrf.mxu0
        %v6025 = vadd.f32 %v5800, %v6024
        %v6026 = vpop.f32.mrf.mxu0
        %6027 = vmatprep.mubr.f32.mxu0 0.0
        %6028 = vmatmul.mubr.f32.gmra.mxu0 %v5516
        %v6029 = vpop.f32.mrf.mxu0
        %v6030 = vadd.f32 %v5805, %v6029
        %v6031 = vpop.f32.mrf.mxu0
        %6032 = vmatprep.mubr.f32.mxu0 0.0
        %6033 = vmatmul.mubr.f32.gmra.mxu0 %v5517
        %v6034 = vpop.f32.mrf.mxu0
        %v6035 = vadd.f32 %v5810, %v6034
        %v6036 = vpop.f32.mrf.mxu0
        %6037 = vmatprep.mubr.f32.mxu0 0.0
        %6038 = vmatmul.mubr.f32.gmra.mxu0 %v5518
        %v6039 = vpop.f32.mrf.mxu0
        %v6040 = vadd.f32 %v5815, %v6039
        %v6041 = vpop.f32.mrf.mxu0
        %6042 = vmatprep.mubr.f32.mxu0 0.0
        %6043 = vmatmul.mubr.f32.gmra.mxu0 %v5519
        %v6044 = vpop.f32.mrf.mxu0
        %v6045 = vadd.f32 %v5820, %v6044
        %v6046 = vpop.f32.mrf.mxu0
        %6047 = vmatprep.mubr.f32.mxu0 0.0
        %6048 = vmatmul.mubr.f32.gmra.mxu0 %v5520
        %v6049 = vpop.f32.mrf.mxu0
        %v6050 = vadd.f32 %v5825, %v6049
        %v6051 = vpop.f32.mrf.mxu0
        %6052 = vmatprep.mubr.f32.mxu0 0.0
        %6053 = vmatmul.mubr.f32.gmra.mxu0 %v5521
        %v6054 = vpop.f32.mrf.mxu0
        %v6055 = vadd.f32 %v5830, %v6054
        %v6056 = vpop.f32.mrf.mxu0
        %6057 = vmatprep.mubr.f32.mxu0 0.0
        %6058 = vmatmul.mubr.f32.gmra.mxu0 %v5522
        %v6059 = vpop.f32.mrf.mxu0
        %v6060 = vadd.f32 %v5835, %v6059
        %v6061 = vpop.f32.mrf.mxu0
        %6062 = vmatprep.mubr.f32.mxu0 0.0
        %6063 = vmatmul.mubr.f32.gmra.mxu0 %v5523
        %v6064 = vpop.f32.mrf.mxu0
        %v6065 = vadd.f32 %v5840, %v6064
        %v6066 = vpop.f32.mrf.mxu0
        %6067 = vmatprep.mubr.f32.mxu0 0.0
        %6068 = vmatmul.mubr.f32.gmra.mxu0 %v5524
        %v6069 = vpop.f32.mrf.mxu0
        %v6070 = vadd.f32 %v5845, %v6069
        %v6071 = vpop.f32.mrf.mxu0
        %6072 = vmatprep.mubr.f32.mxu0 0.0
        %6073 = vmatmul.mubr.f32.gmra.mxu0 %v5525
        %v6074 = vpop.f32.mrf.mxu0
        %v6075 = vadd.f32 %v5850, %v6074
        %v6076 = vpop.f32.mrf.mxu0
        %6077 = vmatprep.mubr.f32.mxu0 0.0
        %6078 = vmatmul.mubr.f32.gmra.mxu0 %v5526
        %v6079 = vpop.f32.mrf.mxu0
        %v6080 = vadd.f32 %v5855, %v6079
        %v6081 = vpop.f32.mrf.mxu0
        %6082 = vmatprep.mubr.f32.mxu0 0.0
        %6083 = vmatmul.mubr.f32.gmra.mxu0 %v5527
        %v6084 = vpop.f32.mrf.mxu0
        %v6085 = vadd.f32 %v5860, %v6084
        %v6086 = vpop.f32.mrf.mxu0
        %6087 = vmatprep.mubr.f32.mxu0 0.0
        %6088 = vmatmul.mubr.f32.gmra.mxu0 %v5528
        %v6089 = vpop.f32.mrf.mxu0
        %v6090 = vadd.f32 %v5865, %v6089
        %v6091 = vpop.f32.mrf.mxu0
        %6092 = vmatprep.mubr.f32.mxu0 0.0
        %6093 = vmatmul.mubr.f32.gmra.mxu0 %v5529
        %v6094 = vpop.f32.mrf.mxu0
        %v6095 = vadd.f32 %v5870, %v6094
        %v6096 = vpop.f32.mrf.mxu0
        %6097 = vmatprep.mubr.f32.mxu0 0.0
        %6098 = vmatmul.mubr.f32.gmra.mxu0 %v5530
        %v6099 = vpop.f32.mrf.mxu0
        %v6100 = vadd.f32 %v5875, %v6099
        %v6101 = vpop.f32.mrf.mxu0
        %6102 = vmatprep.mubr.f32.mxu0 0.0
        %6103 = vmatmul.mubr.f32.gmra.mxu0 %v5531
        %v6104 = vpop.f32.mrf.mxu0
        %v6105 = vadd.f32 %v5880, %v6104
        %v6106 = vpop.f32.mrf.mxu0
        %6107 = vmatprep.mubr.f32.mxu0 0.0
        %6108 = vmatmul.mubr.f32.gmra.mxu0 %v5532
        %v6109 = vpop.f32.mrf.mxu0
        %v6110 = vadd.f32 %v5885, %v6109
        %v6111 = vpop.f32.mrf.mxu0
        %6112 = vmatprep.mubr.f32.mxu0 0.0
        %6113 = vmatmul.mubr.f32.gmra.mxu0 %v5533
        %v6114 = vpop.f32.mrf.mxu0
        %v6115 = vadd.f32 %v5890, %v6114
        %v6116 = vpop.f32.mrf.mxu0
        %6117 = vmatprep.mubr.f32.mxu0 0.0
        %6118 = vmatmul.mubr.f32.gmra.mxu0 %v5534
        %v6119 = vpop.f32.mrf.mxu0
        %v6120 = vadd.f32 %v5895, %v6119
        %v6121 = vpop.f32.mrf.mxu0
        %6122 = vmatprep.mubr.f32.mxu0 0.0
        %6123 = vmatmul.mubr.f32.gmra.mxu0 %v5535
        %v6124 = vpop.f32.mrf.mxu0
        %v6125 = vadd.f32 %v5900, %v6124
        %v6126 = vpop.f32.mrf.mxu0
        %6127 = vmatprep.mubr.f32.mxu0 0.0
        %6128 = vmatmul.mubr.f32.gmra.mxu0 %v5536
        %v6129 = vpop.f32.mrf.mxu0
        %v6130 = vadd.f32 %v5905, %v6129
        %v6131 = vpop.f32.mrf.mxu0
        %6132 = vmatprep.mubr.f32.mxu0 0.0
        %6133 = vmatmul.mubr.f32.gmra.mxu0 %v5537
        %v6134 = vpop.f32.mrf.mxu0
        %v6135 = vadd.f32 %v5910, %v6134
        %v6136 = vpop.f32.mrf.mxu0
        %6137 = vmatprep.mubr.f32.mxu0 0.0
        %6138 = vmatmul.mubr.f32.gmra.mxu0 %v5538
        %v6139 = vpop.f32.mrf.mxu0
        %v6140 = vadd.f32 %v5915, %v6139
        %v6141 = vpop.f32.mrf.mxu0
        %6142 = vmatprep.mubr.f32.mxu0 0.0
        %6143 = vmatmul.mubr.f32.gmra.mxu0 %v5539
        %v6144 = vpop.f32.mrf.mxu0
        %v6145 = vadd.f32 %v5920, %v6144
        %v6146 = vpop.f32.mrf.mxu0
        %6147 = vdwg.mxu0
        %s6148 = scalar_lea.vmem %s5, 5
        %v6149 = vld [vmem:[%s6148] sm:$0x1]
        %v6151 = vlaneseq
        %v6152 = vshrl.u32 %v6151, 7
        %v6153 = vsub.s32 0, %v6152
        %v6154 = vrot.slane %v6149, %v6153
        %v6156 = vadd.f32 %v5990, %v6154
        %v6157 = vadd.f32 %v5995, %v6154
        %v6158 = vadd.f32 %v6000, %v6154
        %v6159 = vadd.f32 %v6005, %v6154
        %v6160 = vadd.f32 %v6010, %v6154
        %v6161 = vadd.f32 %v6015, %v6154
        %v6162 = vadd.f32 %v6020, %v6154
        %v6163 = vadd.f32 %v6025, %v6154
        %v6164 = vadd.f32 %v6030, %v6154
        %v6165 = vadd.f32 %v6035, %v6154
        %v6166 = vadd.f32 %v6040, %v6154
        %v6167 = vadd.f32 %v6045, %v6154
        %v6168 = vadd.f32 %v6050, %v6154
        %v6169 = vadd.f32 %v6055, %v6154
        %v6170 = vadd.f32 %v6060, %v6154
        %v6171 = vadd.f32 %v6065, %v6154
        %v6172 = vadd.f32 %v6070, %v6154
        %v6173 = vadd.f32 %v6075, %v6154
        %v6174 = vadd.f32 %v6080, %v6154
        %v6175 = vadd.f32 %v6085, %v6154
        %v6176 = vadd.f32 %v6090, %v6154
        %v6177 = vadd.f32 %v6095, %v6154
        %v6178 = vadd.f32 %v6100, %v6154
        %v6179 = vadd.f32 %v6105, %v6154
        %v6180 = vadd.f32 %v6110, %v6154
        %v6181 = vadd.f32 %v6115, %v6154
        %v6182 = vadd.f32 %v6120, %v6154
        %v6183 = vadd.f32 %v6125, %v6154
        %v6184 = vadd.f32 %v6130, %v6154
        %v6185 = vadd.f32 %v6135, %v6154
        %v6186 = vadd.f32 %v6140, %v6154
        %v6187 = vadd.f32 %v6145, %v6154
        %v6188 = vmax.f32 %v6156, 0.0
        %v6189 = vmax.f32 %v6157, 0.0
        %v6190 = vmax.f32 %v6158, 0.0
        %v6191 = vmax.f32 %v6159, 0.0
        %v6192 = vmax.f32 %v6160, 0.0
        %v6193 = vmax.f32 %v6161, 0.0
        %v6194 = vmax.f32 %v6162, 0.0
        %v6195 = vmax.f32 %v6163, 0.0
        %v6196 = vmax.f32 %v6164, 0.0
        %v6197 = vmax.f32 %v6165, 0.0
        %v6198 = vmax.f32 %v6166, 0.0
        %v6199 = vmax.f32 %v6167, 0.0
        %v6200 = vmax.f32 %v6168, 0.0
        %v6201 = vmax.f32 %v6169, 0.0
        %v6202 = vmax.f32 %v6170, 0.0
        %v6203 = vmax.f32 %v6171, 0.0
        %v6204 = vmax.f32 %v6172, 0.0
        %v6205 = vmax.f32 %v6173, 0.0
        %v6206 = vmax.f32 %v6174, 0.0
        %v6207 = vmax.f32 %v6175, 0.0
        %v6208 = vmax.f32 %v6176, 0.0
        %v6209 = vmax.f32 %v6177, 0.0
        %v6210 = vmax.f32 %v6178, 0.0
        %v6211 = vmax.f32 %v6179, 0.0
        %v6212 = vmax.f32 %v6180, 0.0
        %v6213 = vmax.f32 %v6181, 0.0
        %v6214 = vmax.f32 %v6182, 0.0
        %v6215 = vmax.f32 %v6183, 0.0
        %v6216 = vmax.f32 %v6184, 0.0
        %v6217 = vmax.f32 %v6185, 0.0
        %v6218 = vmax.f32 %v6186, 0.0
        %v6219 = vmax.f32 %v6187, 0.0
        %s6220 = scalar_lea.vmem [#allocation8], 640
        %v6221 = vld [vmem:[%s6220] sm:$0xff]
        %v6222 = vld [vmem:[%s6220 + $0x8] sm:$0xff]
        %v6223 = vld [vmem:[%s6220 + $0x10] sm:$0xff]
        %v6224 = vld [vmem:[%s6220 + $0x18] sm:$0xff]
        %v6225 = vld [vmem:[%s6220 + $0x20] sm:$0xff]
        %v6226 = vld [vmem:[%s6220 + $0x28] sm:$0xff]
        %v6227 = vld [vmem:[%s6220 + $0x30] sm:$0xff]
        %v6228 = vld [vmem:[%s6220 + $0x38] sm:$0xff]
        %v6229 = vld [vmem:[%s6220 + $0x40] sm:$0xff]
        %v6230 = vld [vmem:[%s6220 + $0x48] sm:$0xff]
        %v6231 = vld [vmem:[%s6220 + $0x50] sm:$0xff]
        %v6232 = vld [vmem:[%s6220 + $0x58] sm:$0xff]
        %v6233 = vld [vmem:[%s6220 + $0x60] sm:$0xff]
        %v6234 = vld [vmem:[%s6220 + $0x68] sm:$0xff]
        %v6235 = vld [vmem:[%s6220 + $0x70] sm:$0xff]
        %v6236 = vld [vmem:[%s6220 + $0x78] sm:$0xff]
        %s6237 = scalar_lea.vmem %s6, 5
        %v6238 = vld [vmem:[%s6237] sm:$0x1]
        %v6240 = vlaneseq
        %v6241 = vshrl.u32 %v6240, 7
        %v6242 = vsub.s32 0, %v6241
        %v6243 = vrot.slane %v6238, %v6242
        %6245 = vmatprep.subr.mxu0 0.0
        %6246 = vmatpush1.msra.mxu0 %v6236
        %6247 = vmatprep.subr.mxu0 0.0
        %6248 = vmatpush1.msra.mxu0 %v6235
        %6249 = vmatprep.subr.mxu0 0.0
        %6250 = vmatpush1.msra.mxu0 %v6234
        %6251 = vmatprep.subr.mxu0 0.0
        %6252 = vmatpush1.msra.mxu0 %v6233
        %6253 = vmatprep.subr.mxu0 0.0
        %6254 = vmatpush1.msra.mxu0 %v6232
        %6255 = vmatprep.subr.mxu0 0.0
        %6256 = vmatpush1.msra.mxu0 %v6231
        %6257 = vmatprep.subr.mxu0 0.0
        %6258 = vmatpush1.msra.mxu0 %v6230
        %6259 = vmatprep.subr.mxu0 0.0
        %6260 = vmatpush1.msra.mxu0 %v6229
        %6261 = vmatprep.subr.mxu0 0.0
        %6262 = vmatpush1.msra.mxu0 %v6228
        %6263 = vmatprep.subr.mxu0 0.0
        %6264 = vmatpush1.msra.mxu0 %v6227
        %6265 = vmatprep.subr.mxu0 0.0
        %6266 = vmatpush1.msra.mxu0 %v6226
        %6267 = vmatprep.subr.mxu0 0.0
        %6268 = vmatpush1.msra.mxu0 %v6225
        %6269 = vmatprep.subr.mxu0 0.0
        %6270 = vmatpush1.msra.mxu0 %v6224
        %6271 = vmatprep.subr.mxu0 0.0
        %6272 = vmatpush1.msra.mxu0 %v6223
        %6273 = vmatprep.subr.mxu0 0.0
        %6274 = vmatpush1.msra.mxu0 %v6222
        %6275 = vmatprep.subr.mxu0 0.0
        %6276 = vmatpush1.msra.mxu0 %v6221
        %6277 = vmatprep.subr.mxu0 0.0
        %6278 = vmatpush2.msra.mxu0 0.0
        %6279 = vmatprep.subr.mxu0 0.0
        %6280 = vmatpush2.msra.mxu0 0.0
        %6281 = vmatprep.subr.mxu0 0.0
        %6282 = vmatpush2.msra.mxu0 0.0
        %6283 = vmatprep.subr.mxu0 0.0
        %6284 = vmatpush2.msra.mxu0 0.0
        %6285 = vmatprep.subr.mxu0 0.0
        %6286 = vmatpush2.msra.mxu0 0.0
        %6287 = vmatprep.subr.mxu0 0.0
        %6288 = vmatpush2.msra.mxu0 0.0
        %6289 = vmatprep.subr.mxu0 0.0
        %6290 = vmatpush2.msra.mxu0 0.0
        %6291 = vmatprep.subr.mxu0 0.0
        %6292 = vmatpush2.msra.mxu0 0.0
        %6293 = vmatprep.subr.mxu0 0.0
        %6294 = vmatpush2.msra.mxu0 0.0
        %6295 = vmatprep.subr.mxu0 0.0
        %6296 = vmatpush2.msra.mxu0 0.0
        %6297 = vmatprep.subr.mxu0 0.0
        %6298 = vmatpush2.msra.mxu0 0.0
        %6299 = vmatprep.subr.mxu0 0.0
        %6300 = vmatpush2.msra.mxu0 0.0
        %6301 = vmatprep.subr.mxu0 0.0
        %6302 = vmatpush2.msra.mxu0 0.0
        %6303 = vmatprep.subr.mxu0 0.0
        %6304 = vmatpush2.msra.mxu0 0.0
        %6305 = vmatprep.subr.mxu0 0.0
        %6306 = vmatpush2.msra.mxu0 0.0
        %6307 = vmatprep.subr.mxu0 0.0
        %6308 = vmatpush2.msra.mxu0 0.0
        %6309 = vmatprep.mubr.f32.mxu0 0.0
        %6310 = vmatmul.mubr.f32.gmra.mxu0 %v6188
        %v6311 = vpop.f32.mrf.mxu0
        %v6312 = vadd.f32 %v6243, %v6311
        %v6313 = vpop.f32.mrf.mxu0
        %6314 = vmatprep.mubr.f32.mxu0 0.0
        %6315 = vmatmul.mubr.f32.gmra.mxu0 %v6189
        %v6316 = vpop.f32.mrf.mxu0
        %v6317 = vadd.f32 %v6243, %v6316
        %v6318 = vpop.f32.mrf.mxu0
        %6319 = vmatprep.mubr.f32.mxu0 0.0
        %6320 = vmatmul.mubr.f32.gmra.mxu0 %v6190
        %v6321 = vpop.f32.mrf.mxu0
        %v6322 = vadd.f32 %v6243, %v6321
        %v6323 = vpop.f32.mrf.mxu0
        %6324 = vmatprep.mubr.f32.mxu0 0.0
        %6325 = vmatmul.mubr.f32.gmra.mxu0 %v6191
        %v6326 = vpop.f32.mrf.mxu0
        %v6327 = vadd.f32 %v6243, %v6326
        %v6328 = vpop.f32.mrf.mxu0
        %6329 = vmatprep.mubr.f32.mxu0 0.0
        %6330 = vmatmul.mubr.f32.gmra.mxu0 %v6192
        %v6331 = vpop.f32.mrf.mxu0
        %v6332 = vadd.f32 %v6243, %v6331
        %v6333 = vpop.f32.mrf.mxu0
        %6334 = vmatprep.mubr.f32.mxu0 0.0
        %6335 = vmatmul.mubr.f32.gmra.mxu0 %v6193
        %v6336 = vpop.f32.mrf.mxu0
        %v6337 = vadd.f32 %v6243, %v6336
        %v6338 = vpop.f32.mrf.mxu0
        %6339 = vmatprep.mubr.f32.mxu0 0.0
        %6340 = vmatmul.mubr.f32.gmra.mxu0 %v6194
        %v6341 = vpop.f32.mrf.mxu0
        %v6342 = vadd.f32 %v6243, %v6341
        %v6343 = vpop.f32.mrf.mxu0
        %6344 = vmatprep.mubr.f32.mxu0 0.0
        %6345 = vmatmul.mubr.f32.gmra.mxu0 %v6195
        %v6346 = vpop.f32.mrf.mxu0
        %v6347 = vadd.f32 %v6243, %v6346
        %v6348 = vpop.f32.mrf.mxu0
        %6349 = vmatprep.mubr.f32.mxu0 0.0
        %6350 = vmatmul.mubr.f32.gmra.mxu0 %v6196
        %v6351 = vpop.f32.mrf.mxu0
        %v6352 = vadd.f32 %v6243, %v6351
        %v6353 = vpop.f32.mrf.mxu0
        %6354 = vmatprep.mubr.f32.mxu0 0.0
        %6355 = vmatmul.mubr.f32.gmra.mxu0 %v6197
        %v6356 = vpop.f32.mrf.mxu0
        %v6357 = vadd.f32 %v6243, %v6356
        %v6358 = vpop.f32.mrf.mxu0
        %6359 = vmatprep.mubr.f32.mxu0 0.0
        %6360 = vmatmul.mubr.f32.gmra.mxu0 %v6198
        %v6361 = vpop.f32.mrf.mxu0
        %v6362 = vadd.f32 %v6243, %v6361
        %v6363 = vpop.f32.mrf.mxu0
        %6364 = vmatprep.mubr.f32.mxu0 0.0
        %6365 = vmatmul.mubr.f32.gmra.mxu0 %v6199
        %v6366 = vpop.f32.mrf.mxu0
        %v6367 = vadd.f32 %v6243, %v6366
        %v6368 = vpop.f32.mrf.mxu0
        %6369 = vmatprep.mubr.f32.mxu0 0.0
        %6370 = vmatmul.mubr.f32.gmra.mxu0 %v6200
        %v6371 = vpop.f32.mrf.mxu0
        %v6372 = vadd.f32 %v6243, %v6371
        %v6373 = vpop.f32.mrf.mxu0
        %6374 = vmatprep.mubr.f32.mxu0 0.0
        %6375 = vmatmul.mubr.f32.gmra.mxu0 %v6201
        %v6376 = vpop.f32.mrf.mxu0
        %v6377 = vadd.f32 %v6243, %v6376
        %v6378 = vpop.f32.mrf.mxu0
        %6379 = vmatprep.mubr.f32.mxu0 0.0
        %6380 = vmatmul.mubr.f32.gmra.mxu0 %v6202
        %v6381 = vpop.f32.mrf.mxu0
        %v6382 = vadd.f32 %v6243, %v6381
        %v6383 = vpop.f32.mrf.mxu0
        %6384 = vmatprep.mubr.f32.mxu0 0.0
        %6385 = vmatmul.mubr.f32.gmra.mxu0 %v6203
        %v6386 = vpop.f32.mrf.mxu0
        %v6387 = vadd.f32 %v6243, %v6386
        %v6388 = vpop.f32.mrf.mxu0
        %6389 = vmatprep.mubr.f32.mxu0 0.0
        %6390 = vmatmul.mubr.f32.gmra.mxu0 %v6204
        %v6391 = vpop.f32.mrf.mxu0
        %v6392 = vadd.f32 %v6243, %v6391
        %v6393 = vpop.f32.mrf.mxu0
        %6394 = vmatprep.mubr.f32.mxu0 0.0
        %6395 = vmatmul.mubr.f32.gmra.mxu0 %v6205
        %v6396 = vpop.f32.mrf.mxu0
        %v6397 = vadd.f32 %v6243, %v6396
        %v6398 = vpop.f32.mrf.mxu0
        %6399 = vmatprep.mubr.f32.mxu0 0.0
        %6400 = vmatmul.mubr.f32.gmra.mxu0 %v6206
        %v6401 = vpop.f32.mrf.mxu0
        %v6402 = vadd.f32 %v6243, %v6401
        %v6403 = vpop.f32.mrf.mxu0
        %6404 = vmatprep.mubr.f32.mxu0 0.0
        %6405 = vmatmul.mubr.f32.gmra.mxu0 %v6207
        %v6406 = vpop.f32.mrf.mxu0
        %v6407 = vadd.f32 %v6243, %v6406
        %v6408 = vpop.f32.mrf.mxu0
        %6409 = vmatprep.mubr.f32.mxu0 0.0
        %6410 = vmatmul.mubr.f32.gmra.mxu0 %v6208
        %v6411 = vpop.f32.mrf.mxu0
        %v6412 = vadd.f32 %v6243, %v6411
        %v6413 = vpop.f32.mrf.mxu0
        %6414 = vmatprep.mubr.f32.mxu0 0.0
        %6415 = vmatmul.mubr.f32.gmra.mxu0 %v6209
        %v6416 = vpop.f32.mrf.mxu0
        %v6417 = vadd.f32 %v6243, %v6416
        %v6418 = vpop.f32.mrf.mxu0
        %6419 = vmatprep.mubr.f32.mxu0 0.0
        %6420 = vmatmul.mubr.f32.gmra.mxu0 %v6210
        %v6421 = vpop.f32.mrf.mxu0
        %v6422 = vadd.f32 %v6243, %v6421
        %v6423 = vpop.f32.mrf.mxu0
        %6424 = vmatprep.mubr.f32.mxu0 0.0
        %6425 = vmatmul.mubr.f32.gmra.mxu0 %v6211
        %v6426 = vpop.f32.mrf.mxu0
        %v6427 = vadd.f32 %v6243, %v6426
        %v6428 = vpop.f32.mrf.mxu0
        %6429 = vmatprep.mubr.f32.mxu0 0.0
        %6430 = vmatmul.mubr.f32.gmra.mxu0 %v6212
        %v6431 = vpop.f32.mrf.mxu0
        %v6432 = vadd.f32 %v6243, %v6431
        %v6433 = vpop.f32.mrf.mxu0
        %6434 = vmatprep.mubr.f32.mxu0 0.0
        %6435 = vmatmul.mubr.f32.gmra.mxu0 %v6213
        %v6436 = vpop.f32.mrf.mxu0
        %v6437 = vadd.f32 %v6243, %v6436
        %v6438 = vpop.f32.mrf.mxu0
        %6439 = vmatprep.mubr.f32.mxu0 0.0
        %6440 = vmatmul.mubr.f32.gmra.mxu0 %v6214
        %v6441 = vpop.f32.mrf.mxu0
        %v6442 = vadd.f32 %v6243, %v6441
        %v6443 = vpop.f32.mrf.mxu0
        %6444 = vmatprep.mubr.f32.mxu0 0.0
        %6445 = vmatmul.mubr.f32.gmra.mxu0 %v6215
        %v6446 = vpop.f32.mrf.mxu0
        %v6447 = vadd.f32 %v6243, %v6446
        %v6448 = vpop.f32.mrf.mxu0
        %6449 = vmatprep.mubr.f32.mxu0 0.0
        %6450 = vmatmul.mubr.f32.gmra.mxu0 %v6216
        %v6451 = vpop.f32.mrf.mxu0
        %v6452 = vadd.f32 %v6243, %v6451
        %v6453 = vpop.f32.mrf.mxu0
        %6454 = vmatprep.mubr.f32.mxu0 0.0
        %6455 = vmatmul.mubr.f32.gmra.mxu0 %v6217
        %v6456 = vpop.f32.mrf.mxu0
        %v6457 = vadd.f32 %v6243, %v6456
        %v6458 = vpop.f32.mrf.mxu0
        %6459 = vmatprep.mubr.f32.mxu0 0.0
        %6460 = vmatmul.mubr.f32.gmra.mxu0 %v6218
        %v6461 = vpop.f32.mrf.mxu0
        %v6462 = vadd.f32 %v6243, %v6461
        %v6463 = vpop.f32.mrf.mxu0
        %6464 = vmatprep.mubr.f32.mxu0 0.0
        %6465 = vmatmul.mubr.f32.gmra.mxu0 %v6219
        %v6466 = vpop.f32.mrf.mxu0
        %v6467 = vadd.f32 %v6243, %v6466
        %v6468 = vpop.f32.mrf.mxu0
        %6469 = vdwg.mxu0
        %v6470 = vadd.f32 %v6312, %v5508
        %v6471 = vadd.f32 %v6317, %v5509
        %v6472 = vadd.f32 %v6322, %v5510
        %v6473 = vadd.f32 %v6327, %v5511
        %v6474 = vadd.f32 %v6332, %v5512
        %v6475 = vadd.f32 %v6337, %v5513
        %v6476 = vadd.f32 %v6342, %v5514
        %v6477 = vadd.f32 %v6347, %v5515
        %v6478 = vadd.f32 %v6352, %v5516
        %v6479 = vadd.f32 %v6357, %v5517
        %v6480 = vadd.f32 %v6362, %v5518
        %v6481 = vadd.f32 %v6367, %v5519
        %v6482 = vadd.f32 %v6372, %v5520
        %v6483 = vadd.f32 %v6377, %v5521
        %v6484 = vadd.f32 %v6382, %v5522
        %v6485 = vadd.f32 %v6387, %v5523
        %v6486 = vadd.f32 %v6392, %v5524
        %v6487 = vadd.f32 %v6397, %v5525
        %v6488 = vadd.f32 %v6402, %v5526
        %v6489 = vadd.f32 %v6407, %v5527
        %v6490 = vadd.f32 %v6412, %v5528
        %v6491 = vadd.f32 %v6417, %v5529
        %v6492 = vadd.f32 %v6422, %v5530
        %v6493 = vadd.f32 %v6427, %v5531
        %v6494 = vadd.f32 %v6432, %v5532
        %v6495 = vadd.f32 %v6437, %v5533
        %v6496 = vadd.f32 %v6442, %v5534
        %v6497 = vadd.f32 %v6447, %v5535
        %v6498 = vadd.f32 %v6452, %v5536
        %v6499 = vadd.f32 %v6457, %v5537
        %v6500 = vadd.f32 %v6462, %v5538
        %v6501 = vadd.f32 %v6467, %v5539
        %6502 = vst [vmem:[#allocation2] sm:$0xff] %v6470
        %6503 = vst [vmem:[#allocation2 + $0x8] sm:$0xff] %v6471
        %6504 = vst [vmem:[#allocation2 + $0x10] sm:$0xff] %v6472
        %6505 = vst [vmem:[#allocation2 + $0x18] sm:$0xff] %v6473
        %6506 = vst [vmem:[#allocation2 + $0x20] sm:$0xff] %v6474
        %6507 = vst [vmem:[#allocation2 + $0x28] sm:$0xff] %v6475
        %6508 = vst [vmem:[#allocation2 + $0x30] sm:$0xff] %v6476
        %6509 = vst [vmem:[#allocation2 + $0x38] sm:$0xff] %v6477
        %6510 = vst [vmem:[#allocation2 + $0x40] sm:$0xff] %v6478
        %6511 = vst [vmem:[#allocation2 + $0x48] sm:$0xff] %v6479
        %6512 = vst [vmem:[#allocation2 + $0x50] sm:$0xff] %v6480
        %6513 = vst [vmem:[#allocation2 + $0x58] sm:$0xff] %v6481
        %6514 = vst [vmem:[#allocation2 + $0x60] sm:$0xff] %v6482
        %6515 = vst [vmem:[#allocation2 + $0x68] sm:$0xff] %v6483
        %6516 = vst [vmem:[#allocation2 + $0x70] sm:$0xff] %v6484
        %6517 = vst [vmem:[#allocation2 + $0x78] sm:$0xff] %v6485
        %6518 = vst [vmem:[#allocation2 + $0x80] sm:$0xff] %v6486
        %6519 = vst [vmem:[#allocation2 + $0x88] sm:$0xff] %v6487
        %6520 = vst [vmem:[#allocation2 + $0x90] sm:$0xff] %v6488
        %6521 = vst [vmem:[#allocation2 + $0x98] sm:$0xff] %v6489
        %6522 = vst [vmem:[#allocation2 + $0xa0] sm:$0xff] %v6490
        %6523 = vst [vmem:[#allocation2 + $0xa8] sm:$0xff] %v6491
        %6524 = vst [vmem:[#allocation2 + $0xb0] sm:$0xff] %v6492
        %6525 = vst [vmem:[#allocation2 + $0xb8] sm:$0xff] %v6493
        %6526 = vst [vmem:[#allocation2 + $0xc0] sm:$0xff] %v6494
        %6527 = vst [vmem:[#allocation2 + $0xc8] sm:$0xff] %v6495
        %6528 = vst [vmem:[#allocation2 + $0xd0] sm:$0xff] %v6496
        %6529 = vst [vmem:[#allocation2 + $0xd8] sm:$0xff] %v6497
        %6530 = vst [vmem:[#allocation2 + $0xe0] sm:$0xff] %v6498
        %6531 = vst [vmem:[#allocation2 + $0xe8] sm:$0xff] %v6499
        %6532 = vst [vmem:[#allocation2 + $0xf0] sm:$0xff] %v6500
        %6533 = vst [vmem:[#allocation2 + $0xf8] sm:$0xff] %v6501
        %v6534 = vld [vmem:[#allocation2] sm:$0xff]
        %v6535 = vld [vmem:[#allocation2 + $0x8] sm:$0xff]
        %v6536 = vld [vmem:[#allocation2 + $0x10] sm:$0xff]
        %v6537 = vld [vmem:[#allocation2 + $0x18] sm:$0xff]
        %v6538 = vld [vmem:[#allocation2 + $0x20] sm:$0xff]
        %v6539 = vld [vmem:[#allocation2 + $0x28] sm:$0xff]
        %v6540 = vld [vmem:[#allocation2 + $0x30] sm:$0xff]
        %v6541 = vld [vmem:[#allocation2 + $0x38] sm:$0xff]
        %v6542 = vld [vmem:[#allocation2 + $0x40] sm:$0xff]
        %v6543 = vld [vmem:[#allocation2 + $0x48] sm:$0xff]
        %v6544 = vld [vmem:[#allocation2 + $0x50] sm:$0xff]
        %v6545 = vld [vmem:[#allocation2 + $0x58] sm:$0xff]
        %v6546 = vld [vmem:[#allocation2 + $0x60] sm:$0xff]
        %v6547 = vld [vmem:[#allocation2 + $0x68] sm:$0xff]
        %v6548 = vld [vmem:[#allocation2 + $0x70] sm:$0xff]
        %v6549 = vld [vmem:[#allocation2 + $0x78] sm:$0xff]
        %v6550 = vld [vmem:[#allocation2 + $0x80] sm:$0xff]
        %v6551 = vld [vmem:[#allocation2 + $0x88] sm:$0xff]
        %v6552 = vld [vmem:[#allocation2 + $0x90] sm:$0xff]
        %v6553 = vld [vmem:[#allocation2 + $0x98] sm:$0xff]
        %v6554 = vld [vmem:[#allocation2 + $0xa0] sm:$0xff]
        %v6555 = vld [vmem:[#allocation2 + $0xa8] sm:$0xff]
        %v6556 = vld [vmem:[#allocation2 + $0xb0] sm:$0xff]
        %v6557 = vld [vmem:[#allocation2 + $0xb8] sm:$0xff]
        %v6558 = vld [vmem:[#allocation2 + $0xc0] sm:$0xff]
        %v6559 = vld [vmem:[#allocation2 + $0xc8] sm:$0xff]
        %v6560 = vld [vmem:[#allocation2 + $0xd0] sm:$0xff]
        %v6561 = vld [vmem:[#allocation2 + $0xd8] sm:$0xff]
        %v6562 = vld [vmem:[#allocation2 + $0xe0] sm:$0xff]
        %v6563 = vld [vmem:[#allocation2 + $0xe8] sm:$0xff]
        %v6564 = vld [vmem:[#allocation2 + $0xf0] sm:$0xff]
        %v6565 = vld [vmem:[#allocation2 + $0xf8] sm:$0xff]
        %6566 = vst [vmem:[%s341] sm:$0xff] %v6534
        %6567 = vst [vmem:[%s341 + $0x8] sm:$0xff] %v6535
        %6568 = vst [vmem:[%s341 + $0x10] sm:$0xff] %v6536
        %6569 = vst [vmem:[%s341 + $0x18] sm:$0xff] %v6537
        %6570 = vst [vmem:[%s341 + $0x20] sm:$0xff] %v6538
        %6571 = vst [vmem:[%s341 + $0x28] sm:$0xff] %v6539
        %6572 = vst [vmem:[%s341 + $0x30] sm:$0xff] %v6540
        %6573 = vst [vmem:[%s341 + $0x38] sm:$0xff] %v6541
        %6574 = vst [vmem:[%s341 + $0x40] sm:$0xff] %v6542
        %6575 = vst [vmem:[%s341 + $0x48] sm:$0xff] %v6543
        %6576 = vst [vmem:[%s341 + $0x50] sm:$0xff] %v6544
        %6577 = vst [vmem:[%s341 + $0x58] sm:$0xff] %v6545
        %6578 = vst [vmem:[%s341 + $0x60] sm:$0xff] %v6546
        %6579 = vst [vmem:[%s341 + $0x68] sm:$0xff] %v6547
        %6580 = vst [vmem:[%s341 + $0x70] sm:$0xff] %v6548
        %6581 = vst [vmem:[%s341 + $0x78] sm:$0xff] %v6549
        %6582 = vst [vmem:[%s341 + $0x80] sm:$0xff] %v6550
        %6583 = vst [vmem:[%s341 + $0x88] sm:$0xff] %v6551
        %6584 = vst [vmem:[%s341 + $0x90] sm:$0xff] %v6552
        %6585 = vst [vmem:[%s341 + $0x98] sm:$0xff] %v6553
        %6586 = vst [vmem:[%s341 + $0xa0] sm:$0xff] %v6554
        %6587 = vst [vmem:[%s341 + $0xa8] sm:$0xff] %v6555
        %6588 = vst [vmem:[%s341 + $0xb0] sm:$0xff] %v6556
        %6589 = vst [vmem:[%s341 + $0xb8] sm:$0xff] %v6557
        %6590 = vst [vmem:[%s341 + $0xc0] sm:$0xff] %v6558
        %6591 = vst [vmem:[%s341 + $0xc8] sm:$0xff] %v6559
        %6592 = vst [vmem:[%s341 + $0xd0] sm:$0xff] %v6560
        %6593 = vst [vmem:[%s341 + $0xd8] sm:$0xff] %v6561
        %6594 = vst [vmem:[%s341 + $0xe0] sm:$0xff] %v6562
        %6595 = vst [vmem:[%s341 + $0xe8] sm:$0xff] %v6563
        %6596 = vst [vmem:[%s341 + $0xf0] sm:$0xff] %v6564
        %6597 = vst [vmem:[%s341 + $0xf8] sm:$0xff] %v6565
        %s6598 = sand.u32 %s190, 1
        %s6599 = scalar_lea.sflag [#allocation5], %s6598
        %s6600 = sand.u32 %s190, 1
        %s6601 = smul.addr %s6600, 256
        %s6602 = scalar_lea.vmem [#allocation9], %s6601
        // Predicated region
        $region61: #{tpu_custom_call.1} parent=47 // pred_check
          %p6603 = pneg %p200
        $region62: #{tpu_custom_call.1} parent=47 // pred_check_branch
          %6605 = sbr.rel (%p6603) target = $region64
        $region63: #{tpu_custom_call.1} parent=47 // pred_region
          %s6606 = smul.u32 32, %s25
          %s6608 = ssub.s32 4096, 4096
          %6609 = vsyncadd %s6599, %s6608
          %s6610 = smul.addr %s6606, 128
          %s6611 = scalar_lea.hbm %s7, %s6610
          %s6612 = sshll.u32 %s6602, 4
          %s6613 = int_to_ptr.vmem [resolvable:$true] %s6612
          %6618 = dma.vmem_to_hbm [thread:$0]  %s6613, 4096, %s6611, %s6599, 128, 128, 8
        $region64: #{tpu_custom_call.1} parent=47 // pred_fallthru
          _
      $region48: #{tpu_custom_call.1} parent=5 // pred_fallthru
        _
      %p6619 = scmp.le.s32.totalorder 2, %s20
      // Predicated region
      $region65: #{tpu_custom_call.1} parent=5 // pred_check
        %p6620 = pneg %p6619
      $region66: #{tpu_custom_call.1} parent=5 // pred_check_branch
        %6622 = sbr.rel (%p6620) target = $region68
      $region67: #{tpu_custom_call.1} parent=5 // pred_region
        %s6623 = ssub.s32 %s20, 2
        // Predicated region
        $region69: #{tpu_custom_call.1} parent=67 // pred_check
          %p6624 = pneg %p206
        $region70: #{tpu_custom_call.1} parent=67 // pred_check_branch
          %6626 = sbr.rel (%p6624) target = $region72
        $region71: #{tpu_custom_call.1} parent=67 // pred_region
          %s6627 = sand.u32 %s191, 1
          %s6628 = scalar_lea.sflag [#allocation5], %s6627
          %s6629 = sand.u32 %s191, 1
          %s6630 = smul.addr %s6629, 256
          %s6631 = scalar_lea.vmem [#allocation9], %s6630
          %6632 = dma.done %s6628, 4096
        $region72: #{tpu_custom_call.1} parent=67 // pred_fallthru
          _
      $region68: #{tpu_custom_call.1} parent=5 // pred_fallthru
        _
    $region6: #{tpu_custom_call.1} parent=1 // loop_footer
      %s24 = sadd.s32 1, %s20
    $region7: #{tpu_custom_call.1} parent=1 // loop_footer_branch
      %19 = sbr.rel target = $region3
    $region8: #{tpu_custom_call.1} parent=1 // loop_exit
      _
    %6633 = vsyncpa [#allocation4], 1
    %s6634 = scalar_lea.sflag [#allocation4], 1
    %6635 = vsyncpa %s6634, 1
    %6636 = vsyncpa [#allocation7], 1
    %6637 = vsyncpa [#allocation5], 1
    %s6638 = scalar_lea.sflag [#allocation5], 1
    %6639 = vsyncpa %s6638, 1

</llo_original>
